<compile_context>
chip_gen: v7x
topology: tpu7x:2x2x1
jax: 0.10.0
libtpu: 0.0.40
codegen_flags: <defaults>
</compile_context>

<pallas_src>
import functools

import jax
import jax.numpy as jnp
import numpy as np
from jax.experimental import pallas as pl


LANES = 384   # 6 * max hidden size (gru4: H=64)
SUB = 8       # sublane granularity


def _pad_up(n, m):
    return -(-n // m) * m


# ----------------------------------------------------------------------------
# Fused kernel: entire BiGRU network in a single grid step
# ----------------------------------------------------------------------------
def _fused_kernel(x_ref, w_ref, b_ref, o_ref, *, T, Bp, meta):

    def wmat(off, r, c):
        return w_ref[off:off + r, :c]          # static slice of packed weights

    def bias(off, c):
        return b_ref[off:off + 1, :c]          # (1, c), 8-row-aligned offsets

    def bigru(X, m):
        """Direction-fused bidirectional GRU layer.

        X: (T*Bp, F) layer input in natural time order, cols = [fwd | bwd]
        of the previous layer.  Packed gate column layout (width H each):
        [r_f | r_b | z_f | z_b | n_f | n_b].
        """
        F, H = m["F"], m["H"]
        wf = wmat(m["wf"], F, 6 * H)            # x -> fwd gate columns
        wb = wmat(m["wb"], F, 6 * H)            # x -> bwd gate columns
        whh = wmat(m["whh"], 2 * H, 6 * H)      # block-diag [h_f|h_b] -> gates
        bgi = bias(m["bgi"], 6 * H)             # b_ih (+ r/z parts of b_hh)
        bhn = bias(m["bhn"], 2 * H)             # n-gate b_hh (stays in loop)

        # Hoisted whole-sequence input projections (off the recurrent chain).
        gi_f = jnp.dot(X, wf, preferred_element_type=jnp.float32) + bgi
        gi_b = jnp.dot(X, wb, preferred_element_type=jnp.float32)

        bhn_b = jnp.broadcast_to(bhn, (Bp, 2 * H))   # broadcast once, not per step

        h = jnp.zeros((Bp, 2 * H), jnp.float32)      # [h_fwd | h_bwd]
        hs = []
        for t in range(T):                           # fully unrolled, static slices
            rf = t * Bp
            rb = (T - 1 - t) * Bp
            g = gi_f[rf:rf + Bp, :] + gi_b[rb:rb + Bp, :]
            gh = jnp.dot(h, whh, preferred_element_type=jnp.float32)
            rz = jax.nn.sigmoid(g[:, :4 * H] + gh[:, :4 * H])   # one EUP call for r&z
            r = rz[:, :2 * H]
            z = rz[:, 2 * H:4 * H]
            n = jnp.tanh(g[:, 4 * H:] + r * (gh[:, 4 * H:] + bhn_b))
            h = (1.0 - z) * n + z * h
            hs.append(h)                             # keep in registers

        # Re-assemble time-major output: Y[t] = [h_fwd(t) | h_bwd(t)].
        col = jax.lax.broadcasted_iota(jnp.int32, (Bp, 2 * H), 1)
        fwd_cols = col < H
        rows = [jnp.where(fwd_cols, hs[t], hs[T - 1 - t]) for t in range(T)]
        return jnp.concatenate(rows, axis=0)         # (T*Bp, 2H)

    x = x_ref[...]                                   # (T*Bp, Cp)

    y1 = bigru(x, meta["gru1"])
    y2 = bigru(y1, meta["gru2"])

    dm = meta["dense"]
    wd = wmat(dm["w"], dm["F"], dm["O"])
    d = jnp.dot(y2, wd, preferred_element_type=jnp.float32) + bias(dm["b"], dm["O"])
    d = jnp.maximum(d, 0.0)
    # Dropout(p=0.327) is identity in eval/inference mode.

    y3 = bigru(d, meta["gru3"])
    y4 = bigru(y3, meta["gru4"])

    om = meta["out"]
    wo = wmat(om["w"], om["F"], om["O"])
    out = jnp.dot(y4, wo, preferred_element_type=jnp.float32) + bias(om["b"], om["O"])
    o_ref[...] = out.astype(o_ref.dtype)


# ----------------------------------------------------------------------------
# One-time parameter packing (direction-fused, gate-fused, pre-transposed)
# ----------------------------------------------------------------------------
def pack_params(params):
    w_blocks, w_off, b_rows = [], [0], []

    def add_w(a):
        a = np.asarray(a, np.float32)
        r, c = a.shape
        rp = _pad_up(r, SUB)
        buf = np.zeros((rp, LANES), np.float32)
        buf[:r, :c] = a
        off = w_off[0]
        w_blocks.append(buf)
        w_off[0] += rp
        return off

    def add_b(v):
        v = np.asarray(v, np.float32).reshape(-1)
        row = np.zeros((LANES,), np.float32)
        row[:v.shape[0]] = v
        off = SUB * len(b_rows)
        b_rows.append(row)
        return off

    def pack_gru(p, H):
        def split3(a):
            return a[:H], a[H:2 * H], a[2 * H:3 * H]

        f, b = p["fwd"], p["bwd"]
        wih_f = np.asarray(f["w_ih"], np.float32); wih_b = np.asarray(b["w_ih"], np.float32)
        whh_f = np.asarray(f["w_hh"], np.float32); whh_b = np.asarray(b["w_hh"], np.float32)
        bih_f = np.asarray(f["b_ih"], np.float32); bih_b = np.asarray(b["b_ih"], np.float32)
        bhh_f = np.asarray(f["b_hh"], np.float32); bhh_b = np.asarray(b["b_hh"], np.float32)
        F = wih_f.shape[1]

        # Fused column layout: [r_f | r_b | z_f | z_b | n_f | n_b]
        irf, izf, inf_ = split3(wih_f)
        irb, izb, inb = split3(wih_b)
        Wf = np.zeros((F, 6 * H), np.float32)
        Wb = np.zeros((F, 6 * H), np.float32)
        Wf[:, 0 * H:1 * H] = irf.T; Wf[:, 2 * H:3 * H] = izf.T; Wf[:, 4 * H:5 * H] = inf_.T
        Wb[:, 1 * H:2 * H] = irb.T; Wb[:, 3 * H:4 * H] = izb.T; Wb[:, 5 * H:6 * H] = inb.T

        hrf, hzf, hnf = split3(whh_f)
        hrb, hzb, hnb = split3(whh_b)
        Whh = np.zeros((2 * H, 6 * H), np.float32)          # block-diagonal
        Whh[0:H, 0 * H:1 * H] = hrf.T; Whh[0:H, 2 * H:3 * H] = hzf.T; Whh[0:H, 4 * H:5 * H] = hnf.T
        Whh[H:2 * H, 1 * H:2 * H] = hrb.T; Whh[H:2 * H, 3 * H:4 * H] = hzb.T; Whh[H:2 * H, 5 * H:6 * H] = hnb.T

        brf, bzf, bnf = split3(bih_f)
        brb, bzb, bnb = split3(bih_b)
        hbrf, hbzf, hbnf = split3(bhh_f)
        hbrb, hbzb, hbnb = split3(bhh_b)
        # r/z parts of b_hh fold into the hoisted input-projection bias;
        # the n-gate b_hh must stay inside the recurrence (multiplied by r).
        bgi = np.concatenate([brf + hbrf, brb + hbrb,
                              bzf + hbzf, bzb + hbzb,
                              bnf, bnb])
        bhn = np.concatenate([hbnf, hbnb])

        return dict(F=int(_pad_up(F, SUB)), H=int(H),
                    wf=add_w(Wf), wb=add_w(Wb), whh=add_w(Whh),
                    bgi=add_b(bgi), bhn=add_b(bhn))

    meta = {}
    meta["gru1"] = pack_gru(params["gru1"], 16)
    meta["gru2"] = pack_gru(params["gru2"], 16)
    dw = np.asarray(params["dense"]["w"], np.float32)        # (8, 32)
    meta["dense"] = dict(F=int(dw.shape[1]), O=int(dw.shape[0]),
                         w=add_w(dw.T), b=add_b(params["dense"]["b"]))
    meta["gru3"] = pack_gru(params["gru3"], 16)
    meta["gru4"] = pack_gru(params["gru4"], 64)
    ow = np.asarray(params["out"]["w"], np.float32)          # (n_classes, 128)
    meta["out"] = dict(F=int(ow.shape[1]), O=int(ow.shape[0]),
                       w=add_w(ow.T), b=add_b(params["out"]["b"]))

    W_all = np.concatenate(w_blocks, axis=0)                 # (rows, 384)
    B_all = np.zeros((SUB * len(b_rows), LANES), np.float32)
    for k, row in enumerate(b_rows):
        B_all[SUB * k, :] = row
    return jnp.asarray(W_all), jnp.asarray(B_all), meta


# ----------------------------------------------------------------------------
# Wrapper: single pallas_call for the whole forward pass
# ----------------------------------------------------------------------------
def bigru_forward(x, w_all, b_all, *, meta):
    T, B, C = x.shape
    Bp = _pad_up(B, SUB)                     # batch padded to 8 sublanes
    Cp = meta["gru1"]["F"]                   # channels padded to 8
    n_classes = meta["out"]["O"]

    xp = jnp.zeros((T, Bp, Cp), jnp.float32)
    xp = xp.at[:, :B, :C].set(x.astype(jnp.float32))
    x2 = xp.reshape(T * Bp, Cp)

    kern = functools.partial(_fused_kernel, T=T, Bp=Bp, meta=meta)
    out2 = pl.pallas_call(
        kern,
        out_shape=jax.ShapeDtypeStruct((T * Bp, n_classes), jnp.float32),
        grid=(1,),
        in_specs=[pl.BlockSpec((T * Bp, Cp), lambda i: (0, 0)),
                  pl.BlockSpec(w_all.shape, lambda i: (0, 0)),
                  pl.BlockSpec(b_all.shape, lambda i: (0, 0))],
        out_specs=pl.BlockSpec((T * Bp, n_classes), lambda i: (0, 0)),
    )(x2, w_all, b_all)
    return out2.reshape(T, Bp, n_classes)[:, :B, :]


# ----------------------------------------------------------------------------
# Deterministic parameter initialization (PyTorch-style uniform)
# ----------------------------------------------------------------------------
def _init_gru_dir(key, input_size, hidden_size):
    k = 1.0 / np.sqrt(hidden_size)
    ks = jax.random.split(key, 4)
    u = lambda kk, s: jax.random.uniform(kk, s, jnp.float32, -k, k)
    return dict(w_ih=u(ks[0], (3 * hidden_size, input_size)),
                w_hh=u(ks[1], (3 * hidden_size, hidden_size)),
                b_ih=u(ks[2], (3 * hidden_size,)),
                b_hh=u(ks[3], (3 * hidden_size,)))


def _init_bigru(key, input_size, hidden_size):
    k1, k2 = jax.random.split(key)
    return dict(fwd=_init_gru_dir(k1, input_size, hidden_size),
                bwd=_init_gru_dir(k2, input_size, hidden_size))


def _init_linear(key, in_f, out_f):
    k = 1.0 / np.sqrt(in_f)
    k1, k2 = jax.random.split(key)
    u = lambda kk, s: jax.random.uniform(kk, s, jnp.float32, -k, k)
    return dict(w=u(k1, (out_f, in_f)), b=u(k2, (out_f,)))


def init_params(key, n_channels, n_classes):
    ks = jax.random.split(key, 6)
    return dict(
        gru1=_init_bigru(ks[0], n_channels, 16),
        gru2=_init_bigru(ks[1], 32, 16),
        dense=_init_linear(ks[2], 32, 8),
        gru3=_init_bigru(ks[3], 8, 16),
        gru4=_init_bigru(ks[4], 32, 64),
        out=_init_linear(ks[5], 128, n_classes),
    )


# ----------------------------------------------------------------------------
# Pure-JAX reference (for correctness check)
# ----------------------------------------------------------------------------
def _ref_gru_dir(x, p, reverse):
    w_ih, w_hh, b_ih, b_hh = p["w_ih"], p["w_hh"], p["b_ih"], p["b_hh"]
    T, B, _ = x.shape
    H = w_hh.shape[1]
    xs = x[::-1] if reverse else x

    def step(h, xt):
        gi = xt @ w_ih.T + b_ih
        gh = h @ w_hh.T + b_hh
        i_r, i_z, i_n = jnp.split(gi, 3, axis=-1)
        h_r, h_z, h_n = jnp.split(gh, 3, axis=-1)
        r = jax.nn.sigmoid(i_r + h_r)
        z = jax.nn.sigmoid(i_z + h_z)
        n = jnp.tanh(i_n + r * h_n)
        h_new = (1.0 - z) * n + z * h
        return h_new, h_new

    _, ys = jax.lax.scan(step, jnp.zeros((B, H), jnp.float32), xs)
    return ys[::-1] if reverse else ys


def _ref_bigru(x, p):
    return jnp.concatenate([_ref_gru_dir(x, p["fwd"], False),
                            _ref_gru_dir(x, p["bwd"], True)], axis=-1)


def ref_forward(x, params):
    x = _ref_bigru(x, params["gru1"])
    x = _ref_bigru(x, params["gru2"])
    x = jnp.maximum(x @ params["dense"]["w"].T + params["dense"]["b"], 0.0)
    x = _ref_bigru(x, params["gru3"])
    x = _ref_bigru(x, params["gru4"])
    x = x @ params["out"]["w"].T + params["out"]["b"]
    return x


if __name__ == "__main__":
    n_channels, n_classes = 4, 5
    seq_len, batch = 8, 2

    key = jax.random.PRNGKey(0)
    k_params, k_x = jax.random.split(key)
    params = init_params(k_params, n_channels, n_classes)
    x = jax.random.normal(k_x, (seq_len, batch, n_channels), jnp.float32)

    w_all, b_all, meta = pack_params(params)        # one-time weight packing
    fwd = jax.jit(functools.partial(bigru_forward, meta=meta))

    out = jax.block_until_ready(fwd(x, w_all, b_all))
    assert out.shape == (seq_len, batch, n_classes), out.shape

    ref = jax.block_until_ready(ref_forward(x, params))
    max_diff = float(jnp.max(jnp.abs(out - ref)))
    if max_diff > 1e-4:
        raise AssertionError(f"Pallas output mismatch, max abs diff={max_diff}")

    print("KERNEL_OK")
</pallas_src>

<mosaic_0001>
module attributes {stable_mosaic.version = 11 : i64} {
  func.func @_fused_kernel(%arg0: i32, %arg1: memref<64x8xf32, #tpu.memory_space<vmem>>, %arg2: memref<544x384xf32, #tpu.memory_space<vmem>>, %arg3: memref<80x384xf32, #tpu.memory_space<vmem>>, %arg4: memref<64x5xf32, #tpu.memory_space<vmem>>) attributes {dimension_semantics = [#tpu.dimension_semantics<arbitrary>], iteration_bounds = array<i64: 1>, scalar_prefetch = 0 : i64, scratch_operands = 0 : i64, tpu.core_type = #tpu.core_type<tc>, window_params = [{pipeline_mode = #tpu.pipeline_mode<synchronous>, transform_indices = @transform_0, window_bounds = array<i64: 64, 8>}, {pipeline_mode = #tpu.pipeline_mode<synchronous>, transform_indices = @transform_1, window_bounds = array<i64: 544, 384>}, {pipeline_mode = #tpu.pipeline_mode<synchronous>, transform_indices = @transform_2, window_bounds = array<i64: 80, 384>}, {pipeline_mode = #tpu.pipeline_mode<synchronous>, transform_indices = @transform_3, window_bounds = array<i64: 64, 5>}]} {
    %c0 = arith.constant 0 : index
    %c0_0 = arith.constant 0 : index
    %0 = vector.load %arg1[%c0, %c0_0] : memref<64x8xf32, #tpu.memory_space<vmem>>, vector<64x8xf32>
    %c0_1 = arith.constant 0 : index
    %c0_2 = arith.constant 0 : index
    %1 = vector.load %arg2[%c0_1, %c0_2] : memref<544x384xf32, #tpu.memory_space<vmem>>, vector<8x96xf32>
    %c8 = arith.constant 8 : index
    %c0_3 = arith.constant 0 : index
    %2 = vector.load %arg2[%c8, %c0_3] : memref<544x384xf32, #tpu.memory_space<vmem>>, vector<8x96xf32>
    %c16 = arith.constant 16 : index
    %c0_4 = arith.constant 0 : index
    %3 = vector.load %arg2[%c16, %c0_4] : memref<544x384xf32, #tpu.memory_space<vmem>>, vector<32x96xf32>
    %c0_5 = arith.constant 0 : index
    %c0_6 = arith.constant 0 : index
    %4 = vector.load %arg3[%c0_5, %c0_6] : memref<80x384xf32, #tpu.memory_space<vmem>>, vector<1x96xf32>
    %c8_7 = arith.constant 8 : index
    %c0_8 = arith.constant 0 : index
    %5 = vector.load %arg3[%c8_7, %c0_8] : memref<80x384xf32, #tpu.memory_space<vmem>>, vector<1x32xf32>
    %cst = arith.constant dense<0.000000e+00> : vector<64x96xf32>
    %6 = tpu.matmul %0, %1, %cst {dimension_numbers = #tpu.dot_dimension_numbers<[1], [0], [0], [1], [0, 0, 1, 1], [], []>} : vector<64x8xf32>, vector<8x96xf32>, vector<64x96xf32> -> vector<64x96xf32>
    %7 = vector.broadcast %4 : vector<1x96xf32> to vector<64x96xf32>
    %8 = arith.addf %6, %7 : vector<64x96xf32>
    %cst_9 = arith.constant dense<0.000000e+00> : vector<64x96xf32>
    %9 = tpu.matmul %0, %2, %cst_9 {dimension_numbers = #tpu.dot_dimension_numbers<[1], [0], [0], [1], [0, 0, 1, 1], [], []>} : vector<64x8xf32>, vector<8x96xf32>, vector<64x96xf32> -> vector<64x96xf32>
    %10 = vector.shape_cast %5 : vector<1x32xf32> to vector<1x32xf32>
    %11 = vector.broadcast %10 : vector<1x32xf32> to vector<8x32xf32>
    %cst_10 = arith.constant 0.000000e+00 : f32
    %12 = vector.broadcast %cst_10 : f32 to vector<8x32xf32>
    %13 = vector.extract_strided_slice %8 {offsets = [0, 0], sizes = [8, 96], strides = [1, 1]} : vector<64x96xf32> to vector<8x96xf32>
    %14 = vector.extract_strided_slice %9 {offsets = [56, 0], sizes = [8, 96], strides = [1, 1]} : vector<64x96xf32> to vector<8x96xf32>
    %15 = arith.addf %13, %14 : vector<8x96xf32>
    %cst_11 = arith.constant dense<0.000000e+00> : vector<8x96xf32>
    %16 = tpu.matmul %12, %3, %cst_11 {dimension_numbers = #tpu.dot_dimension_numbers<[1], [0], [0], [1], [0, 0, 1, 1], [], []>} : vector<8x32xf32>, vector<32x96xf32>, vector<8x96xf32> -> vector<8x96xf32>
    %17 = vector.extract_strided_slice %15 {offsets = [0, 0], sizes = [8, 64], strides = [1, 1]} : vector<8x96xf32> to vector<8x64xf32>
    %18 = vector.extract_strided_slice %16 {offsets = [0, 0], sizes = [8, 64], strides = [1, 1]} : vector<8x96xf32> to vector<8x64xf32>
    %19 = arith.addf %17, %18 : vector<8x64xf32>
    %20 = arith.negf %19 : vector<8x64xf32>
    %21 = math.exp %20 : vector<8x64xf32>
    %cst_12 = arith.constant 1.000000e+00 : f32
    %22 = vector.broadcast %cst_12 : f32 to vector<8x64xf32>
    %23 = arith.addf %22, %21 : vector<8x64xf32>
    %24 = arith.divf %22, %23 : vector<8x64xf32>
    %25 = vector.extract_strided_slice %24 {offsets = [0, 0], sizes = [8, 32], strides = [1, 1]} : vector<8x64xf32> to vector<8x32xf32>
    %26 = vector.extract_strided_slice %24 {offsets = [0, 32], sizes = [8, 32], strides = [1, 1]} : vector<8x64xf32> to vector<8x32xf32>
    %27 = vector.extract_strided_slice %15 {offsets = [0, 64], sizes = [8, 32], strides = [1, 1]} : vector<8x96xf32> to vector<8x32xf32>
    %28 = vector.extract_strided_slice %16 {offsets = [0, 64], sizes = [8, 32], strides = [1, 1]} : vector<8x96xf32> to vector<8x32xf32>
    %29 = arith.addf %28, %11 : vector<8x32xf32>
    %30 = arith.mulf %25, %29 : vector<8x32xf32>
    %31 = arith.addf %27, %30 : vector<8x32xf32>
    %32 = math.tanh %31 : vector<8x32xf32>
    %cst_13 = arith.constant 1.000000e+00 : f32
    %33 = vector.broadcast %cst_13 : f32 to vector<8x32xf32>
    %34 = arith.subf %33, %26 : vector<8x32xf32>
    %35 = arith.mulf %34, %32 : vector<8x32xf32>
    %36 = arith.mulf %26, %12 : vector<8x32xf32>
    %37 = arith.addf %35, %36 : vector<8x32xf32>
    %38 = vector.extract_strided_slice %8 {offsets = [8, 0], sizes = [8, 96], strides = [1, 1]} : vector<64x96xf32> to vector<8x96xf32>
    %39 = vector.extract_strided_slice %9 {offsets = [48, 0], sizes = [8, 96], strides = [1, 1]} : vector<64x96xf32> to vector<8x96xf32>
    %40 = arith.addf %38, %39 : vector<8x96xf32>
    %cst_14 = arith.constant dense<0.000000e+00> : vector<8x96xf32>
    %41 = tpu.matmul %37, %3, %cst_14 {dimension_numbers = #tpu.dot_dimension_numbers<[1], [0], [0], [1], [0, 0, 1, 1], [], []>} : vector<8x32xf32>, vector<32x96xf32>, vector<8x96xf32> -> vector<8x96xf32>
    %42 = vector.extract_strided_slice %40 {offsets = [0, 0], sizes = [8, 64], strides = [1, 1]} : vector<8x96xf32> to vector<8x64xf32>
    %43 = vector.extract_strided_slice %41 {offsets = [0, 0], sizes = [8, 64], strides = [1, 1]} : vector<8x96xf32> to vector<8x64xf32>
    %44 = arith.addf %42, %43 : vector<8x64xf32>
    %45 = arith.negf %44 : vector<8x64xf32>
    %46 = math.exp %45 : vector<8x64xf32>
    %cst_15 = arith.constant 1.000000e+00 : f32
    %47 = vector.broadcast %cst_15 : f32 to vector<8x64xf32>
    %48 = arith.addf %47, %46 : vector<8x64xf32>
    %49 = arith.divf %47, %48 : vector<8x64xf32>
    %50 = vector.extract_strided_slice %49 {offsets = [0, 0], sizes = [8, 32], strides = [1, 1]} : vector<8x64xf32> to vector<8x32xf32>
    %51 = vector.extract_strided_slice %49 {offsets = [0, 32], sizes = [8, 32], strides = [1, 1]} : vector<8x64xf32> to vector<8x32xf32>
    %52 = vector.extract_strided_slice %40 {offsets = [0, 64], sizes = [8, 32], strides = [1, 1]} : vector<8x96xf32> to vector<8x32xf32>
    %53 = vector.extract_strided_slice %41 {offsets = [0, 64], sizes = [8, 32], strides = [1, 1]} : vector<8x96xf32> to vector<8x32xf32>
    %54 = arith.addf %53, %11 : vector<8x32xf32>
    %55 = arith.mulf %50, %54 : vector<8x32xf32>
    %56 = arith.addf %52, %55 : vector<8x32xf32>
    %57 = math.tanh %56 : vector<8x32xf32>
    %cst_16 = arith.constant 1.000000e+00 : f32
    %58 = vector.broadcast %cst_16 : f32 to vector<8x32xf32>
    %59 = arith.subf %58, %51 : vector<8x32xf32>
    %60 = arith.mulf %59, %57 : vector<8x32xf32>
    %61 = arith.mulf %51, %37 : vector<8x32xf32>
    %62 = arith.addf %60, %61 : vector<8x32xf32>
    %63 = vector.extract_strided_slice %8 {offsets = [16, 0], sizes = [8, 96], strides = [1, 1]} : vector<64x96xf32> to vector<8x96xf32>
    %64 = vector.extract_strided_slice %9 {offsets = [40, 0], sizes = [8, 96], strides = [1, 1]} : vector<64x96xf32> to vector<8x96xf32>
    %65 = arith.addf %63, %64 : vector<8x96xf32>
    %cst_17 = arith.constant dense<0.000000e+00> : vector<8x96xf32>
    %66 = tpu.matmul %62, %3, %cst_17 {dimension_numbers = #tpu.dot_dimension_numbers<[1], [0], [0], [1], [0, 0, 1, 1], [], []>} : vector<8x32xf32>, vector<32x96xf32>, vector<8x96xf32> -> vector<8x96xf32>
    %67 = vector.extract_strided_slice %65 {offsets = [0, 0], sizes = [8, 64], strides = [1, 1]} : vector<8x96xf32> to vector<8x64xf32>
    %68 = vector.extract_strided_slice %66 {offsets = [0, 0], sizes = [8, 64], strides = [1, 1]} : vector<8x96xf32> to vector<8x64xf32>
    %69 = arith.addf %67, %68 : vector<8x64xf32>
    %70 = arith.negf %69 : vector<8x64xf32>
    %71 = math.exp %70 : vector<8x64xf32>
    %cst_18 = arith.constant 1.000000e+00 : f32
    %72 = vector.broadcast %cst_18 : f32 to vector<8x64xf32>
    %73 = arith.addf %72, %71 : vector<8x64xf32>
    %74 = arith.divf %72, %73 : vector<8x64xf32>
    %75 = vector.extract_strided_slice %74 {offsets = [0, 0], sizes = [8, 32], strides = [1, 1]} : vector<8x64xf32> to vector<8x32xf32>
    %76 = vector.extract_strided_slice %74 {offsets = [0, 32], sizes = [8, 32], strides = [1, 1]} : vector<8x64xf32> to vector<8x32xf32>
    %77 = vector.extract_strided_slice %65 {offsets = [0, 64], sizes = [8, 32], strides = [1, 1]} : vector<8x96xf32> to vector<8x32xf32>
    %78 = vector.extract_strided_slice %66 {offsets = [0, 64], sizes = [8, 32], strides = [1, 1]} : vector<8x96xf32> to vector<8x32xf32>
    %79 = arith.addf %78, %11 : vector<8x32xf32>
    %80 = arith.mulf %75, %79 : vector<8x32xf32>
    %81 = arith.addf %77, %80 : vector<8x32xf32>
    %82 = math.tanh %81 : vector<8x32xf32>
    %cst_19 = arith.constant 1.000000e+00 : f32
    %83 = vector.broadcast %cst_19 : f32 to vector<8x32xf32>
    %84 = arith.subf %83, %76 : vector<8x32xf32>
    %85 = arith.mulf %84, %82 : vector<8x32xf32>
    %86 = arith.mulf %76, %62 : vector<8x32xf32>
    %87 = arith.addf %85, %86 : vector<8x32xf32>
    %88 = vector.extract_strided_slice %8 {offsets = [24, 0], sizes = [8, 96], strides = [1, 1]} : vector<64x96xf32> to vector<8x96xf32>
    %89 = vector.extract_strided_slice %9 {offsets = [32, 0], sizes = [8, 96], strides = [1, 1]} : vector<64x96xf32> to vector<8x96xf32>
    %90 = arith.addf %88, %89 : vector<8x96xf32>
    %cst_20 = arith.constant dense<0.000000e+00> : vector<8x96xf32>
    %91 = tpu.matmul %87, %3, %cst_20 {dimension_numbers = #tpu.dot_dimension_numbers<[1], [0], [0], [1], [0, 0, 1, 1], [], []>} : vector<8x32xf32>, vector<32x96xf32>, vector<8x96xf32> -> vector<8x96xf32>
    %92 = vector.extract_strided_slice %90 {offsets = [0, 0], sizes = [8, 64], strides = [1, 1]} : vector<8x96xf32> to vector<8x64xf32>
    %93 = vector.extract_strided_slice %91 {offsets = [0, 0], sizes = [8, 64], strides = [1, 1]} : vector<8x96xf32> to vector<8x64xf32>
    %94 = arith.addf %92, %93 : vector<8x64xf32>
    %95 = arith.negf %94 : vector<8x64xf32>
    %96 = math.exp %95 : vector<8x64xf32>
    %cst_21 = arith.constant 1.000000e+00 : f32
    %97 = vector.broadcast %cst_21 : f32 to vector<8x64xf32>
    %98 = arith.addf %97, %96 : vector<8x64xf32>
    %99 = arith.divf %97, %98 : vector<8x64xf32>
    %100 = vector.extract_strided_slice %99 {offsets = [0, 0], sizes = [8, 32], strides = [1, 1]} : vector<8x64xf32> to vector<8x32xf32>
    %101 = vector.extract_strided_slice %99 {offsets = [0, 32], sizes = [8, 32], strides = [1, 1]} : vector<8x64xf32> to vector<8x32xf32>
    %102 = vector.extract_strided_slice %90 {offsets = [0, 64], sizes = [8, 32], strides = [1, 1]} : vector<8x96xf32> to vector<8x32xf32>
    %103 = vector.extract_strided_slice %91 {offsets = [0, 64], sizes = [8, 32], strides = [1, 1]} : vector<8x96xf32> to vector<8x32xf32>
    %104 = arith.addf %103, %11 : vector<8x32xf32>
    %105 = arith.mulf %100, %104 : vector<8x32xf32>
    %106 = arith.addf %102, %105 : vector<8x32xf32>
    %107 = math.tanh %106 : vector<8x32xf32>
    %cst_22 = arith.constant 1.000000e+00 : f32
    %108 = vector.broadcast %cst_22 : f32 to vector<8x32xf32>
    %109 = arith.subf %108, %101 : vector<8x32xf32>
    %110 = arith.mulf %109, %107 : vector<8x32xf32>
    %111 = arith.mulf %101, %87 : vector<8x32xf32>
    %112 = arith.addf %110, %111 : vector<8x32xf32>
    %113 = vector.extract_strided_slice %8 {offsets = [32, 0], sizes = [8, 96], strides = [1, 1]} : vector<64x96xf32> to vector<8x96xf32>
    %114 = vector.extract_strided_slice %9 {offsets = [24, 0], sizes = [8, 96], strides = [1, 1]} : vector<64x96xf32> to vector<8x96xf32>
    %115 = arith.addf %113, %114 : vector<8x96xf32>
    %cst_23 = arith.constant dense<0.000000e+00> : vector<8x96xf32>
    %116 = tpu.matmul %112, %3, %cst_23 {dimension_numbers = #tpu.dot_dimension_numbers<[1], [0], [0], [1], [0, 0, 1, 1], [], []>} : vector<8x32xf32>, vector<32x96xf32>, vector<8x96xf32> -> vector<8x96xf32>
    %117 = vector.extract_strided_slice %115 {offsets = [0, 0], sizes = [8, 64], strides = [1, 1]} : vector<8x96xf32> to vector<8x64xf32>
    %118 = vector.extract_strided_slice %116 {offsets = [0, 0], sizes = [8, 64], strides = [1, 1]} : vector<8x96xf32> to vector<8x64xf32>
    %119 = arith.addf %117, %118 : vector<8x64xf32>
    %120 = arith.negf %119 : vector<8x64xf32>
    %121 = math.exp %120 : vector<8x64xf32>
    %cst_24 = arith.constant 1.000000e+00 : f32
    %122 = vector.broadcast %cst_24 : f32 to vector<8x64xf32>
    %123 = arith.addf %122, %121 : vector<8x64xf32>
    %124 = arith.divf %122, %123 : vector<8x64xf32>
    %125 = vector.extract_strided_slice %124 {offsets = [0, 0], sizes = [8, 32], strides = [1, 1]} : vector<8x64xf32> to vector<8x32xf32>
    %126 = vector.extract_strided_slice %124 {offsets = [0, 32], sizes = [8, 32], strides = [1, 1]} : vector<8x64xf32> to vector<8x32xf32>
    %127 = vector.extract_strided_slice %115 {offsets = [0, 64], sizes = [8, 32], strides = [1, 1]} : vector<8x96xf32> to vector<8x32xf32>
    %128 = vector.extract_strided_slice %116 {offsets = [0, 64], sizes = [8, 32], strides = [1, 1]} : vector<8x96xf32> to vector<8x32xf32>
    %129 = arith.addf %128, %11 : vector<8x32xf32>
    %130 = arith.mulf %125, %129 : vector<8x32xf32>
    %131 = arith.addf %127, %130 : vector<8x32xf32>
    %132 = math.tanh %131 : vector<8x32xf32>
    %cst_25 = arith.constant 1.000000e+00 : f32
    %133 = vector.broadcast %cst_25 : f32 to vector<8x32xf32>
    %134 = arith.subf %133, %126 : vector<8x32xf32>
    %135 = arith.mulf %134, %132 : vector<8x32xf32>
    %136 = arith.mulf %126, %112 : vector<8x32xf32>
    %137 = arith.addf %135, %136 : vector<8x32xf32>
    %138 = vector.extract_strided_slice %8 {offsets = [40, 0], sizes = [8, 96], strides = [1, 1]} : vector<64x96xf32> to vector<8x96xf32>
    %139 = vector.extract_strided_slice %9 {offsets = [16, 0], sizes = [8, 96], strides = [1, 1]} : vector<64x96xf32> to vector<8x96xf32>
    %140 = arith.addf %138, %139 : vector<8x96xf32>
    %cst_26 = arith.constant dense<0.000000e+00> : vector<8x96xf32>
    %141 = tpu.matmul %137, %3, %cst_26 {dimension_numbers = #tpu.dot_dimension_numbers<[1], [0], [0], [1], [0, 0, 1, 1], [], []>} : vector<8x32xf32>, vector<32x96xf32>, vector<8x96xf32> -> vector<8x96xf32>
    %142 = vector.extract_strided_slice %140 {offsets = [0, 0], sizes = [8, 64], strides = [1, 1]} : vector<8x96xf32> to vector<8x64xf32>
    %143 = vector.extract_strided_slice %141 {offsets = [0, 0], sizes = [8, 64], strides = [1, 1]} : vector<8x96xf32> to vector<8x64xf32>
    %144 = arith.addf %142, %143 : vector<8x64xf32>
    %145 = arith.negf %144 : vector<8x64xf32>
    %146 = math.exp %145 : vector<8x64xf32>
    %cst_27 = arith.constant 1.000000e+00 : f32
    %147 = vector.broadcast %cst_27 : f32 to vector<8x64xf32>
    %148 = arith.addf %147, %146 : vector<8x64xf32>
    %149 = arith.divf %147, %148 : vector<8x64xf32>
    %150 = vector.extract_strided_slice %149 {offsets = [0, 0], sizes = [8, 32], strides = [1, 1]} : vector<8x64xf32> to vector<8x32xf32>
    %151 = vector.extract_strided_slice %149 {offsets = [0, 32], sizes = [8, 32], strides = [1, 1]} : vector<8x64xf32> to vector<8x32xf32>
    %152 = vector.extract_strided_slice %140 {offsets = [0, 64], sizes = [8, 32], strides = [1, 1]} : vector<8x96xf32> to vector<8x32xf32>
    %153 = vector.extract_strided_slice %141 {offsets = [0, 64], sizes = [8, 32], strides = [1, 1]} : vector<8x96xf32> to vector<8x32xf32>
    %154 = arith.addf %153, %11 : vector<8x32xf32>
    %155 = arith.mulf %150, %154 : vector<8x32xf32>
    %156 = arith.addf %152, %155 : vector<8x32xf32>
    %157 = math.tanh %156 : vector<8x32xf32>
    %cst_28 = arith.constant 1.000000e+00 : f32
    %158 = vector.broadcast %cst_28 : f32 to vector<8x32xf32>
    %159 = arith.subf %158, %151 : vector<8x32xf32>
    %160 = arith.mulf %159, %157 : vector<8x32xf32>
    %161 = arith.mulf %151, %137 : vector<8x32xf32>
    %162 = arith.addf %160, %161 : vector<8x32xf32>
    %163 = vector.extract_strided_slice %8 {offsets = [48, 0], sizes = [8, 96], strides = [1, 1]} : vector<64x96xf32> to vector<8x96xf32>
    %164 = vector.extract_strided_slice %9 {offsets = [8, 0], sizes = [8, 96], strides = [1, 1]} : vector<64x96xf32> to vector<8x96xf32>
    %165 = arith.addf %163, %164 : vector<8x96xf32>
    %cst_29 = arith.constant dense<0.000000e+00> : vector<8x96xf32>
    %166 = tpu.matmul %162, %3, %cst_29 {dimension_numbers = #tpu.dot_dimension_numbers<[1], [0], [0], [1], [0, 0, 1, 1], [], []>} : vector<8x32xf32>, vector<32x96xf32>, vector<8x96xf32> -> vector<8x96xf32>
    %167 = vector.extract_strided_slice %165 {offsets = [0, 0], sizes = [8, 64], strides = [1, 1]} : vector<8x96xf32> to vector<8x64xf32>
    %168 = vector.extract_strided_slice %166 {offsets = [0, 0], sizes = [8, 64], strides = [1, 1]} : vector<8x96xf32> to vector<8x64xf32>
    %169 = arith.addf %167, %168 : vector<8x64xf32>
    %170 = arith.negf %169 : vector<8x64xf32>
    %171 = math.exp %170 : vector<8x64xf32>
    %cst_30 = arith.constant 1.000000e+00 : f32
    %172 = vector.broadcast %cst_30 : f32 to vector<8x64xf32>
    %173 = arith.addf %172, %171 : vector<8x64xf32>
    %174 = arith.divf %172, %173 : vector<8x64xf32>
    %175 = vector.extract_strided_slice %174 {offsets = [0, 0], sizes = [8, 32], strides = [1, 1]} : vector<8x64xf32> to vector<8x32xf32>
    %176 = vector.extract_strided_slice %174 {offsets = [0, 32], sizes = [8, 32], strides = [1, 1]} : vector<8x64xf32> to vector<8x32xf32>
    %177 = vector.extract_strided_slice %165 {offsets = [0, 64], sizes = [8, 32], strides = [1, 1]} : vector<8x96xf32> to vector<8x32xf32>
    %178 = vector.extract_strided_slice %166 {offsets = [0, 64], sizes = [8, 32], strides = [1, 1]} : vector<8x96xf32> to vector<8x32xf32>
    %179 = arith.addf %178, %11 : vector<8x32xf32>
    %180 = arith.mulf %175, %179 : vector<8x32xf32>
    %181 = arith.addf %177, %180 : vector<8x32xf32>
    %182 = math.tanh %181 : vector<8x32xf32>
    %cst_31 = arith.constant 1.000000e+00 : f32
    %183 = vector.broadcast %cst_31 : f32 to vector<8x32xf32>
    %184 = arith.subf %183, %176 : vector<8x32xf32>
    %185 = arith.mulf %184, %182 : vector<8x32xf32>
    %186 = arith.mulf %176, %162 : vector<8x32xf32>
    %187 = arith.addf %185, %186 : vector<8x32xf32>
    %188 = vector.extract_strided_slice %8 {offsets = [56, 0], sizes = [8, 96], strides = [1, 1]} : vector<64x96xf32> to vector<8x96xf32>
    %189 = vector.extract_strided_slice %9 {offsets = [0, 0], sizes = [8, 96], strides = [1, 1]} : vector<64x96xf32> to vector<8x96xf32>
    %190 = arith.addf %188, %189 : vector<8x96xf32>
    %cst_32 = arith.constant dense<0.000000e+00> : vector<8x96xf32>
    %191 = tpu.matmul %187, %3, %cst_32 {dimension_numbers = #tpu.dot_dimension_numbers<[1], [0], [0], [1], [0, 0, 1, 1], [], []>} : vector<8x32xf32>, vector<32x96xf32>, vector<8x96xf32> -> vector<8x96xf32>
    %192 = vector.extract_strided_slice %190 {offsets = [0, 0], sizes = [8, 64], strides = [1, 1]} : vector<8x96xf32> to vector<8x64xf32>
    %193 = vector.extract_strided_slice %191 {offsets = [0, 0], sizes = [8, 64], strides = [1, 1]} : vector<8x96xf32> to vector<8x64xf32>
    %194 = arith.addf %192, %193 : vector<8x64xf32>
    %195 = arith.negf %194 : vector<8x64xf32>
    %196 = math.exp %195 : vector<8x64xf32>
    %cst_33 = arith.constant 1.000000e+00 : f32
    %197 = vector.broadcast %cst_33 : f32 to vector<8x64xf32>
    %198 = arith.addf %197, %196 : vector<8x64xf32>
    %199 = arith.divf %197, %198 : vector<8x64xf32>
    %200 = vector.extract_strided_slice %199 {offsets = [0, 0], sizes = [8, 32], strides = [1, 1]} : vector<8x64xf32> to vector<8x32xf32>
    %201 = vector.extract_strided_slice %199 {offsets = [0, 32], sizes = [8, 32], strides = [1, 1]} : vector<8x64xf32> to vector<8x32xf32>
    %202 = vector.extract_strided_slice %190 {offsets = [0, 64], sizes = [8, 32], strides = [1, 1]} : vector<8x96xf32> to vector<8x32xf32>
    %203 = vector.extract_strided_slice %191 {offsets = [0, 64], sizes = [8, 32], strides = [1, 1]} : vector<8x96xf32> to vector<8x32xf32>
    %204 = arith.addf %203, %11 : vector<8x32xf32>
    %205 = arith.mulf %200, %204 : vector<8x32xf32>
    %206 = arith.addf %202, %205 : vector<8x32xf32>
    %207 = math.tanh %206 : vector<8x32xf32>
    %cst_34 = arith.constant 1.000000e+00 : f32
    %208 = vector.broadcast %cst_34 : f32 to vector<8x32xf32>
    %209 = arith.subf %208, %201 : vector<8x32xf32>
    %210 = arith.mulf %209, %207 : vector<8x32xf32>
    %211 = arith.mulf %201, %187 : vector<8x32xf32>
    %212 = arith.addf %210, %211 : vector<8x32xf32>
    %213 = tpu.iota {dimensions = array<i32: 1>} : vector<8x32xi32>
    %c16_i32 = arith.constant 16 : i32
    %214 = vector.broadcast %c16_i32 : i32 to vector<8x32xi32>
    %215 = arith.cmpi slt, %213, %214 : vector<8x32xi32>
    %216 = arith.select %215, %37, %212 : vector<8x32xi1>, vector<8x32xf32>
    %217 = arith.select %215, %62, %187 : vector<8x32xi1>, vector<8x32xf32>
    %218 = arith.select %215, %87, %162 : vector<8x32xi1>, vector<8x32xf32>
    %219 = arith.select %215, %112, %137 : vector<8x32xi1>, vector<8x32xf32>
    %220 = arith.select %215, %137, %112 : vector<8x32xi1>, vector<8x32xf32>
    %221 = arith.select %215, %162, %87 : vector<8x32xi1>, vector<8x32xf32>
    %222 = arith.select %215, %187, %62 : vector<8x32xi1>, vector<8x32xf32>
    %223 = arith.select %215, %212, %37 : vector<8x32xi1>, vector<8x32xf32>
    %224 = tpu.concatenate %216, %217, %218, %219, %220, %221, %222, %223 in 0 : vector<8x32xf32>, vector<8x32xf32>, vector<8x32xf32>, vector<8x32xf32>, vector<8x32xf32>, vector<8x32xf32>, vector<8x32xf32>, vector<8x32xf32> -> vector<64x32xf32>
    %c48 = arith.constant 48 : index
    %c0_35 = arith.constant 0 : index
    %225 = vector.load %arg2[%c48, %c0_35] : memref<544x384xf32, #tpu.memory_space<vmem>>, vector<32x96xf32>
    %c80 = arith.constant 80 : index
    %c0_36 = arith.constant 0 : index
    %226 = vector.load %arg2[%c80, %c0_36] : memref<544x384xf32, #tpu.memory_space<vmem>>, vector<32x96xf32>
    %c112 = arith.constant 112 : index
    %c0_37 = arith.constant 0 : index
    %227 = vector.load %arg2[%c112, %c0_37] : memref<544x384xf32, #tpu.memory_space<vmem>>, vector<32x96xf32>
    %c16_38 = arith.constant 16 : index
    %c0_39 = arith.constant 0 : index
    %228 = vector.load %arg3[%c16_38, %c0_39] : memref<80x384xf32, #tpu.memory_space<vmem>>, vector<1x96xf32>
    %c24 = arith.constant 24 : index
    %c0_40 = arith.constant 0 : index
    %229 = vector.load %arg3[%c24, %c0_40] : memref<80x384xf32, #tpu.memory_space<vmem>>, vector<1x32xf32>
    %cst_41 = arith.constant dense<0.000000e+00> : vector<64x96xf32>
    %230 = tpu.matmul %224, %225, %cst_41 {dimension_numbers = #tpu.dot_dimension_numbers<[1], [0], [0], [1], [0, 0, 1, 1], [], []>} : vector<64x32xf32>, vector<32x96xf32>, vector<64x96xf32> -> vector<64x96xf32>
    %231 = vector.broadcast %228 : vector<1x96xf32> to vector<64x96xf32>
    %232 = arith.addf %230, %231 : vector<64x96xf32>
    %cst_42 = arith.constant dense<0.000000e+00> : vector<64x96xf32>
    %233 = tpu.matmul %224, %226, %cst_42 {dimension_numbers = #tpu.dot_dimension_numbers<[1], [0], [0], [1], [0, 0, 1, 1], [], []>} : vector<64x32xf32>, vector<32x96xf32>, vector<64x96xf32> -> vector<64x96xf32>
    %234 = vector.shape_cast %229 : vector<1x32xf32> to vector<1x32xf32>
    %235 = vector.broadcast %234 : vector<1x32xf32> to vector<8x32xf32>
    %cst_43 = arith.constant 0.000000e+00 : f32
    %236 = vector.broadcast %cst_43 : f32 to vector<8x32xf32>
    %237 = vector.extract_strided_slice %232 {offsets = [0, 0], sizes = [8, 96], strides = [1, 1]} : vector<64x96xf32> to vector<8x96xf32>
    %238 = vector.extract_strided_slice %233 {offsets = [56, 0], sizes = [8, 96], strides = [1, 1]} : vector<64x96xf32> to vector<8x96xf32>
    %239 = arith.addf %237, %238 : vector<8x96xf32>
    %cst_44 = arith.constant dense<0.000000e+00> : vector<8x96xf32>
    %240 = tpu.matmul %236, %227, %cst_44 {dimension_numbers = #tpu.dot_dimension_numbers<[1], [0], [0], [1], [0, 0, 1, 1], [], []>} : vector<8x32xf32>, vector<32x96xf32>, vector<8x96xf32> -> vector<8x96xf32>
    %241 = vector.extract_strided_slice %239 {offsets = [0, 0], sizes = [8, 64], strides = [1, 1]} : vector<8x96xf32> to vector<8x64xf32>
    %242 = vector.extract_strided_slice %240 {offsets = [0, 0], sizes = [8, 64], strides = [1, 1]} : vector<8x96xf32> to vector<8x64xf32>
    %243 = arith.addf %241, %242 : vector<8x64xf32>
    %244 = arith.negf %243 : vector<8x64xf32>
    %245 = math.exp %244 : vector<8x64xf32>
    %cst_45 = arith.constant 1.000000e+00 : f32
    %246 = vector.broadcast %cst_45 : f32 to vector<8x64xf32>
    %247 = arith.addf %246, %245 : vector<8x64xf32>
    %248 = arith.divf %246, %247 : vector<8x64xf32>
    %249 = vector.extract_strided_slice %248 {offsets = [0, 0], sizes = [8, 32], strides = [1, 1]} : vector<8x64xf32> to vector<8x32xf32>
    %250 = vector.extract_strided_slice %248 {offsets = [0, 32], sizes = [8, 32], strides = [1, 1]} : vector<8x64xf32> to vector<8x32xf32>
    %251 = vector.extract_strided_slice %239 {offsets = [0, 64], sizes = [8, 32], strides = [1, 1]} : vector<8x96xf32> to vector<8x32xf32>
    %252 = vector.extract_strided_slice %240 {offsets = [0, 64], sizes = [8, 32], strides = [1, 1]} : vector<8x96xf32> to vector<8x32xf32>
    %253 = arith.addf %252, %235 : vector<8x32xf32>
    %254 = arith.mulf %249, %253 : vector<8x32xf32>
    %255 = arith.addf %251, %254 : vector<8x32xf32>
    %256 = math.tanh %255 : vector<8x32xf32>
    %cst_46 = arith.constant 1.000000e+00 : f32
    %257 = vector.broadcast %cst_46 : f32 to vector<8x32xf32>
    %258 = arith.subf %257, %250 : vector<8x32xf32>
    %259 = arith.mulf %258, %256 : vector<8x32xf32>
    %260 = arith.mulf %250, %236 : vector<8x32xf32>
    %261 = arith.addf %259, %260 : vector<8x32xf32>
    %262 = vector.extract_strided_slice %232 {offsets = [8, 0], sizes = [8, 96], strides = [1, 1]} : vector<64x96xf32> to vector<8x96xf32>
    %263 = vector.extract_strided_slice %233 {offsets = [48, 0], sizes = [8, 96], strides = [1, 1]} : vector<64x96xf32> to vector<8x96xf32>
    %264 = arith.addf %262, %263 : vector<8x96xf32>
    %cst_47 = arith.constant dense<0.000000e+00> : vector<8x96xf32>
    %265 = tpu.matmul %261, %227, %cst_47 {dimension_numbers = #tpu.dot_dimension_numbers<[1], [0], [0], [1], [0, 0, 1, 1], [], []>} : vector<8x32xf32>, vector<32x96xf32>, vector<8x96xf32> -> vector<8x96xf32>
    %266 = vector.extract_strided_slice %264 {offsets = [0, 0], sizes = [8, 64], strides = [1, 1]} : vector<8x96xf32> to vector<8x64xf32>
    %267 = vector.extract_strided_slice %265 {offsets = [0, 0], sizes = [8, 64], strides = [1, 1]} : vector<8x96xf32> to vector<8x64xf32>
    %268 = arith.addf %266, %267 : vector<8x64xf32>
    %269 = arith.negf %268 : vector<8x64xf32>
    %270 = math.exp %269 : vector<8x64xf32>
    %cst_48 = arith.constant 1.000000e+00 : f32
    %271 = vector.broadcast %cst_48 : f32 to vector<8x64xf32>
    %272 = arith.addf %271, %270 : vector<8x64xf32>
    %273 = arith.divf %271, %272 : vector<8x64xf32>
    %274 = vector.extract_strided_slice %273 {offsets = [0, 0], sizes = [8, 32], strides = [1, 1]} : vector<8x64xf32> to vector<8x32xf32>
    %275 = vector.extract_strided_slice %273 {offsets = [0, 32], sizes = [8, 32], strides = [1, 1]} : vector<8x64xf32> to vector<8x32xf32>
    %276 = vector.extract_strided_slice %264 {offsets = [0, 64], sizes = [8, 32], strides = [1, 1]} : vector<8x96xf32> to vector<8x32xf32>
    %277 = vector.extract_strided_slice %265 {offsets = [0, 64], sizes = [8, 32], strides = [1, 1]} : vector<8x96xf32> to vector<8x32xf32>
    %278 = arith.addf %277, %235 : vector<8x32xf32>
    %279 = arith.mulf %274, %278 : vector<8x32xf32>
    %280 = arith.addf %276, %279 : vector<8x32xf32>
    %281 = math.tanh %280 : vector<8x32xf32>
    %cst_49 = arith.constant 1.000000e+00 : f32
    %282 = vector.broadcast %cst_49 : f32 to vector<8x32xf32>
    %283 = arith.subf %282, %275 : vector<8x32xf32>
    %284 = arith.mulf %283, %281 : vector<8x32xf32>
    %285 = arith.mulf %275, %261 : vector<8x32xf32>
    %286 = arith.addf %284, %285 : vector<8x32xf32>
    %287 = vector.extract_strided_slice %232 {offsets = [16, 0], sizes = [8, 96], strides = [1, 1]} : vector<64x96xf32> to vector<8x96xf32>
    %288 = vector.extract_strided_slice %233 {offsets = [40, 0], sizes = [8, 96], strides = [1, 1]} : vector<64x96xf32> to vector<8x96xf32>
    %289 = arith.addf %287, %288 : vector<8x96xf32>
    %cst_50 = arith.constant dense<0.000000e+00> : vector<8x96xf32>
    %290 = tpu.matmul %286, %227, %cst_50 {dimension_numbers = #tpu.dot_dimension_numbers<[1], [0], [0], [1], [0, 0, 1, 1], [], []>} : vector<8x32xf32>, vector<32x96xf32>, vector<8x96xf32> -> vector<8x96xf32>
    %291 = vector.extract_strided_slice %289 {offsets = [0, 0], sizes = [8, 64], strides = [1, 1]} : vector<8x96xf32> to vector<8x64xf32>
    %292 = vector.extract_strided_slice %290 {offsets = [0, 0], sizes = [8, 64], strides = [1, 1]} : vector<8x96xf32> to vector<8x64xf32>
    %293 = arith.addf %291, %292 : vector<8x64xf32>
    %294 = arith.negf %293 : vector<8x64xf32>
    %295 = math.exp %294 : vector<8x64xf32>
    %cst_51 = arith.constant 1.000000e+00 : f32
    %296 = vector.broadcast %cst_51 : f32 to vector<8x64xf32>
    %297 = arith.addf %296, %295 : vector<8x64xf32>
    %298 = arith.divf %296, %297 : vector<8x64xf32>
    %299 = vector.extract_strided_slice %298 {offsets = [0, 0], sizes = [8, 32], strides = [1, 1]} : vector<8x64xf32> to vector<8x32xf32>
    %300 = vector.extract_strided_slice %298 {offsets = [0, 32], sizes = [8, 32], strides = [1, 1]} : vector<8x64xf32> to vector<8x32xf32>
    %301 = vector.extract_strided_slice %289 {offsets = [0, 64], sizes = [8, 32], strides = [1, 1]} : vector<8x96xf32> to vector<8x32xf32>
    %302 = vector.extract_strided_slice %290 {offsets = [0, 64], sizes = [8, 32], strides = [1, 1]} : vector<8x96xf32> to vector<8x32xf32>
    %303 = arith.addf %302, %235 : vector<8x32xf32>
    %304 = arith.mulf %299, %303 : vector<8x32xf32>
    %305 = arith.addf %301, %304 : vector<8x32xf32>
    %306 = math.tanh %305 : vector<8x32xf32>
    %cst_52 = arith.constant 1.000000e+00 : f32
    %307 = vector.broadcast %cst_52 : f32 to vector<8x32xf32>
    %308 = arith.subf %307, %300 : vector<8x32xf32>
    %309 = arith.mulf %308, %306 : vector<8x32xf32>
    %310 = arith.mulf %300, %286 : vector<8x32xf32>
    %311 = arith.addf %309, %310 : vector<8x32xf32>
    %312 = vector.extract_strided_slice %232 {offsets = [24, 0], sizes = [8, 96], strides = [1, 1]} : vector<64x96xf32> to vector<8x96xf32>
    %313 = vector.extract_strided_slice %233 {offsets = [32, 0], sizes = [8, 96], strides = [1, 1]} : vector<64x96xf32> to vector<8x96xf32>
    %314 = arith.addf %312, %313 : vector<8x96xf32>
    %cst_53 = arith.constant dense<0.000000e+00> : vector<8x96xf32>
    %315 = tpu.matmul %311, %227, %cst_53 {dimension_numbers = #tpu.dot_dimension_numbers<[1], [0], [0], [1], [0, 0, 1, 1], [], []>} : vector<8x32xf32>, vector<32x96xf32>, vector<8x96xf32> -> vector<8x96xf32>
    %316 = vector.extract_strided_slice %314 {offsets = [0, 0], sizes = [8, 64], strides = [1, 1]} : vector<8x96xf32> to vector<8x64xf32>
    %317 = vector.extract_strided_slice %315 {offsets = [0, 0], sizes = [8, 64], strides = [1, 1]} : vector<8x96xf32> to vector<8x64xf32>
    %318 = arith.addf %316, %317 : vector<8x64xf32>
    %319 = arith.negf %318 : vector<8x64xf32>
    %320 = math.exp %319 : vector<8x64xf32>
    %cst_54 = arith.constant 1.000000e+00 : f32
    %321 = vector.broadcast %cst_54 : f32 to vector<8x64xf32>
    %322 = arith.addf %321, %320 : vector<8x64xf32>
    %323 = arith.divf %321, %322 : vector<8x64xf32>
    %324 = vector.extract_strided_slice %323 {offsets = [0, 0], sizes = [8, 32], strides = [1, 1]} : vector<8x64xf32> to vector<8x32xf32>
    %325 = vector.extract_strided_slice %323 {offsets = [0, 32], sizes = [8, 32], strides = [1, 1]} : vector<8x64xf32> to vector<8x32xf32>
    %326 = vector.extract_strided_slice %314 {offsets = [0, 64], sizes = [8, 32], strides = [1, 1]} : vector<8x96xf32> to vector<8x32xf32>
    %327 = vector.extract_strided_slice %315 {offsets = [0, 64], sizes = [8, 32], strides = [1, 1]} : vector<8x96xf32> to vector<8x32xf32>
    %328 = arith.addf %327, %235 : vector<8x32xf32>
    %329 = arith.mulf %324, %328 : vector<8x32xf32>
    %330 = arith.addf %326, %329 : vector<8x32xf32>
    %331 = math.tanh %330 : vector<8x32xf32>
    %cst_55 = arith.constant 1.000000e+00 : f32
    %332 = vector.broadcast %cst_55 : f32 to vector<8x32xf32>
    %333 = arith.subf %332, %325 : vector<8x32xf32>
    %334 = arith.mulf %333, %331 : vector<8x32xf32>
    %335 = arith.mulf %325, %311 : vector<8x32xf32>
    %336 = arith.addf %334, %335 : vector<8x32xf32>
    %337 = vector.extract_strided_slice %232 {offsets = [32, 0], sizes = [8, 96], strides = [1, 1]} : vector<64x96xf32> to vector<8x96xf32>
    %338 = vector.extract_strided_slice %233 {offsets = [24, 0], sizes = [8, 96], strides = [1, 1]} : vector<64x96xf32> to vector<8x96xf32>
    %339 = arith.addf %337, %338 : vector<8x96xf32>
    %cst_56 = arith.constant dense<0.000000e+00> : vector<8x96xf32>
    %340 = tpu.matmul %336, %227, %cst_56 {dimension_numbers = #tpu.dot_dimension_numbers<[1], [0], [0], [1], [0, 0, 1, 1], [], []>} : vector<8x32xf32>, vector<32x96xf32>, vector<8x96xf32> -> vector<8x96xf32>
    %341 = vector.extract_strided_slice %339 {offsets = [0, 0], sizes = [8, 64], strides = [1, 1]} : vector<8x96xf32> to vector<8x64xf32>
    %342 = vector.extract_strided_slice %340 {offsets = [0, 0], sizes = [8, 64], strides = [1, 1]} : vector<8x96xf32> to vector<8x64xf32>
    %343 = arith.addf %341, %342 : vector<8x64xf32>
    %344 = arith.negf %343 : vector<8x64xf32>
    %345 = math.exp %344 : vector<8x64xf32>
    %cst_57 = arith.constant 1.000000e+00 : f32
    %346 = vector.broadcast %cst_57 : f32 to vector<8x64xf32>
    %347 = arith.addf %346, %345 : vector<8x64xf32>
    %348 = arith.divf %346, %347 : vector<8x64xf32>
    %349 = vector.extract_strided_slice %348 {offsets = [0, 0], sizes = [8, 32], strides = [1, 1]} : vector<8x64xf32> to vector<8x32xf32>
    %350 = vector.extract_strided_slice %348 {offsets = [0, 32], sizes = [8, 32], strides = [1, 1]} : vector<8x64xf32> to vector<8x32xf32>
    %351 = vector.extract_strided_slice %339 {offsets = [0, 64], sizes = [8, 32], strides = [1, 1]} : vector<8x96xf32> to vector<8x32xf32>
    %352 = vector.extract_strided_slice %340 {offsets = [0, 64], sizes = [8, 32], strides = [1, 1]} : vector<8x96xf32> to vector<8x32xf32>
    %353 = arith.addf %352, %235 : vector<8x32xf32>
    %354 = arith.mulf %349, %353 : vector<8x32xf32>
    %355 = arith.addf %351, %354 : vector<8x32xf32>
    %356 = math.tanh %355 : vector<8x32xf32>
    %cst_58 = arith.constant 1.000000e+00 : f32
    %357 = vector.broadcast %cst_58 : f32 to vector<8x32xf32>
    %358 = arith.subf %357, %350 : vector<8x32xf32>
    %359 = arith.mulf %358, %356 : vector<8x32xf32>
    %360 = arith.mulf %350, %336 : vector<8x32xf32>
    %361 = arith.addf %359, %360 : vector<8x32xf32>
    %362 = vector.extract_strided_slice %232 {offsets = [40, 0], sizes = [8, 96], strides = [1, 1]} : vector<64x96xf32> to vector<8x96xf32>
    %363 = vector.extract_strided_slice %233 {offsets = [16, 0], sizes = [8, 96], strides = [1, 1]} : vector<64x96xf32> to vector<8x96xf32>
    %364 = arith.addf %362, %363 : vector<8x96xf32>
    %cst_59 = arith.constant dense<0.000000e+00> : vector<8x96xf32>
    %365 = tpu.matmul %361, %227, %cst_59 {dimension_numbers = #tpu.dot_dimension_numbers<[1], [0], [0], [1], [0, 0, 1, 1], [], []>} : vector<8x32xf32>, vector<32x96xf32>, vector<8x96xf32> -> vector<8x96xf32>
    %366 = vector.extract_strided_slice %364 {offsets = [0, 0], sizes = [8, 64], strides = [1, 1]} : vector<8x96xf32> to vector<8x64xf32>
    %367 = vector.extract_strided_slice %365 {offsets = [0, 0], sizes = [8, 64], strides = [1, 1]} : vector<8x96xf32> to vector<8x64xf32>
    %368 = arith.addf %366, %367 : vector<8x64xf32>
    %369 = arith.negf %368 : vector<8x64xf32>
    %370 = math.exp %369 : vector<8x64xf32>
    %cst_60 = arith.constant 1.000000e+00 : f32
    %371 = vector.broadcast %cst_60 : f32 to vector<8x64xf32>
    %372 = arith.addf %371, %370 : vector<8x64xf32>
    %373 = arith.divf %371, %372 : vector<8x64xf32>
    %374 = vector.extract_strided_slice %373 {offsets = [0, 0], sizes = [8, 32], strides = [1, 1]} : vector<8x64xf32> to vector<8x32xf32>
    %375 = vector.extract_strided_slice %373 {offsets = [0, 32], sizes = [8, 32], strides = [1, 1]} : vector<8x64xf32> to vector<8x32xf32>
    %376 = vector.extract_strided_slice %364 {offsets = [0, 64], sizes = [8, 32], strides = [1, 1]} : vector<8x96xf32> to vector<8x32xf32>
    %377 = vector.extract_strided_slice %365 {offsets = [0, 64], sizes = [8, 32], strides = [1, 1]} : vector<8x96xf32> to vector<8x32xf32>
    %378 = arith.addf %377, %235 : vector<8x32xf32>
    %379 = arith.mulf %374, %378 : vector<8x32xf32>
    %380 = arith.addf %376, %379 : vector<8x32xf32>
    %381 = math.tanh %380 : vector<8x32xf32>
    %cst_61 = arith.constant 1.000000e+00 : f32
    %382 = vector.broadcast %cst_61 : f32 to vector<8x32xf32>
    %383 = arith.subf %382, %375 : vector<8x32xf32>
    %384 = arith.mulf %383, %381 : vector<8x32xf32>
    %385 = arith.mulf %375, %361 : vector<8x32xf32>
    %386 = arith.addf %384, %385 : vector<8x32xf32>
    %387 = vector.extract_strided_slice %232 {offsets = [48, 0], sizes = [8, 96], strides = [1, 1]} : vector<64x96xf32> to vector<8x96xf32>
    %388 = vector.extract_strided_slice %233 {offsets = [8, 0], sizes = [8, 96], strides = [1, 1]} : vector<64x96xf32> to vector<8x96xf32>
    %389 = arith.addf %387, %388 : vector<8x96xf32>
    %cst_62 = arith.constant dense<0.000000e+00> : vector<8x96xf32>
    %390 = tpu.matmul %386, %227, %cst_62 {dimension_numbers = #tpu.dot_dimension_numbers<[1], [0], [0], [1], [0, 0, 1, 1], [], []>} : vector<8x32xf32>, vector<32x96xf32>, vector<8x96xf32> -> vector<8x96xf32>
    %391 = vector.extract_strided_slice %389 {offsets = [0, 0], sizes = [8, 64], strides = [1, 1]} : vector<8x96xf32> to vector<8x64xf32>
    %392 = vector.extract_strided_slice %390 {offsets = [0, 0], sizes = [8, 64], strides = [1, 1]} : vector<8x96xf32> to vector<8x64xf32>
    %393 = arith.addf %391, %392 : vector<8x64xf32>
    %394 = arith.negf %393 : vector<8x64xf32>
    %395 = math.exp %394 : vector<8x64xf32>
    %cst_63 = arith.constant 1.000000e+00 : f32
    %396 = vector.broadcast %cst_63 : f32 to vector<8x64xf32>
    %397 = arith.addf %396, %395 : vector<8x64xf32>
    %398 = arith.divf %396, %397 : vector<8x64xf32>
    %399 = vector.extract_strided_slice %398 {offsets = [0, 0], sizes = [8, 32], strides = [1, 1]} : vector<8x64xf32> to vector<8x32xf32>
    %400 = vector.extract_strided_slice %398 {offsets = [0, 32], sizes = [8, 32], strides = [1, 1]} : vector<8x64xf32> to vector<8x32xf32>
    %401 = vector.extract_strided_slice %389 {offsets = [0, 64], sizes = [8, 32], strides = [1, 1]} : vector<8x96xf32> to vector<8x32xf32>
    %402 = vector.extract_strided_slice %390 {offsets = [0, 64], sizes = [8, 32], strides = [1, 1]} : vector<8x96xf32> to vector<8x32xf32>
    %403 = arith.addf %402, %235 : vector<8x32xf32>
    %404 = arith.mulf %399, %403 : vector<8x32xf32>
    %405 = arith.addf %401, %404 : vector<8x32xf32>
    %406 = math.tanh %405 : vector<8x32xf32>
    %cst_64 = arith.constant 1.000000e+00 : f32
    %407 = vector.broadcast %cst_64 : f32 to vector<8x32xf32>
    %408 = arith.subf %407, %400 : vector<8x32xf32>
    %409 = arith.mulf %408, %406 : vector<8x32xf32>
    %410 = arith.mulf %400, %386 : vector<8x32xf32>
    %411 = arith.addf %409, %410 : vector<8x32xf32>
    %412 = vector.extract_strided_slice %232 {offsets = [56, 0], sizes = [8, 96], strides = [1, 1]} : vector<64x96xf32> to vector<8x96xf32>
    %413 = vector.extract_strided_slice %233 {offsets = [0, 0], sizes = [8, 96], strides = [1, 1]} : vector<64x96xf32> to vector<8x96xf32>
    %414 = arith.addf %412, %413 : vector<8x96xf32>
    %cst_65 = arith.constant dense<0.000000e+00> : vector<8x96xf32>
    %415 = tpu.matmul %411, %227, %cst_65 {dimension_numbers = #tpu.dot_dimension_numbers<[1], [0], [0], [1], [0, 0, 1, 1], [], []>} : vector<8x32xf32>, vector<32x96xf32>, vector<8x96xf32> -> vector<8x96xf32>
    %416 = vector.extract_strided_slice %414 {offsets = [0, 0], sizes = [8, 64], strides = [1, 1]} : vector<8x96xf32> to vector<8x64xf32>
    %417 = vector.extract_strided_slice %415 {offsets = [0, 0], sizes = [8, 64], strides = [1, 1]} : vector<8x96xf32> to vector<8x64xf32>
    %418 = arith.addf %416, %417 : vector<8x64xf32>
    %419 = arith.negf %418 : vector<8x64xf32>
    %420 = math.exp %419 : vector<8x64xf32>
    %cst_66 = arith.constant 1.000000e+00 : f32
    %421 = vector.broadcast %cst_66 : f32 to vector<8x64xf32>
    %422 = arith.addf %421, %420 : vector<8x64xf32>
    %423 = arith.divf %421, %422 : vector<8x64xf32>
    %424 = vector.extract_strided_slice %423 {offsets = [0, 0], sizes = [8, 32], strides = [1, 1]} : vector<8x64xf32> to vector<8x32xf32>
    %425 = vector.extract_strided_slice %423 {offsets = [0, 32], sizes = [8, 32], strides = [1, 1]} : vector<8x64xf32> to vector<8x32xf32>
    %426 = vector.extract_strided_slice %414 {offsets = [0, 64], sizes = [8, 32], strides = [1, 1]} : vector<8x96xf32> to vector<8x32xf32>
    %427 = vector.extract_strided_slice %415 {offsets = [0, 64], sizes = [8, 32], strides = [1, 1]} : vector<8x96xf32> to vector<8x32xf32>
    %428 = arith.addf %427, %235 : vector<8x32xf32>
    %429 = arith.mulf %424, %428 : vector<8x32xf32>
    %430 = arith.addf %426, %429 : vector<8x32xf32>
    %431 = math.tanh %430 : vector<8x32xf32>
    %cst_67 = arith.constant 1.000000e+00 : f32
    %432 = vector.broadcast %cst_67 : f32 to vector<8x32xf32>
    %433 = arith.subf %432, %425 : vector<8x32xf32>
    %434 = arith.mulf %433, %431 : vector<8x32xf32>
    %435 = arith.mulf %425, %411 : vector<8x32xf32>
    %436 = arith.addf %434, %435 : vector<8x32xf32>
    %437 = tpu.iota {dimensions = array<i32: 1>} : vector<8x32xi32>
    %c16_i32_68 = arith.constant 16 : i32
    %438 = vector.broadcast %c16_i32_68 : i32 to vector<8x32xi32>
    %439 = arith.cmpi slt, %437, %438 : vector<8x32xi32>
    %440 = arith.select %439, %261, %436 : vector<8x32xi1>, vector<8x32xf32>
    %441 = arith.select %439, %286, %411 : vector<8x32xi1>, vector<8x32xf32>
    %442 = arith.select %439, %311, %386 : vector<8x32xi1>, vector<8x32xf32>
    %443 = arith.select %439, %336, %361 : vector<8x32xi1>, vector<8x32xf32>
    %444 = arith.select %439, %361, %336 : vector<8x32xi1>, vector<8x32xf32>
    %445 = arith.select %439, %386, %311 : vector<8x32xi1>, vector<8x32xf32>
    %446 = arith.select %439, %411, %286 : vector<8x32xi1>, vector<8x32xf32>
    %447 = arith.select %439, %436, %261 : vector<8x32xi1>, vector<8x32xf32>
    %448 = tpu.concatenate %440, %441, %442, %443, %444, %445, %446, %447 in 0 : vector<8x32xf32>, vector<8x32xf32>, vector<8x32xf32>, vector<8x32xf32>, vector<8x32xf32>, vector<8x32xf32>, vector<8x32xf32>, vector<8x32xf32> -> vector<64x32xf32>
    %c144 = arith.constant 144 : index
    %c0_69 = arith.constant 0 : index
    %449 = vector.load %arg2[%c144, %c0_69] : memref<544x384xf32, #tpu.memory_space<vmem>>, vector<32x8xf32>
    %cst_70 = arith.constant dense<0.000000e+00> : vector<64x8xf32>
    %450 = tpu.matmul %448, %449, %cst_70 {dimension_numbers = #tpu.dot_dimension_numbers<[1], [0], [0], [1], [0, 0, 1, 1], [], []>} : vector<64x32xf32>, vector<32x8xf32>, vector<64x8xf32> -> vector<64x8xf32>
    %c32 = arith.constant 32 : index
    %c0_71 = arith.constant 0 : index
    %451 = vector.load %arg3[%c32, %c0_71] : memref<80x384xf32, #tpu.memory_space<vmem>>, vector<1x8xf32>
    %452 = vector.broadcast %451 : vector<1x8xf32> to vector<64x8xf32>
    %453 = arith.addf %450, %452 : vector<64x8xf32>
    %cst_72 = arith.constant 0.000000e+00 : f32
    %454 = vector.broadcast %cst_72 : f32 to vector<64x8xf32>
    %455 = arith.maximumf %453, %454 : vector<64x8xf32>
    %c176 = arith.constant 176 : index
    %c0_73 = arith.constant 0 : index
    %456 = vector.load %arg2[%c176, %c0_73] : memref<544x384xf32, #tpu.memory_space<vmem>>, vector<8x96xf32>
    %c184 = arith.constant 184 : index
    %c0_74 = arith.constant 0 : index
    %457 = vector.load %arg2[%c184, %c0_74] : memref<544x384xf32, #tpu.memory_space<vmem>>, vector<8x96xf32>
    %c192 = arith.constant 192 : index
    %c0_75 = arith.constant 0 : index
    %458 = vector.load %arg2[%c192, %c0_75] : memref<544x384xf32, #tpu.memory_space<vmem>>, vector<32x96xf32>
    %c40 = arith.constant 40 : index
    %c0_76 = arith.constant 0 : index
    %459 = vector.load %arg3[%c40, %c0_76] : memref<80x384xf32, #tpu.memory_space<vmem>>, vector<1x96xf32>
    %c48_77 = arith.constant 48 : index
    %c0_78 = arith.constant 0 : index
    %460 = vector.load %arg3[%c48_77, %c0_78] : memref<80x384xf32, #tpu.memory_space<vmem>>, vector<1x32xf32>
    %cst_79 = arith.constant dense<0.000000e+00> : vector<64x96xf32>
    %461 = tpu.matmul %455, %456, %cst_79 {dimension_numbers = #tpu.dot_dimension_numbers<[1], [0], [0], [1], [0, 0, 1, 1], [], []>} : vector<64x8xf32>, vector<8x96xf32>, vector<64x96xf32> -> vector<64x96xf32>
    %462 = vector.broadcast %459 : vector<1x96xf32> to vector<64x96xf32>
    %463 = arith.addf %461, %462 : vector<64x96xf32>
    %cst_80 = arith.constant dense<0.000000e+00> : vector<64x96xf32>
    %464 = tpu.matmul %455, %457, %cst_80 {dimension_numbers = #tpu.dot_dimension_numbers<[1], [0], [0], [1], [0, 0, 1, 1], [], []>} : vector<64x8xf32>, vector<8x96xf32>, vector<64x96xf32> -> vector<64x96xf32>
    %465 = vector.shape_cast %460 : vector<1x32xf32> to vector<1x32xf32>
    %466 = vector.broadcast %465 : vector<1x32xf32> to vector<8x32xf32>
    %cst_81 = arith.constant 0.000000e+00 : f32
    %467 = vector.broadcast %cst_81 : f32 to vector<8x32xf32>
    %468 = vector.extract_strided_slice %463 {offsets = [0, 0], sizes = [8, 96], strides = [1, 1]} : vector<64x96xf32> to vector<8x96xf32>
    %469 = vector.extract_strided_slice %464 {offsets = [56, 0], sizes = [8, 96], strides = [1, 1]} : vector<64x96xf32> to vector<8x96xf32>
    %470 = arith.addf %468, %469 : vector<8x96xf32>
    %cst_82 = arith.constant dense<0.000000e+00> : vector<8x96xf32>
    %471 = tpu.matmul %467, %458, %cst_82 {dimension_numbers = #tpu.dot_dimension_numbers<[1], [0], [0], [1], [0, 0, 1, 1], [], []>} : vector<8x32xf32>, vector<32x96xf32>, vector<8x96xf32> -> vector<8x96xf32>
    %472 = vector.extract_strided_slice %470 {offsets = [0, 0], sizes = [8, 64], strides = [1, 1]} : vector<8x96xf32> to vector<8x64xf32>
    %473 = vector.extract_strided_slice %471 {offsets = [0, 0], sizes = [8, 64], strides = [1, 1]} : vector<8x96xf32> to vector<8x64xf32>
    %474 = arith.addf %472, %473 : vector<8x64xf32>
    %475 = arith.negf %474 : vector<8x64xf32>
    %476 = math.exp %475 : vector<8x64xf32>
    %cst_83 = arith.constant 1.000000e+00 : f32
    %477 = vector.broadcast %cst_83 : f32 to vector<8x64xf32>
    %478 = arith.addf %477, %476 : vector<8x64xf32>
    %479 = arith.divf %477, %478 : vector<8x64xf32>
    %480 = vector.extract_strided_slice %479 {offsets = [0, 0], sizes = [8, 32], strides = [1, 1]} : vector<8x64xf32> to vector<8x32xf32>
    %481 = vector.extract_strided_slice %479 {offsets = [0, 32], sizes = [8, 32], strides = [1, 1]} : vector<8x64xf32> to vector<8x32xf32>
    %482 = vector.extract_strided_slice %470 {offsets = [0, 64], sizes = [8, 32], strides = [1, 1]} : vector<8x96xf32> to vector<8x32xf32>
    %483 = vector.extract_strided_slice %471 {offsets = [0, 64], sizes = [8, 32], strides = [1, 1]} : vector<8x96xf32> to vector<8x32xf32>
    %484 = arith.addf %483, %466 : vector<8x32xf32>
    %485 = arith.mulf %480, %484 : vector<8x32xf32>
    %486 = arith.addf %482, %485 : vector<8x32xf32>
    %487 = math.tanh %486 : vector<8x32xf32>
    %cst_84 = arith.constant 1.000000e+00 : f32
    %488 = vector.broadcast %cst_84 : f32 to vector<8x32xf32>
    %489 = arith.subf %488, %481 : vector<8x32xf32>
    %490 = arith.mulf %489, %487 : vector<8x32xf32>
    %491 = arith.mulf %481, %467 : vector<8x32xf32>
    %492 = arith.addf %490, %491 : vector<8x32xf32>
    %493 = vector.extract_strided_slice %463 {offsets = [8, 0], sizes = [8, 96], strides = [1, 1]} : vector<64x96xf32> to vector<8x96xf32>
    %494 = vector.extract_strided_slice %464 {offsets = [48, 0], sizes = [8, 96], strides = [1, 1]} : vector<64x96xf32> to vector<8x96xf32>
    %495 = arith.addf %493, %494 : vector<8x96xf32>
    %cst_85 = arith.constant dense<0.000000e+00> : vector<8x96xf32>
    %496 = tpu.matmul %492, %458, %cst_85 {dimension_numbers = #tpu.dot_dimension_numbers<[1], [0], [0], [1], [0, 0, 1, 1], [], []>} : vector<8x32xf32>, vector<32x96xf32>, vector<8x96xf32> -> vector<8x96xf32>
    %497 = vector.extract_strided_slice %495 {offsets = [0, 0], sizes = [8, 64], strides = [1, 1]} : vector<8x96xf32> to vector<8x64xf32>
    %498 = vector.extract_strided_slice %496 {offsets = [0, 0], sizes = [8, 64], strides = [1, 1]} : vector<8x96xf32> to vector<8x64xf32>
    %499 = arith.addf %497, %498 : vector<8x64xf32>
    %500 = arith.negf %499 : vector<8x64xf32>
    %501 = math.exp %500 : vector<8x64xf32>
    %cst_86 = arith.constant 1.000000e+00 : f32
    %502 = vector.broadcast %cst_86 : f32 to vector<8x64xf32>
    %503 = arith.addf %502, %501 : vector<8x64xf32>
    %504 = arith.divf %502, %503 : vector<8x64xf32>
    %505 = vector.extract_strided_slice %504 {offsets = [0, 0], sizes = [8, 32], strides = [1, 1]} : vector<8x64xf32> to vector<8x32xf32>
    %506 = vector.extract_strided_slice %504 {offsets = [0, 32], sizes = [8, 32], strides = [1, 1]} : vector<8x64xf32> to vector<8x32xf32>
    %507 = vector.extract_strided_slice %495 {offsets = [0, 64], sizes = [8, 32], strides = [1, 1]} : vector<8x96xf32> to vector<8x32xf32>
    %508 = vector.extract_strided_slice %496 {offsets = [0, 64], sizes = [8, 32], strides = [1, 1]} : vector<8x96xf32> to vector<8x32xf32>
    %509 = arith.addf %508, %466 : vector<8x32xf32>
    %510 = arith.mulf %505, %509 : vector<8x32xf32>
    %511 = arith.addf %507, %510 : vector<8x32xf32>
    %512 = math.tanh %511 : vector<8x32xf32>
    %cst_87 = arith.constant 1.000000e+00 : f32
    %513 = vector.broadcast %cst_87 : f32 to vector<8x32xf32>
    %514 = arith.subf %513, %506 : vector<8x32xf32>
    %515 = arith.mulf %514, %512 : vector<8x32xf32>
    %516 = arith.mulf %506, %492 : vector<8x32xf32>
    %517 = arith.addf %515, %516 : vector<8x32xf32>
    %518 = vector.extract_strided_slice %463 {offsets = [16, 0], sizes = [8, 96], strides = [1, 1]} : vector<64x96xf32> to vector<8x96xf32>
    %519 = vector.extract_strided_slice %464 {offsets = [40, 0], sizes = [8, 96], strides = [1, 1]} : vector<64x96xf32> to vector<8x96xf32>
    %520 = arith.addf %518, %519 : vector<8x96xf32>
    %cst_88 = arith.constant dense<0.000000e+00> : vector<8x96xf32>
    %521 = tpu.matmul %517, %458, %cst_88 {dimension_numbers = #tpu.dot_dimension_numbers<[1], [0], [0], [1], [0, 0, 1, 1], [], []>} : vector<8x32xf32>, vector<32x96xf32>, vector<8x96xf32> -> vector<8x96xf32>
    %522 = vector.extract_strided_slice %520 {offsets = [0, 0], sizes = [8, 64], strides = [1, 1]} : vector<8x96xf32> to vector<8x64xf32>
    %523 = vector.extract_strided_slice %521 {offsets = [0, 0], sizes = [8, 64], strides = [1, 1]} : vector<8x96xf32> to vector<8x64xf32>
    %524 = arith.addf %522, %523 : vector<8x64xf32>
    %525 = arith.negf %524 : vector<8x64xf32>
    %526 = math.exp %525 : vector<8x64xf32>
    %cst_89 = arith.constant 1.000000e+00 : f32
    %527 = vector.broadcast %cst_89 : f32 to vector<8x64xf32>
    %528 = arith.addf %527, %526 : vector<8x64xf32>
    %529 = arith.divf %527, %528 : vector<8x64xf32>
    %530 = vector.extract_strided_slice %529 {offsets = [0, 0], sizes = [8, 32], strides = [1, 1]} : vector<8x64xf32> to vector<8x32xf32>
    %531 = vector.extract_strided_slice %529 {offsets = [0, 32], sizes = [8, 32], strides = [1, 1]} : vector<8x64xf32> to vector<8x32xf32>
    %532 = vector.extract_strided_slice %520 {offsets = [0, 64], sizes = [8, 32], strides = [1, 1]} : vector<8x96xf32> to vector<8x32xf32>
    %533 = vector.extract_strided_slice %521 {offsets = [0, 64], sizes = [8, 32], strides = [1, 1]} : vector<8x96xf32> to vector<8x32xf32>
    %534 = arith.addf %533, %466 : vector<8x32xf32>
    %535 = arith.mulf %530, %534 : vector<8x32xf32>
    %536 = arith.addf %532, %535 : vector<8x32xf32>
    %537 = math.tanh %536 : vector<8x32xf32>
    %cst_90 = arith.constant 1.000000e+00 : f32
    %538 = vector.broadcast %cst_90 : f32 to vector<8x32xf32>
    %539 = arith.subf %538, %531 : vector<8x32xf32>
    %540 = arith.mulf %539, %537 : vector<8x32xf32>
    %541 = arith.mulf %531, %517 : vector<8x32xf32>
    %542 = arith.addf %540, %541 : vector<8x32xf32>
    %543 = vector.extract_strided_slice %463 {offsets = [24, 0], sizes = [8, 96], strides = [1, 1]} : vector<64x96xf32> to vector<8x96xf32>
    %544 = vector.extract_strided_slice %464 {offsets = [32, 0], sizes = [8, 96], strides = [1, 1]} : vector<64x96xf32> to vector<8x96xf32>
    %545 = arith.addf %543, %544 : vector<8x96xf32>
    %cst_91 = arith.constant dense<0.000000e+00> : vector<8x96xf32>
    %546 = tpu.matmul %542, %458, %cst_91 {dimension_numbers = #tpu.dot_dimension_numbers<[1], [0], [0], [1], [0, 0, 1, 1], [], []>} : vector<8x32xf32>, vector<32x96xf32>, vector<8x96xf32> -> vector<8x96xf32>
    %547 = vector.extract_strided_slice %545 {offsets = [0, 0], sizes = [8, 64], strides = [1, 1]} : vector<8x96xf32> to vector<8x64xf32>
    %548 = vector.extract_strided_slice %546 {offsets = [0, 0], sizes = [8, 64], strides = [1, 1]} : vector<8x96xf32> to vector<8x64xf32>
    %549 = arith.addf %547, %548 : vector<8x64xf32>
    %550 = arith.negf %549 : vector<8x64xf32>
    %551 = math.exp %550 : vector<8x64xf32>
    %cst_92 = arith.constant 1.000000e+00 : f32
    %552 = vector.broadcast %cst_92 : f32 to vector<8x64xf32>
    %553 = arith.addf %552, %551 : vector<8x64xf32>
    %554 = arith.divf %552, %553 : vector<8x64xf32>
    %555 = vector.extract_strided_slice %554 {offsets = [0, 0], sizes = [8, 32], strides = [1, 1]} : vector<8x64xf32> to vector<8x32xf32>
    %556 = vector.extract_strided_slice %554 {offsets = [0, 32], sizes = [8, 32], strides = [1, 1]} : vector<8x64xf32> to vector<8x32xf32>
    %557 = vector.extract_strided_slice %545 {offsets = [0, 64], sizes = [8, 32], strides = [1, 1]} : vector<8x96xf32> to vector<8x32xf32>
    %558 = vector.extract_strided_slice %546 {offsets = [0, 64], sizes = [8, 32], strides = [1, 1]} : vector<8x96xf32> to vector<8x32xf32>
    %559 = arith.addf %558, %466 : vector<8x32xf32>
    %560 = arith.mulf %555, %559 : vector<8x32xf32>
    %561 = arith.addf %557, %560 : vector<8x32xf32>
    %562 = math.tanh %561 : vector<8x32xf32>
    %cst_93 = arith.constant 1.000000e+00 : f32
    %563 = vector.broadcast %cst_93 : f32 to vector<8x32xf32>
    %564 = arith.subf %563, %556 : vector<8x32xf32>
    %565 = arith.mulf %564, %562 : vector<8x32xf32>
    %566 = arith.mulf %556, %542 : vector<8x32xf32>
    %567 = arith.addf %565, %566 : vector<8x32xf32>
    %568 = vector.extract_strided_slice %463 {offsets = [32, 0], sizes = [8, 96], strides = [1, 1]} : vector<64x96xf32> to vector<8x96xf32>
    %569 = vector.extract_strided_slice %464 {offsets = [24, 0], sizes = [8, 96], strides = [1, 1]} : vector<64x96xf32> to vector<8x96xf32>
    %570 = arith.addf %568, %569 : vector<8x96xf32>
    %cst_94 = arith.constant dense<0.000000e+00> : vector<8x96xf32>
    %571 = tpu.matmul %567, %458, %cst_94 {dimension_numbers = #tpu.dot_dimension_numbers<[1], [0], [0], [1], [0, 0, 1, 1], [], []>} : vector<8x32xf32>, vector<32x96xf32>, vector<8x96xf32> -> vector<8x96xf32>
    %572 = vector.extract_strided_slice %570 {offsets = [0, 0], sizes = [8, 64], strides = [1, 1]} : vector<8x96xf32> to vector<8x64xf32>
    %573 = vector.extract_strided_slice %571 {offsets = [0, 0], sizes = [8, 64], strides = [1, 1]} : vector<8x96xf32> to vector<8x64xf32>
    %574 = arith.addf %572, %573 : vector<8x64xf32>
    %575 = arith.negf %574 : vector<8x64xf32>
    %576 = math.exp %575 : vector<8x64xf32>
    %cst_95 = arith.constant 1.000000e+00 : f32
    %577 = vector.broadcast %cst_95 : f32 to vector<8x64xf32>
    %578 = arith.addf %577, %576 : vector<8x64xf32>
    %579 = arith.divf %577, %578 : vector<8x64xf32>
    %580 = vector.extract_strided_slice %579 {offsets = [0, 0], sizes = [8, 32], strides = [1, 1]} : vector<8x64xf32> to vector<8x32xf32>
    %581 = vector.extract_strided_slice %579 {offsets = [0, 32], sizes = [8, 32], strides = [1, 1]} : vector<8x64xf32> to vector<8x32xf32>
    %582 = vector.extract_strided_slice %570 {offsets = [0, 64], sizes = [8, 32], strides = [1, 1]} : vector<8x96xf32> to vector<8x32xf32>
    %583 = vector.extract_strided_slice %571 {offsets = [0, 64], sizes = [8, 32], strides = [1, 1]} : vector<8x96xf32> to vector<8x32xf32>
    %584 = arith.addf %583, %466 : vector<8x32xf32>
    %585 = arith.mulf %580, %584 : vector<8x32xf32>
    %586 = arith.addf %582, %585 : vector<8x32xf32>
    %587 = math.tanh %586 : vector<8x32xf32>
    %cst_96 = arith.constant 1.000000e+00 : f32
    %588 = vector.broadcast %cst_96 : f32 to vector<8x32xf32>
    %589 = arith.subf %588, %581 : vector<8x32xf32>
    %590 = arith.mulf %589, %587 : vector<8x32xf32>
    %591 = arith.mulf %581, %567 : vector<8x32xf32>
    %592 = arith.addf %590, %591 : vector<8x32xf32>
    %593 = vector.extract_strided_slice %463 {offsets = [40, 0], sizes = [8, 96], strides = [1, 1]} : vector<64x96xf32> to vector<8x96xf32>
    %594 = vector.extract_strided_slice %464 {offsets = [16, 0], sizes = [8, 96], strides = [1, 1]} : vector<64x96xf32> to vector<8x96xf32>
    %595 = arith.addf %593, %594 : vector<8x96xf32>
    %cst_97 = arith.constant dense<0.000000e+00> : vector<8x96xf32>
    %596 = tpu.matmul %592, %458, %cst_97 {dimension_numbers = #tpu.dot_dimension_numbers<[1], [0], [0], [1], [0, 0, 1, 1], [], []>} : vector<8x32xf32>, vector<32x96xf32>, vector<8x96xf32> -> vector<8x96xf32>
    %597 = vector.extract_strided_slice %595 {offsets = [0, 0], sizes = [8, 64], strides = [1, 1]} : vector<8x96xf32> to vector<8x64xf32>
    %598 = vector.extract_strided_slice %596 {offsets = [0, 0], sizes = [8, 64], strides = [1, 1]} : vector<8x96xf32> to vector<8x64xf32>
    %599 = arith.addf %597, %598 : vector<8x64xf32>
    %600 = arith.negf %599 : vector<8x64xf32>
    %601 = math.exp %600 : vector<8x64xf32>
    %cst_98 = arith.constant 1.000000e+00 : f32
    %602 = vector.broadcast %cst_98 : f32 to vector<8x64xf32>
    %603 = arith.addf %602, %601 : vector<8x64xf32>
    %604 = arith.divf %602, %603 : vector<8x64xf32>
    %605 = vector.extract_strided_slice %604 {offsets = [0, 0], sizes = [8, 32], strides = [1, 1]} : vector<8x64xf32> to vector<8x32xf32>
    %606 = vector.extract_strided_slice %604 {offsets = [0, 32], sizes = [8, 32], strides = [1, 1]} : vector<8x64xf32> to vector<8x32xf32>
    %607 = vector.extract_strided_slice %595 {offsets = [0, 64], sizes = [8, 32], strides = [1, 1]} : vector<8x96xf32> to vector<8x32xf32>
    %608 = vector.extract_strided_slice %596 {offsets = [0, 64], sizes = [8, 32], strides = [1, 1]} : vector<8x96xf32> to vector<8x32xf32>
    %609 = arith.addf %608, %466 : vector<8x32xf32>
    %610 = arith.mulf %605, %609 : vector<8x32xf32>
    %611 = arith.addf %607, %610 : vector<8x32xf32>
    %612 = math.tanh %611 : vector<8x32xf32>
    %cst_99 = arith.constant 1.000000e+00 : f32
    %613 = vector.broadcast %cst_99 : f32 to vector<8x32xf32>
    %614 = arith.subf %613, %606 : vector<8x32xf32>
    %615 = arith.mulf %614, %612 : vector<8x32xf32>
    %616 = arith.mulf %606, %592 : vector<8x32xf32>
    %617 = arith.addf %615, %616 : vector<8x32xf32>
    %618 = vector.extract_strided_slice %463 {offsets = [48, 0], sizes = [8, 96], strides = [1, 1]} : vector<64x96xf32> to vector<8x96xf32>
    %619 = vector.extract_strided_slice %464 {offsets = [8, 0], sizes = [8, 96], strides = [1, 1]} : vector<64x96xf32> to vector<8x96xf32>
    %620 = arith.addf %618, %619 : vector<8x96xf32>
    %cst_100 = arith.constant dense<0.000000e+00> : vector<8x96xf32>
    %621 = tpu.matmul %617, %458, %cst_100 {dimension_numbers = #tpu.dot_dimension_numbers<[1], [0], [0], [1], [0, 0, 1, 1], [], []>} : vector<8x32xf32>, vector<32x96xf32>, vector<8x96xf32> -> vector<8x96xf32>
    %622 = vector.extract_strided_slice %620 {offsets = [0, 0], sizes = [8, 64], strides = [1, 1]} : vector<8x96xf32> to vector<8x64xf32>
    %623 = vector.extract_strided_slice %621 {offsets = [0, 0], sizes = [8, 64], strides = [1, 1]} : vector<8x96xf32> to vector<8x64xf32>
    %624 = arith.addf %622, %623 : vector<8x64xf32>
    %625 = arith.negf %624 : vector<8x64xf32>
    %626 = math.exp %625 : vector<8x64xf32>
    %cst_101 = arith.constant 1.000000e+00 : f32
    %627 = vector.broadcast %cst_101 : f32 to vector<8x64xf32>
    %628 = arith.addf %627, %626 : vector<8x64xf32>
    %629 = arith.divf %627, %628 : vector<8x64xf32>
    %630 = vector.extract_strided_slice %629 {offsets = [0, 0], sizes = [8, 32], strides = [1, 1]} : vector<8x64xf32> to vector<8x32xf32>
    %631 = vector.extract_strided_slice %629 {offsets = [0, 32], sizes = [8, 32], strides = [1, 1]} : vector<8x64xf32> to vector<8x32xf32>
    %632 = vector.extract_strided_slice %620 {offsets = [0, 64], sizes = [8, 32], strides = [1, 1]} : vector<8x96xf32> to vector<8x32xf32>
    %633 = vector.extract_strided_slice %621 {offsets = [0, 64], sizes = [8, 32], strides = [1, 1]} : vector<8x96xf32> to vector<8x32xf32>
    %634 = arith.addf %633, %466 : vector<8x32xf32>
    %635 = arith.mulf %630, %634 : vector<8x32xf32>
    %636 = arith.addf %632, %635 : vector<8x32xf32>
    %637 = math.tanh %636 : vector<8x32xf32>
    %cst_102 = arith.constant 1.000000e+00 : f32
    %638 = vector.broadcast %cst_102 : f32 to vector<8x32xf32>
    %639 = arith.subf %638, %631 : vector<8x32xf32>
    %640 = arith.mulf %639, %637 : vector<8x32xf32>
    %641 = arith.mulf %631, %617 : vector<8x32xf32>
    %642 = arith.addf %640, %641 : vector<8x32xf32>
    %643 = vector.extract_strided_slice %463 {offsets = [56, 0], sizes = [8, 96], strides = [1, 1]} : vector<64x96xf32> to vector<8x96xf32>
    %644 = vector.extract_strided_slice %464 {offsets = [0, 0], sizes = [8, 96], strides = [1, 1]} : vector<64x96xf32> to vector<8x96xf32>
    %645 = arith.addf %643, %644 : vector<8x96xf32>
    %cst_103 = arith.constant dense<0.000000e+00> : vector<8x96xf32>
    %646 = tpu.matmul %642, %458, %cst_103 {dimension_numbers = #tpu.dot_dimension_numbers<[1], [0], [0], [1], [0, 0, 1, 1], [], []>} : vector<8x32xf32>, vector<32x96xf32>, vector<8x96xf32> -> vector<8x96xf32>
    %647 = vector.extract_strided_slice %645 {offsets = [0, 0], sizes = [8, 64], strides = [1, 1]} : vector<8x96xf32> to vector<8x64xf32>
    %648 = vector.extract_strided_slice %646 {offsets = [0, 0], sizes = [8, 64], strides = [1, 1]} : vector<8x96xf32> to vector<8x64xf32>
    %649 = arith.addf %647, %648 : vector<8x64xf32>
    %650 = arith.negf %649 : vector<8x64xf32>
    %651 = math.exp %650 : vector<8x64xf32>
    %cst_104 = arith.constant 1.000000e+00 : f32
    %652 = vector.broadcast %cst_104 : f32 to vector<8x64xf32>
    %653 = arith.addf %652, %651 : vector<8x64xf32>
    %654 = arith.divf %652, %653 : vector<8x64xf32>
    %655 = vector.extract_strided_slice %654 {offsets = [0, 0], sizes = [8, 32], strides = [1, 1]} : vector<8x64xf32> to vector<8x32xf32>
    %656 = vector.extract_strided_slice %654 {offsets = [0, 32], sizes = [8, 32], strides = [1, 1]} : vector<8x64xf32> to vector<8x32xf32>
    %657 = vector.extract_strided_slice %645 {offsets = [0, 64], sizes = [8, 32], strides = [1, 1]} : vector<8x96xf32> to vector<8x32xf32>
    %658 = vector.extract_strided_slice %646 {offsets = [0, 64], sizes = [8, 32], strides = [1, 1]} : vector<8x96xf32> to vector<8x32xf32>
    %659 = arith.addf %658, %466 : vector<8x32xf32>
    %660 = arith.mulf %655, %659 : vector<8x32xf32>
    %661 = arith.addf %657, %660 : vector<8x32xf32>
    %662 = math.tanh %661 : vector<8x32xf32>
    %cst_105 = arith.constant 1.000000e+00 : f32
    %663 = vector.broadcast %cst_105 : f32 to vector<8x32xf32>
    %664 = arith.subf %663, %656 : vector<8x32xf32>
    %665 = arith.mulf %664, %662 : vector<8x32xf32>
    %666 = arith.mulf %656, %642 : vector<8x32xf32>
    %667 = arith.addf %665, %666 : vector<8x32xf32>
    %668 = tpu.iota {dimensions = array<i32: 1>} : vector<8x32xi32>
    %c16_i32_106 = arith.constant 16 : i32
    %669 = vector.broadcast %c16_i32_106 : i32 to vector<8x32xi32>
    %670 = arith.cmpi slt, %668, %669 : vector<8x32xi32>
    %671 = arith.select %670, %492, %667 : vector<8x32xi1>, vector<8x32xf32>
    %672 = arith.select %670, %517, %642 : vector<8x32xi1>, vector<8x32xf32>
    %673 = arith.select %670, %542, %617 : vector<8x32xi1>, vector<8x32xf32>
    %674 = arith.select %670, %567, %592 : vector<8x32xi1>, vector<8x32xf32>
    %675 = arith.select %670, %592, %567 : vector<8x32xi1>, vector<8x32xf32>
    %676 = arith.select %670, %617, %542 : vector<8x32xi1>, vector<8x32xf32>
    %677 = arith.select %670, %642, %517 : vector<8x32xi1>, vector<8x32xf32>
    %678 = arith.select %670, %667, %492 : vector<8x32xi1>, vector<8x32xf32>
    %679 = tpu.concatenate %671, %672, %673, %674, %675, %676, %677, %678 in 0 : vector<8x32xf32>, vector<8x32xf32>, vector<8x32xf32>, vector<8x32xf32>, vector<8x32xf32>, vector<8x32xf32>, vector<8x32xf32>, vector<8x32xf32> -> vector<64x32xf32>
    %c224 = arith.constant 224 : index
    %c0_107 = arith.constant 0 : index
    %680 = vector.load %arg2[%c224, %c0_107] : memref<544x384xf32, #tpu.memory_space<vmem>>, vector<32x384xf32>
    %c256 = arith.constant 256 : index
    %c0_108 = arith.constant 0 : index
    %681 = vector.load %arg2[%c256, %c0_108] : memref<544x384xf32, #tpu.memory_space<vmem>>, vector<32x384xf32>
    %c288 = arith.constant 288 : index
    %c0_109 = arith.constant 0 : index
    %682 = vector.load %arg2[%c288, %c0_109] : memref<544x384xf32, #tpu.memory_space<vmem>>, vector<128x384xf32>
    %c56 = arith.constant 56 : index
    %c0_110 = arith.constant 0 : index
    %683 = vector.load %arg3[%c56, %c0_110] : memref<80x384xf32, #tpu.memory_space<vmem>>, vector<1x384xf32>
    %c64 = arith.constant 64 : index
    %c0_111 = arith.constant 0 : index
    %684 = vector.load %arg3[%c64, %c0_111] : memref<80x384xf32, #tpu.memory_space<vmem>>, vector<1x128xf32>
    %cst_112 = arith.constant dense<0.000000e+00> : vector<64x384xf32>
    %685 = tpu.matmul %679, %680, %cst_112 {dimension_numbers = #tpu.dot_dimension_numbers<[1], [0], [0], [1], [0, 0, 1, 1], [], []>} : vector<64x32xf32>, vector<32x384xf32>, vector<64x384xf32> -> vector<64x384xf32>
    %686 = vector.broadcast %683 : vector<1x384xf32> to vector<64x384xf32>
    %687 = arith.addf %685, %686 : vector<64x384xf32>
    %cst_113 = arith.constant dense<0.000000e+00> : vector<64x384xf32>
    %688 = tpu.matmul %679, %681, %cst_113 {dimension_numbers = #tpu.dot_dimension_numbers<[1], [0], [0], [1], [0, 0, 1, 1], [], []>} : vector<64x32xf32>, vector<32x384xf32>, vector<64x384xf32> -> vector<64x384xf32>
    %689 = vector.shape_cast %684 : vector<1x128xf32> to vector<1x128xf32>
    %690 = vector.broadcast %689 : vector<1x128xf32> to vector<8x128xf32>
    %cst_114 = arith.constant 0.000000e+00 : f32
    %691 = vector.broadcast %cst_114 : f32 to vector<8x128xf32>
    %692 = vector.extract_strided_slice %687 {offsets = [0, 0], sizes = [8, 384], strides = [1, 1]} : vector<64x384xf32> to vector<8x384xf32>
    %693 = vector.extract_strided_slice %688 {offsets = [56, 0], sizes = [8, 384], strides = [1, 1]} : vector<64x384xf32> to vector<8x384xf32>
    %694 = arith.addf %692, %693 : vector<8x384xf32>
    %cst_115 = arith.constant dense<0.000000e+00> : vector<8x384xf32>
    %695 = tpu.matmul %691, %682, %cst_115 {dimension_numbers = #tpu.dot_dimension_numbers<[1], [0], [0], [1], [0, 0, 1, 1], [], []>} : vector<8x128xf32>, vector<128x384xf32>, vector<8x384xf32> -> vector<8x384xf32>
    %696 = vector.extract_strided_slice %694 {offsets = [0, 0], sizes = [8, 256], strides = [1, 1]} : vector<8x384xf32> to vector<8x256xf32>
    %697 = vector.extract_strided_slice %695 {offsets = [0, 0], sizes = [8, 256], strides = [1, 1]} : vector<8x384xf32> to vector<8x256xf32>
    %698 = arith.addf %696, %697 : vector<8x256xf32>
    %699 = arith.negf %698 : vector<8x256xf32>
    %700 = math.exp %699 : vector<8x256xf32>
    %cst_116 = arith.constant 1.000000e+00 : f32
    %701 = vector.broadcast %cst_116 : f32 to vector<8x256xf32>
    %702 = arith.addf %701, %700 : vector<8x256xf32>
    %703 = arith.divf %701, %702 : vector<8x256xf32>
    %704 = vector.extract_strided_slice %703 {offsets = [0, 0], sizes = [8, 128], strides = [1, 1]} : vector<8x256xf32> to vector<8x128xf32>
    %705 = vector.extract_strided_slice %703 {offsets = [0, 128], sizes = [8, 128], strides = [1, 1]} : vector<8x256xf32> to vector<8x128xf32>
    %706 = vector.extract_strided_slice %694 {offsets = [0, 256], sizes = [8, 128], strides = [1, 1]} : vector<8x384xf32> to vector<8x128xf32>
    %707 = vector.extract_strided_slice %695 {offsets = [0, 256], sizes = [8, 128], strides = [1, 1]} : vector<8x384xf32> to vector<8x128xf32>
    %708 = arith.addf %707, %690 : vector<8x128xf32>
    %709 = arith.mulf %704, %708 : vector<8x128xf32>
    %710 = arith.addf %706, %709 : vector<8x128xf32>
    %711 = math.tanh %710 : vector<8x128xf32>
    %cst_117 = arith.constant 1.000000e+00 : f32
    %712 = vector.broadcast %cst_117 : f32 to vector<8x128xf32>
    %713 = arith.subf %712, %705 : vector<8x128xf32>
    %714 = arith.mulf %713, %711 : vector<8x128xf32>
    %715 = arith.mulf %705, %691 : vector<8x128xf32>
    %716 = arith.addf %714, %715 : vector<8x128xf32>
    %717 = vector.extract_strided_slice %687 {offsets = [8, 0], sizes = [8, 384], strides = [1, 1]} : vector<64x384xf32> to vector<8x384xf32>
    %718 = vector.extract_strided_slice %688 {offsets = [48, 0], sizes = [8, 384], strides = [1, 1]} : vector<64x384xf32> to vector<8x384xf32>
    %719 = arith.addf %717, %718 : vector<8x384xf32>
    %cst_118 = arith.constant dense<0.000000e+00> : vector<8x384xf32>
    %720 = tpu.matmul %716, %682, %cst_118 {dimension_numbers = #tpu.dot_dimension_numbers<[1], [0], [0], [1], [0, 0, 1, 1], [], []>} : vector<8x128xf32>, vector<128x384xf32>, vector<8x384xf32> -> vector<8x384xf32>
    %721 = vector.extract_strided_slice %719 {offsets = [0, 0], sizes = [8, 256], strides = [1, 1]} : vector<8x384xf32> to vector<8x256xf32>
    %722 = vector.extract_strided_slice %720 {offsets = [0, 0], sizes = [8, 256], strides = [1, 1]} : vector<8x384xf32> to vector<8x256xf32>
    %723 = arith.addf %721, %722 : vector<8x256xf32>
    %724 = arith.negf %723 : vector<8x256xf32>
    %725 = math.exp %724 : vector<8x256xf32>
    %cst_119 = arith.constant 1.000000e+00 : f32
    %726 = vector.broadcast %cst_119 : f32 to vector<8x256xf32>
    %727 = arith.addf %726, %725 : vector<8x256xf32>
    %728 = arith.divf %726, %727 : vector<8x256xf32>
    %729 = vector.extract_strided_slice %728 {offsets = [0, 0], sizes = [8, 128], strides = [1, 1]} : vector<8x256xf32> to vector<8x128xf32>
    %730 = vector.extract_strided_slice %728 {offsets = [0, 128], sizes = [8, 128], strides = [1, 1]} : vector<8x256xf32> to vector<8x128xf32>
    %731 = vector.extract_strided_slice %719 {offsets = [0, 256], sizes = [8, 128], strides = [1, 1]} : vector<8x384xf32> to vector<8x128xf32>
    %732 = vector.extract_strided_slice %720 {offsets = [0, 256], sizes = [8, 128], strides = [1, 1]} : vector<8x384xf32> to vector<8x128xf32>
    %733 = arith.addf %732, %690 : vector<8x128xf32>
    %734 = arith.mulf %729, %733 : vector<8x128xf32>
    %735 = arith.addf %731, %734 : vector<8x128xf32>
    %736 = math.tanh %735 : vector<8x128xf32>
    %cst_120 = arith.constant 1.000000e+00 : f32
    %737 = vector.broadcast %cst_120 : f32 to vector<8x128xf32>
    %738 = arith.subf %737, %730 : vector<8x128xf32>
    %739 = arith.mulf %738, %736 : vector<8x128xf32>
    %740 = arith.mulf %730, %716 : vector<8x128xf32>
    %741 = arith.addf %739, %740 : vector<8x128xf32>
    %742 = vector.extract_strided_slice %687 {offsets = [16, 0], sizes = [8, 384], strides = [1, 1]} : vector<64x384xf32> to vector<8x384xf32>
    %743 = vector.extract_strided_slice %688 {offsets = [40, 0], sizes = [8, 384], strides = [1, 1]} : vector<64x384xf32> to vector<8x384xf32>
    %744 = arith.addf %742, %743 : vector<8x384xf32>
    %cst_121 = arith.constant dense<0.000000e+00> : vector<8x384xf32>
    %745 = tpu.matmul %741, %682, %cst_121 {dimension_numbers = #tpu.dot_dimension_numbers<[1], [0], [0], [1], [0, 0, 1, 1], [], []>} : vector<8x128xf32>, vector<128x384xf32>, vector<8x384xf32> -> vector<8x384xf32>
    %746 = vector.extract_strided_slice %744 {offsets = [0, 0], sizes = [8, 256], strides = [1, 1]} : vector<8x384xf32> to vector<8x256xf32>
    %747 = vector.extract_strided_slice %745 {offsets = [0, 0], sizes = [8, 256], strides = [1, 1]} : vector<8x384xf32> to vector<8x256xf32>
    %748 = arith.addf %746, %747 : vector<8x256xf32>
    %749 = arith.negf %748 : vector<8x256xf32>
    %750 = math.exp %749 : vector<8x256xf32>
    %cst_122 = arith.constant 1.000000e+00 : f32
    %751 = vector.broadcast %cst_122 : f32 to vector<8x256xf32>
    %752 = arith.addf %751, %750 : vector<8x256xf32>
    %753 = arith.divf %751, %752 : vector<8x256xf32>
    %754 = vector.extract_strided_slice %753 {offsets = [0, 0], sizes = [8, 128], strides = [1, 1]} : vector<8x256xf32> to vector<8x128xf32>
    %755 = vector.extract_strided_slice %753 {offsets = [0, 128], sizes = [8, 128], strides = [1, 1]} : vector<8x256xf32> to vector<8x128xf32>
    %756 = vector.extract_strided_slice %744 {offsets = [0, 256], sizes = [8, 128], strides = [1, 1]} : vector<8x384xf32> to vector<8x128xf32>
    %757 = vector.extract_strided_slice %745 {offsets = [0, 256], sizes = [8, 128], strides = [1, 1]} : vector<8x384xf32> to vector<8x128xf32>
    %758 = arith.addf %757, %690 : vector<8x128xf32>
    %759 = arith.mulf %754, %758 : vector<8x128xf32>
    %760 = arith.addf %756, %759 : vector<8x128xf32>
    %761 = math.tanh %760 : vector<8x128xf32>
    %cst_123 = arith.constant 1.000000e+00 : f32
    %762 = vector.broadcast %cst_123 : f32 to vector<8x128xf32>
    %763 = arith.subf %762, %755 : vector<8x128xf32>
    %764 = arith.mulf %763, %761 : vector<8x128xf32>
    %765 = arith.mulf %755, %741 : vector<8x128xf32>
    %766 = arith.addf %764, %765 : vector<8x128xf32>
    %767 = vector.extract_strided_slice %687 {offsets = [24, 0], sizes = [8, 384], strides = [1, 1]} : vector<64x384xf32> to vector<8x384xf32>
    %768 = vector.extract_strided_slice %688 {offsets = [32, 0], sizes = [8, 384], strides = [1, 1]} : vector<64x384xf32> to vector<8x384xf32>
    %769 = arith.addf %767, %768 : vector<8x384xf32>
    %cst_124 = arith.constant dense<0.000000e+00> : vector<8x384xf32>
    %770 = tpu.matmul %766, %682, %cst_124 {dimension_numbers = #tpu.dot_dimension_numbers<[1], [0], [0], [1], [0, 0, 1, 1], [], []>} : vector<8x128xf32>, vector<128x384xf32>, vector<8x384xf32> -> vector<8x384xf32>
    %771 = vector.extract_strided_slice %769 {offsets = [0, 0], sizes = [8, 256], strides = [1, 1]} : vector<8x384xf32> to vector<8x256xf32>
    %772 = vector.extract_strided_slice %770 {offsets = [0, 0], sizes = [8, 256], strides = [1, 1]} : vector<8x384xf32> to vector<8x256xf32>
    %773 = arith.addf %771, %772 : vector<8x256xf32>
    %774 = arith.negf %773 : vector<8x256xf32>
    %775 = math.exp %774 : vector<8x256xf32>
    %cst_125 = arith.constant 1.000000e+00 : f32
    %776 = vector.broadcast %cst_125 : f32 to vector<8x256xf32>
    %777 = arith.addf %776, %775 : vector<8x256xf32>
    %778 = arith.divf %776, %777 : vector<8x256xf32>
    %779 = vector.extract_strided_slice %778 {offsets = [0, 0], sizes = [8, 128], strides = [1, 1]} : vector<8x256xf32> to vector<8x128xf32>
    %780 = vector.extract_strided_slice %778 {offsets = [0, 128], sizes = [8, 128], strides = [1, 1]} : vector<8x256xf32> to vector<8x128xf32>
    %781 = vector.extract_strided_slice %769 {offsets = [0, 256], sizes = [8, 128], strides = [1, 1]} : vector<8x384xf32> to vector<8x128xf32>
    %782 = vector.extract_strided_slice %770 {offsets = [0, 256], sizes = [8, 128], strides = [1, 1]} : vector<8x384xf32> to vector<8x128xf32>
    %783 = arith.addf %782, %690 : vector<8x128xf32>
    %784 = arith.mulf %779, %783 : vector<8x128xf32>
    %785 = arith.addf %781, %784 : vector<8x128xf32>
    %786 = math.tanh %785 : vector<8x128xf32>
    %cst_126 = arith.constant 1.000000e+00 : f32
    %787 = vector.broadcast %cst_126 : f32 to vector<8x128xf32>
    %788 = arith.subf %787, %780 : vector<8x128xf32>
    %789 = arith.mulf %788, %786 : vector<8x128xf32>
    %790 = arith.mulf %780, %766 : vector<8x128xf32>
    %791 = arith.addf %789, %790 : vector<8x128xf32>
    %792 = vector.extract_strided_slice %687 {offsets = [32, 0], sizes = [8, 384], strides = [1, 1]} : vector<64x384xf32> to vector<8x384xf32>
    %793 = vector.extract_strided_slice %688 {offsets = [24, 0], sizes = [8, 384], strides = [1, 1]} : vector<64x384xf32> to vector<8x384xf32>
    %794 = arith.addf %792, %793 : vector<8x384xf32>
    %cst_127 = arith.constant dense<0.000000e+00> : vector<8x384xf32>
    %795 = tpu.matmul %791, %682, %cst_127 {dimension_numbers = #tpu.dot_dimension_numbers<[1], [0], [0], [1], [0, 0, 1, 1], [], []>} : vector<8x128xf32>, vector<128x384xf32>, vector<8x384xf32> -> vector<8x384xf32>
    %796 = vector.extract_strided_slice %794 {offsets = [0, 0], sizes = [8, 256], strides = [1, 1]} : vector<8x384xf32> to vector<8x256xf32>
    %797 = vector.extract_strided_slice %795 {offsets = [0, 0], sizes = [8, 256], strides = [1, 1]} : vector<8x384xf32> to vector<8x256xf32>
    %798 = arith.addf %796, %797 : vector<8x256xf32>
    %799 = arith.negf %798 : vector<8x256xf32>
    %800 = math.exp %799 : vector<8x256xf32>
    %cst_128 = arith.constant 1.000000e+00 : f32
    %801 = vector.broadcast %cst_128 : f32 to vector<8x256xf32>
    %802 = arith.addf %801, %800 : vector<8x256xf32>
    %803 = arith.divf %801, %802 : vector<8x256xf32>
    %804 = vector.extract_strided_slice %803 {offsets = [0, 0], sizes = [8, 128], strides = [1, 1]} : vector<8x256xf32> to vector<8x128xf32>
    %805 = vector.extract_strided_slice %803 {offsets = [0, 128], sizes = [8, 128], strides = [1, 1]} : vector<8x256xf32> to vector<8x128xf32>
    %806 = vector.extract_strided_slice %794 {offsets = [0, 256], sizes = [8, 128], strides = [1, 1]} : vector<8x384xf32> to vector<8x128xf32>
    %807 = vector.extract_strided_slice %795 {offsets = [0, 256], sizes = [8, 128], strides = [1, 1]} : vector<8x384xf32> to vector<8x128xf32>
    %808 = arith.addf %807, %690 : vector<8x128xf32>
    %809 = arith.mulf %804, %808 : vector<8x128xf32>
    %810 = arith.addf %806, %809 : vector<8x128xf32>
    %811 = math.tanh %810 : vector<8x128xf32>
    %cst_129 = arith.constant 1.000000e+00 : f32
    %812 = vector.broadcast %cst_129 : f32 to vector<8x128xf32>
    %813 = arith.subf %812, %805 : vector<8x128xf32>
    %814 = arith.mulf %813, %811 : vector<8x128xf32>
    %815 = arith.mulf %805, %791 : vector<8x128xf32>
    %816 = arith.addf %814, %815 : vector<8x128xf32>
    %817 = vector.extract_strided_slice %687 {offsets = [40, 0], sizes = [8, 384], strides = [1, 1]} : vector<64x384xf32> to vector<8x384xf32>
    %818 = vector.extract_strided_slice %688 {offsets = [16, 0], sizes = [8, 384], strides = [1, 1]} : vector<64x384xf32> to vector<8x384xf32>
    %819 = arith.addf %817, %818 : vector<8x384xf32>
    %cst_130 = arith.constant dense<0.000000e+00> : vector<8x384xf32>
    %820 = tpu.matmul %816, %682, %cst_130 {dimension_numbers = #tpu.dot_dimension_numbers<[1], [0], [0], [1], [0, 0, 1, 1], [], []>} : vector<8x128xf32>, vector<128x384xf32>, vector<8x384xf32> -> vector<8x384xf32>
    %821 = vector.extract_strided_slice %819 {offsets = [0, 0], sizes = [8, 256], strides = [1, 1]} : vector<8x384xf32> to vector<8x256xf32>
    %822 = vector.extract_strided_slice %820 {offsets = [0, 0], sizes = [8, 256], strides = [1, 1]} : vector<8x384xf32> to vector<8x256xf32>
    %823 = arith.addf %821, %822 : vector<8x256xf32>
    %824 = arith.negf %823 : vector<8x256xf32>
    %825 = math.exp %824 : vector<8x256xf32>
    %cst_131 = arith.constant 1.000000e+00 : f32
    %826 = vector.broadcast %cst_131 : f32 to vector<8x256xf32>
    %827 = arith.addf %826, %825 : vector<8x256xf32>
    %828 = arith.divf %826, %827 : vector<8x256xf32>
    %829 = vector.extract_strided_slice %828 {offsets = [0, 0], sizes = [8, 128], strides = [1, 1]} : vector<8x256xf32> to vector<8x128xf32>
    %830 = vector.extract_strided_slice %828 {offsets = [0, 128], sizes = [8, 128], strides = [1, 1]} : vector<8x256xf32> to vector<8x128xf32>
    %831 = vector.extract_strided_slice %819 {offsets = [0, 256], sizes = [8, 128], strides = [1, 1]} : vector<8x384xf32> to vector<8x128xf32>
    %832 = vector.extract_strided_slice %820 {offsets = [0, 256], sizes = [8, 128], strides = [1, 1]} : vector<8x384xf32> to vector<8x128xf32>
    %833 = arith.addf %832, %690 : vector<8x128xf32>
    %834 = arith.mulf %829, %833 : vector<8x128xf32>
    %835 = arith.addf %831, %834 : vector<8x128xf32>
    %836 = math.tanh %835 : vector<8x128xf32>
    %cst_132 = arith.constant 1.000000e+00 : f32
    %837 = vector.broadcast %cst_132 : f32 to vector<8x128xf32>
    %838 = arith.subf %837, %830 : vector<8x128xf32>
    %839 = arith.mulf %838, %836 : vector<8x128xf32>
    %840 = arith.mulf %830, %816 : vector<8x128xf32>
    %841 = arith.addf %839, %840 : vector<8x128xf32>
    %842 = vector.extract_strided_slice %687 {offsets = [48, 0], sizes = [8, 384], strides = [1, 1]} : vector<64x384xf32> to vector<8x384xf32>
    %843 = vector.extract_strided_slice %688 {offsets = [8, 0], sizes = [8, 384], strides = [1, 1]} : vector<64x384xf32> to vector<8x384xf32>
    %844 = arith.addf %842, %843 : vector<8x384xf32>
    %cst_133 = arith.constant dense<0.000000e+00> : vector<8x384xf32>
    %845 = tpu.matmul %841, %682, %cst_133 {dimension_numbers = #tpu.dot_dimension_numbers<[1], [0], [0], [1], [0, 0, 1, 1], [], []>} : vector<8x128xf32>, vector<128x384xf32>, vector<8x384xf32> -> vector<8x384xf32>
    %846 = vector.extract_strided_slice %844 {offsets = [0, 0], sizes = [8, 256], strides = [1, 1]} : vector<8x384xf32> to vector<8x256xf32>
    %847 = vector.extract_strided_slice %845 {offsets = [0, 0], sizes = [8, 256], strides = [1, 1]} : vector<8x384xf32> to vector<8x256xf32>
    %848 = arith.addf %846, %847 : vector<8x256xf32>
    %849 = arith.negf %848 : vector<8x256xf32>
    %850 = math.exp %849 : vector<8x256xf32>
    %cst_134 = arith.constant 1.000000e+00 : f32
    %851 = vector.broadcast %cst_134 : f32 to vector<8x256xf32>
    %852 = arith.addf %851, %850 : vector<8x256xf32>
    %853 = arith.divf %851, %852 : vector<8x256xf32>
    %854 = vector.extract_strided_slice %853 {offsets = [0, 0], sizes = [8, 128], strides = [1, 1]} : vector<8x256xf32> to vector<8x128xf32>
    %855 = vector.extract_strided_slice %853 {offsets = [0, 128], sizes = [8, 128], strides = [1, 1]} : vector<8x256xf32> to vector<8x128xf32>
    %856 = vector.extract_strided_slice %844 {offsets = [0, 256], sizes = [8, 128], strides = [1, 1]} : vector<8x384xf32> to vector<8x128xf32>
    %857 = vector.extract_strided_slice %845 {offsets = [0, 256], sizes = [8, 128], strides = [1, 1]} : vector<8x384xf32> to vector<8x128xf32>
    %858 = arith.addf %857, %690 : vector<8x128xf32>
    %859 = arith.mulf %854, %858 : vector<8x128xf32>
    %860 = arith.addf %856, %859 : vector<8x128xf32>
    %861 = math.tanh %860 : vector<8x128xf32>
    %cst_135 = arith.constant 1.000000e+00 : f32
    %862 = vector.broadcast %cst_135 : f32 to vector<8x128xf32>
    %863 = arith.subf %862, %855 : vector<8x128xf32>
    %864 = arith.mulf %863, %861 : vector<8x128xf32>
    %865 = arith.mulf %855, %841 : vector<8x128xf32>
    %866 = arith.addf %864, %865 : vector<8x128xf32>
    %867 = vector.extract_strided_slice %687 {offsets = [56, 0], sizes = [8, 384], strides = [1, 1]} : vector<64x384xf32> to vector<8x384xf32>
    %868 = vector.extract_strided_slice %688 {offsets = [0, 0], sizes = [8, 384], strides = [1, 1]} : vector<64x384xf32> to vector<8x384xf32>
    %869 = arith.addf %867, %868 : vector<8x384xf32>
    %cst_136 = arith.constant dense<0.000000e+00> : vector<8x384xf32>
    %870 = tpu.matmul %866, %682, %cst_136 {dimension_numbers = #tpu.dot_dimension_numbers<[1], [0], [0], [1], [0, 0, 1, 1], [], []>} : vector<8x128xf32>, vector<128x384xf32>, vector<8x384xf32> -> vector<8x384xf32>
    %871 = vector.extract_strided_slice %869 {offsets = [0, 0], sizes = [8, 256], strides = [1, 1]} : vector<8x384xf32> to vector<8x256xf32>
    %872 = vector.extract_strided_slice %870 {offsets = [0, 0], sizes = [8, 256], strides = [1, 1]} : vector<8x384xf32> to vector<8x256xf32>
    %873 = arith.addf %871, %872 : vector<8x256xf32>
    %874 = arith.negf %873 : vector<8x256xf32>
    %875 = math.exp %874 : vector<8x256xf32>
    %cst_137 = arith.constant 1.000000e+00 : f32
    %876 = vector.broadcast %cst_137 : f32 to vector<8x256xf32>
    %877 = arith.addf %876, %875 : vector<8x256xf32>
    %878 = arith.divf %876, %877 : vector<8x256xf32>
    %879 = vector.extract_strided_slice %878 {offsets = [0, 0], sizes = [8, 128], strides = [1, 1]} : vector<8x256xf32> to vector<8x128xf32>
    %880 = vector.extract_strided_slice %878 {offsets = [0, 128], sizes = [8, 128], strides = [1, 1]} : vector<8x256xf32> to vector<8x128xf32>
    %881 = vector.extract_strided_slice %869 {offsets = [0, 256], sizes = [8, 128], strides = [1, 1]} : vector<8x384xf32> to vector<8x128xf32>
    %882 = vector.extract_strided_slice %870 {offsets = [0, 256], sizes = [8, 128], strides = [1, 1]} : vector<8x384xf32> to vector<8x128xf32>
    %883 = arith.addf %882, %690 : vector<8x128xf32>
    %884 = arith.mulf %879, %883 : vector<8x128xf32>
    %885 = arith.addf %881, %884 : vector<8x128xf32>
    %886 = math.tanh %885 : vector<8x128xf32>
    %cst_138 = arith.constant 1.000000e+00 : f32
    %887 = vector.broadcast %cst_138 : f32 to vector<8x128xf32>
    %888 = arith.subf %887, %880 : vector<8x128xf32>
    %889 = arith.mulf %888, %886 : vector<8x128xf32>
    %890 = arith.mulf %880, %866 : vector<8x128xf32>
    %891 = arith.addf %889, %890 : vector<8x128xf32>
    %892 = tpu.iota {dimensions = array<i32: 1>} : vector<8x128xi32>
    %c64_i32 = arith.constant 64 : i32
    %893 = vector.broadcast %c64_i32 : i32 to vector<8x128xi32>
    %894 = arith.cmpi slt, %892, %893 : vector<8x128xi32>
    %895 = arith.select %894, %716, %891 : vector<8x128xi1>, vector<8x128xf32>
    %896 = arith.select %894, %741, %866 : vector<8x128xi1>, vector<8x128xf32>
    %897 = arith.select %894, %766, %841 : vector<8x128xi1>, vector<8x128xf32>
    %898 = arith.select %894, %791, %816 : vector<8x128xi1>, vector<8x128xf32>
    %899 = arith.select %894, %816, %791 : vector<8x128xi1>, vector<8x128xf32>
    %900 = arith.select %894, %841, %766 : vector<8x128xi1>, vector<8x128xf32>
    %901 = arith.select %894, %866, %741 : vector<8x128xi1>, vector<8x128xf32>
    %902 = arith.select %894, %891, %716 : vector<8x128xi1>, vector<8x128xf32>
    %903 = tpu.concatenate %895, %896, %897, %898, %899, %900, %901, %902 in 0 : vector<8x128xf32>, vector<8x128xf32>, vector<8x128xf32>, vector<8x128xf32>, vector<8x128xf32>, vector<8x128xf32>, vector<8x128xf32>, vector<8x128xf32> -> vector<64x128xf32>
    %c416 = arith.constant 416 : index
    %c0_139 = arith.constant 0 : index
    %904 = vector.load %arg2[%c416, %c0_139] : memref<544x384xf32, #tpu.memory_space<vmem>>, vector<128x5xf32>
    %cst_140 = arith.constant dense<0.000000e+00> : vector<64x5xf32>
    %905 = tpu.matmul %903, %904, %cst_140 {dimension_numbers = #tpu.dot_dimension_numbers<[1], [0], [0], [1], [0, 0, 1, 1], [], []>} : vector<64x128xf32>, vector<128x5xf32>, vector<64x5xf32> -> vector<64x5xf32>
    %c72 = arith.constant 72 : index
    %c0_141 = arith.constant 0 : index
    %906 = vector.load %arg3[%c72, %c0_141] : memref<80x384xf32, #tpu.memory_space<vmem>>, vector<1x5xf32>
    %907 = vector.broadcast %906 : vector<1x5xf32> to vector<64x5xf32>
    %908 = arith.addf %905, %907 : vector<64x5xf32>
    %c0_142 = arith.constant 0 : index
    %c0_143 = arith.constant 0 : index
    %909 = vector.load %arg4[%c0_142, %c0_143] : memref<64x5xf32, #tpu.memory_space<vmem>>, vector<64x5xf32>
    tpu.vector_store %arg4[%c0_142, %c0_143], %908 {strides = array<i32>} : memref<64x5xf32, #tpu.memory_space<vmem>>, vector<64x5xf32>,
    return
  }
  func.func @transform_0(%arg0: i32) -> (i32, i32) {
    %c0_i32 = arith.constant 0 : i32
    %c0_i32_0 = arith.constant 0 : i32
    %c0_i32_1 = arith.constant 0 : i32
    return %c0_i32, %c0_i32_0 : i32, i32
  }
  func.func @transform_1(%arg0: i32) -> (i32, i32) {
    %c0_i32 = arith.constant 0 : i32
    %c0_i32_0 = arith.constant 0 : i32
    %c0_i32_1 = arith.constant 0 : i32
    return %c0_i32, %c0_i32_0 : i32, i32
  }
  func.func @transform_2(%arg0: i32) -> (i32, i32) {
    %c0_i32 = arith.constant 0 : i32
    %c0_i32_0 = arith.constant 0 : i32
    %c0_i32_1 = arith.constant 0 : i32
    return %c0_i32, %c0_i32_0 : i32, i32
  }
  func.func @transform_3(%arg0: i32) -> (i32, i32) {
    %c0_i32 = arith.constant 0 : i32
    %c0_i32_0 = arith.constant 0 : i32
    %c0_i32_1 = arith.constant 0 : i32
    return %c0_i32, %c0_i32_0 : i32, i32
  }
}

</mosaic_0001>

<llo_original>
// kernel: bigru_forward.1
$region0: #{bigru_forward.1}
  #allocation0 [shape = 'u32[]', space=smem, size = 0x4, offset = 0x4, fixed_abs, tag = 'smem constant byte address 0x4 - core index']
  #allocation1 [shape = 'u32[144,128]{1,0:T(1,128)}', space=vmem, size = 0x12000, scoped, tag = 'internal scratch']
  %s0 = inlined_call_operand.vmem [shape: f32[64,8], index: 0, kind: input, shape index: {}]
  %s1 = inlined_call_operand.hbm [shape: f32[544,384], index: 1, kind: input, shape index: {}]
  %s2 = inlined_call_operand.hbm [shape: f32[80,384], index: 2, kind: input, shape index: {}]
  %s3 = inlined_call_operand.vmem [shape: f32[64,5], index: 3, kind: output, shape index: {}]
  %s4 = sld [smem:[#allocation0]]
  $region30: #{bigru_forward.1} parent=0
    _
  %s6 = ssub.s32 1, %s4
  %s7 = scalar_select 0, %s6, %s4
  $region1: #{bigru_forward.1} parent=0
    #allocation2 [shape = 'u8[835584]{0}', space=vmem, size = 0xcc000, scoped, tag = 'input window, operand 1, single buffered']
    #allocation3 [shape = 's32[1]{0}', space=sflag, size = 0x4, scoped, tag = 'scoped memory for bigru_forward.1']
    #allocation4 [shape = 'u8[122880]{0}', space=vmem, size = 0x1e000, scoped, tag = 'input window, operand 2, single buffered']
    #allocation5 [shape = 's32[1]{0}', space=sflag, size = 0x4, scoped, tag = 'scoped memory for bigru_forward.1']
    %8 = vsyncpa [#allocation3], 0
    %9 = vsyncpa [#allocation5], 0
    // Predicated region
    $region2: #{bigru_forward.1} parent=1 // pred_check
      _
    $region3: #{bigru_forward.1} parent=1 // pred_check_branch
      %11 = sbr.rel (0) target = $region5
    $region4: #{bigru_forward.1} parent=1 // pred_region
      _
    $region5: #{bigru_forward.1} parent=1 // pred_fallthru
      _
    // Predicated region
    $region6: #{bigru_forward.1} parent=1 // pred_check
      _
    $region7: #{bigru_forward.1} parent=1 // pred_check_branch
      %13 = sbr.rel (0) target = $region9
    $region8: #{bigru_forward.1} parent=1 // pred_region
      %s15 = ssub.s32 26112, 26112
      %16 = vsyncadd [#allocation3], %s15
      %s17 = sshll.u32 [#allocation2], 4
      %s18 = int_to_ptr.vmem [resolvable:$true] %s17
      %23 = dma.hbm_to_vmem [thread:$0]  %s1, 26112, %s18, [#allocation3], 384, 384, 24
    $region9: #{bigru_forward.1} parent=1 // pred_fallthru
      _
    // Predicated region
    $region10: #{bigru_forward.1} parent=1 // pred_check
      _
    $region11: #{bigru_forward.1} parent=1 // pred_check_branch
      %25 = sbr.rel (0) target = $region13
    $region12: #{bigru_forward.1} parent=1 // pred_region
      %s27 = ssub.s32 3840, 3840
      %28 = vsyncadd [#allocation5], %s27
      %s29 = sshll.u32 [#allocation4], 4
      %s30 = int_to_ptr.vmem [resolvable:$true] %s29
      %35 = dma.hbm_to_vmem [thread:$0]  %s2, 3840, %s30, [#allocation5], 384, 384, 24
    $region13: #{bigru_forward.1} parent=1 // pred_fallthru
      _
    // Predicated region
    $region14: #{bigru_forward.1} parent=1 // pred_check
      _
    $region15: #{bigru_forward.1} parent=1 // pred_check_branch
      %37 = sbr.rel (0) target = $region17
    $region16: #{bigru_forward.1} parent=1 // pred_region
      %38 = dma.done [#allocation3], 26112
    $region17: #{bigru_forward.1} parent=1 // pred_fallthru
      _
    // Predicated region
    $region18: #{bigru_forward.1} parent=1 // pred_check
      _
    $region19: #{bigru_forward.1} parent=1 // pred_check_branch
      %40 = sbr.rel (0) target = $region21
    $region20: #{bigru_forward.1} parent=1 // pred_region
      %41 = dma.done [#allocation5], 3840
    $region21: #{bigru_forward.1} parent=1 // pred_fallthru
      _
    %v42 = vld [vmem:[%s0] sm:$0xff]
    %v43 = vld [vmem:[%s0 + $0x8] sm:$0xff]
    %v44 = vld [vmem:[%s0 + $0x10] sm:$0xff]
    %v45 = vld [vmem:[%s0 + $0x18] sm:$0xff]
    %v46 = vld [vmem:[%s0 + $0x20] sm:$0xff]
    %v47 = vld [vmem:[%s0 + $0x28] sm:$0xff]
    %v48 = vld [vmem:[%s0 + $0x30] sm:$0xff]
    %v49 = vld [vmem:[%s0 + $0x38] sm:$0xff]
    %v50 = vld [vmem:[#allocation2] sm:$0xff]
    %v51 = vld [vmem:[#allocation2 + $0x18] sm:$0xff]
    %v52 = vld [vmem:[#allocation2 + $0x30] sm:$0xff]
    %v53 = vld [vmem:[#allocation2 + $0x48] sm:$0xff]
    %v54 = vld [vmem:[#allocation2 + $0x60] sm:$0xff]
    %v55 = vld [vmem:[#allocation2 + $0x78] sm:$0xff]
    %v56 = vld [vmem:[#allocation4] ss:$0 sm:$0xff]
    %v57 = vld [vmem:[#allocation4 + $0x18] ss:$0 sm:$0xff]
    %vm58 = vcmask 64512
    %v60 = vsel %vm58, %v42, 0
    %v63 = vsel %vm58, %v43, 0
    %v66 = vsel %vm58, %v44, 0
    %v69 = vsel %vm58, %v45, 0
    %v72 = vsel %vm58, %v46, 0
    %v75 = vsel %vm58, %v47, 0
    %v78 = vsel %vm58, %v48, 0
    %v81 = vsel %vm58, %v49, 0
    %83 = vmatprep.subr.mxu0 0.0
    %84 = vmatpush1.msra.mxu0 %v50
    %85 = vmatprep.subr.mxu0 0.0
    %86 = vmatpush1.msra.mxu0 0.0
    %87 = vmatprep.subr.mxu0 0.0
    %88 = vmatpush1.msra.mxu0 0.0
    %89 = vmatprep.subr.mxu0 0.0
    %90 = vmatpush1.msra.mxu0 0.0
    %91 = vmatprep.subr.mxu0 0.0
    %92 = vmatpush1.msra.mxu0 0.0
    %93 = vmatprep.subr.mxu0 0.0
    %94 = vmatpush1.msra.mxu0 0.0
    %95 = vmatprep.subr.mxu0 0.0
    %96 = vmatpush1.msra.mxu0 0.0
    %97 = vmatprep.subr.mxu0 0.0
    %98 = vmatpush1.msra.mxu0 0.0
    %99 = vmatprep.subr.mxu0 0.0
    %100 = vmatpush1.msra.mxu0 0.0
    %101 = vmatprep.subr.mxu0 0.0
    %102 = vmatpush1.msra.mxu0 0.0
    %103 = vmatprep.subr.mxu0 0.0
    %104 = vmatpush1.msra.mxu0 0.0
    %105 = vmatprep.subr.mxu0 0.0
    %106 = vmatpush1.msra.mxu0 0.0
    %107 = vmatprep.subr.mxu0 0.0
    %108 = vmatpush1.msra.mxu0 0.0
    %109 = vmatprep.subr.mxu0 0.0
    %110 = vmatpush1.msra.mxu0 0.0
    %111 = vmatprep.subr.mxu0 0.0
    %112 = vmatpush1.msra.mxu0 0.0
    %113 = vmatprep.subr.mxu0 0.0
    %114 = vmatpush1.msra.mxu0 0.0
    %115 = vmatprep.subr.mxu0 0.0
    %116 = vmatpush1.msra.mxu0 0.0
    %117 = vmatprep.subr.mxu0 0.0
    %118 = vmatpush1.msra.mxu0 0.0
    %119 = vmatprep.subr.mxu0 0.0
    %120 = vmatpush1.msra.mxu0 0.0
    %121 = vmatprep.subr.mxu0 0.0
    %122 = vmatpush1.msra.mxu0 0.0
    %123 = vmatprep.subr.mxu0 0.0
    %124 = vmatpush1.msra.mxu0 0.0
    %125 = vmatprep.subr.mxu0 0.0
    %126 = vmatpush1.msra.mxu0 0.0
    %127 = vmatprep.subr.mxu0 0.0
    %128 = vmatpush1.msra.mxu0 0.0
    %129 = vmatprep.subr.mxu0 0.0
    %130 = vmatpush1.msra.mxu0 0.0
    %131 = vmatprep.subr.mxu0 0.0
    %132 = vmatpush1.msra.mxu0 0.0
    %133 = vmatprep.subr.mxu0 0.0
    %134 = vmatpush1.msra.mxu0 0.0
    %135 = vmatprep.subr.mxu0 0.0
    %136 = vmatpush1.msra.mxu0 0.0
    %137 = vmatprep.subr.mxu0 0.0
    %138 = vmatpush1.msra.mxu0 0.0
    %139 = vmatprep.subr.mxu0 0.0
    %140 = vmatpush1.msra.mxu0 0.0
    %141 = vmatprep.subr.mxu0 0.0
    %142 = vmatpush1.msra.mxu0 0.0
    %143 = vmatprep.subr.mxu0 0.0
    %144 = vmatpush1.msra.mxu0 0.0
    %145 = vmatprep.subr.mxu0 0.0
    %146 = vmatpush1.msra.mxu0 0.0
    %147 = vmatprep.mubr.f32.mxu0 0.0
    %148 = vmatmul.mubr.f32.gmra.mrb[0].mxu0 %v60
    %v149 = vpop.f32.mrb[0].mxu0
    %v150 = vadd.f32 %v56, %v149
    %v151 = vpop.f32.mrb[0].mxu0
    %152 = vmatprep.mubr.f32.mxu0 0.0
    %153 = vmatmul.mubr.f32.gmra.mrb[0].mxu0 %v63
    %v154 = vpop.f32.mrb[0].mxu0
    %v155 = vadd.f32 %v56, %v154
    %v156 = vpop.f32.mrb[0].mxu0
    %157 = vmatprep.mubr.f32.mxu0 0.0
    %158 = vmatmul.mubr.f32.gmra.mrb[0].mxu0 %v66
    %v159 = vpop.f32.mrb[0].mxu0
    %v160 = vadd.f32 %v56, %v159
    %v161 = vpop.f32.mrb[0].mxu0
    %162 = vmatprep.mubr.f32.mxu0 0.0
    %163 = vmatmul.mubr.f32.gmra.mrb[0].mxu0 %v69
    %v164 = vpop.f32.mrb[0].mxu0
    %v165 = vadd.f32 %v56, %v164
    %v166 = vpop.f32.mrb[0].mxu0
    %167 = vmatprep.mubr.f32.mxu0 0.0
    %168 = vmatmul.mubr.f32.gmra.mrb[0].mxu0 %v72
    %v169 = vpop.f32.mrb[0].mxu0
    %v170 = vadd.f32 %v56, %v169
    %v171 = vpop.f32.mrb[0].mxu0
    %172 = vmatprep.mubr.f32.mxu0 0.0
    %173 = vmatmul.mubr.f32.gmra.mrb[0].mxu0 %v75
    %v174 = vpop.f32.mrb[0].mxu0
    %v175 = vadd.f32 %v56, %v174
    %v176 = vpop.f32.mrb[0].mxu0
    %177 = vmatprep.mubr.f32.mxu0 0.0
    %178 = vmatmul.mubr.f32.gmra.mrb[0].mxu0 %v78
    %v179 = vpop.f32.mrb[0].mxu0
    %v180 = vadd.f32 %v56, %v179
    %v181 = vpop.f32.mrb[0].mxu0
    %182 = vmatprep.mubr.f32.mxu0 0.0
    %183 = vmatmul.mubr.f32.gmra.mrb[0].mxu0 %v81
    %v184 = vpop.f32.mrb[0].mxu0
    %v185 = vadd.f32 %v56, %v184
    %v186 = vpop.f32.mrb[0].mxu0
    %187 = vdwg.mxu0
    %188 = vmatprep.subr.mxu0 0.0
    %189 = vmatpush1.msra.mxu0 %v51
    %190 = vmatprep.subr.mxu0 0.0
    %191 = vmatpush1.msra.mxu0 0.0
    %192 = vmatprep.subr.mxu0 0.0
    %193 = vmatpush1.msra.mxu0 0.0
    %194 = vmatprep.subr.mxu0 0.0
    %195 = vmatpush1.msra.mxu0 0.0
    %196 = vmatprep.subr.mxu0 0.0
    %197 = vmatpush1.msra.mxu0 0.0
    %198 = vmatprep.subr.mxu0 0.0
    %199 = vmatpush1.msra.mxu0 0.0
    %200 = vmatprep.subr.mxu0 0.0
    %201 = vmatpush1.msra.mxu0 0.0
    %202 = vmatprep.subr.mxu0 0.0
    %203 = vmatpush1.msra.mxu0 0.0
    %204 = vmatprep.subr.mxu0 0.0
    %205 = vmatpush1.msra.mxu0 0.0
    %206 = vmatprep.subr.mxu0 0.0
    %207 = vmatpush1.msra.mxu0 0.0
    %208 = vmatprep.subr.mxu0 0.0
    %209 = vmatpush1.msra.mxu0 0.0
    %210 = vmatprep.subr.mxu0 0.0
    %211 = vmatpush1.msra.mxu0 0.0
    %212 = vmatprep.subr.mxu0 0.0
    %213 = vmatpush1.msra.mxu0 0.0
    %214 = vmatprep.subr.mxu0 0.0
    %215 = vmatpush1.msra.mxu0 0.0
    %216 = vmatprep.subr.mxu0 0.0
    %217 = vmatpush1.msra.mxu0 0.0
    %218 = vmatprep.subr.mxu0 0.0
    %219 = vmatpush1.msra.mxu0 0.0
    %220 = vmatprep.subr.mxu0 0.0
    %221 = vmatpush1.msra.mxu0 0.0
    %222 = vmatprep.subr.mxu0 0.0
    %223 = vmatpush1.msra.mxu0 0.0
    %224 = vmatprep.subr.mxu0 0.0
    %225 = vmatpush1.msra.mxu0 0.0
    %226 = vmatprep.subr.mxu0 0.0
    %227 = vmatpush1.msra.mxu0 0.0
    %228 = vmatprep.subr.mxu0 0.0
    %229 = vmatpush1.msra.mxu0 0.0
    %230 = vmatprep.subr.mxu0 0.0
    %231 = vmatpush1.msra.mxu0 0.0
    %232 = vmatprep.subr.mxu0 0.0
    %233 = vmatpush1.msra.mxu0 0.0
    %234 = vmatprep.subr.mxu0 0.0
    %235 = vmatpush1.msra.mxu0 0.0
    %236 = vmatprep.subr.mxu0 0.0
    %237 = vmatpush1.msra.mxu0 0.0
    %238 = vmatprep.subr.mxu0 0.0
    %239 = vmatpush1.msra.mxu0 0.0
    %240 = vmatprep.subr.mxu0 0.0
    %241 = vmatpush1.msra.mxu0 0.0
    %242 = vmatprep.subr.mxu0 0.0
    %243 = vmatpush1.msra.mxu0 0.0
    %244 = vmatprep.subr.mxu0 0.0
    %245 = vmatpush1.msra.mxu0 0.0
    %246 = vmatprep.subr.mxu0 0.0
    %247 = vmatpush1.msra.mxu0 0.0
    %248 = vmatprep.subr.mxu0 0.0
    %249 = vmatpush1.msra.mxu0 0.0
    %250 = vmatprep.subr.mxu0 0.0
    %251 = vmatpush1.msra.mxu0 0.0
    %252 = vmatprep.mubr.f32.mxu0 0.0
    %253 = vmatmul.mubr.f32.gmra.mrb[0].mxu0 %v60
    %v254 = vpop.f32.mrb[0].mxu0
    %v255 = vadd.f32 0.0, %v254
    %v256 = vpop.f32.mrb[0].mxu0
    %257 = vmatprep.mubr.f32.mxu0 0.0
    %258 = vmatmul.mubr.f32.gmra.mrb[0].mxu0 %v63
    %v259 = vpop.f32.mrb[0].mxu0
    %v260 = vadd.f32 0.0, %v259
    %v261 = vpop.f32.mrb[0].mxu0
    %262 = vmatprep.mubr.f32.mxu0 0.0
    %263 = vmatmul.mubr.f32.gmra.mrb[0].mxu0 %v66
    %v264 = vpop.f32.mrb[0].mxu0
    %v265 = vadd.f32 0.0, %v264
    %v266 = vpop.f32.mrb[0].mxu0
    %267 = vmatprep.mubr.f32.mxu0 0.0
    %268 = vmatmul.mubr.f32.gmra.mrb[0].mxu0 %v69
    %v269 = vpop.f32.mrb[0].mxu0
    %v270 = vadd.f32 0.0, %v269
    %v271 = vpop.f32.mrb[0].mxu0
    %272 = vmatprep.mubr.f32.mxu0 0.0
    %273 = vmatmul.mubr.f32.gmra.mrb[0].mxu0 %v72
    %v274 = vpop.f32.mrb[0].mxu0
    %v275 = vadd.f32 0.0, %v274
    %v276 = vpop.f32.mrb[0].mxu0
    %277 = vmatprep.mubr.f32.mxu0 0.0
    %278 = vmatmul.mubr.f32.gmra.mrb[0].mxu0 %v75
    %v279 = vpop.f32.mrb[0].mxu0
    %v280 = vadd.f32 0.0, %v279
    %v281 = vpop.f32.mrb[0].mxu0
    %282 = vmatprep.mubr.f32.mxu0 0.0
    %283 = vmatmul.mubr.f32.gmra.mrb[0].mxu0 %v78
    %v284 = vpop.f32.mrb[0].mxu0
    %v285 = vadd.f32 0.0, %v284
    %v286 = vpop.f32.mrb[0].mxu0
    %287 = vmatprep.mubr.f32.mxu0 0.0
    %288 = vmatmul.mubr.f32.gmra.mrb[0].mxu0 %v81
    %v289 = vpop.f32.mrb[0].mxu0
    %v290 = vadd.f32 0.0, %v289
    %v291 = vpop.f32.mrb[0].mxu0
    %292 = vdwg.mxu0
    %v293 = vadd.f32 %v150, %v290
    %vm294 = vcmask 261120
    %v296 = vsel %vm294, 0.0, 0
    %298 = vmatprep.subr.mxu0 0.0
    %299 = vmatpush1.msra.mxu0 %v52
    %300 = vmatprep.subr.mxu0 0.0
    %301 = vmatpush1.msra.mxu0 %v53
    %302 = vmatprep.subr.mxu0 0.0
    %303 = vmatpush1.msra.mxu0 %v54
    %304 = vmatprep.subr.mxu0 0.0
    %305 = vmatpush1.msra.mxu0 %v55
    %306 = vmatprep.subr.mxu0 0.0
    %307 = vmatpush1.msra.mxu0 0.0
    %308 = vmatprep.subr.mxu0 0.0
    %309 = vmatpush1.msra.mxu0 0.0
    %310 = vmatprep.subr.mxu0 0.0
    %311 = vmatpush1.msra.mxu0 0.0
    %312 = vmatprep.subr.mxu0 0.0
    %313 = vmatpush1.msra.mxu0 0.0
    %314 = vmatprep.subr.mxu0 0.0
    %315 = vmatpush1.msra.mxu0 0.0
    %316 = vmatprep.subr.mxu0 0.0
    %317 = vmatpush1.msra.mxu0 0.0
    %318 = vmatprep.subr.mxu0 0.0
    %319 = vmatpush1.msra.mxu0 0.0
    %320 = vmatprep.subr.mxu0 0.0
    %321 = vmatpush1.msra.mxu0 0.0
    %322 = vmatprep.subr.mxu0 0.0
    %323 = vmatpush1.msra.mxu0 0.0
    %324 = vmatprep.subr.mxu0 0.0
    %325 = vmatpush1.msra.mxu0 0.0
    %326 = vmatprep.subr.mxu0 0.0
    %327 = vmatpush1.msra.mxu0 0.0
    %328 = vmatprep.subr.mxu0 0.0
    %329 = vmatpush1.msra.mxu0 0.0
    %330 = vmatprep.subr.mxu0 0.0
    %331 = vmatpush1.msra.mxu0 0.0
    %332 = vmatprep.subr.mxu0 0.0
    %333 = vmatpush1.msra.mxu0 0.0
    %334 = vmatprep.subr.mxu0 0.0
    %335 = vmatpush1.msra.mxu0 0.0
    %336 = vmatprep.subr.mxu0 0.0
    %337 = vmatpush1.msra.mxu0 0.0
    %338 = vmatprep.subr.mxu0 0.0
    %339 = vmatpush1.msra.mxu0 0.0
    %340 = vmatprep.subr.mxu0 0.0
    %341 = vmatpush1.msra.mxu0 0.0
    %342 = vmatprep.subr.mxu0 0.0
    %343 = vmatpush1.msra.mxu0 0.0
    %344 = vmatprep.subr.mxu0 0.0
    %345 = vmatpush1.msra.mxu0 0.0
    %346 = vmatprep.subr.mxu0 0.0
    %347 = vmatpush1.msra.mxu0 0.0
    %348 = vmatprep.subr.mxu0 0.0
    %349 = vmatpush1.msra.mxu0 0.0
    %350 = vmatprep.subr.mxu0 0.0
    %351 = vmatpush1.msra.mxu0 0.0
    %352 = vmatprep.subr.mxu0 0.0
    %353 = vmatpush1.msra.mxu0 0.0
    %354 = vmatprep.subr.mxu0 0.0
    %355 = vmatpush1.msra.mxu0 0.0
    %356 = vmatprep.subr.mxu0 0.0
    %357 = vmatpush1.msra.mxu0 0.0
    %358 = vmatprep.subr.mxu0 0.0
    %359 = vmatpush1.msra.mxu0 0.0
    %360 = vmatprep.subr.mxu0 0.0
    %361 = vmatpush1.msra.mxu0 0.0
    %362 = vmatprep.mubr.f32.mxu0 0.0
    %363 = vmatmul.mubr.f32.gmra.mrb[0].mxu0 %v296
    %v364 = vpop.f32.mrb[0].mxu0
    %v365 = vadd.f32 0.0, %v364
    %v366 = vpop.f32.mrb[0].mxu0
    %367 = vdwg.mxu0
    %v368 = vadd.f32 %v293, %v365
    %v369 = vxor.u32 %v368, 2147483648
    %v370 = vmul.f32 %v369, 1.442695
    %v371 = vpow.pop %v370
    %v372 = vadd.f32 %v371, 1.0
    %v373 = vrcp.pop %v372
    %v374 = vmul.f32 1.0, %v373
    %376 = vrot.lane.b32.xlu0 %v57, 64
    %v377 = vpop.permute.xlu0 %376
    %v379 = vadd.f32 %v365, %v377
    %381 = vrot.lane.b32.xlu0 %v379, 64
    %v382 = vpop.permute.xlu0 %381
    %v384 = vmul.f32 %v374, %v382
    %386 = vrot.lane.b32.xlu0 %v384, 64
    %v387 = vpop.permute.xlu0 %386
    %v389 = vadd.f32 %v293, %v387
    %v390 = vtanh.pop %v389
    %v391 = vsub.f32 1.0, %v374
    %393 = vrot.lane.b32.xlu0 %v390, 96
    %v394 = vpop.permute.xlu0 %393
    %v396 = vmul.f32 %v391, %v394
    %v397 = vmul.f32 %v374, 0.0
    %v398 = vadd.f32 %v396, %v397
    %v399 = vadd.f32 %v155, %v285
    %401 = vrot.lane.b32.xlu0 %v398, 96
    %v402 = vpop.permute.xlu0 %401
    %v403 = vsel %vm294, %v402, 0
    %405 = vmatprep.subr.mxu0 0.0
    %406 = vmatpush1.msra.mxu0 %v52
    %407 = vmatprep.subr.mxu0 0.0
    %408 = vmatpush1.msra.mxu0 %v53
    %409 = vmatprep.subr.mxu0 0.0
    %410 = vmatpush1.msra.mxu0 %v54
    %411 = vmatprep.subr.mxu0 0.0
    %412 = vmatpush1.msra.mxu0 %v55
    %413 = vmatprep.subr.mxu0 0.0
    %414 = vmatpush1.msra.mxu0 0.0
    %415 = vmatprep.subr.mxu0 0.0
    %416 = vmatpush1.msra.mxu0 0.0
    %417 = vmatprep.subr.mxu0 0.0
    %418 = vmatpush1.msra.mxu0 0.0
    %419 = vmatprep.subr.mxu0 0.0
    %420 = vmatpush1.msra.mxu0 0.0
    %421 = vmatprep.subr.mxu0 0.0
    %422 = vmatpush1.msra.mxu0 0.0
    %423 = vmatprep.subr.mxu0 0.0
    %424 = vmatpush1.msra.mxu0 0.0
    %425 = vmatprep.subr.mxu0 0.0
    %426 = vmatpush1.msra.mxu0 0.0
    %427 = vmatprep.subr.mxu0 0.0
    %428 = vmatpush1.msra.mxu0 0.0
    %429 = vmatprep.subr.mxu0 0.0
    %430 = vmatpush1.msra.mxu0 0.0
    %431 = vmatprep.subr.mxu0 0.0
    %432 = vmatpush1.msra.mxu0 0.0
    %433 = vmatprep.subr.mxu0 0.0
    %434 = vmatpush1.msra.mxu0 0.0
    %435 = vmatprep.subr.mxu0 0.0
    %436 = vmatpush1.msra.mxu0 0.0
    %437 = vmatprep.subr.mxu0 0.0
    %438 = vmatpush1.msra.mxu0 0.0
    %439 = vmatprep.subr.mxu0 0.0
    %440 = vmatpush1.msra.mxu0 0.0
    %441 = vmatprep.subr.mxu0 0.0
    %442 = vmatpush1.msra.mxu0 0.0
    %443 = vmatprep.subr.mxu0 0.0
    %444 = vmatpush1.msra.mxu0 0.0
    %445 = vmatprep.subr.mxu0 0.0
    %446 = vmatpush1.msra.mxu0 0.0
    %447 = vmatprep.subr.mxu0 0.0
    %448 = vmatpush1.msra.mxu0 0.0
    %449 = vmatprep.subr.mxu0 0.0
    %450 = vmatpush1.msra.mxu0 0.0
    %451 = vmatprep.subr.mxu0 0.0
    %452 = vmatpush1.msra.mxu0 0.0
    %453 = vmatprep.subr.mxu0 0.0
    %454 = vmatpush1.msra.mxu0 0.0
    %455 = vmatprep.subr.mxu0 0.0
    %456 = vmatpush1.msra.mxu0 0.0
    %457 = vmatprep.subr.mxu0 0.0
    %458 = vmatpush1.msra.mxu0 0.0
    %459 = vmatprep.subr.mxu0 0.0
    %460 = vmatpush1.msra.mxu0 0.0
    %461 = vmatprep.subr.mxu0 0.0
    %462 = vmatpush1.msra.mxu0 0.0
    %463 = vmatprep.subr.mxu0 0.0
    %464 = vmatpush1.msra.mxu0 0.0
    %465 = vmatprep.subr.mxu0 0.0
    %466 = vmatpush1.msra.mxu0 0.0
    %467 = vmatprep.subr.mxu0 0.0
    %468 = vmatpush1.msra.mxu0 0.0
    %469 = vmatprep.mubr.f32.mxu0 0.0
    %470 = vmatmul.mubr.f32.gmra.mrb[0].mxu0 %v403
    %v471 = vpop.f32.mrb[0].mxu0
    %v472 = vadd.f32 0.0, %v471
    %v473 = vpop.f32.mrb[0].mxu0
    %474 = vdwg.mxu0
    %v475 = vadd.f32 %v399, %v472
    %v476 = vxor.u32 %v475, 2147483648
    %v477 = vmul.f32 %v476, 1.442695
    %v478 = vpow.pop %v477
    %v479 = vadd.f32 %v478, 1.0
    %v480 = vrcp.pop %v479
    %v481 = vmul.f32 1.0, %v480
    %v482 = vadd.f32 %v472, %v377
    %484 = vrot.lane.b32.xlu0 %v482, 64
    %v485 = vpop.permute.xlu0 %484
    %v487 = vmul.f32 %v481, %v485
    %489 = vrot.lane.b32.xlu0 %v487, 64
    %v490 = vpop.permute.xlu0 %489
    %v492 = vadd.f32 %v399, %v490
    %v493 = vtanh.pop %v492
    %v494 = vsub.f32 1.0, %v481
    %496 = vrot.lane.b32.xlu0 %v493, 96
    %v497 = vpop.permute.xlu0 %496
    %v499 = vmul.f32 %v494, %v497
    %v500 = vmul.f32 %v481, %v398
    %v501 = vadd.f32 %v499, %v500
    %v502 = vadd.f32 %v160, %v280
    %504 = vrot.lane.b32.xlu0 %v501, 96
    %v505 = vpop.permute.xlu0 %504
    %v506 = vsel %vm294, %v505, 0
    %508 = vmatprep.subr.mxu0 0.0
    %509 = vmatpush1.msra.mxu0 %v52
    %510 = vmatprep.subr.mxu0 0.0
    %511 = vmatpush1.msra.mxu0 %v53
    %512 = vmatprep.subr.mxu0 0.0
    %513 = vmatpush1.msra.mxu0 %v54
    %514 = vmatprep.subr.mxu0 0.0
    %515 = vmatpush1.msra.mxu0 %v55
    %516 = vmatprep.subr.mxu0 0.0
    %517 = vmatpush1.msra.mxu0 0.0
    %518 = vmatprep.subr.mxu0 0.0
    %519 = vmatpush1.msra.mxu0 0.0
    %520 = vmatprep.subr.mxu0 0.0
    %521 = vmatpush1.msra.mxu0 0.0
    %522 = vmatprep.subr.mxu0 0.0
    %523 = vmatpush1.msra.mxu0 0.0
    %524 = vmatprep.subr.mxu0 0.0
    %525 = vmatpush1.msra.mxu0 0.0
    %526 = vmatprep.subr.mxu0 0.0
    %527 = vmatpush1.msra.mxu0 0.0
    %528 = vmatprep.subr.mxu0 0.0
    %529 = vmatpush1.msra.mxu0 0.0
    %530 = vmatprep.subr.mxu0 0.0
    %531 = vmatpush1.msra.mxu0 0.0
    %532 = vmatprep.subr.mxu0 0.0
    %533 = vmatpush1.msra.mxu0 0.0
    %534 = vmatprep.subr.mxu0 0.0
    %535 = vmatpush1.msra.mxu0 0.0
    %536 = vmatprep.subr.mxu0 0.0
    %537 = vmatpush1.msra.mxu0 0.0
    %538 = vmatprep.subr.mxu0 0.0
    %539 = vmatpush1.msra.mxu0 0.0
    %540 = vmatprep.subr.mxu0 0.0
    %541 = vmatpush1.msra.mxu0 0.0
    %542 = vmatprep.subr.mxu0 0.0
    %543 = vmatpush1.msra.mxu0 0.0
    %544 = vmatprep.subr.mxu0 0.0
    %545 = vmatpush1.msra.mxu0 0.0
    %546 = vmatprep.subr.mxu0 0.0
    %547 = vmatpush1.msra.mxu0 0.0
    %548 = vmatprep.subr.mxu0 0.0
    %549 = vmatpush1.msra.mxu0 0.0
    %550 = vmatprep.subr.mxu0 0.0
    %551 = vmatpush1.msra.mxu0 0.0
    %552 = vmatprep.subr.mxu0 0.0
    %553 = vmatpush1.msra.mxu0 0.0
    %554 = vmatprep.subr.mxu0 0.0
    %555 = vmatpush1.msra.mxu0 0.0
    %556 = vmatprep.subr.mxu0 0.0
    %557 = vmatpush1.msra.mxu0 0.0
    %558 = vmatprep.subr.mxu0 0.0
    %559 = vmatpush1.msra.mxu0 0.0
    %560 = vmatprep.subr.mxu0 0.0
    %561 = vmatpush1.msra.mxu0 0.0
    %562 = vmatprep.subr.mxu0 0.0
    %563 = vmatpush1.msra.mxu0 0.0
    %564 = vmatprep.subr.mxu0 0.0
    %565 = vmatpush1.msra.mxu0 0.0
    %566 = vmatprep.subr.mxu0 0.0
    %567 = vmatpush1.msra.mxu0 0.0
    %568 = vmatprep.subr.mxu0 0.0
    %569 = vmatpush1.msra.mxu0 0.0
    %570 = vmatprep.subr.mxu0 0.0
    %571 = vmatpush1.msra.mxu0 0.0
    %572 = vmatprep.mubr.f32.mxu0 0.0
    %573 = vmatmul.mubr.f32.gmra.mrb[0].mxu0 %v506
    %v574 = vpop.f32.mrb[0].mxu0
    %v575 = vadd.f32 0.0, %v574
    %v576 = vpop.f32.mrb[0].mxu0
    %577 = vdwg.mxu0
    %v578 = vadd.f32 %v502, %v575
    %v579 = vxor.u32 %v578, 2147483648
    %v580 = vmul.f32 %v579, 1.442695
    %v581 = vpow.pop %v580
    %v582 = vadd.f32 %v581, 1.0
    %v583 = vrcp.pop %v582
    %v584 = vmul.f32 1.0, %v583
    %v585 = vadd.f32 %v575, %v377
    %587 = vrot.lane.b32.xlu0 %v585, 64
    %v588 = vpop.permute.xlu0 %587
    %v590 = vmul.f32 %v584, %v588
    %592 = vrot.lane.b32.xlu0 %v590, 64
    %v593 = vpop.permute.xlu0 %592
    %v595 = vadd.f32 %v502, %v593
    %v596 = vtanh.pop %v595
    %v597 = vsub.f32 1.0, %v584
    %599 = vrot.lane.b32.xlu0 %v596, 96
    %v600 = vpop.permute.xlu0 %599
    %v602 = vmul.f32 %v597, %v600
    %v603 = vmul.f32 %v584, %v501
    %v604 = vadd.f32 %v602, %v603
    %v605 = vadd.f32 %v165, %v275
    %607 = vrot.lane.b32.xlu0 %v604, 96
    %v608 = vpop.permute.xlu0 %607
    %v609 = vsel %vm294, %v608, 0
    %611 = vmatprep.subr.mxu0 0.0
    %612 = vmatpush1.msra.mxu0 %v52
    %613 = vmatprep.subr.mxu0 0.0
    %614 = vmatpush1.msra.mxu0 %v53
    %615 = vmatprep.subr.mxu0 0.0
    %616 = vmatpush1.msra.mxu0 %v54
    %617 = vmatprep.subr.mxu0 0.0
    %618 = vmatpush1.msra.mxu0 %v55
    %619 = vmatprep.subr.mxu0 0.0
    %620 = vmatpush1.msra.mxu0 0.0
    %621 = vmatprep.subr.mxu0 0.0
    %622 = vmatpush1.msra.mxu0 0.0
    %623 = vmatprep.subr.mxu0 0.0
    %624 = vmatpush1.msra.mxu0 0.0
    %625 = vmatprep.subr.mxu0 0.0
    %626 = vmatpush1.msra.mxu0 0.0
    %627 = vmatprep.subr.mxu0 0.0
    %628 = vmatpush1.msra.mxu0 0.0
    %629 = vmatprep.subr.mxu0 0.0
    %630 = vmatpush1.msra.mxu0 0.0
    %631 = vmatprep.subr.mxu0 0.0
    %632 = vmatpush1.msra.mxu0 0.0
    %633 = vmatprep.subr.mxu0 0.0
    %634 = vmatpush1.msra.mxu0 0.0
    %635 = vmatprep.subr.mxu0 0.0
    %636 = vmatpush1.msra.mxu0 0.0
    %637 = vmatprep.subr.mxu0 0.0
    %638 = vmatpush1.msra.mxu0 0.0
    %639 = vmatprep.subr.mxu0 0.0
    %640 = vmatpush1.msra.mxu0 0.0
    %641 = vmatprep.subr.mxu0 0.0
    %642 = vmatpush1.msra.mxu0 0.0
    %643 = vmatprep.subr.mxu0 0.0
    %644 = vmatpush1.msra.mxu0 0.0
    %645 = vmatprep.subr.mxu0 0.0
    %646 = vmatpush1.msra.mxu0 0.0
    %647 = vmatprep.subr.mxu0 0.0
    %648 = vmatpush1.msra.mxu0 0.0
    %649 = vmatprep.subr.mxu0 0.0
    %650 = vmatpush1.msra.mxu0 0.0
    %651 = vmatprep.subr.mxu0 0.0
    %652 = vmatpush1.msra.mxu0 0.0
    %653 = vmatprep.subr.mxu0 0.0
    %654 = vmatpush1.msra.mxu0 0.0
    %655 = vmatprep.subr.mxu0 0.0
    %656 = vmatpush1.msra.mxu0 0.0
    %657 = vmatprep.subr.mxu0 0.0
    %658 = vmatpush1.msra.mxu0 0.0
    %659 = vmatprep.subr.mxu0 0.0
    %660 = vmatpush1.msra.mxu0 0.0
    %661 = vmatprep.subr.mxu0 0.0
    %662 = vmatpush1.msra.mxu0 0.0
    %663 = vmatprep.subr.mxu0 0.0
    %664 = vmatpush1.msra.mxu0 0.0
    %665 = vmatprep.subr.mxu0 0.0
    %666 = vmatpush1.msra.mxu0 0.0
    %667 = vmatprep.subr.mxu0 0.0
    %668 = vmatpush1.msra.mxu0 0.0
    %669 = vmatprep.subr.mxu0 0.0
    %670 = vmatpush1.msra.mxu0 0.0
    %671 = vmatprep.subr.mxu0 0.0
    %672 = vmatpush1.msra.mxu0 0.0
    %673 = vmatprep.subr.mxu0 0.0
    %674 = vmatpush1.msra.mxu0 0.0
    %675 = vmatprep.mubr.f32.mxu0 0.0
    %676 = vmatmul.mubr.f32.gmra.mrb[0].mxu0 %v609
    %v677 = vpop.f32.mrb[0].mxu0
    %v678 = vadd.f32 0.0, %v677
    %v679 = vpop.f32.mrb[0].mxu0
    %680 = vdwg.mxu0
    %v681 = vadd.f32 %v605, %v678
    %v682 = vxor.u32 %v681, 2147483648
    %v683 = vmul.f32 %v682, 1.442695
    %v684 = vpow.pop %v683
    %v685 = vadd.f32 %v684, 1.0
    %v686 = vrcp.pop %v685
    %v687 = vmul.f32 1.0, %v686
    %v688 = vadd.f32 %v678, %v377
    %690 = vrot.lane.b32.xlu0 %v688, 64
    %v691 = vpop.permute.xlu0 %690
    %v693 = vmul.f32 %v687, %v691
    %695 = vrot.lane.b32.xlu0 %v693, 64
    %v696 = vpop.permute.xlu0 %695
    %v698 = vadd.f32 %v605, %v696
    %v699 = vtanh.pop %v698
    %v700 = vsub.f32 1.0, %v687
    %702 = vrot.lane.b32.xlu0 %v699, 96
    %v703 = vpop.permute.xlu0 %702
    %v705 = vmul.f32 %v700, %v703
    %v706 = vmul.f32 %v687, %v604
    %v707 = vadd.f32 %v705, %v706
    %v708 = vadd.f32 %v170, %v270
    %710 = vrot.lane.b32.xlu0 %v707, 96
    %v711 = vpop.permute.xlu0 %710
    %v712 = vsel %vm294, %v711, 0
    %714 = vmatprep.subr.mxu0 0.0
    %715 = vmatpush1.msra.mxu0 %v52
    %716 = vmatprep.subr.mxu0 0.0
    %717 = vmatpush1.msra.mxu0 %v53
    %718 = vmatprep.subr.mxu0 0.0
    %719 = vmatpush1.msra.mxu0 %v54
    %720 = vmatprep.subr.mxu0 0.0
    %721 = vmatpush1.msra.mxu0 %v55
    %722 = vmatprep.subr.mxu0 0.0
    %723 = vmatpush1.msra.mxu0 0.0
    %724 = vmatprep.subr.mxu0 0.0
    %725 = vmatpush1.msra.mxu0 0.0
    %726 = vmatprep.subr.mxu0 0.0
    %727 = vmatpush1.msra.mxu0 0.0
    %728 = vmatprep.subr.mxu0 0.0
    %729 = vmatpush1.msra.mxu0 0.0
    %730 = vmatprep.subr.mxu0 0.0
    %731 = vmatpush1.msra.mxu0 0.0
    %732 = vmatprep.subr.mxu0 0.0
    %733 = vmatpush1.msra.mxu0 0.0
    %734 = vmatprep.subr.mxu0 0.0
    %735 = vmatpush1.msra.mxu0 0.0
    %736 = vmatprep.subr.mxu0 0.0
    %737 = vmatpush1.msra.mxu0 0.0
    %738 = vmatprep.subr.mxu0 0.0
    %739 = vmatpush1.msra.mxu0 0.0
    %740 = vmatprep.subr.mxu0 0.0
    %741 = vmatpush1.msra.mxu0 0.0
    %742 = vmatprep.subr.mxu0 0.0
    %743 = vmatpush1.msra.mxu0 0.0
    %744 = vmatprep.subr.mxu0 0.0
    %745 = vmatpush1.msra.mxu0 0.0
    %746 = vmatprep.subr.mxu0 0.0
    %747 = vmatpush1.msra.mxu0 0.0
    %748 = vmatprep.subr.mxu0 0.0
    %749 = vmatpush1.msra.mxu0 0.0
    %750 = vmatprep.subr.mxu0 0.0
    %751 = vmatpush1.msra.mxu0 0.0
    %752 = vmatprep.subr.mxu0 0.0
    %753 = vmatpush1.msra.mxu0 0.0
    %754 = vmatprep.subr.mxu0 0.0
    %755 = vmatpush1.msra.mxu0 0.0
    %756 = vmatprep.subr.mxu0 0.0
    %757 = vmatpush1.msra.mxu0 0.0
    %758 = vmatprep.subr.mxu0 0.0
    %759 = vmatpush1.msra.mxu0 0.0
    %760 = vmatprep.subr.mxu0 0.0
    %761 = vmatpush1.msra.mxu0 0.0
    %762 = vmatprep.subr.mxu0 0.0
    %763 = vmatpush1.msra.mxu0 0.0
    %764 = vmatprep.subr.mxu0 0.0
    %765 = vmatpush1.msra.mxu0 0.0
    %766 = vmatprep.subr.mxu0 0.0
    %767 = vmatpush1.msra.mxu0 0.0
    %768 = vmatprep.subr.mxu0 0.0
    %769 = vmatpush1.msra.mxu0 0.0
    %770 = vmatprep.subr.mxu0 0.0
    %771 = vmatpush1.msra.mxu0 0.0
    %772 = vmatprep.subr.mxu0 0.0
    %773 = vmatpush1.msra.mxu0 0.0
    %774 = vmatprep.subr.mxu0 0.0
    %775 = vmatpush1.msra.mxu0 0.0
    %776 = vmatprep.subr.mxu0 0.0
    %777 = vmatpush1.msra.mxu0 0.0
    %778 = vmatprep.mubr.f32.mxu0 0.0
    %779 = vmatmul.mubr.f32.gmra.mrb[0].mxu0 %v712
    %v780 = vpop.f32.mrb[0].mxu0
    %v781 = vadd.f32 0.0, %v780
    %v782 = vpop.f32.mrb[0].mxu0
    %783 = vdwg.mxu0
    %v784 = vadd.f32 %v708, %v781
    %v785 = vxor.u32 %v784, 2147483648
    %v786 = vmul.f32 %v785, 1.442695
    %v787 = vpow.pop %v786
    %v788 = vadd.f32 %v787, 1.0
    %v789 = vrcp.pop %v788
    %v790 = vmul.f32 1.0, %v789
    %v791 = vadd.f32 %v781, %v377
    %793 = vrot.lane.b32.xlu0 %v791, 64
    %v794 = vpop.permute.xlu0 %793
    %v796 = vmul.f32 %v790, %v794
    %798 = vrot.lane.b32.xlu0 %v796, 64
    %v799 = vpop.permute.xlu0 %798
    %v801 = vadd.f32 %v708, %v799
    %v802 = vtanh.pop %v801
    %v803 = vsub.f32 1.0, %v790
    %805 = vrot.lane.b32.xlu0 %v802, 96
    %v806 = vpop.permute.xlu0 %805
    %v808 = vmul.f32 %v803, %v806
    %v809 = vmul.f32 %v790, %v707
    %v810 = vadd.f32 %v808, %v809
    %v811 = vadd.f32 %v175, %v265
    %813 = vrot.lane.b32.xlu0 %v810, 96
    %v814 = vpop.permute.xlu0 %813
    %v815 = vsel %vm294, %v814, 0
    %817 = vmatprep.subr.mxu0 0.0
    %818 = vmatpush1.msra.mxu0 %v52
    %819 = vmatprep.subr.mxu0 0.0
    %820 = vmatpush1.msra.mxu0 %v53
    %821 = vmatprep.subr.mxu0 0.0
    %822 = vmatpush1.msra.mxu0 %v54
    %823 = vmatprep.subr.mxu0 0.0
    %824 = vmatpush1.msra.mxu0 %v55
    %825 = vmatprep.subr.mxu0 0.0
    %826 = vmatpush1.msra.mxu0 0.0
    %827 = vmatprep.subr.mxu0 0.0
    %828 = vmatpush1.msra.mxu0 0.0
    %829 = vmatprep.subr.mxu0 0.0
    %830 = vmatpush1.msra.mxu0 0.0
    %831 = vmatprep.subr.mxu0 0.0
    %832 = vmatpush1.msra.mxu0 0.0
    %833 = vmatprep.subr.mxu0 0.0
    %834 = vmatpush1.msra.mxu0 0.0
    %835 = vmatprep.subr.mxu0 0.0
    %836 = vmatpush1.msra.mxu0 0.0
    %837 = vmatprep.subr.mxu0 0.0
    %838 = vmatpush1.msra.mxu0 0.0
    %839 = vmatprep.subr.mxu0 0.0
    %840 = vmatpush1.msra.mxu0 0.0
    %841 = vmatprep.subr.mxu0 0.0
    %842 = vmatpush1.msra.mxu0 0.0
    %843 = vmatprep.subr.mxu0 0.0
    %844 = vmatpush1.msra.mxu0 0.0
    %845 = vmatprep.subr.mxu0 0.0
    %846 = vmatpush1.msra.mxu0 0.0
    %847 = vmatprep.subr.mxu0 0.0
    %848 = vmatpush1.msra.mxu0 0.0
    %849 = vmatprep.subr.mxu0 0.0
    %850 = vmatpush1.msra.mxu0 0.0
    %851 = vmatprep.subr.mxu0 0.0
    %852 = vmatpush1.msra.mxu0 0.0
    %853 = vmatprep.subr.mxu0 0.0
    %854 = vmatpush1.msra.mxu0 0.0
    %855 = vmatprep.subr.mxu0 0.0
    %856 = vmatpush1.msra.mxu0 0.0
    %857 = vmatprep.subr.mxu0 0.0
    %858 = vmatpush1.msra.mxu0 0.0
    %859 = vmatprep.subr.mxu0 0.0
    %860 = vmatpush1.msra.mxu0 0.0
    %861 = vmatprep.subr.mxu0 0.0
    %862 = vmatpush1.msra.mxu0 0.0
    %863 = vmatprep.subr.mxu0 0.0
    %864 = vmatpush1.msra.mxu0 0.0
    %865 = vmatprep.subr.mxu0 0.0
    %866 = vmatpush1.msra.mxu0 0.0
    %867 = vmatprep.subr.mxu0 0.0
    %868 = vmatpush1.msra.mxu0 0.0
    %869 = vmatprep.subr.mxu0 0.0
    %870 = vmatpush1.msra.mxu0 0.0
    %871 = vmatprep.subr.mxu0 0.0
    %872 = vmatpush1.msra.mxu0 0.0
    %873 = vmatprep.subr.mxu0 0.0
    %874 = vmatpush1.msra.mxu0 0.0
    %875 = vmatprep.subr.mxu0 0.0
    %876 = vmatpush1.msra.mxu0 0.0
    %877 = vmatprep.subr.mxu0 0.0
    %878 = vmatpush1.msra.mxu0 0.0
    %879 = vmatprep.subr.mxu0 0.0
    %880 = vmatpush1.msra.mxu0 0.0
    %881 = vmatprep.mubr.f32.mxu0 0.0
    %882 = vmatmul.mubr.f32.gmra.mrb[0].mxu0 %v815
    %v883 = vpop.f32.mrb[0].mxu0
    %v884 = vadd.f32 0.0, %v883
    %v885 = vpop.f32.mrb[0].mxu0
    %886 = vdwg.mxu0
    %v887 = vadd.f32 %v811, %v884
    %v888 = vxor.u32 %v887, 2147483648
    %v889 = vmul.f32 %v888, 1.442695
    %v890 = vpow.pop %v889
    %v891 = vadd.f32 %v890, 1.0
    %v892 = vrcp.pop %v891
    %v893 = vmul.f32 1.0, %v892
    %v894 = vadd.f32 %v884, %v377
    %896 = vrot.lane.b32.xlu0 %v894, 64
    %v897 = vpop.permute.xlu0 %896
    %v899 = vmul.f32 %v893, %v897
    %901 = vrot.lane.b32.xlu0 %v899, 64
    %v902 = vpop.permute.xlu0 %901
    %v904 = vadd.f32 %v811, %v902
    %v905 = vtanh.pop %v904
    %v906 = vsub.f32 1.0, %v893
    %908 = vrot.lane.b32.xlu0 %v905, 96
    %v909 = vpop.permute.xlu0 %908
    %v911 = vmul.f32 %v906, %v909
    %v912 = vmul.f32 %v893, %v810
    %v913 = vadd.f32 %v911, %v912
    %v914 = vadd.f32 %v180, %v260
    %916 = vrot.lane.b32.xlu0 %v913, 96
    %v917 = vpop.permute.xlu0 %916
    %v918 = vsel %vm294, %v917, 0
    %920 = vmatprep.subr.mxu0 0.0
    %921 = vmatpush1.msra.mxu0 %v52
    %922 = vmatprep.subr.mxu0 0.0
    %923 = vmatpush1.msra.mxu0 %v53
    %924 = vmatprep.subr.mxu0 0.0
    %925 = vmatpush1.msra.mxu0 %v54
    %926 = vmatprep.subr.mxu0 0.0
    %927 = vmatpush1.msra.mxu0 %v55
    %928 = vmatprep.subr.mxu0 0.0
    %929 = vmatpush1.msra.mxu0 0.0
    %930 = vmatprep.subr.mxu0 0.0
    %931 = vmatpush1.msra.mxu0 0.0
    %932 = vmatprep.subr.mxu0 0.0
    %933 = vmatpush1.msra.mxu0 0.0
    %934 = vmatprep.subr.mxu0 0.0
    %935 = vmatpush1.msra.mxu0 0.0
    %936 = vmatprep.subr.mxu0 0.0
    %937 = vmatpush1.msra.mxu0 0.0
    %938 = vmatprep.subr.mxu0 0.0
    %939 = vmatpush1.msra.mxu0 0.0
    %940 = vmatprep.subr.mxu0 0.0
    %941 = vmatpush1.msra.mxu0 0.0
    %942 = vmatprep.subr.mxu0 0.0
    %943 = vmatpush1.msra.mxu0 0.0
    %944 = vmatprep.subr.mxu0 0.0
    %945 = vmatpush1.msra.mxu0 0.0
    %946 = vmatprep.subr.mxu0 0.0
    %947 = vmatpush1.msra.mxu0 0.0
    %948 = vmatprep.subr.mxu0 0.0
    %949 = vmatpush1.msra.mxu0 0.0
    %950 = vmatprep.subr.mxu0 0.0
    %951 = vmatpush1.msra.mxu0 0.0
    %952 = vmatprep.subr.mxu0 0.0
    %953 = vmatpush1.msra.mxu0 0.0
    %954 = vmatprep.subr.mxu0 0.0
    %955 = vmatpush1.msra.mxu0 0.0
    %956 = vmatprep.subr.mxu0 0.0
    %957 = vmatpush1.msra.mxu0 0.0
    %958 = vmatprep.subr.mxu0 0.0
    %959 = vmatpush1.msra.mxu0 0.0
    %960 = vmatprep.subr.mxu0 0.0
    %961 = vmatpush1.msra.mxu0 0.0
    %962 = vmatprep.subr.mxu0 0.0
    %963 = vmatpush1.msra.mxu0 0.0
    %964 = vmatprep.subr.mxu0 0.0
    %965 = vmatpush1.msra.mxu0 0.0
    %966 = vmatprep.subr.mxu0 0.0
    %967 = vmatpush1.msra.mxu0 0.0
    %968 = vmatprep.subr.mxu0 0.0
    %969 = vmatpush1.msra.mxu0 0.0
    %970 = vmatprep.subr.mxu0 0.0
    %971 = vmatpush1.msra.mxu0 0.0
    %972 = vmatprep.subr.mxu0 0.0
    %973 = vmatpush1.msra.mxu0 0.0
    %974 = vmatprep.subr.mxu0 0.0
    %975 = vmatpush1.msra.mxu0 0.0
    %976 = vmatprep.subr.mxu0 0.0
    %977 = vmatpush1.msra.mxu0 0.0
    %978 = vmatprep.subr.mxu0 0.0
    %979 = vmatpush1.msra.mxu0 0.0
    %980 = vmatprep.subr.mxu0 0.0
    %981 = vmatpush1.msra.mxu0 0.0
    %982 = vmatprep.subr.mxu0 0.0
    %983 = vmatpush1.msra.mxu0 0.0
    %984 = vmatprep.mubr.f32.mxu0 0.0
    %985 = vmatmul.mubr.f32.gmra.mrb[0].mxu0 %v918
    %v986 = vpop.f32.mrb[0].mxu0
    %v987 = vadd.f32 0.0, %v986
    %v988 = vpop.f32.mrb[0].mxu0
    %989 = vdwg.mxu0
    %v990 = vadd.f32 %v914, %v987
    %v991 = vxor.u32 %v990, 2147483648
    %v992 = vmul.f32 %v991, 1.442695
    %v993 = vpow.pop %v992
    %v994 = vadd.f32 %v993, 1.0
    %v995 = vrcp.pop %v994
    %v996 = vmul.f32 1.0, %v995
    %v997 = vadd.f32 %v987, %v377
    %999 = vrot.lane.b32.xlu0 %v997, 64
    %v1000 = vpop.permute.xlu0 %999
    %v1002 = vmul.f32 %v996, %v1000
    %1004 = vrot.lane.b32.xlu0 %v1002, 64
    %v1005 = vpop.permute.xlu0 %1004
    %v1007 = vadd.f32 %v914, %v1005
    %v1008 = vtanh.pop %v1007
    %v1009 = vsub.f32 1.0, %v996
    %1011 = vrot.lane.b32.xlu0 %v1008, 96
    %v1012 = vpop.permute.xlu0 %1011
    %v1014 = vmul.f32 %v1009, %v1012
    %v1015 = vmul.f32 %v996, %v913
    %v1016 = vadd.f32 %v1014, %v1015
    %v1017 = vadd.f32 %v185, %v255
    %1019 = vrot.lane.b32.xlu0 %v1016, 96
    %v1020 = vpop.permute.xlu0 %1019
    %v1021 = vsel %vm294, %v1020, 0
    %1023 = vmatprep.subr.mxu0 0.0
    %1024 = vmatpush1.msra.mxu0 %v52
    %1025 = vmatprep.subr.mxu0 0.0
    %1026 = vmatpush1.msra.mxu0 %v53
    %1027 = vmatprep.subr.mxu0 0.0
    %1028 = vmatpush1.msra.mxu0 %v54
    %1029 = vmatprep.subr.mxu0 0.0
    %1030 = vmatpush1.msra.mxu0 %v55
    %1031 = vmatprep.subr.mxu0 0.0
    %1032 = vmatpush1.msra.mxu0 0.0
    %1033 = vmatprep.subr.mxu0 0.0
    %1034 = vmatpush1.msra.mxu0 0.0
    %1035 = vmatprep.subr.mxu0 0.0
    %1036 = vmatpush1.msra.mxu0 0.0
    %1037 = vmatprep.subr.mxu0 0.0
    %1038 = vmatpush1.msra.mxu0 0.0
    %1039 = vmatprep.subr.mxu0 0.0
    %1040 = vmatpush1.msra.mxu0 0.0
    %1041 = vmatprep.subr.mxu0 0.0
    %1042 = vmatpush1.msra.mxu0 0.0
    %1043 = vmatprep.subr.mxu0 0.0
    %1044 = vmatpush1.msra.mxu0 0.0
    %1045 = vmatprep.subr.mxu0 0.0
    %1046 = vmatpush1.msra.mxu0 0.0
    %1047 = vmatprep.subr.mxu0 0.0
    %1048 = vmatpush1.msra.mxu0 0.0
    %1049 = vmatprep.subr.mxu0 0.0
    %1050 = vmatpush1.msra.mxu0 0.0
    %1051 = vmatprep.subr.mxu0 0.0
    %1052 = vmatpush1.msra.mxu0 0.0
    %1053 = vmatprep.subr.mxu0 0.0
    %1054 = vmatpush1.msra.mxu0 0.0
    %1055 = vmatprep.subr.mxu0 0.0
    %1056 = vmatpush1.msra.mxu0 0.0
    %1057 = vmatprep.subr.mxu0 0.0
    %1058 = vmatpush1.msra.mxu0 0.0
    %1059 = vmatprep.subr.mxu0 0.0
    %1060 = vmatpush1.msra.mxu0 0.0
    %1061 = vmatprep.subr.mxu0 0.0
    %1062 = vmatpush1.msra.mxu0 0.0
    %1063 = vmatprep.subr.mxu0 0.0
    %1064 = vmatpush1.msra.mxu0 0.0
    %1065 = vmatprep.subr.mxu0 0.0
    %1066 = vmatpush1.msra.mxu0 0.0
    %1067 = vmatprep.subr.mxu0 0.0
    %1068 = vmatpush1.msra.mxu0 0.0
    %1069 = vmatprep.subr.mxu0 0.0
    %1070 = vmatpush1.msra.mxu0 0.0
    %1071 = vmatprep.subr.mxu0 0.0
    %1072 = vmatpush1.msra.mxu0 0.0
    %1073 = vmatprep.subr.mxu0 0.0
    %1074 = vmatpush1.msra.mxu0 0.0
    %1075 = vmatprep.subr.mxu0 0.0
    %1076 = vmatpush1.msra.mxu0 0.0
    %1077 = vmatprep.subr.mxu0 0.0
    %1078 = vmatpush1.msra.mxu0 0.0
    %1079 = vmatprep.subr.mxu0 0.0
    %1080 = vmatpush1.msra.mxu0 0.0
    %1081 = vmatprep.subr.mxu0 0.0
    %1082 = vmatpush1.msra.mxu0 0.0
    %1083 = vmatprep.subr.mxu0 0.0
    %1084 = vmatpush1.msra.mxu0 0.0
    %1085 = vmatprep.subr.mxu0 0.0
    %1086 = vmatpush1.msra.mxu0 0.0
    %1087 = vmatprep.mubr.f32.mxu0 0.0
    %1088 = vmatmul.mubr.f32.gmra.mrb[0].mxu0 %v1021
    %v1089 = vpop.f32.mrb[0].mxu0
    %v1090 = vadd.f32 0.0, %v1089
    %v1091 = vpop.f32.mrb[0].mxu0
    %1092 = vdwg.mxu0
    %v1093 = vadd.f32 %v1017, %v1090
    %v1094 = vxor.u32 %v1093, 2147483648
    %v1095 = vmul.f32 %v1094, 1.442695
    %v1096 = vpow.pop %v1095
    %v1097 = vadd.f32 %v1096, 1.0
    %v1098 = vrcp.pop %v1097
    %v1099 = vmul.f32 1.0, %v1098
    %v1100 = vadd.f32 %v1090, %v377
    %1102 = vrot.lane.b32.xlu0 %v1100, 64
    %v1103 = vpop.permute.xlu0 %1102
    %v1105 = vmul.f32 %v1099, %v1103
    %1107 = vrot.lane.b32.xlu0 %v1105, 64
    %v1108 = vpop.permute.xlu0 %1107
    %v1110 = vadd.f32 %v1017, %v1108
    %v1111 = vtanh.pop %v1110
    %v1112 = vsub.f32 1.0, %v1099
    %1114 = vrot.lane.b32.xlu0 %v1111, 96
    %v1115 = vpop.permute.xlu0 %1114
    %v1117 = vmul.f32 %v1112, %v1115
    %v1118 = vmul.f32 %v1099, %v1016
    %v1119 = vadd.f32 %v1117, %v1118
    %v1120 = vlaneseq
    %v1121 = vand.u32 %v1120, 127
    %vm1122 = vcmp.lt.s32.totalorder %v1121, 16
    %1125 = vrot.lane.b32.xlu0 %v1119, 96
    %v1126 = vpop.permute.xlu0 %1125
    %v1128 = vsel %vm1122, %v402, %v1126
    %v1131 = vsel %vm1122, %v505, %v1020
    %v1134 = vsel %vm1122, %v608, %v917
    %v1137 = vsel %vm1122, %v711, %v814
    %v1138 = vsel %vm1122, %v814, %v711
    %v1139 = vsel %vm1122, %v917, %v608
    %v1140 = vsel %vm1122, %v1020, %v505
    %v1141 = vsel %vm1122, %v1126, %v402
    %v1142 = vld [vmem:[#allocation2 + $0x90] sm:$0xff]
    %v1143 = vld [vmem:[#allocation2 + $0xa8] sm:$0xff]
    %v1144 = vld [vmem:[#allocation2 + $0xc0] sm:$0xff]
    %v1145 = vld [vmem:[#allocation2 + $0xd8] sm:$0xff]
    %v1146 = vld [vmem:[#allocation2 + $0xf0] sm:$0xff]
    %v1147 = vld [vmem:[#allocation2 + $0x108] sm:$0xff]
    %v1148 = vld [vmem:[#allocation2 + $0x120] sm:$0xff]
    %v1149 = vld [vmem:[#allocation2 + $0x138] sm:$0xff]
    %v1150 = vld [vmem:[#allocation2 + $0x150] sm:$0xff]
    %v1151 = vld [vmem:[#allocation2 + $0x168] sm:$0xff]
    %v1152 = vld [vmem:[#allocation2 + $0x180] sm:$0xff]
    %v1153 = vld [vmem:[#allocation2 + $0x198] sm:$0xff]
    %v1154 = vld [vmem:[#allocation4 + $0x30] ss:$0 sm:$0xff]
    %v1155 = vld [vmem:[#allocation4 + $0x48] ss:$0 sm:$0xff]
    %v1157 = vsel %vm294, %v1128, 0
    %v1160 = vsel %vm294, %v1131, 0
    %v1163 = vsel %vm294, %v1134, 0
    %v1166 = vsel %vm294, %v1137, 0
    %v1169 = vsel %vm294, %v1138, 0
    %v1172 = vsel %vm294, %v1139, 0
    %v1175 = vsel %vm294, %v1140, 0
    %v1178 = vsel %vm294, %v1141, 0
    %1180 = vmatprep.subr.mxu0 0.0
    %1181 = vmatpush1.msra.mxu0 %v1142
    %1182 = vmatprep.subr.mxu0 0.0
    %1183 = vmatpush1.msra.mxu0 %v1143
    %1184 = vmatprep.subr.mxu0 0.0
    %1185 = vmatpush1.msra.mxu0 %v1144
    %1186 = vmatprep.subr.mxu0 0.0
    %1187 = vmatpush1.msra.mxu0 %v1145
    %1188 = vmatprep.subr.mxu0 0.0
    %1189 = vmatpush1.msra.mxu0 0.0
    %1190 = vmatprep.subr.mxu0 0.0
    %1191 = vmatpush1.msra.mxu0 0.0
    %1192 = vmatprep.subr.mxu0 0.0
    %1193 = vmatpush1.msra.mxu0 0.0
    %1194 = vmatprep.subr.mxu0 0.0
    %1195 = vmatpush1.msra.mxu0 0.0
    %1196 = vmatprep.subr.mxu0 0.0
    %1197 = vmatpush1.msra.mxu0 0.0
    %1198 = vmatprep.subr.mxu0 0.0
    %1199 = vmatpush1.msra.mxu0 0.0
    %1200 = vmatprep.subr.mxu0 0.0
    %1201 = vmatpush1.msra.mxu0 0.0
    %1202 = vmatprep.subr.mxu0 0.0
    %1203 = vmatpush1.msra.mxu0 0.0
    %1204 = vmatprep.subr.mxu0 0.0
    %1205 = vmatpush1.msra.mxu0 0.0
    %1206 = vmatprep.subr.mxu0 0.0
    %1207 = vmatpush1.msra.mxu0 0.0
    %1208 = vmatprep.subr.mxu0 0.0
    %1209 = vmatpush1.msra.mxu0 0.0
    %1210 = vmatprep.subr.mxu0 0.0
    %1211 = vmatpush1.msra.mxu0 0.0
    %1212 = vmatprep.subr.mxu0 0.0
    %1213 = vmatpush1.msra.mxu0 0.0
    %1214 = vmatprep.subr.mxu0 0.0
    %1215 = vmatpush1.msra.mxu0 0.0
    %1216 = vmatprep.subr.mxu0 0.0
    %1217 = vmatpush1.msra.mxu0 0.0
    %1218 = vmatprep.subr.mxu0 0.0
    %1219 = vmatpush1.msra.mxu0 0.0
    %1220 = vmatprep.subr.mxu0 0.0
    %1221 = vmatpush1.msra.mxu0 0.0
    %1222 = vmatprep.subr.mxu0 0.0
    %1223 = vmatpush1.msra.mxu0 0.0
    %1224 = vmatprep.subr.mxu0 0.0
    %1225 = vmatpush1.msra.mxu0 0.0
    %1226 = vmatprep.subr.mxu0 0.0
    %1227 = vmatpush1.msra.mxu0 0.0
    %1228 = vmatprep.subr.mxu0 0.0
    %1229 = vmatpush1.msra.mxu0 0.0
    %1230 = vmatprep.subr.mxu0 0.0
    %1231 = vmatpush1.msra.mxu0 0.0
    %1232 = vmatprep.subr.mxu0 0.0
    %1233 = vmatpush1.msra.mxu0 0.0
    %1234 = vmatprep.subr.mxu0 0.0
    %1235 = vmatpush1.msra.mxu0 0.0
    %1236 = vmatprep.subr.mxu0 0.0
    %1237 = vmatpush1.msra.mxu0 0.0
    %1238 = vmatprep.subr.mxu0 0.0
    %1239 = vmatpush1.msra.mxu0 0.0
    %1240 = vmatprep.subr.mxu0 0.0
    %1241 = vmatpush1.msra.mxu0 0.0
    %1242 = vmatprep.subr.mxu0 0.0
    %1243 = vmatpush1.msra.mxu0 0.0
    %1244 = vmatprep.mubr.f32.mxu0 0.0
    %1245 = vmatmul.mubr.f32.gmra.mrb[0].mxu0 %v1157
    %v1246 = vpop.f32.mrb[0].mxu0
    %v1247 = vadd.f32 %v1154, %v1246
    %v1248 = vpop.f32.mrb[0].mxu0
    %1249 = vmatprep.mubr.f32.mxu0 0.0
    %1250 = vmatmul.mubr.f32.gmra.mrb[0].mxu0 %v1160
    %v1251 = vpop.f32.mrb[0].mxu0
    %v1252 = vadd.f32 %v1154, %v1251
    %v1253 = vpop.f32.mrb[0].mxu0
    %1254 = vmatprep.mubr.f32.mxu0 0.0
    %1255 = vmatmul.mubr.f32.gmra.mrb[0].mxu0 %v1163
    %v1256 = vpop.f32.mrb[0].mxu0
    %v1257 = vadd.f32 %v1154, %v1256
    %v1258 = vpop.f32.mrb[0].mxu0
    %1259 = vmatprep.mubr.f32.mxu0 0.0
    %1260 = vmatmul.mubr.f32.gmra.mrb[0].mxu0 %v1166
    %v1261 = vpop.f32.mrb[0].mxu0
    %v1262 = vadd.f32 %v1154, %v1261
    %v1263 = vpop.f32.mrb[0].mxu0
    %1264 = vmatprep.mubr.f32.mxu0 0.0
    %1265 = vmatmul.mubr.f32.gmra.mrb[0].mxu0 %v1169
    %v1266 = vpop.f32.mrb[0].mxu0
    %v1267 = vadd.f32 %v1154, %v1266
    %v1268 = vpop.f32.mrb[0].mxu0
    %1269 = vmatprep.mubr.f32.mxu0 0.0
    %1270 = vmatmul.mubr.f32.gmra.mrb[0].mxu0 %v1172
    %v1271 = vpop.f32.mrb[0].mxu0
    %v1272 = vadd.f32 %v1154, %v1271
    %v1273 = vpop.f32.mrb[0].mxu0
    %1274 = vmatprep.mubr.f32.mxu0 0.0
    %1275 = vmatmul.mubr.f32.gmra.mrb[0].mxu0 %v1175
    %v1276 = vpop.f32.mrb[0].mxu0
    %v1277 = vadd.f32 %v1154, %v1276
    %v1278 = vpop.f32.mrb[0].mxu0
    %1279 = vmatprep.mubr.f32.mxu0 0.0
    %1280 = vmatmul.mubr.f32.gmra.mrb[0].mxu0 %v1178
    %v1281 = vpop.f32.mrb[0].mxu0
    %v1282 = vadd.f32 %v1154, %v1281
    %v1283 = vpop.f32.mrb[0].mxu0
    %1284 = vdwg.mxu0
    %1285 = vmatprep.subr.mxu0 0.0
    %1286 = vmatpush1.msra.mxu0 %v1146
    %1287 = vmatprep.subr.mxu0 0.0
    %1288 = vmatpush1.msra.mxu0 %v1147
    %1289 = vmatprep.subr.mxu0 0.0
    %1290 = vmatpush1.msra.mxu0 %v1148
    %1291 = vmatprep.subr.mxu0 0.0
    %1292 = vmatpush1.msra.mxu0 %v1149
    %1293 = vmatprep.subr.mxu0 0.0
    %1294 = vmatpush1.msra.mxu0 0.0
    %1295 = vmatprep.subr.mxu0 0.0
    %1296 = vmatpush1.msra.mxu0 0.0
    %1297 = vmatprep.subr.mxu0 0.0
    %1298 = vmatpush1.msra.mxu0 0.0
    %1299 = vmatprep.subr.mxu0 0.0
    %1300 = vmatpush1.msra.mxu0 0.0
    %1301 = vmatprep.subr.mxu0 0.0
    %1302 = vmatpush1.msra.mxu0 0.0
    %1303 = vmatprep.subr.mxu0 0.0
    %1304 = vmatpush1.msra.mxu0 0.0
    %1305 = vmatprep.subr.mxu0 0.0
    %1306 = vmatpush1.msra.mxu0 0.0
    %1307 = vmatprep.subr.mxu0 0.0
    %1308 = vmatpush1.msra.mxu0 0.0
    %1309 = vmatprep.subr.mxu0 0.0
    %1310 = vmatpush1.msra.mxu0 0.0
    %1311 = vmatprep.subr.mxu0 0.0
    %1312 = vmatpush1.msra.mxu0 0.0
    %1313 = vmatprep.subr.mxu0 0.0
    %1314 = vmatpush1.msra.mxu0 0.0
    %1315 = vmatprep.subr.mxu0 0.0
    %1316 = vmatpush1.msra.mxu0 0.0
    %1317 = vmatprep.subr.mxu0 0.0
    %1318 = vmatpush1.msra.mxu0 0.0
    %1319 = vmatprep.subr.mxu0 0.0
    %1320 = vmatpush1.msra.mxu0 0.0
    %1321 = vmatprep.subr.mxu0 0.0
    %1322 = vmatpush1.msra.mxu0 0.0
    %1323 = vmatprep.subr.mxu0 0.0
    %1324 = vmatpush1.msra.mxu0 0.0
    %1325 = vmatprep.subr.mxu0 0.0
    %1326 = vmatpush1.msra.mxu0 0.0
    %1327 = vmatprep.subr.mxu0 0.0
    %1328 = vmatpush1.msra.mxu0 0.0
    %1329 = vmatprep.subr.mxu0 0.0
    %1330 = vmatpush1.msra.mxu0 0.0
    %1331 = vmatprep.subr.mxu0 0.0
    %1332 = vmatpush1.msra.mxu0 0.0
    %1333 = vmatprep.subr.mxu0 0.0
    %1334 = vmatpush1.msra.mxu0 0.0
    %1335 = vmatprep.subr.mxu0 0.0
    %1336 = vmatpush1.msra.mxu0 0.0
    %1337 = vmatprep.subr.mxu0 0.0
    %1338 = vmatpush1.msra.mxu0 0.0
    %1339 = vmatprep.subr.mxu0 0.0
    %1340 = vmatpush1.msra.mxu0 0.0
    %1341 = vmatprep.subr.mxu0 0.0
    %1342 = vmatpush1.msra.mxu0 0.0
    %1343 = vmatprep.subr.mxu0 0.0
    %1344 = vmatpush1.msra.mxu0 0.0
    %1345 = vmatprep.subr.mxu0 0.0
    %1346 = vmatpush1.msra.mxu0 0.0
    %1347 = vmatprep.subr.mxu0 0.0
    %1348 = vmatpush1.msra.mxu0 0.0
    %1349 = vmatprep.mubr.f32.mxu0 0.0
    %1350 = vmatmul.mubr.f32.gmra.mrb[0].mxu0 %v1157
    %v1351 = vpop.f32.mrb[0].mxu0
    %v1352 = vadd.f32 0.0, %v1351
    %v1353 = vpop.f32.mrb[0].mxu0
    %1354 = vmatprep.mubr.f32.mxu0 0.0
    %1355 = vmatmul.mubr.f32.gmra.mrb[0].mxu0 %v1160
    %v1356 = vpop.f32.mrb[0].mxu0
    %v1357 = vadd.f32 0.0, %v1356
    %v1358 = vpop.f32.mrb[0].mxu0
    %1359 = vmatprep.mubr.f32.mxu0 0.0
    %1360 = vmatmul.mubr.f32.gmra.mrb[0].mxu0 %v1163
    %v1361 = vpop.f32.mrb[0].mxu0
    %v1362 = vadd.f32 0.0, %v1361
    %v1363 = vpop.f32.mrb[0].mxu0
    %1364 = vmatprep.mubr.f32.mxu0 0.0
    %1365 = vmatmul.mubr.f32.gmra.mrb[0].mxu0 %v1166
    %v1366 = vpop.f32.mrb[0].mxu0
    %v1367 = vadd.f32 0.0, %v1366
    %v1368 = vpop.f32.mrb[0].mxu0
    %1369 = vmatprep.mubr.f32.mxu0 0.0
    %1370 = vmatmul.mubr.f32.gmra.mrb[0].mxu0 %v1169
    %v1371 = vpop.f32.mrb[0].mxu0
    %v1372 = vadd.f32 0.0, %v1371
    %v1373 = vpop.f32.mrb[0].mxu0
    %1374 = vmatprep.mubr.f32.mxu0 0.0
    %1375 = vmatmul.mubr.f32.gmra.mrb[0].mxu0 %v1172
    %v1376 = vpop.f32.mrb[0].mxu0
    %v1377 = vadd.f32 0.0, %v1376
    %v1378 = vpop.f32.mrb[0].mxu0
    %1379 = vmatprep.mubr.f32.mxu0 0.0
    %1380 = vmatmul.mubr.f32.gmra.mrb[0].mxu0 %v1175
    %v1381 = vpop.f32.mrb[0].mxu0
    %v1382 = vadd.f32 0.0, %v1381
    %v1383 = vpop.f32.mrb[0].mxu0
    %1384 = vmatprep.mubr.f32.mxu0 0.0
    %1385 = vmatmul.mubr.f32.gmra.mrb[0].mxu0 %v1178
    %v1386 = vpop.f32.mrb[0].mxu0
    %v1387 = vadd.f32 0.0, %v1386
    %v1388 = vpop.f32.mrb[0].mxu0
    %1389 = vdwg.mxu0
    %v1390 = vadd.f32 %v1247, %v1387
    %1391 = vmatprep.subr.mxu0 0.0
    %1392 = vmatpush1.msra.mxu0 %v1150
    %1393 = vmatprep.subr.mxu0 0.0
    %1394 = vmatpush1.msra.mxu0 %v1151
    %1395 = vmatprep.subr.mxu0 0.0
    %1396 = vmatpush1.msra.mxu0 %v1152
    %1397 = vmatprep.subr.mxu0 0.0
    %1398 = vmatpush1.msra.mxu0 %v1153
    %1399 = vmatprep.subr.mxu0 0.0
    %1400 = vmatpush1.msra.mxu0 0.0
    %1401 = vmatprep.subr.mxu0 0.0
    %1402 = vmatpush1.msra.mxu0 0.0
    %1403 = vmatprep.subr.mxu0 0.0
    %1404 = vmatpush1.msra.mxu0 0.0
    %1405 = vmatprep.subr.mxu0 0.0
    %1406 = vmatpush1.msra.mxu0 0.0
    %1407 = vmatprep.subr.mxu0 0.0
    %1408 = vmatpush1.msra.mxu0 0.0
    %1409 = vmatprep.subr.mxu0 0.0
    %1410 = vmatpush1.msra.mxu0 0.0
    %1411 = vmatprep.subr.mxu0 0.0
    %1412 = vmatpush1.msra.mxu0 0.0
    %1413 = vmatprep.subr.mxu0 0.0
    %1414 = vmatpush1.msra.mxu0 0.0
    %1415 = vmatprep.subr.mxu0 0.0
    %1416 = vmatpush1.msra.mxu0 0.0
    %1417 = vmatprep.subr.mxu0 0.0
    %1418 = vmatpush1.msra.mxu0 0.0
    %1419 = vmatprep.subr.mxu0 0.0
    %1420 = vmatpush1.msra.mxu0 0.0
    %1421 = vmatprep.subr.mxu0 0.0
    %1422 = vmatpush1.msra.mxu0 0.0
    %1423 = vmatprep.subr.mxu0 0.0
    %1424 = vmatpush1.msra.mxu0 0.0
    %1425 = vmatprep.subr.mxu0 0.0
    %1426 = vmatpush1.msra.mxu0 0.0
    %1427 = vmatprep.subr.mxu0 0.0
    %1428 = vmatpush1.msra.mxu0 0.0
    %1429 = vmatprep.subr.mxu0 0.0
    %1430 = vmatpush1.msra.mxu0 0.0
    %1431 = vmatprep.subr.mxu0 0.0
    %1432 = vmatpush1.msra.mxu0 0.0
    %1433 = vmatprep.subr.mxu0 0.0
    %1434 = vmatpush1.msra.mxu0 0.0
    %1435 = vmatprep.subr.mxu0 0.0
    %1436 = vmatpush1.msra.mxu0 0.0
    %1437 = vmatprep.subr.mxu0 0.0
    %1438 = vmatpush1.msra.mxu0 0.0
    %1439 = vmatprep.subr.mxu0 0.0
    %1440 = vmatpush1.msra.mxu0 0.0
    %1441 = vmatprep.subr.mxu0 0.0
    %1442 = vmatpush1.msra.mxu0 0.0
    %1443 = vmatprep.subr.mxu0 0.0
    %1444 = vmatpush1.msra.mxu0 0.0
    %1445 = vmatprep.subr.mxu0 0.0
    %1446 = vmatpush1.msra.mxu0 0.0
    %1447 = vmatprep.subr.mxu0 0.0
    %1448 = vmatpush1.msra.mxu0 0.0
    %1449 = vmatprep.subr.mxu0 0.0
    %1450 = vmatpush1.msra.mxu0 0.0
    %1451 = vmatprep.subr.mxu0 0.0
    %1452 = vmatpush1.msra.mxu0 0.0
    %1453 = vmatprep.subr.mxu0 0.0
    %1454 = vmatpush1.msra.mxu0 0.0
    %1455 = vmatprep.mubr.f32.mxu0 0.0
    %1456 = vmatmul.mubr.f32.gmra.mrb[0].mxu0 %v296
    %v1457 = vpop.f32.mrb[0].mxu0
    %v1458 = vadd.f32 0.0, %v1457
    %v1459 = vpop.f32.mrb[0].mxu0
    %1460 = vdwg.mxu0
    %v1461 = vadd.f32 %v1390, %v1458
    %v1462 = vxor.u32 %v1461, 2147483648
    %v1463 = vmul.f32 %v1462, 1.442695
    %v1464 = vpow.pop %v1463
    %v1465 = vadd.f32 %v1464, 1.0
    %v1466 = vrcp.pop %v1465
    %v1467 = vmul.f32 1.0, %v1466
    %1469 = vrot.lane.b32.xlu0 %v1155, 64
    %v1470 = vpop.permute.xlu0 %1469
    %v1472 = vadd.f32 %v1458, %v1470
    %1474 = vrot.lane.b32.xlu0 %v1472, 64
    %v1475 = vpop.permute.xlu0 %1474
    %v1477 = vmul.f32 %v1467, %v1475
    %1479 = vrot.lane.b32.xlu0 %v1477, 64
    %v1480 = vpop.permute.xlu0 %1479
    %v1482 = vadd.f32 %v1390, %v1480
    %v1483 = vtanh.pop %v1482
    %v1484 = vsub.f32 1.0, %v1467
    %1486 = vrot.lane.b32.xlu0 %v1483, 96
    %v1487 = vpop.permute.xlu0 %1486
    %v1489 = vmul.f32 %v1484, %v1487
    %v1490 = vmul.f32 %v1467, 0.0
    %v1491 = vadd.f32 %v1489, %v1490
    %v1492 = vadd.f32 %v1252, %v1382
    %1494 = vrot.lane.b32.xlu0 %v1491, 96
    %v1495 = vpop.permute.xlu0 %1494
    %v1496 = vsel %vm294, %v1495, 0
    %1498 = vmatprep.subr.mxu0 0.0
    %1499 = vmatpush1.msra.mxu0 %v1150
    %1500 = vmatprep.subr.mxu0 0.0
    %1501 = vmatpush1.msra.mxu0 %v1151
    %1502 = vmatprep.subr.mxu0 0.0
    %1503 = vmatpush1.msra.mxu0 %v1152
    %1504 = vmatprep.subr.mxu0 0.0
    %1505 = vmatpush1.msra.mxu0 %v1153
    %1506 = vmatprep.subr.mxu0 0.0
    %1507 = vmatpush1.msra.mxu0 0.0
    %1508 = vmatprep.subr.mxu0 0.0
    %1509 = vmatpush1.msra.mxu0 0.0
    %1510 = vmatprep.subr.mxu0 0.0
    %1511 = vmatpush1.msra.mxu0 0.0
    %1512 = vmatprep.subr.mxu0 0.0
    %1513 = vmatpush1.msra.mxu0 0.0
    %1514 = vmatprep.subr.mxu0 0.0
    %1515 = vmatpush1.msra.mxu0 0.0
    %1516 = vmatprep.subr.mxu0 0.0
    %1517 = vmatpush1.msra.mxu0 0.0
    %1518 = vmatprep.subr.mxu0 0.0
    %1519 = vmatpush1.msra.mxu0 0.0
    %1520 = vmatprep.subr.mxu0 0.0
    %1521 = vmatpush1.msra.mxu0 0.0
    %1522 = vmatprep.subr.mxu0 0.0
    %1523 = vmatpush1.msra.mxu0 0.0
    %1524 = vmatprep.subr.mxu0 0.0
    %1525 = vmatpush1.msra.mxu0 0.0
    %1526 = vmatprep.subr.mxu0 0.0
    %1527 = vmatpush1.msra.mxu0 0.0
    %1528 = vmatprep.subr.mxu0 0.0
    %1529 = vmatpush1.msra.mxu0 0.0
    %1530 = vmatprep.subr.mxu0 0.0
    %1531 = vmatpush1.msra.mxu0 0.0
    %1532 = vmatprep.subr.mxu0 0.0
    %1533 = vmatpush1.msra.mxu0 0.0
    %1534 = vmatprep.subr.mxu0 0.0
    %1535 = vmatpush1.msra.mxu0 0.0
    %1536 = vmatprep.subr.mxu0 0.0
    %1537 = vmatpush1.msra.mxu0 0.0
    %1538 = vmatprep.subr.mxu0 0.0
    %1539 = vmatpush1.msra.mxu0 0.0
    %1540 = vmatprep.subr.mxu0 0.0
    %1541 = vmatpush1.msra.mxu0 0.0
    %1542 = vmatprep.subr.mxu0 0.0
    %1543 = vmatpush1.msra.mxu0 0.0
    %1544 = vmatprep.subr.mxu0 0.0
    %1545 = vmatpush1.msra.mxu0 0.0
    %1546 = vmatprep.subr.mxu0 0.0
    %1547 = vmatpush1.msra.mxu0 0.0
    %1548 = vmatprep.subr.mxu0 0.0
    %1549 = vmatpush1.msra.mxu0 0.0
    %1550 = vmatprep.subr.mxu0 0.0
    %1551 = vmatpush1.msra.mxu0 0.0
    %1552 = vmatprep.subr.mxu0 0.0
    %1553 = vmatpush1.msra.mxu0 0.0
    %1554 = vmatprep.subr.mxu0 0.0
    %1555 = vmatpush1.msra.mxu0 0.0
    %1556 = vmatprep.subr.mxu0 0.0
    %1557 = vmatpush1.msra.mxu0 0.0
    %1558 = vmatprep.subr.mxu0 0.0
    %1559 = vmatpush1.msra.mxu0 0.0
    %1560 = vmatprep.subr.mxu0 0.0
    %1561 = vmatpush1.msra.mxu0 0.0
    %1562 = vmatprep.mubr.f32.mxu0 0.0
    %1563 = vmatmul.mubr.f32.gmra.mrb[0].mxu0 %v1496
    %v1564 = vpop.f32.mrb[0].mxu0
    %v1565 = vadd.f32 0.0, %v1564
    %v1566 = vpop.f32.mrb[0].mxu0
    %1567 = vdwg.mxu0
    %v1568 = vadd.f32 %v1492, %v1565
    %v1569 = vxor.u32 %v1568, 2147483648
    %v1570 = vmul.f32 %v1569, 1.442695
    %v1571 = vpow.pop %v1570
    %v1572 = vadd.f32 %v1571, 1.0
    %v1573 = vrcp.pop %v1572
    %v1574 = vmul.f32 1.0, %v1573
    %v1575 = vadd.f32 %v1565, %v1470
    %1577 = vrot.lane.b32.xlu0 %v1575, 64
    %v1578 = vpop.permute.xlu0 %1577
    %v1580 = vmul.f32 %v1574, %v1578
    %1582 = vrot.lane.b32.xlu0 %v1580, 64
    %v1583 = vpop.permute.xlu0 %1582
    %v1585 = vadd.f32 %v1492, %v1583
    %v1586 = vtanh.pop %v1585
    %v1587 = vsub.f32 1.0, %v1574
    %1589 = vrot.lane.b32.xlu0 %v1586, 96
    %v1590 = vpop.permute.xlu0 %1589
    %v1592 = vmul.f32 %v1587, %v1590
    %v1593 = vmul.f32 %v1574, %v1491
    %v1594 = vadd.f32 %v1592, %v1593
    %v1595 = vadd.f32 %v1257, %v1377
    %1597 = vrot.lane.b32.xlu0 %v1594, 96
    %v1598 = vpop.permute.xlu0 %1597
    %v1599 = vsel %vm294, %v1598, 0
    %1601 = vmatprep.subr.mxu0 0.0
    %1602 = vmatpush1.msra.mxu0 %v1150
    %1603 = vmatprep.subr.mxu0 0.0
    %1604 = vmatpush1.msra.mxu0 %v1151
    %1605 = vmatprep.subr.mxu0 0.0
    %1606 = vmatpush1.msra.mxu0 %v1152
    %1607 = vmatprep.subr.mxu0 0.0
    %1608 = vmatpush1.msra.mxu0 %v1153
    %1609 = vmatprep.subr.mxu0 0.0
    %1610 = vmatpush1.msra.mxu0 0.0
    %1611 = vmatprep.subr.mxu0 0.0
    %1612 = vmatpush1.msra.mxu0 0.0
    %1613 = vmatprep.subr.mxu0 0.0
    %1614 = vmatpush1.msra.mxu0 0.0
    %1615 = vmatprep.subr.mxu0 0.0
    %1616 = vmatpush1.msra.mxu0 0.0
    %1617 = vmatprep.subr.mxu0 0.0
    %1618 = vmatpush1.msra.mxu0 0.0
    %1619 = vmatprep.subr.mxu0 0.0
    %1620 = vmatpush1.msra.mxu0 0.0
    %1621 = vmatprep.subr.mxu0 0.0
    %1622 = vmatpush1.msra.mxu0 0.0
    %1623 = vmatprep.subr.mxu0 0.0
    %1624 = vmatpush1.msra.mxu0 0.0
    %1625 = vmatprep.subr.mxu0 0.0
    %1626 = vmatpush1.msra.mxu0 0.0
    %1627 = vmatprep.subr.mxu0 0.0
    %1628 = vmatpush1.msra.mxu0 0.0
    %1629 = vmatprep.subr.mxu0 0.0
    %1630 = vmatpush1.msra.mxu0 0.0
    %1631 = vmatprep.subr.mxu0 0.0
    %1632 = vmatpush1.msra.mxu0 0.0
    %1633 = vmatprep.subr.mxu0 0.0
    %1634 = vmatpush1.msra.mxu0 0.0
    %1635 = vmatprep.subr.mxu0 0.0
    %1636 = vmatpush1.msra.mxu0 0.0
    %1637 = vmatprep.subr.mxu0 0.0
    %1638 = vmatpush1.msra.mxu0 0.0
    %1639 = vmatprep.subr.mxu0 0.0
    %1640 = vmatpush1.msra.mxu0 0.0
    %1641 = vmatprep.subr.mxu0 0.0
    %1642 = vmatpush1.msra.mxu0 0.0
    %1643 = vmatprep.subr.mxu0 0.0
    %1644 = vmatpush1.msra.mxu0 0.0
    %1645 = vmatprep.subr.mxu0 0.0
    %1646 = vmatpush1.msra.mxu0 0.0
    %1647 = vmatprep.subr.mxu0 0.0
    %1648 = vmatpush1.msra.mxu0 0.0
    %1649 = vmatprep.subr.mxu0 0.0
    %1650 = vmatpush1.msra.mxu0 0.0
    %1651 = vmatprep.subr.mxu0 0.0
    %1652 = vmatpush1.msra.mxu0 0.0
    %1653 = vmatprep.subr.mxu0 0.0
    %1654 = vmatpush1.msra.mxu0 0.0
    %1655 = vmatprep.subr.mxu0 0.0
    %1656 = vmatpush1.msra.mxu0 0.0
    %1657 = vmatprep.subr.mxu0 0.0
    %1658 = vmatpush1.msra.mxu0 0.0
    %1659 = vmatprep.subr.mxu0 0.0
    %1660 = vmatpush1.msra.mxu0 0.0
    %1661 = vmatprep.subr.mxu0 0.0
    %1662 = vmatpush1.msra.mxu0 0.0
    %1663 = vmatprep.subr.mxu0 0.0
    %1664 = vmatpush1.msra.mxu0 0.0
    %1665 = vmatprep.mubr.f32.mxu0 0.0
    %1666 = vmatmul.mubr.f32.gmra.mrb[0].mxu0 %v1599
    %v1667 = vpop.f32.mrb[0].mxu0
    %v1668 = vadd.f32 0.0, %v1667
    %v1669 = vpop.f32.mrb[0].mxu0
    %1670 = vdwg.mxu0
    %v1671 = vadd.f32 %v1595, %v1668
    %v1672 = vxor.u32 %v1671, 2147483648
    %v1673 = vmul.f32 %v1672, 1.442695
    %v1674 = vpow.pop %v1673
    %v1675 = vadd.f32 %v1674, 1.0
    %v1676 = vrcp.pop %v1675
    %v1677 = vmul.f32 1.0, %v1676
    %v1678 = vadd.f32 %v1668, %v1470
    %1680 = vrot.lane.b32.xlu0 %v1678, 64
    %v1681 = vpop.permute.xlu0 %1680
    %v1683 = vmul.f32 %v1677, %v1681
    %1685 = vrot.lane.b32.xlu0 %v1683, 64
    %v1686 = vpop.permute.xlu0 %1685
    %v1688 = vadd.f32 %v1595, %v1686
    %v1689 = vtanh.pop %v1688
    %v1690 = vsub.f32 1.0, %v1677
    %1692 = vrot.lane.b32.xlu0 %v1689, 96
    %v1693 = vpop.permute.xlu0 %1692
    %v1695 = vmul.f32 %v1690, %v1693
    %v1696 = vmul.f32 %v1677, %v1594
    %v1697 = vadd.f32 %v1695, %v1696
    %v1698 = vadd.f32 %v1262, %v1372
    %1700 = vrot.lane.b32.xlu0 %v1697, 96
    %v1701 = vpop.permute.xlu0 %1700
    %v1702 = vsel %vm294, %v1701, 0
    %1704 = vmatprep.subr.mxu0 0.0
    %1705 = vmatpush1.msra.mxu0 %v1150
    %1706 = vmatprep.subr.mxu0 0.0
    %1707 = vmatpush1.msra.mxu0 %v1151
    %1708 = vmatprep.subr.mxu0 0.0
    %1709 = vmatpush1.msra.mxu0 %v1152
    %1710 = vmatprep.subr.mxu0 0.0
    %1711 = vmatpush1.msra.mxu0 %v1153
    %1712 = vmatprep.subr.mxu0 0.0
    %1713 = vmatpush1.msra.mxu0 0.0
    %1714 = vmatprep.subr.mxu0 0.0
    %1715 = vmatpush1.msra.mxu0 0.0
    %1716 = vmatprep.subr.mxu0 0.0
    %1717 = vmatpush1.msra.mxu0 0.0
    %1718 = vmatprep.subr.mxu0 0.0
    %1719 = vmatpush1.msra.mxu0 0.0
    %1720 = vmatprep.subr.mxu0 0.0
    %1721 = vmatpush1.msra.mxu0 0.0
    %1722 = vmatprep.subr.mxu0 0.0
    %1723 = vmatpush1.msra.mxu0 0.0
    %1724 = vmatprep.subr.mxu0 0.0
    %1725 = vmatpush1.msra.mxu0 0.0
    %1726 = vmatprep.subr.mxu0 0.0
    %1727 = vmatpush1.msra.mxu0 0.0
    %1728 = vmatprep.subr.mxu0 0.0
    %1729 = vmatpush1.msra.mxu0 0.0
    %1730 = vmatprep.subr.mxu0 0.0
    %1731 = vmatpush1.msra.mxu0 0.0
    %1732 = vmatprep.subr.mxu0 0.0
    %1733 = vmatpush1.msra.mxu0 0.0
    %1734 = vmatprep.subr.mxu0 0.0
    %1735 = vmatpush1.msra.mxu0 0.0
    %1736 = vmatprep.subr.mxu0 0.0
    %1737 = vmatpush1.msra.mxu0 0.0
    %1738 = vmatprep.subr.mxu0 0.0
    %1739 = vmatpush1.msra.mxu0 0.0
    %1740 = vmatprep.subr.mxu0 0.0
    %1741 = vmatpush1.msra.mxu0 0.0
    %1742 = vmatprep.subr.mxu0 0.0
    %1743 = vmatpush1.msra.mxu0 0.0
    %1744 = vmatprep.subr.mxu0 0.0
    %1745 = vmatpush1.msra.mxu0 0.0
    %1746 = vmatprep.subr.mxu0 0.0
    %1747 = vmatpush1.msra.mxu0 0.0
    %1748 = vmatprep.subr.mxu0 0.0
    %1749 = vmatpush1.msra.mxu0 0.0
    %1750 = vmatprep.subr.mxu0 0.0
    %1751 = vmatpush1.msra.mxu0 0.0
    %1752 = vmatprep.subr.mxu0 0.0
    %1753 = vmatpush1.msra.mxu0 0.0
    %1754 = vmatprep.subr.mxu0 0.0
    %1755 = vmatpush1.msra.mxu0 0.0
    %1756 = vmatprep.subr.mxu0 0.0
    %1757 = vmatpush1.msra.mxu0 0.0
    %1758 = vmatprep.subr.mxu0 0.0
    %1759 = vmatpush1.msra.mxu0 0.0
    %1760 = vmatprep.subr.mxu0 0.0
    %1761 = vmatpush1.msra.mxu0 0.0
    %1762 = vmatprep.subr.mxu0 0.0
    %1763 = vmatpush1.msra.mxu0 0.0
    %1764 = vmatprep.subr.mxu0 0.0
    %1765 = vmatpush1.msra.mxu0 0.0
    %1766 = vmatprep.subr.mxu0 0.0
    %1767 = vmatpush1.msra.mxu0 0.0
    %1768 = vmatprep.mubr.f32.mxu0 0.0
    %1769 = vmatmul.mubr.f32.gmra.mrb[0].mxu0 %v1702
    %v1770 = vpop.f32.mrb[0].mxu0
    %v1771 = vadd.f32 0.0, %v1770
    %v1772 = vpop.f32.mrb[0].mxu0
    %1773 = vdwg.mxu0
    %v1774 = vadd.f32 %v1698, %v1771
    %v1775 = vxor.u32 %v1774, 2147483648
    %v1776 = vmul.f32 %v1775, 1.442695
    %v1777 = vpow.pop %v1776
    %v1778 = vadd.f32 %v1777, 1.0
    %v1779 = vrcp.pop %v1778
    %v1780 = vmul.f32 1.0, %v1779
    %v1781 = vadd.f32 %v1771, %v1470
    %1783 = vrot.lane.b32.xlu0 %v1781, 64
    %v1784 = vpop.permute.xlu0 %1783
    %v1786 = vmul.f32 %v1780, %v1784
    %1788 = vrot.lane.b32.xlu0 %v1786, 64
    %v1789 = vpop.permute.xlu0 %1788
    %v1791 = vadd.f32 %v1698, %v1789
    %v1792 = vtanh.pop %v1791
    %v1793 = vsub.f32 1.0, %v1780
    %1795 = vrot.lane.b32.xlu0 %v1792, 96
    %v1796 = vpop.permute.xlu0 %1795
    %v1798 = vmul.f32 %v1793, %v1796
    %v1799 = vmul.f32 %v1780, %v1697
    %v1800 = vadd.f32 %v1798, %v1799
    %v1801 = vadd.f32 %v1267, %v1367
    %1803 = vrot.lane.b32.xlu0 %v1800, 96
    %v1804 = vpop.permute.xlu0 %1803
    %v1805 = vsel %vm294, %v1804, 0
    %1807 = vmatprep.subr.mxu0 0.0
    %1808 = vmatpush1.msra.mxu0 %v1150
    %1809 = vmatprep.subr.mxu0 0.0
    %1810 = vmatpush1.msra.mxu0 %v1151
    %1811 = vmatprep.subr.mxu0 0.0
    %1812 = vmatpush1.msra.mxu0 %v1152
    %1813 = vmatprep.subr.mxu0 0.0
    %1814 = vmatpush1.msra.mxu0 %v1153
    %1815 = vmatprep.subr.mxu0 0.0
    %1816 = vmatpush1.msra.mxu0 0.0
    %1817 = vmatprep.subr.mxu0 0.0
    %1818 = vmatpush1.msra.mxu0 0.0
    %1819 = vmatprep.subr.mxu0 0.0
    %1820 = vmatpush1.msra.mxu0 0.0
    %1821 = vmatprep.subr.mxu0 0.0
    %1822 = vmatpush1.msra.mxu0 0.0
    %1823 = vmatprep.subr.mxu0 0.0
    %1824 = vmatpush1.msra.mxu0 0.0
    %1825 = vmatprep.subr.mxu0 0.0
    %1826 = vmatpush1.msra.mxu0 0.0
    %1827 = vmatprep.subr.mxu0 0.0
    %1828 = vmatpush1.msra.mxu0 0.0
    %1829 = vmatprep.subr.mxu0 0.0
    %1830 = vmatpush1.msra.mxu0 0.0
    %1831 = vmatprep.subr.mxu0 0.0
    %1832 = vmatpush1.msra.mxu0 0.0
    %1833 = vmatprep.subr.mxu0 0.0
    %1834 = vmatpush1.msra.mxu0 0.0
    %1835 = vmatprep.subr.mxu0 0.0
    %1836 = vmatpush1.msra.mxu0 0.0
    %1837 = vmatprep.subr.mxu0 0.0
    %1838 = vmatpush1.msra.mxu0 0.0
    %1839 = vmatprep.subr.mxu0 0.0
    %1840 = vmatpush1.msra.mxu0 0.0
    %1841 = vmatprep.subr.mxu0 0.0
    %1842 = vmatpush1.msra.mxu0 0.0
    %1843 = vmatprep.subr.mxu0 0.0
    %1844 = vmatpush1.msra.mxu0 0.0
    %1845 = vmatprep.subr.mxu0 0.0
    %1846 = vmatpush1.msra.mxu0 0.0
    %1847 = vmatprep.subr.mxu0 0.0
    %1848 = vmatpush1.msra.mxu0 0.0
    %1849 = vmatprep.subr.mxu0 0.0
    %1850 = vmatpush1.msra.mxu0 0.0
    %1851 = vmatprep.subr.mxu0 0.0
    %1852 = vmatpush1.msra.mxu0 0.0
    %1853 = vmatprep.subr.mxu0 0.0
    %1854 = vmatpush1.msra.mxu0 0.0
    %1855 = vmatprep.subr.mxu0 0.0
    %1856 = vmatpush1.msra.mxu0 0.0
    %1857 = vmatprep.subr.mxu0 0.0
    %1858 = vmatpush1.msra.mxu0 0.0
    %1859 = vmatprep.subr.mxu0 0.0
    %1860 = vmatpush1.msra.mxu0 0.0
    %1861 = vmatprep.subr.mxu0 0.0
    %1862 = vmatpush1.msra.mxu0 0.0
    %1863 = vmatprep.subr.mxu0 0.0
    %1864 = vmatpush1.msra.mxu0 0.0
    %1865 = vmatprep.subr.mxu0 0.0
    %1866 = vmatpush1.msra.mxu0 0.0
    %1867 = vmatprep.subr.mxu0 0.0
    %1868 = vmatpush1.msra.mxu0 0.0
    %1869 = vmatprep.subr.mxu0 0.0
    %1870 = vmatpush1.msra.mxu0 0.0
    %1871 = vmatprep.mubr.f32.mxu0 0.0
    %1872 = vmatmul.mubr.f32.gmra.mrb[0].mxu0 %v1805
    %v1873 = vpop.f32.mrb[0].mxu0
    %v1874 = vadd.f32 0.0, %v1873
    %v1875 = vpop.f32.mrb[0].mxu0
    %1876 = vdwg.mxu0
    %v1877 = vadd.f32 %v1801, %v1874
    %v1878 = vxor.u32 %v1877, 2147483648
    %v1879 = vmul.f32 %v1878, 1.442695
    %v1880 = vpow.pop %v1879
    %v1881 = vadd.f32 %v1880, 1.0
    %v1882 = vrcp.pop %v1881
    %v1883 = vmul.f32 1.0, %v1882
    %v1884 = vadd.f32 %v1874, %v1470
    %1886 = vrot.lane.b32.xlu0 %v1884, 64
    %v1887 = vpop.permute.xlu0 %1886
    %v1889 = vmul.f32 %v1883, %v1887
    %1891 = vrot.lane.b32.xlu0 %v1889, 64
    %v1892 = vpop.permute.xlu0 %1891
    %v1894 = vadd.f32 %v1801, %v1892
    %v1895 = vtanh.pop %v1894
    %v1896 = vsub.f32 1.0, %v1883
    %1898 = vrot.lane.b32.xlu0 %v1895, 96
    %v1899 = vpop.permute.xlu0 %1898
    %v1901 = vmul.f32 %v1896, %v1899
    %v1902 = vmul.f32 %v1883, %v1800
    %v1903 = vadd.f32 %v1901, %v1902
    %v1904 = vadd.f32 %v1272, %v1362
    %1906 = vrot.lane.b32.xlu0 %v1903, 96
    %v1907 = vpop.permute.xlu0 %1906
    %v1908 = vsel %vm294, %v1907, 0
    %1910 = vmatprep.subr.mxu0 0.0
    %1911 = vmatpush1.msra.mxu0 %v1150
    %1912 = vmatprep.subr.mxu0 0.0
    %1913 = vmatpush1.msra.mxu0 %v1151
    %1914 = vmatprep.subr.mxu0 0.0
    %1915 = vmatpush1.msra.mxu0 %v1152
    %1916 = vmatprep.subr.mxu0 0.0
    %1917 = vmatpush1.msra.mxu0 %v1153
    %1918 = vmatprep.subr.mxu0 0.0
    %1919 = vmatpush1.msra.mxu0 0.0
    %1920 = vmatprep.subr.mxu0 0.0
    %1921 = vmatpush1.msra.mxu0 0.0
    %1922 = vmatprep.subr.mxu0 0.0
    %1923 = vmatpush1.msra.mxu0 0.0
    %1924 = vmatprep.subr.mxu0 0.0
    %1925 = vmatpush1.msra.mxu0 0.0
    %1926 = vmatprep.subr.mxu0 0.0
    %1927 = vmatpush1.msra.mxu0 0.0
    %1928 = vmatprep.subr.mxu0 0.0
    %1929 = vmatpush1.msra.mxu0 0.0
    %1930 = vmatprep.subr.mxu0 0.0
    %1931 = vmatpush1.msra.mxu0 0.0
    %1932 = vmatprep.subr.mxu0 0.0
    %1933 = vmatpush1.msra.mxu0 0.0
    %1934 = vmatprep.subr.mxu0 0.0
    %1935 = vmatpush1.msra.mxu0 0.0
    %1936 = vmatprep.subr.mxu0 0.0
    %1937 = vmatpush1.msra.mxu0 0.0
    %1938 = vmatprep.subr.mxu0 0.0
    %1939 = vmatpush1.msra.mxu0 0.0
    %1940 = vmatprep.subr.mxu0 0.0
    %1941 = vmatpush1.msra.mxu0 0.0
    %1942 = vmatprep.subr.mxu0 0.0
    %1943 = vmatpush1.msra.mxu0 0.0
    %1944 = vmatprep.subr.mxu0 0.0
    %1945 = vmatpush1.msra.mxu0 0.0
    %1946 = vmatprep.subr.mxu0 0.0
    %1947 = vmatpush1.msra.mxu0 0.0
    %1948 = vmatprep.subr.mxu0 0.0
    %1949 = vmatpush1.msra.mxu0 0.0
    %1950 = vmatprep.subr.mxu0 0.0
    %1951 = vmatpush1.msra.mxu0 0.0
    %1952 = vmatprep.subr.mxu0 0.0
    %1953 = vmatpush1.msra.mxu0 0.0
    %1954 = vmatprep.subr.mxu0 0.0
    %1955 = vmatpush1.msra.mxu0 0.0
    %1956 = vmatprep.subr.mxu0 0.0
    %1957 = vmatpush1.msra.mxu0 0.0
    %1958 = vmatprep.subr.mxu0 0.0
    %1959 = vmatpush1.msra.mxu0 0.0
    %1960 = vmatprep.subr.mxu0 0.0
    %1961 = vmatpush1.msra.mxu0 0.0
    %1962 = vmatprep.subr.mxu0 0.0
    %1963 = vmatpush1.msra.mxu0 0.0
    %1964 = vmatprep.subr.mxu0 0.0
    %1965 = vmatpush1.msra.mxu0 0.0
    %1966 = vmatprep.subr.mxu0 0.0
    %1967 = vmatpush1.msra.mxu0 0.0
    %1968 = vmatprep.subr.mxu0 0.0
    %1969 = vmatpush1.msra.mxu0 0.0
    %1970 = vmatprep.subr.mxu0 0.0
    %1971 = vmatpush1.msra.mxu0 0.0
    %1972 = vmatprep.subr.mxu0 0.0
    %1973 = vmatpush1.msra.mxu0 0.0
    %1974 = vmatprep.mubr.f32.mxu0 0.0
    %1975 = vmatmul.mubr.f32.gmra.mrb[0].mxu0 %v1908
    %v1976 = vpop.f32.mrb[0].mxu0
    %v1977 = vadd.f32 0.0, %v1976
    %v1978 = vpop.f32.mrb[0].mxu0
    %1979 = vdwg.mxu0
    %v1980 = vadd.f32 %v1904, %v1977
    %v1981 = vxor.u32 %v1980, 2147483648
    %v1982 = vmul.f32 %v1981, 1.442695
    %v1983 = vpow.pop %v1982
    %v1984 = vadd.f32 %v1983, 1.0
    %v1985 = vrcp.pop %v1984
    %v1986 = vmul.f32 1.0, %v1985
    %v1987 = vadd.f32 %v1977, %v1470
    %1989 = vrot.lane.b32.xlu0 %v1987, 64
    %v1990 = vpop.permute.xlu0 %1989
    %v1992 = vmul.f32 %v1986, %v1990
    %1994 = vrot.lane.b32.xlu0 %v1992, 64
    %v1995 = vpop.permute.xlu0 %1994
    %v1997 = vadd.f32 %v1904, %v1995
    %v1998 = vtanh.pop %v1997
    %v1999 = vsub.f32 1.0, %v1986
    %2001 = vrot.lane.b32.xlu0 %v1998, 96
    %v2002 = vpop.permute.xlu0 %2001
    %v2004 = vmul.f32 %v1999, %v2002
    %v2005 = vmul.f32 %v1986, %v1903
    %v2006 = vadd.f32 %v2004, %v2005
    %v2007 = vadd.f32 %v1277, %v1357
    %2009 = vrot.lane.b32.xlu0 %v2006, 96
    %v2010 = vpop.permute.xlu0 %2009
    %v2011 = vsel %vm294, %v2010, 0
    %2013 = vmatprep.subr.mxu0 0.0
    %2014 = vmatpush1.msra.mxu0 %v1150
    %2015 = vmatprep.subr.mxu0 0.0
    %2016 = vmatpush1.msra.mxu0 %v1151
    %2017 = vmatprep.subr.mxu0 0.0
    %2018 = vmatpush1.msra.mxu0 %v1152
    %2019 = vmatprep.subr.mxu0 0.0
    %2020 = vmatpush1.msra.mxu0 %v1153
    %2021 = vmatprep.subr.mxu0 0.0
    %2022 = vmatpush1.msra.mxu0 0.0
    %2023 = vmatprep.subr.mxu0 0.0
    %2024 = vmatpush1.msra.mxu0 0.0
    %2025 = vmatprep.subr.mxu0 0.0
    %2026 = vmatpush1.msra.mxu0 0.0
    %2027 = vmatprep.subr.mxu0 0.0
    %2028 = vmatpush1.msra.mxu0 0.0
    %2029 = vmatprep.subr.mxu0 0.0
    %2030 = vmatpush1.msra.mxu0 0.0
    %2031 = vmatprep.subr.mxu0 0.0
    %2032 = vmatpush1.msra.mxu0 0.0
    %2033 = vmatprep.subr.mxu0 0.0
    %2034 = vmatpush1.msra.mxu0 0.0
    %2035 = vmatprep.subr.mxu0 0.0
    %2036 = vmatpush1.msra.mxu0 0.0
    %2037 = vmatprep.subr.mxu0 0.0
    %2038 = vmatpush1.msra.mxu0 0.0
    %2039 = vmatprep.subr.mxu0 0.0
    %2040 = vmatpush1.msra.mxu0 0.0
    %2041 = vmatprep.subr.mxu0 0.0
    %2042 = vmatpush1.msra.mxu0 0.0
    %2043 = vmatprep.subr.mxu0 0.0
    %2044 = vmatpush1.msra.mxu0 0.0
    %2045 = vmatprep.subr.mxu0 0.0
    %2046 = vmatpush1.msra.mxu0 0.0
    %2047 = vmatprep.subr.mxu0 0.0
    %2048 = vmatpush1.msra.mxu0 0.0
    %2049 = vmatprep.subr.mxu0 0.0
    %2050 = vmatpush1.msra.mxu0 0.0
    %2051 = vmatprep.subr.mxu0 0.0
    %2052 = vmatpush1.msra.mxu0 0.0
    %2053 = vmatprep.subr.mxu0 0.0
    %2054 = vmatpush1.msra.mxu0 0.0
    %2055 = vmatprep.subr.mxu0 0.0
    %2056 = vmatpush1.msra.mxu0 0.0
    %2057 = vmatprep.subr.mxu0 0.0
    %2058 = vmatpush1.msra.mxu0 0.0
    %2059 = vmatprep.subr.mxu0 0.0
    %2060 = vmatpush1.msra.mxu0 0.0
    %2061 = vmatprep.subr.mxu0 0.0
    %2062 = vmatpush1.msra.mxu0 0.0
    %2063 = vmatprep.subr.mxu0 0.0
    %2064 = vmatpush1.msra.mxu0 0.0
    %2065 = vmatprep.subr.mxu0 0.0
    %2066 = vmatpush1.msra.mxu0 0.0
    %2067 = vmatprep.subr.mxu0 0.0
    %2068 = vmatpush1.msra.mxu0 0.0
    %2069 = vmatprep.subr.mxu0 0.0
    %2070 = vmatpush1.msra.mxu0 0.0
    %2071 = vmatprep.subr.mxu0 0.0
    %2072 = vmatpush1.msra.mxu0 0.0
    %2073 = vmatprep.subr.mxu0 0.0
    %2074 = vmatpush1.msra.mxu0 0.0
    %2075 = vmatprep.subr.mxu0 0.0
    %2076 = vmatpush1.msra.mxu0 0.0
    %2077 = vmatprep.mubr.f32.mxu0 0.0
    %2078 = vmatmul.mubr.f32.gmra.mrb[0].mxu0 %v2011
    %v2079 = vpop.f32.mrb[0].mxu0
    %v2080 = vadd.f32 0.0, %v2079
    %v2081 = vpop.f32.mrb[0].mxu0
    %2082 = vdwg.mxu0
    %v2083 = vadd.f32 %v2007, %v2080
    %v2084 = vxor.u32 %v2083, 2147483648
    %v2085 = vmul.f32 %v2084, 1.442695
    %v2086 = vpow.pop %v2085
    %v2087 = vadd.f32 %v2086, 1.0
    %v2088 = vrcp.pop %v2087
    %v2089 = vmul.f32 1.0, %v2088
    %v2090 = vadd.f32 %v2080, %v1470
    %2092 = vrot.lane.b32.xlu0 %v2090, 64
    %v2093 = vpop.permute.xlu0 %2092
    %v2095 = vmul.f32 %v2089, %v2093
    %2097 = vrot.lane.b32.xlu0 %v2095, 64
    %v2098 = vpop.permute.xlu0 %2097
    %v2100 = vadd.f32 %v2007, %v2098
    %v2101 = vtanh.pop %v2100
    %v2102 = vsub.f32 1.0, %v2089
    %2104 = vrot.lane.b32.xlu0 %v2101, 96
    %v2105 = vpop.permute.xlu0 %2104
    %v2107 = vmul.f32 %v2102, %v2105
    %v2108 = vmul.f32 %v2089, %v2006
    %v2109 = vadd.f32 %v2107, %v2108
    %v2110 = vadd.f32 %v1282, %v1352
    %2112 = vrot.lane.b32.xlu0 %v2109, 96
    %v2113 = vpop.permute.xlu0 %2112
    %v2114 = vsel %vm294, %v2113, 0
    %2116 = vmatprep.subr.mxu0 0.0
    %2117 = vmatpush1.msra.mxu0 %v1150
    %2118 = vmatprep.subr.mxu0 0.0
    %2119 = vmatpush1.msra.mxu0 %v1151
    %2120 = vmatprep.subr.mxu0 0.0
    %2121 = vmatpush1.msra.mxu0 %v1152
    %2122 = vmatprep.subr.mxu0 0.0
    %2123 = vmatpush1.msra.mxu0 %v1153
    %2124 = vmatprep.subr.mxu0 0.0
    %2125 = vmatpush1.msra.mxu0 0.0
    %2126 = vmatprep.subr.mxu0 0.0
    %2127 = vmatpush1.msra.mxu0 0.0
    %2128 = vmatprep.subr.mxu0 0.0
    %2129 = vmatpush1.msra.mxu0 0.0
    %2130 = vmatprep.subr.mxu0 0.0
    %2131 = vmatpush1.msra.mxu0 0.0
    %2132 = vmatprep.subr.mxu0 0.0
    %2133 = vmatpush1.msra.mxu0 0.0
    %2134 = vmatprep.subr.mxu0 0.0
    %2135 = vmatpush1.msra.mxu0 0.0
    %2136 = vmatprep.subr.mxu0 0.0
    %2137 = vmatpush1.msra.mxu0 0.0
    %2138 = vmatprep.subr.mxu0 0.0
    %2139 = vmatpush1.msra.mxu0 0.0
    %2140 = vmatprep.subr.mxu0 0.0
    %2141 = vmatpush1.msra.mxu0 0.0
    %2142 = vmatprep.subr.mxu0 0.0
    %2143 = vmatpush1.msra.mxu0 0.0
    %2144 = vmatprep.subr.mxu0 0.0
    %2145 = vmatpush1.msra.mxu0 0.0
    %2146 = vmatprep.subr.mxu0 0.0
    %2147 = vmatpush1.msra.mxu0 0.0
    %2148 = vmatprep.subr.mxu0 0.0
    %2149 = vmatpush1.msra.mxu0 0.0
    %2150 = vmatprep.subr.mxu0 0.0
    %2151 = vmatpush1.msra.mxu0 0.0
    %2152 = vmatprep.subr.mxu0 0.0
    %2153 = vmatpush1.msra.mxu0 0.0
    %2154 = vmatprep.subr.mxu0 0.0
    %2155 = vmatpush1.msra.mxu0 0.0
    %2156 = vmatprep.subr.mxu0 0.0
    %2157 = vmatpush1.msra.mxu0 0.0
    %2158 = vmatprep.subr.mxu0 0.0
    %2159 = vmatpush1.msra.mxu0 0.0
    %2160 = vmatprep.subr.mxu0 0.0
    %2161 = vmatpush1.msra.mxu0 0.0
    %2162 = vmatprep.subr.mxu0 0.0
    %2163 = vmatpush1.msra.mxu0 0.0
    %2164 = vmatprep.subr.mxu0 0.0
    %2165 = vmatpush1.msra.mxu0 0.0
    %2166 = vmatprep.subr.mxu0 0.0
    %2167 = vmatpush1.msra.mxu0 0.0
    %2168 = vmatprep.subr.mxu0 0.0
    %2169 = vmatpush1.msra.mxu0 0.0
    %2170 = vmatprep.subr.mxu0 0.0
    %2171 = vmatpush1.msra.mxu0 0.0
    %2172 = vmatprep.subr.mxu0 0.0
    %2173 = vmatpush1.msra.mxu0 0.0
    %2174 = vmatprep.subr.mxu0 0.0
    %2175 = vmatpush1.msra.mxu0 0.0
    %2176 = vmatprep.subr.mxu0 0.0
    %2177 = vmatpush1.msra.mxu0 0.0
    %2178 = vmatprep.subr.mxu0 0.0
    %2179 = vmatpush1.msra.mxu0 0.0
    %2180 = vmatprep.mubr.f32.mxu0 0.0
    %2181 = vmatmul.mubr.f32.gmra.mrb[0].mxu0 %v2114
    %v2182 = vpop.f32.mrb[0].mxu0
    %v2183 = vadd.f32 0.0, %v2182
    %v2184 = vpop.f32.mrb[0].mxu0
    %2185 = vdwg.mxu0
    %v2186 = vadd.f32 %v2110, %v2183
    %v2187 = vxor.u32 %v2186, 2147483648
    %v2188 = vmul.f32 %v2187, 1.442695
    %v2189 = vpow.pop %v2188
    %v2190 = vadd.f32 %v2189, 1.0
    %v2191 = vrcp.pop %v2190
    %v2192 = vmul.f32 1.0, %v2191
    %v2193 = vadd.f32 %v2183, %v1470
    %2195 = vrot.lane.b32.xlu0 %v2193, 64
    %v2196 = vpop.permute.xlu0 %2195
    %v2198 = vmul.f32 %v2192, %v2196
    %2200 = vrot.lane.b32.xlu0 %v2198, 64
    %v2201 = vpop.permute.xlu0 %2200
    %v2203 = vadd.f32 %v2110, %v2201
    %v2204 = vtanh.pop %v2203
    %v2205 = vsub.f32 1.0, %v2192
    %2207 = vrot.lane.b32.xlu0 %v2204, 96
    %v2208 = vpop.permute.xlu0 %2207
    %v2210 = vmul.f32 %v2205, %v2208
    %v2211 = vmul.f32 %v2192, %v2109
    %v2212 = vadd.f32 %v2210, %v2211
    %2215 = vrot.lane.b32.xlu0 %v2212, 96
    %v2216 = vpop.permute.xlu0 %2215
    %v2218 = vsel %vm1122, %v1495, %v2216
    %v2221 = vsel %vm1122, %v1598, %v2113
    %v2224 = vsel %vm1122, %v1701, %v2010
    %v2227 = vsel %vm1122, %v1804, %v1907
    %v2228 = vsel %vm1122, %v1907, %v1804
    %v2229 = vsel %vm1122, %v2010, %v1701
    %v2230 = vsel %vm1122, %v2113, %v1598
    %v2231 = vsel %vm1122, %v2216, %v1495
    %v2232 = vld [vmem:[#allocation2 + $0x1b0] sm:$0xff]
    %v2233 = vld [vmem:[#allocation2 + $0x1c8] sm:$0xff]
    %v2234 = vld [vmem:[#allocation2 + $0x1e0] sm:$0xff]
    %v2235 = vld [vmem:[#allocation2 + $0x1f8] sm:$0xff]
    %v2236 = vld [vmem:[#allocation4 + $0x60] ss:$0 sm:$0xff]
    %v2238 = vsel %vm294, %v2218, 0
    %v2241 = vsel %vm294, %v2221, 0
    %v2244 = vsel %vm294, %v2224, 0
    %v2247 = vsel %vm294, %v2227, 0
    %v2250 = vsel %vm294, %v2228, 0
    %v2253 = vsel %vm294, %v2229, 0
    %v2256 = vsel %vm294, %v2230, 0
    %v2259 = vsel %vm294, %v2231, 0
    %2261 = vmatprep.subr.mxu0 0.0
    %2262 = vmatpush1.msra.mxu0 %v2232
    %2263 = vmatprep.subr.mxu0 0.0
    %2264 = vmatpush1.msra.mxu0 %v2233
    %2265 = vmatprep.subr.mxu0 0.0
    %2266 = vmatpush1.msra.mxu0 %v2234
    %2267 = vmatprep.subr.mxu0 0.0
    %2268 = vmatpush1.msra.mxu0 %v2235
    %2269 = vmatprep.subr.mxu0 0.0
    %2270 = vmatpush1.msra.mxu0 0.0
    %2271 = vmatprep.subr.mxu0 0.0
    %2272 = vmatpush1.msra.mxu0 0.0
    %2273 = vmatprep.subr.mxu0 0.0
    %2274 = vmatpush1.msra.mxu0 0.0
    %2275 = vmatprep.subr.mxu0 0.0
    %2276 = vmatpush1.msra.mxu0 0.0
    %2277 = vmatprep.subr.mxu0 0.0
    %2278 = vmatpush1.msra.mxu0 0.0
    %2279 = vmatprep.subr.mxu0 0.0
    %2280 = vmatpush1.msra.mxu0 0.0
    %2281 = vmatprep.subr.mxu0 0.0
    %2282 = vmatpush1.msra.mxu0 0.0
    %2283 = vmatprep.subr.mxu0 0.0
    %2284 = vmatpush1.msra.mxu0 0.0
    %2285 = vmatprep.subr.mxu0 0.0
    %2286 = vmatpush1.msra.mxu0 0.0
    %2287 = vmatprep.subr.mxu0 0.0
    %2288 = vmatpush1.msra.mxu0 0.0
    %2289 = vmatprep.subr.mxu0 0.0
    %2290 = vmatpush1.msra.mxu0 0.0
    %2291 = vmatprep.subr.mxu0 0.0
    %2292 = vmatpush1.msra.mxu0 0.0
    %2293 = vmatprep.subr.mxu0 0.0
    %2294 = vmatpush1.msra.mxu0 0.0
    %2295 = vmatprep.subr.mxu0 0.0
    %2296 = vmatpush1.msra.mxu0 0.0
    %2297 = vmatprep.subr.mxu0 0.0
    %2298 = vmatpush1.msra.mxu0 0.0
    %2299 = vmatprep.subr.mxu0 0.0
    %2300 = vmatpush1.msra.mxu0 0.0
    %2301 = vmatprep.subr.mxu0 0.0
    %2302 = vmatpush1.msra.mxu0 0.0
    %2303 = vmatprep.subr.mxu0 0.0
    %2304 = vmatpush1.msra.mxu0 0.0
    %2305 = vmatprep.subr.mxu0 0.0
    %2306 = vmatpush1.msra.mxu0 0.0
    %2307 = vmatprep.subr.mxu0 0.0
    %2308 = vmatpush1.msra.mxu0 0.0
    %2309 = vmatprep.subr.mxu0 0.0
    %2310 = vmatpush1.msra.mxu0 0.0
    %2311 = vmatprep.subr.mxu0 0.0
    %2312 = vmatpush1.msra.mxu0 0.0
    %2313 = vmatprep.subr.mxu0 0.0
    %2314 = vmatpush1.msra.mxu0 0.0
    %2315 = vmatprep.subr.mxu0 0.0
    %2316 = vmatpush1.msra.mxu0 0.0
    %2317 = vmatprep.subr.mxu0 0.0
    %2318 = vmatpush1.msra.mxu0 0.0
    %2319 = vmatprep.subr.mxu0 0.0
    %2320 = vmatpush1.msra.mxu0 0.0
    %2321 = vmatprep.subr.mxu0 0.0
    %2322 = vmatpush1.msra.mxu0 0.0
    %2323 = vmatprep.subr.mxu0 0.0
    %2324 = vmatpush1.msra.mxu0 0.0
    %2325 = vmatprep.mubr.f32.mxu0 0.0
    %2326 = vmatmul.mubr.f32.gmra.mrb[0].mxu0 %v2238
    %v2327 = vpop.f32.mrb[0].mxu0
    %v2328 = vadd.f32 %v2236, %v2327
    %v2329 = vpop.f32.mrb[0].mxu0
    %2330 = vmatprep.mubr.f32.mxu0 0.0
    %2331 = vmatmul.mubr.f32.gmra.mrb[0].mxu0 %v2241
    %v2332 = vpop.f32.mrb[0].mxu0
    %v2333 = vadd.f32 %v2236, %v2332
    %v2334 = vpop.f32.mrb[0].mxu0
    %2335 = vmatprep.mubr.f32.mxu0 0.0
    %2336 = vmatmul.mubr.f32.gmra.mrb[0].mxu0 %v2244
    %v2337 = vpop.f32.mrb[0].mxu0
    %v2338 = vadd.f32 %v2236, %v2337
    %v2339 = vpop.f32.mrb[0].mxu0
    %2340 = vmatprep.mubr.f32.mxu0 0.0
    %2341 = vmatmul.mubr.f32.gmra.mrb[0].mxu0 %v2247
    %v2342 = vpop.f32.mrb[0].mxu0
    %v2343 = vadd.f32 %v2236, %v2342
    %v2344 = vpop.f32.mrb[0].mxu0
    %2345 = vmatprep.mubr.f32.mxu0 0.0
    %2346 = vmatmul.mubr.f32.gmra.mrb[0].mxu0 %v2250
    %v2347 = vpop.f32.mrb[0].mxu0
    %v2348 = vadd.f32 %v2236, %v2347
    %v2349 = vpop.f32.mrb[0].mxu0
    %2350 = vmatprep.mubr.f32.mxu0 0.0
    %2351 = vmatmul.mubr.f32.gmra.mrb[0].mxu0 %v2253
    %v2352 = vpop.f32.mrb[0].mxu0
    %v2353 = vadd.f32 %v2236, %v2352
    %v2354 = vpop.f32.mrb[0].mxu0
    %2355 = vmatprep.mubr.f32.mxu0 0.0
    %2356 = vmatmul.mubr.f32.gmra.mrb[0].mxu0 %v2256
    %v2357 = vpop.f32.mrb[0].mxu0
    %v2358 = vadd.f32 %v2236, %v2357
    %v2359 = vpop.f32.mrb[0].mxu0
    %2360 = vmatprep.mubr.f32.mxu0 0.0
    %2361 = vmatmul.mubr.f32.gmra.mrb[0].mxu0 %v2259
    %v2362 = vpop.f32.mrb[0].mxu0
    %v2363 = vadd.f32 %v2236, %v2362
    %v2364 = vpop.f32.mrb[0].mxu0
    %2365 = vdwg.mxu0
    %v2366 = vmax.f32 %v2328, 0.0
    %v2367 = vmax.f32 %v2333, 0.0
    %v2368 = vmax.f32 %v2338, 0.0
    %v2369 = vmax.f32 %v2343, 0.0
    %v2370 = vmax.f32 %v2348, 0.0
    %v2371 = vmax.f32 %v2353, 0.0
    %v2372 = vmax.f32 %v2358, 0.0
    %v2373 = vmax.f32 %v2363, 0.0
    %v2374 = vld [vmem:[#allocation2 + $0x210] sm:$0xff]
    %v2375 = vld [vmem:[#allocation2 + $0x228] sm:$0xff]
    %v2376 = vld [vmem:[#allocation2 + $0x240] sm:$0xff]
    %v2377 = vld [vmem:[#allocation2 + $0x258] sm:$0xff]
    %v2378 = vld [vmem:[#allocation2 + $0x270] sm:$0xff]
    %v2379 = vld [vmem:[#allocation2 + $0x288] sm:$0xff]
    %v2380 = vld [vmem:[#allocation4 + $0x78] ss:$0 sm:$0xff]
    %v2381 = vld [vmem:[#allocation4 + $0x90] ss:$0 sm:$0xff]
    %v2383 = vsel %vm58, %v2366, 0
    %v2386 = vsel %vm58, %v2367, 0
    %v2389 = vsel %vm58, %v2368, 0
    %v2392 = vsel %vm58, %v2369, 0
    %v2395 = vsel %vm58, %v2370, 0
    %v2398 = vsel %vm58, %v2371, 0
    %v2401 = vsel %vm58, %v2372, 0
    %v2404 = vsel %vm58, %v2373, 0
    %2406 = vmatprep.subr.mxu0 0.0
    %2407 = vmatpush1.msra.mxu0 %v2374
    %2408 = vmatprep.subr.mxu0 0.0
    %2409 = vmatpush1.msra.mxu0 0.0
    %2410 = vmatprep.subr.mxu0 0.0
    %2411 = vmatpush1.msra.mxu0 0.0
    %2412 = vmatprep.subr.mxu0 0.0
    %2413 = vmatpush1.msra.mxu0 0.0
    %2414 = vmatprep.subr.mxu0 0.0
    %2415 = vmatpush1.msra.mxu0 0.0
    %2416 = vmatprep.subr.mxu0 0.0
    %2417 = vmatpush1.msra.mxu0 0.0
    %2418 = vmatprep.subr.mxu0 0.0
    %2419 = vmatpush1.msra.mxu0 0.0
    %2420 = vmatprep.subr.mxu0 0.0
    %2421 = vmatpush1.msra.mxu0 0.0
    %2422 = vmatprep.subr.mxu0 0.0
    %2423 = vmatpush1.msra.mxu0 0.0
    %2424 = vmatprep.subr.mxu0 0.0
    %2425 = vmatpush1.msra.mxu0 0.0
    %2426 = vmatprep.subr.mxu0 0.0
    %2427 = vmatpush1.msra.mxu0 0.0
    %2428 = vmatprep.subr.mxu0 0.0
    %2429 = vmatpush1.msra.mxu0 0.0
    %2430 = vmatprep.subr.mxu0 0.0
    %2431 = vmatpush1.msra.mxu0 0.0
    %2432 = vmatprep.subr.mxu0 0.0
    %2433 = vmatpush1.msra.mxu0 0.0
    %2434 = vmatprep.subr.mxu0 0.0
    %2435 = vmatpush1.msra.mxu0 0.0
    %2436 = vmatprep.subr.mxu0 0.0
    %2437 = vmatpush1.msra.mxu0 0.0
    %2438 = vmatprep.subr.mxu0 0.0
    %2439 = vmatpush1.msra.mxu0 0.0
    %2440 = vmatprep.subr.mxu0 0.0
    %2441 = vmatpush1.msra.mxu0 0.0
    %2442 = vmatprep.subr.mxu0 0.0
    %2443 = vmatpush1.msra.mxu0 0.0
    %2444 = vmatprep.subr.mxu0 0.0
    %2445 = vmatpush1.msra.mxu0 0.0
    %2446 = vmatprep.subr.mxu0 0.0
    %2447 = vmatpush1.msra.mxu0 0.0
    %2448 = vmatprep.subr.mxu0 0.0
    %2449 = vmatpush1.msra.mxu0 0.0
    %2450 = vmatprep.subr.mxu0 0.0
    %2451 = vmatpush1.msra.mxu0 0.0
    %2452 = vmatprep.subr.mxu0 0.0
    %2453 = vmatpush1.msra.mxu0 0.0
    %2454 = vmatprep.subr.mxu0 0.0
    %2455 = vmatpush1.msra.mxu0 0.0
    %2456 = vmatprep.subr.mxu0 0.0
    %2457 = vmatpush1.msra.mxu0 0.0
    %2458 = vmatprep.subr.mxu0 0.0
    %2459 = vmatpush1.msra.mxu0 0.0
    %2460 = vmatprep.subr.mxu0 0.0
    %2461 = vmatpush1.msra.mxu0 0.0
    %2462 = vmatprep.subr.mxu0 0.0
    %2463 = vmatpush1.msra.mxu0 0.0
    %2464 = vmatprep.subr.mxu0 0.0
    %2465 = vmatpush1.msra.mxu0 0.0
    %2466 = vmatprep.subr.mxu0 0.0
    %2467 = vmatpush1.msra.mxu0 0.0
    %2468 = vmatprep.subr.mxu0 0.0
    %2469 = vmatpush1.msra.mxu0 0.0
    %2470 = vmatprep.mubr.f32.mxu0 0.0
    %2471 = vmatmul.mubr.f32.gmra.mrb[0].mxu0 %v2383
    %v2472 = vpop.f32.mrb[0].mxu0
    %v2473 = vadd.f32 %v2380, %v2472
    %v2474 = vpop.f32.mrb[0].mxu0
    %2475 = vmatprep.mubr.f32.mxu0 0.0
    %2476 = vmatmul.mubr.f32.gmra.mrb[0].mxu0 %v2386
    %v2477 = vpop.f32.mrb[0].mxu0
    %v2478 = vadd.f32 %v2380, %v2477
    %v2479 = vpop.f32.mrb[0].mxu0
    %2480 = vmatprep.mubr.f32.mxu0 0.0
    %2481 = vmatmul.mubr.f32.gmra.mrb[0].mxu0 %v2389
    %v2482 = vpop.f32.mrb[0].mxu0
    %v2483 = vadd.f32 %v2380, %v2482
    %v2484 = vpop.f32.mrb[0].mxu0
    %2485 = vmatprep.mubr.f32.mxu0 0.0
    %2486 = vmatmul.mubr.f32.gmra.mrb[0].mxu0 %v2392
    %v2487 = vpop.f32.mrb[0].mxu0
    %v2488 = vadd.f32 %v2380, %v2487
    %v2489 = vpop.f32.mrb[0].mxu0
    %2490 = vmatprep.mubr.f32.mxu0 0.0
    %2491 = vmatmul.mubr.f32.gmra.mrb[0].mxu0 %v2395
    %v2492 = vpop.f32.mrb[0].mxu0
    %v2493 = vadd.f32 %v2380, %v2492
    %v2494 = vpop.f32.mrb[0].mxu0
    %2495 = vmatprep.mubr.f32.mxu0 0.0
    %2496 = vmatmul.mubr.f32.gmra.mrb[0].mxu0 %v2398
    %v2497 = vpop.f32.mrb[0].mxu0
    %v2498 = vadd.f32 %v2380, %v2497
    %v2499 = vpop.f32.mrb[0].mxu0
    %2500 = vmatprep.mubr.f32.mxu0 0.0
    %2501 = vmatmul.mubr.f32.gmra.mrb[0].mxu0 %v2401
    %v2502 = vpop.f32.mrb[0].mxu0
    %v2503 = vadd.f32 %v2380, %v2502
    %v2504 = vpop.f32.mrb[0].mxu0
    %2505 = vmatprep.mubr.f32.mxu0 0.0
    %2506 = vmatmul.mubr.f32.gmra.mrb[0].mxu0 %v2404
    %v2507 = vpop.f32.mrb[0].mxu0
    %v2508 = vadd.f32 %v2380, %v2507
    %v2509 = vpop.f32.mrb[0].mxu0
    %2510 = vdwg.mxu0
    %2511 = vmatprep.subr.mxu0 0.0
    %2512 = vmatpush1.msra.mxu0 %v2375
    %2513 = vmatprep.subr.mxu0 0.0
    %2514 = vmatpush1.msra.mxu0 0.0
    %2515 = vmatprep.subr.mxu0 0.0
    %2516 = vmatpush1.msra.mxu0 0.0
    %2517 = vmatprep.subr.mxu0 0.0
    %2518 = vmatpush1.msra.mxu0 0.0
    %2519 = vmatprep.subr.mxu0 0.0
    %2520 = vmatpush1.msra.mxu0 0.0
    %2521 = vmatprep.subr.mxu0 0.0
    %2522 = vmatpush1.msra.mxu0 0.0
    %2523 = vmatprep.subr.mxu0 0.0
    %2524 = vmatpush1.msra.mxu0 0.0
    %2525 = vmatprep.subr.mxu0 0.0
    %2526 = vmatpush1.msra.mxu0 0.0
    %2527 = vmatprep.subr.mxu0 0.0
    %2528 = vmatpush1.msra.mxu0 0.0
    %2529 = vmatprep.subr.mxu0 0.0
    %2530 = vmatpush1.msra.mxu0 0.0
    %2531 = vmatprep.subr.mxu0 0.0
    %2532 = vmatpush1.msra.mxu0 0.0
    %2533 = vmatprep.subr.mxu0 0.0
    %2534 = vmatpush1.msra.mxu0 0.0
    %2535 = vmatprep.subr.mxu0 0.0
    %2536 = vmatpush1.msra.mxu0 0.0
    %2537 = vmatprep.subr.mxu0 0.0
    %2538 = vmatpush1.msra.mxu0 0.0
    %2539 = vmatprep.subr.mxu0 0.0
    %2540 = vmatpush1.msra.mxu0 0.0
    %2541 = vmatprep.subr.mxu0 0.0
    %2542 = vmatpush1.msra.mxu0 0.0
    %2543 = vmatprep.subr.mxu0 0.0
    %2544 = vmatpush1.msra.mxu0 0.0
    %2545 = vmatprep.subr.mxu0 0.0
    %2546 = vmatpush1.msra.mxu0 0.0
    %2547 = vmatprep.subr.mxu0 0.0
    %2548 = vmatpush1.msra.mxu0 0.0
    %2549 = vmatprep.subr.mxu0 0.0
    %2550 = vmatpush1.msra.mxu0 0.0
    %2551 = vmatprep.subr.mxu0 0.0
    %2552 = vmatpush1.msra.mxu0 0.0
    %2553 = vmatprep.subr.mxu0 0.0
    %2554 = vmatpush1.msra.mxu0 0.0
    %2555 = vmatprep.subr.mxu0 0.0
    %2556 = vmatpush1.msra.mxu0 0.0
    %2557 = vmatprep.subr.mxu0 0.0
    %2558 = vmatpush1.msra.mxu0 0.0
    %2559 = vmatprep.subr.mxu0 0.0
    %2560 = vmatpush1.msra.mxu0 0.0
    %2561 = vmatprep.subr.mxu0 0.0
    %2562 = vmatpush1.msra.mxu0 0.0
    %2563 = vmatprep.subr.mxu0 0.0
    %2564 = vmatpush1.msra.mxu0 0.0
    %2565 = vmatprep.subr.mxu0 0.0
    %2566 = vmatpush1.msra.mxu0 0.0
    %2567 = vmatprep.subr.mxu0 0.0
    %2568 = vmatpush1.msra.mxu0 0.0
    %2569 = vmatprep.subr.mxu0 0.0
    %2570 = vmatpush1.msra.mxu0 0.0
    %2571 = vmatprep.subr.mxu0 0.0
    %2572 = vmatpush1.msra.mxu0 0.0
    %2573 = vmatprep.subr.mxu0 0.0
    %2574 = vmatpush1.msra.mxu0 0.0
    %2575 = vmatprep.mubr.f32.mxu0 0.0
    %2576 = vmatmul.mubr.f32.gmra.mrb[0].mxu0 %v2383
    %v2577 = vpop.f32.mrb[0].mxu0
    %v2578 = vadd.f32 0.0, %v2577
    %v2579 = vpop.f32.mrb[0].mxu0
    %2580 = vmatprep.mubr.f32.mxu0 0.0
    %2581 = vmatmul.mubr.f32.gmra.mrb[0].mxu0 %v2386
    %v2582 = vpop.f32.mrb[0].mxu0
    %v2583 = vadd.f32 0.0, %v2582
    %v2584 = vpop.f32.mrb[0].mxu0
    %2585 = vmatprep.mubr.f32.mxu0 0.0
    %2586 = vmatmul.mubr.f32.gmra.mrb[0].mxu0 %v2389
    %v2587 = vpop.f32.mrb[0].mxu0
    %v2588 = vadd.f32 0.0, %v2587
    %v2589 = vpop.f32.mrb[0].mxu0
    %2590 = vmatprep.mubr.f32.mxu0 0.0
    %2591 = vmatmul.mubr.f32.gmra.mrb[0].mxu0 %v2392
    %v2592 = vpop.f32.mrb[0].mxu0
    %v2593 = vadd.f32 0.0, %v2592
    %v2594 = vpop.f32.mrb[0].mxu0
    %2595 = vmatprep.mubr.f32.mxu0 0.0
    %2596 = vmatmul.mubr.f32.gmra.mrb[0].mxu0 %v2395
    %v2597 = vpop.f32.mrb[0].mxu0
    %v2598 = vadd.f32 0.0, %v2597
    %v2599 = vpop.f32.mrb[0].mxu0
    %2600 = vmatprep.mubr.f32.mxu0 0.0
    %2601 = vmatmul.mubr.f32.gmra.mrb[0].mxu0 %v2398
    %v2602 = vpop.f32.mrb[0].mxu0
    %v2603 = vadd.f32 0.0, %v2602
    %v2604 = vpop.f32.mrb[0].mxu0
    %2605 = vmatprep.mubr.f32.mxu0 0.0
    %2606 = vmatmul.mubr.f32.gmra.mrb[0].mxu0 %v2401
    %v2607 = vpop.f32.mrb[0].mxu0
    %v2608 = vadd.f32 0.0, %v2607
    %v2609 = vpop.f32.mrb[0].mxu0
    %2610 = vmatprep.mubr.f32.mxu0 0.0
    %2611 = vmatmul.mubr.f32.gmra.mrb[0].mxu0 %v2404
    %v2612 = vpop.f32.mrb[0].mxu0
    %v2613 = vadd.f32 0.0, %v2612
    %v2614 = vpop.f32.mrb[0].mxu0
    %2615 = vdwg.mxu0
    %v2616 = vadd.f32 %v2473, %v2613
    %2617 = vmatprep.subr.mxu0 0.0
    %2618 = vmatpush1.msra.mxu0 %v2376
    %2619 = vmatprep.subr.mxu0 0.0
    %2620 = vmatpush1.msra.mxu0 %v2377
    %2621 = vmatprep.subr.mxu0 0.0
    %2622 = vmatpush1.msra.mxu0 %v2378
    %2623 = vmatprep.subr.mxu0 0.0
    %2624 = vmatpush1.msra.mxu0 %v2379
    %2625 = vmatprep.subr.mxu0 0.0
    %2626 = vmatpush1.msra.mxu0 0.0
    %2627 = vmatprep.subr.mxu0 0.0
    %2628 = vmatpush1.msra.mxu0 0.0
    %2629 = vmatprep.subr.mxu0 0.0
    %2630 = vmatpush1.msra.mxu0 0.0
    %2631 = vmatprep.subr.mxu0 0.0
    %2632 = vmatpush1.msra.mxu0 0.0
    %2633 = vmatprep.subr.mxu0 0.0
    %2634 = vmatpush1.msra.mxu0 0.0
    %2635 = vmatprep.subr.mxu0 0.0
    %2636 = vmatpush1.msra.mxu0 0.0
    %2637 = vmatprep.subr.mxu0 0.0
    %2638 = vmatpush1.msra.mxu0 0.0
    %2639 = vmatprep.subr.mxu0 0.0
    %2640 = vmatpush1.msra.mxu0 0.0
    %2641 = vmatprep.subr.mxu0 0.0
    %2642 = vmatpush1.msra.mxu0 0.0
    %2643 = vmatprep.subr.mxu0 0.0
    %2644 = vmatpush1.msra.mxu0 0.0
    %2645 = vmatprep.subr.mxu0 0.0
    %2646 = vmatpush1.msra.mxu0 0.0
    %2647 = vmatprep.subr.mxu0 0.0
    %2648 = vmatpush1.msra.mxu0 0.0
    %2649 = vmatprep.subr.mxu0 0.0
    %2650 = vmatpush1.msra.mxu0 0.0
    %2651 = vmatprep.subr.mxu0 0.0
    %2652 = vmatpush1.msra.mxu0 0.0
    %2653 = vmatprep.subr.mxu0 0.0
    %2654 = vmatpush1.msra.mxu0 0.0
    %2655 = vmatprep.subr.mxu0 0.0
    %2656 = vmatpush1.msra.mxu0 0.0
    %2657 = vmatprep.subr.mxu0 0.0
    %2658 = vmatpush1.msra.mxu0 0.0
    %2659 = vmatprep.subr.mxu0 0.0
    %2660 = vmatpush1.msra.mxu0 0.0
    %2661 = vmatprep.subr.mxu0 0.0
    %2662 = vmatpush1.msra.mxu0 0.0
    %2663 = vmatprep.subr.mxu0 0.0
    %2664 = vmatpush1.msra.mxu0 0.0
    %2665 = vmatprep.subr.mxu0 0.0
    %2666 = vmatpush1.msra.mxu0 0.0
    %2667 = vmatprep.subr.mxu0 0.0
    %2668 = vmatpush1.msra.mxu0 0.0
    %2669 = vmatprep.subr.mxu0 0.0
    %2670 = vmatpush1.msra.mxu0 0.0
    %2671 = vmatprep.subr.mxu0 0.0
    %2672 = vmatpush1.msra.mxu0 0.0
    %2673 = vmatprep.subr.mxu0 0.0
    %2674 = vmatpush1.msra.mxu0 0.0
    %2675 = vmatprep.subr.mxu0 0.0
    %2676 = vmatpush1.msra.mxu0 0.0
    %2677 = vmatprep.subr.mxu0 0.0
    %2678 = vmatpush1.msra.mxu0 0.0
    %2679 = vmatprep.subr.mxu0 0.0
    %2680 = vmatpush1.msra.mxu0 0.0
    %2681 = vmatprep.mubr.f32.mxu0 0.0
    %2682 = vmatmul.mubr.f32.gmra.mrb[0].mxu0 %v296
    %v2683 = vpop.f32.mrb[0].mxu0
    %v2684 = vadd.f32 0.0, %v2683
    %v2685 = vpop.f32.mrb[0].mxu0
    %2686 = vdwg.mxu0
    %v2687 = vadd.f32 %v2616, %v2684
    %v2688 = vxor.u32 %v2687, 2147483648
    %v2689 = vmul.f32 %v2688, 1.442695
    %v2690 = vpow.pop %v2689
    %v2691 = vadd.f32 %v2690, 1.0
    %v2692 = vrcp.pop %v2691
    %v2693 = vmul.f32 1.0, %v2692
    %2695 = vrot.lane.b32.xlu0 %v2381, 64
    %v2696 = vpop.permute.xlu0 %2695
    %v2698 = vadd.f32 %v2684, %v2696
    %2700 = vrot.lane.b32.xlu0 %v2698, 64
    %v2701 = vpop.permute.xlu0 %2700
    %v2703 = vmul.f32 %v2693, %v2701
    %2705 = vrot.lane.b32.xlu0 %v2703, 64
    %v2706 = vpop.permute.xlu0 %2705
    %v2708 = vadd.f32 %v2616, %v2706
    %v2709 = vtanh.pop %v2708
    %v2710 = vsub.f32 1.0, %v2693
    %2712 = vrot.lane.b32.xlu0 %v2709, 96
    %v2713 = vpop.permute.xlu0 %2712
    %v2715 = vmul.f32 %v2710, %v2713
    %v2716 = vmul.f32 %v2693, 0.0
    %v2717 = vadd.f32 %v2715, %v2716
    %v2718 = vadd.f32 %v2478, %v2608
    %2720 = vrot.lane.b32.xlu0 %v2717, 96
    %v2721 = vpop.permute.xlu0 %2720
    %v2722 = vsel %vm294, %v2721, 0
    %2724 = vmatprep.subr.mxu0 0.0
    %2725 = vmatpush1.msra.mxu0 %v2376
    %2726 = vmatprep.subr.mxu0 0.0
    %2727 = vmatpush1.msra.mxu0 %v2377
    %2728 = vmatprep.subr.mxu0 0.0
    %2729 = vmatpush1.msra.mxu0 %v2378
    %2730 = vmatprep.subr.mxu0 0.0
    %2731 = vmatpush1.msra.mxu0 %v2379
    %2732 = vmatprep.subr.mxu0 0.0
    %2733 = vmatpush1.msra.mxu0 0.0
    %2734 = vmatprep.subr.mxu0 0.0
    %2735 = vmatpush1.msra.mxu0 0.0
    %2736 = vmatprep.subr.mxu0 0.0
    %2737 = vmatpush1.msra.mxu0 0.0
    %2738 = vmatprep.subr.mxu0 0.0
    %2739 = vmatpush1.msra.mxu0 0.0
    %2740 = vmatprep.subr.mxu0 0.0
    %2741 = vmatpush1.msra.mxu0 0.0
    %2742 = vmatprep.subr.mxu0 0.0
    %2743 = vmatpush1.msra.mxu0 0.0
    %2744 = vmatprep.subr.mxu0 0.0
    %2745 = vmatpush1.msra.mxu0 0.0
    %2746 = vmatprep.subr.mxu0 0.0
    %2747 = vmatpush1.msra.mxu0 0.0
    %2748 = vmatprep.subr.mxu0 0.0
    %2749 = vmatpush1.msra.mxu0 0.0
    %2750 = vmatprep.subr.mxu0 0.0
    %2751 = vmatpush1.msra.mxu0 0.0
    %2752 = vmatprep.subr.mxu0 0.0
    %2753 = vmatpush1.msra.mxu0 0.0
    %2754 = vmatprep.subr.mxu0 0.0
    %2755 = vmatpush1.msra.mxu0 0.0
    %2756 = vmatprep.subr.mxu0 0.0
    %2757 = vmatpush1.msra.mxu0 0.0
    %2758 = vmatprep.subr.mxu0 0.0
    %2759 = vmatpush1.msra.mxu0 0.0
    %2760 = vmatprep.subr.mxu0 0.0
    %2761 = vmatpush1.msra.mxu0 0.0
    %2762 = vmatprep.subr.mxu0 0.0
    %2763 = vmatpush1.msra.mxu0 0.0
    %2764 = vmatprep.subr.mxu0 0.0
    %2765 = vmatpush1.msra.mxu0 0.0
    %2766 = vmatprep.subr.mxu0 0.0
    %2767 = vmatpush1.msra.mxu0 0.0
    %2768 = vmatprep.subr.mxu0 0.0
    %2769 = vmatpush1.msra.mxu0 0.0
    %2770 = vmatprep.subr.mxu0 0.0
    %2771 = vmatpush1.msra.mxu0 0.0
    %2772 = vmatprep.subr.mxu0 0.0
    %2773 = vmatpush1.msra.mxu0 0.0
    %2774 = vmatprep.subr.mxu0 0.0
    %2775 = vmatpush1.msra.mxu0 0.0
    %2776 = vmatprep.subr.mxu0 0.0
    %2777 = vmatpush1.msra.mxu0 0.0
    %2778 = vmatprep.subr.mxu0 0.0
    %2779 = vmatpush1.msra.mxu0 0.0
    %2780 = vmatprep.subr.mxu0 0.0
    %2781 = vmatpush1.msra.mxu0 0.0
    %2782 = vmatprep.subr.mxu0 0.0
    %2783 = vmatpush1.msra.mxu0 0.0
    %2784 = vmatprep.subr.mxu0 0.0
    %2785 = vmatpush1.msra.mxu0 0.0
    %2786 = vmatprep.subr.mxu0 0.0
    %2787 = vmatpush1.msra.mxu0 0.0
    %2788 = vmatprep.mubr.f32.mxu0 0.0
    %2789 = vmatmul.mubr.f32.gmra.mrb[0].mxu0 %v2722
    %v2790 = vpop.f32.mrb[0].mxu0
    %v2791 = vadd.f32 0.0, %v2790
    %v2792 = vpop.f32.mrb[0].mxu0
    %2793 = vdwg.mxu0
    %v2794 = vadd.f32 %v2718, %v2791
    %v2795 = vxor.u32 %v2794, 2147483648
    %v2796 = vmul.f32 %v2795, 1.442695
    %v2797 = vpow.pop %v2796
    %v2798 = vadd.f32 %v2797, 1.0
    %v2799 = vrcp.pop %v2798
    %v2800 = vmul.f32 1.0, %v2799
    %v2801 = vadd.f32 %v2791, %v2696
    %2803 = vrot.lane.b32.xlu0 %v2801, 64
    %v2804 = vpop.permute.xlu0 %2803
    %v2806 = vmul.f32 %v2800, %v2804
    %2808 = vrot.lane.b32.xlu0 %v2806, 64
    %v2809 = vpop.permute.xlu0 %2808
    %v2811 = vadd.f32 %v2718, %v2809
    %v2812 = vtanh.pop %v2811
    %v2813 = vsub.f32 1.0, %v2800
    %2815 = vrot.lane.b32.xlu0 %v2812, 96
    %v2816 = vpop.permute.xlu0 %2815
    %v2818 = vmul.f32 %v2813, %v2816
    %v2819 = vmul.f32 %v2800, %v2717
    %v2820 = vadd.f32 %v2818, %v2819
    %v2821 = vadd.f32 %v2483, %v2603
    %2823 = vrot.lane.b32.xlu0 %v2820, 96
    %v2824 = vpop.permute.xlu0 %2823
    %v2825 = vsel %vm294, %v2824, 0
    %2827 = vmatprep.subr.mxu0 0.0
    %2828 = vmatpush1.msra.mxu0 %v2376
    %2829 = vmatprep.subr.mxu0 0.0
    %2830 = vmatpush1.msra.mxu0 %v2377
    %2831 = vmatprep.subr.mxu0 0.0
    %2832 = vmatpush1.msra.mxu0 %v2378
    %2833 = vmatprep.subr.mxu0 0.0
    %2834 = vmatpush1.msra.mxu0 %v2379
    %2835 = vmatprep.subr.mxu0 0.0
    %2836 = vmatpush1.msra.mxu0 0.0
    %2837 = vmatprep.subr.mxu0 0.0
    %2838 = vmatpush1.msra.mxu0 0.0
    %2839 = vmatprep.subr.mxu0 0.0
    %2840 = vmatpush1.msra.mxu0 0.0
    %2841 = vmatprep.subr.mxu0 0.0
    %2842 = vmatpush1.msra.mxu0 0.0
    %2843 = vmatprep.subr.mxu0 0.0
    %2844 = vmatpush1.msra.mxu0 0.0
    %2845 = vmatprep.subr.mxu0 0.0
    %2846 = vmatpush1.msra.mxu0 0.0
    %2847 = vmatprep.subr.mxu0 0.0
    %2848 = vmatpush1.msra.mxu0 0.0
    %2849 = vmatprep.subr.mxu0 0.0
    %2850 = vmatpush1.msra.mxu0 0.0
    %2851 = vmatprep.subr.mxu0 0.0
    %2852 = vmatpush1.msra.mxu0 0.0
    %2853 = vmatprep.subr.mxu0 0.0
    %2854 = vmatpush1.msra.mxu0 0.0
    %2855 = vmatprep.subr.mxu0 0.0
    %2856 = vmatpush1.msra.mxu0 0.0
    %2857 = vmatprep.subr.mxu0 0.0
    %2858 = vmatpush1.msra.mxu0 0.0
    %2859 = vmatprep.subr.mxu0 0.0
    %2860 = vmatpush1.msra.mxu0 0.0
    %2861 = vmatprep.subr.mxu0 0.0
    %2862 = vmatpush1.msra.mxu0 0.0
    %2863 = vmatprep.subr.mxu0 0.0
    %2864 = vmatpush1.msra.mxu0 0.0
    %2865 = vmatprep.subr.mxu0 0.0
    %2866 = vmatpush1.msra.mxu0 0.0
    %2867 = vmatprep.subr.mxu0 0.0
    %2868 = vmatpush1.msra.mxu0 0.0
    %2869 = vmatprep.subr.mxu0 0.0
    %2870 = vmatpush1.msra.mxu0 0.0
    %2871 = vmatprep.subr.mxu0 0.0
    %2872 = vmatpush1.msra.mxu0 0.0
    %2873 = vmatprep.subr.mxu0 0.0
    %2874 = vmatpush1.msra.mxu0 0.0
    %2875 = vmatprep.subr.mxu0 0.0
    %2876 = vmatpush1.msra.mxu0 0.0
    %2877 = vmatprep.subr.mxu0 0.0
    %2878 = vmatpush1.msra.mxu0 0.0
    %2879 = vmatprep.subr.mxu0 0.0
    %2880 = vmatpush1.msra.mxu0 0.0
    %2881 = vmatprep.subr.mxu0 0.0
    %2882 = vmatpush1.msra.mxu0 0.0
    %2883 = vmatprep.subr.mxu0 0.0
    %2884 = vmatpush1.msra.mxu0 0.0
    %2885 = vmatprep.subr.mxu0 0.0
    %2886 = vmatpush1.msra.mxu0 0.0
    %2887 = vmatprep.subr.mxu0 0.0
    %2888 = vmatpush1.msra.mxu0 0.0
    %2889 = vmatprep.subr.mxu0 0.0
    %2890 = vmatpush1.msra.mxu0 0.0
    %2891 = vmatprep.mubr.f32.mxu0 0.0
    %2892 = vmatmul.mubr.f32.gmra.mrb[0].mxu0 %v2825
    %v2893 = vpop.f32.mrb[0].mxu0
    %v2894 = vadd.f32 0.0, %v2893
    %v2895 = vpop.f32.mrb[0].mxu0
    %2896 = vdwg.mxu0
    %v2897 = vadd.f32 %v2821, %v2894
    %v2898 = vxor.u32 %v2897, 2147483648
    %v2899 = vmul.f32 %v2898, 1.442695
    %v2900 = vpow.pop %v2899
    %v2901 = vadd.f32 %v2900, 1.0
    %v2902 = vrcp.pop %v2901
    %v2903 = vmul.f32 1.0, %v2902
    %v2904 = vadd.f32 %v2894, %v2696
    %2906 = vrot.lane.b32.xlu0 %v2904, 64
    %v2907 = vpop.permute.xlu0 %2906
    %v2909 = vmul.f32 %v2903, %v2907
    %2911 = vrot.lane.b32.xlu0 %v2909, 64
    %v2912 = vpop.permute.xlu0 %2911
    %v2914 = vadd.f32 %v2821, %v2912
    %v2915 = vtanh.pop %v2914
    %v2916 = vsub.f32 1.0, %v2903
    %2918 = vrot.lane.b32.xlu0 %v2915, 96
    %v2919 = vpop.permute.xlu0 %2918
    %v2921 = vmul.f32 %v2916, %v2919
    %v2922 = vmul.f32 %v2903, %v2820
    %v2923 = vadd.f32 %v2921, %v2922
    %v2924 = vadd.f32 %v2488, %v2598
    %2926 = vrot.lane.b32.xlu0 %v2923, 96
    %v2927 = vpop.permute.xlu0 %2926
    %v2928 = vsel %vm294, %v2927, 0
    %2930 = vmatprep.subr.mxu0 0.0
    %2931 = vmatpush1.msra.mxu0 %v2376
    %2932 = vmatprep.subr.mxu0 0.0
    %2933 = vmatpush1.msra.mxu0 %v2377
    %2934 = vmatprep.subr.mxu0 0.0
    %2935 = vmatpush1.msra.mxu0 %v2378
    %2936 = vmatprep.subr.mxu0 0.0
    %2937 = vmatpush1.msra.mxu0 %v2379
    %2938 = vmatprep.subr.mxu0 0.0
    %2939 = vmatpush1.msra.mxu0 0.0
    %2940 = vmatprep.subr.mxu0 0.0
    %2941 = vmatpush1.msra.mxu0 0.0
    %2942 = vmatprep.subr.mxu0 0.0
    %2943 = vmatpush1.msra.mxu0 0.0
    %2944 = vmatprep.subr.mxu0 0.0
    %2945 = vmatpush1.msra.mxu0 0.0
    %2946 = vmatprep.subr.mxu0 0.0
    %2947 = vmatpush1.msra.mxu0 0.0
    %2948 = vmatprep.subr.mxu0 0.0
    %2949 = vmatpush1.msra.mxu0 0.0
    %2950 = vmatprep.subr.mxu0 0.0
    %2951 = vmatpush1.msra.mxu0 0.0
    %2952 = vmatprep.subr.mxu0 0.0
    %2953 = vmatpush1.msra.mxu0 0.0
    %2954 = vmatprep.subr.mxu0 0.0
    %2955 = vmatpush1.msra.mxu0 0.0
    %2956 = vmatprep.subr.mxu0 0.0
    %2957 = vmatpush1.msra.mxu0 0.0
    %2958 = vmatprep.subr.mxu0 0.0
    %2959 = vmatpush1.msra.mxu0 0.0
    %2960 = vmatprep.subr.mxu0 0.0
    %2961 = vmatpush1.msra.mxu0 0.0
    %2962 = vmatprep.subr.mxu0 0.0
    %2963 = vmatpush1.msra.mxu0 0.0
    %2964 = vmatprep.subr.mxu0 0.0
    %2965 = vmatpush1.msra.mxu0 0.0
    %2966 = vmatprep.subr.mxu0 0.0
    %2967 = vmatpush1.msra.mxu0 0.0
    %2968 = vmatprep.subr.mxu0 0.0
    %2969 = vmatpush1.msra.mxu0 0.0
    %2970 = vmatprep.subr.mxu0 0.0
    %2971 = vmatpush1.msra.mxu0 0.0
    %2972 = vmatprep.subr.mxu0 0.0
    %2973 = vmatpush1.msra.mxu0 0.0
    %2974 = vmatprep.subr.mxu0 0.0
    %2975 = vmatpush1.msra.mxu0 0.0
    %2976 = vmatprep.subr.mxu0 0.0
    %2977 = vmatpush1.msra.mxu0 0.0
    %2978 = vmatprep.subr.mxu0 0.0
    %2979 = vmatpush1.msra.mxu0 0.0
    %2980 = vmatprep.subr.mxu0 0.0
    %2981 = vmatpush1.msra.mxu0 0.0
    %2982 = vmatprep.subr.mxu0 0.0
    %2983 = vmatpush1.msra.mxu0 0.0
    %2984 = vmatprep.subr.mxu0 0.0
    %2985 = vmatpush1.msra.mxu0 0.0
    %2986 = vmatprep.subr.mxu0 0.0
    %2987 = vmatpush1.msra.mxu0 0.0
    %2988 = vmatprep.subr.mxu0 0.0
    %2989 = vmatpush1.msra.mxu0 0.0
    %2990 = vmatprep.subr.mxu0 0.0
    %2991 = vmatpush1.msra.mxu0 0.0
    %2992 = vmatprep.subr.mxu0 0.0
    %2993 = vmatpush1.msra.mxu0 0.0
    %2994 = vmatprep.mubr.f32.mxu0 0.0
    %2995 = vmatmul.mubr.f32.gmra.mrb[0].mxu0 %v2928
    %v2996 = vpop.f32.mrb[0].mxu0
    %v2997 = vadd.f32 0.0, %v2996
    %v2998 = vpop.f32.mrb[0].mxu0
    %2999 = vdwg.mxu0
    %v3000 = vadd.f32 %v2924, %v2997
    %v3001 = vxor.u32 %v3000, 2147483648
    %v3002 = vmul.f32 %v3001, 1.442695
    %v3003 = vpow.pop %v3002
    %v3004 = vadd.f32 %v3003, 1.0
    %v3005 = vrcp.pop %v3004
    %v3006 = vmul.f32 1.0, %v3005
    %v3007 = vadd.f32 %v2997, %v2696
    %3009 = vrot.lane.b32.xlu0 %v3007, 64
    %v3010 = vpop.permute.xlu0 %3009
    %v3012 = vmul.f32 %v3006, %v3010
    %3014 = vrot.lane.b32.xlu0 %v3012, 64
    %v3015 = vpop.permute.xlu0 %3014
    %v3017 = vadd.f32 %v2924, %v3015
    %v3018 = vtanh.pop %v3017
    %v3019 = vsub.f32 1.0, %v3006
    %3021 = vrot.lane.b32.xlu0 %v3018, 96
    %v3022 = vpop.permute.xlu0 %3021
    %v3024 = vmul.f32 %v3019, %v3022
    %v3025 = vmul.f32 %v3006, %v2923
    %v3026 = vadd.f32 %v3024, %v3025
    %v3027 = vadd.f32 %v2493, %v2593
    %3029 = vrot.lane.b32.xlu0 %v3026, 96
    %v3030 = vpop.permute.xlu0 %3029
    %v3031 = vsel %vm294, %v3030, 0
    %3033 = vmatprep.subr.mxu0 0.0
    %3034 = vmatpush1.msra.mxu0 %v2376
    %3035 = vmatprep.subr.mxu0 0.0
    %3036 = vmatpush1.msra.mxu0 %v2377
    %3037 = vmatprep.subr.mxu0 0.0
    %3038 = vmatpush1.msra.mxu0 %v2378
    %3039 = vmatprep.subr.mxu0 0.0
    %3040 = vmatpush1.msra.mxu0 %v2379
    %3041 = vmatprep.subr.mxu0 0.0
    %3042 = vmatpush1.msra.mxu0 0.0
    %3043 = vmatprep.subr.mxu0 0.0
    %3044 = vmatpush1.msra.mxu0 0.0
    %3045 = vmatprep.subr.mxu0 0.0
    %3046 = vmatpush1.msra.mxu0 0.0
    %3047 = vmatprep.subr.mxu0 0.0
    %3048 = vmatpush1.msra.mxu0 0.0
    %3049 = vmatprep.subr.mxu0 0.0
    %3050 = vmatpush1.msra.mxu0 0.0
    %3051 = vmatprep.subr.mxu0 0.0
    %3052 = vmatpush1.msra.mxu0 0.0
    %3053 = vmatprep.subr.mxu0 0.0
    %3054 = vmatpush1.msra.mxu0 0.0
    %3055 = vmatprep.subr.mxu0 0.0
    %3056 = vmatpush1.msra.mxu0 0.0
    %3057 = vmatprep.subr.mxu0 0.0
    %3058 = vmatpush1.msra.mxu0 0.0
    %3059 = vmatprep.subr.mxu0 0.0
    %3060 = vmatpush1.msra.mxu0 0.0
    %3061 = vmatprep.subr.mxu0 0.0
    %3062 = vmatpush1.msra.mxu0 0.0
    %3063 = vmatprep.subr.mxu0 0.0
    %3064 = vmatpush1.msra.mxu0 0.0
    %3065 = vmatprep.subr.mxu0 0.0
    %3066 = vmatpush1.msra.mxu0 0.0
    %3067 = vmatprep.subr.mxu0 0.0
    %3068 = vmatpush1.msra.mxu0 0.0
    %3069 = vmatprep.subr.mxu0 0.0
    %3070 = vmatpush1.msra.mxu0 0.0
    %3071 = vmatprep.subr.mxu0 0.0
    %3072 = vmatpush1.msra.mxu0 0.0
    %3073 = vmatprep.subr.mxu0 0.0
    %3074 = vmatpush1.msra.mxu0 0.0
    %3075 = vmatprep.subr.mxu0 0.0
    %3076 = vmatpush1.msra.mxu0 0.0
    %3077 = vmatprep.subr.mxu0 0.0
    %3078 = vmatpush1.msra.mxu0 0.0
    %3079 = vmatprep.subr.mxu0 0.0
    %3080 = vmatpush1.msra.mxu0 0.0
    %3081 = vmatprep.subr.mxu0 0.0
    %3082 = vmatpush1.msra.mxu0 0.0
    %3083 = vmatprep.subr.mxu0 0.0
    %3084 = vmatpush1.msra.mxu0 0.0
    %3085 = vmatprep.subr.mxu0 0.0
    %3086 = vmatpush1.msra.mxu0 0.0
    %3087 = vmatprep.subr.mxu0 0.0
    %3088 = vmatpush1.msra.mxu0 0.0
    %3089 = vmatprep.subr.mxu0 0.0
    %3090 = vmatpush1.msra.mxu0 0.0
    %3091 = vmatprep.subr.mxu0 0.0
    %3092 = vmatpush1.msra.mxu0 0.0
    %3093 = vmatprep.subr.mxu0 0.0
    %3094 = vmatpush1.msra.mxu0 0.0
    %3095 = vmatprep.subr.mxu0 0.0
    %3096 = vmatpush1.msra.mxu0 0.0
    %3097 = vmatprep.mubr.f32.mxu0 0.0
    %3098 = vmatmul.mubr.f32.gmra.mrb[0].mxu0 %v3031
    %v3099 = vpop.f32.mrb[0].mxu0
    %v3100 = vadd.f32 0.0, %v3099
    %v3101 = vpop.f32.mrb[0].mxu0
    %3102 = vdwg.mxu0
    %v3103 = vadd.f32 %v3027, %v3100
    %v3104 = vxor.u32 %v3103, 2147483648
    %v3105 = vmul.f32 %v3104, 1.442695
    %v3106 = vpow.pop %v3105
    %v3107 = vadd.f32 %v3106, 1.0
    %v3108 = vrcp.pop %v3107
    %v3109 = vmul.f32 1.0, %v3108
    %v3110 = vadd.f32 %v3100, %v2696
    %3112 = vrot.lane.b32.xlu0 %v3110, 64
    %v3113 = vpop.permute.xlu0 %3112
    %v3115 = vmul.f32 %v3109, %v3113
    %3117 = vrot.lane.b32.xlu0 %v3115, 64
    %v3118 = vpop.permute.xlu0 %3117
    %v3120 = vadd.f32 %v3027, %v3118
    %v3121 = vtanh.pop %v3120
    %v3122 = vsub.f32 1.0, %v3109
    %3124 = vrot.lane.b32.xlu0 %v3121, 96
    %v3125 = vpop.permute.xlu0 %3124
    %v3127 = vmul.f32 %v3122, %v3125
    %v3128 = vmul.f32 %v3109, %v3026
    %v3129 = vadd.f32 %v3127, %v3128
    %v3130 = vadd.f32 %v2498, %v2588
    %3132 = vrot.lane.b32.xlu0 %v3129, 96
    %v3133 = vpop.permute.xlu0 %3132
    %v3134 = vsel %vm294, %v3133, 0
    %3136 = vmatprep.subr.mxu0 0.0
    %3137 = vmatpush1.msra.mxu0 %v2376
    %3138 = vmatprep.subr.mxu0 0.0
    %3139 = vmatpush1.msra.mxu0 %v2377
    %3140 = vmatprep.subr.mxu0 0.0
    %3141 = vmatpush1.msra.mxu0 %v2378
    %3142 = vmatprep.subr.mxu0 0.0
    %3143 = vmatpush1.msra.mxu0 %v2379
    %3144 = vmatprep.subr.mxu0 0.0
    %3145 = vmatpush1.msra.mxu0 0.0
    %3146 = vmatprep.subr.mxu0 0.0
    %3147 = vmatpush1.msra.mxu0 0.0
    %3148 = vmatprep.subr.mxu0 0.0
    %3149 = vmatpush1.msra.mxu0 0.0
    %3150 = vmatprep.subr.mxu0 0.0
    %3151 = vmatpush1.msra.mxu0 0.0
    %3152 = vmatprep.subr.mxu0 0.0
    %3153 = vmatpush1.msra.mxu0 0.0
    %3154 = vmatprep.subr.mxu0 0.0
    %3155 = vmatpush1.msra.mxu0 0.0
    %3156 = vmatprep.subr.mxu0 0.0
    %3157 = vmatpush1.msra.mxu0 0.0
    %3158 = vmatprep.subr.mxu0 0.0
    %3159 = vmatpush1.msra.mxu0 0.0
    %3160 = vmatprep.subr.mxu0 0.0
    %3161 = vmatpush1.msra.mxu0 0.0
    %3162 = vmatprep.subr.mxu0 0.0
    %3163 = vmatpush1.msra.mxu0 0.0
    %3164 = vmatprep.subr.mxu0 0.0
    %3165 = vmatpush1.msra.mxu0 0.0
    %3166 = vmatprep.subr.mxu0 0.0
    %3167 = vmatpush1.msra.mxu0 0.0
    %3168 = vmatprep.subr.mxu0 0.0
    %3169 = vmatpush1.msra.mxu0 0.0
    %3170 = vmatprep.subr.mxu0 0.0
    %3171 = vmatpush1.msra.mxu0 0.0
    %3172 = vmatprep.subr.mxu0 0.0
    %3173 = vmatpush1.msra.mxu0 0.0
    %3174 = vmatprep.subr.mxu0 0.0
    %3175 = vmatpush1.msra.mxu0 0.0
    %3176 = vmatprep.subr.mxu0 0.0
    %3177 = vmatpush1.msra.mxu0 0.0
    %3178 = vmatprep.subr.mxu0 0.0
    %3179 = vmatpush1.msra.mxu0 0.0
    %3180 = vmatprep.subr.mxu0 0.0
    %3181 = vmatpush1.msra.mxu0 0.0
    %3182 = vmatprep.subr.mxu0 0.0
    %3183 = vmatpush1.msra.mxu0 0.0
    %3184 = vmatprep.subr.mxu0 0.0
    %3185 = vmatpush1.msra.mxu0 0.0
    %3186 = vmatprep.subr.mxu0 0.0
    %3187 = vmatpush1.msra.mxu0 0.0
    %3188 = vmatprep.subr.mxu0 0.0
    %3189 = vmatpush1.msra.mxu0 0.0
    %3190 = vmatprep.subr.mxu0 0.0
    %3191 = vmatpush1.msra.mxu0 0.0
    %3192 = vmatprep.subr.mxu0 0.0
    %3193 = vmatpush1.msra.mxu0 0.0
    %3194 = vmatprep.subr.mxu0 0.0
    %3195 = vmatpush1.msra.mxu0 0.0
    %3196 = vmatprep.subr.mxu0 0.0
    %3197 = vmatpush1.msra.mxu0 0.0
    %3198 = vmatprep.subr.mxu0 0.0
    %3199 = vmatpush1.msra.mxu0 0.0
    %3200 = vmatprep.mubr.f32.mxu0 0.0
    %3201 = vmatmul.mubr.f32.gmra.mrb[0].mxu0 %v3134
    %v3202 = vpop.f32.mrb[0].mxu0
    %v3203 = vadd.f32 0.0, %v3202
    %v3204 = vpop.f32.mrb[0].mxu0
    %3205 = vdwg.mxu0
    %v3206 = vadd.f32 %v3130, %v3203
    %v3207 = vxor.u32 %v3206, 2147483648
    %v3208 = vmul.f32 %v3207, 1.442695
    %v3209 = vpow.pop %v3208
    %v3210 = vadd.f32 %v3209, 1.0
    %v3211 = vrcp.pop %v3210
    %v3212 = vmul.f32 1.0, %v3211
    %v3213 = vadd.f32 %v3203, %v2696
    %3215 = vrot.lane.b32.xlu0 %v3213, 64
    %v3216 = vpop.permute.xlu0 %3215
    %v3218 = vmul.f32 %v3212, %v3216
    %3220 = vrot.lane.b32.xlu0 %v3218, 64
    %v3221 = vpop.permute.xlu0 %3220
    %v3223 = vadd.f32 %v3130, %v3221
    %v3224 = vtanh.pop %v3223
    %v3225 = vsub.f32 1.0, %v3212
    %3227 = vrot.lane.b32.xlu0 %v3224, 96
    %v3228 = vpop.permute.xlu0 %3227
    %v3230 = vmul.f32 %v3225, %v3228
    %v3231 = vmul.f32 %v3212, %v3129
    %v3232 = vadd.f32 %v3230, %v3231
    %v3233 = vadd.f32 %v2503, %v2583
    %3235 = vrot.lane.b32.xlu0 %v3232, 96
    %v3236 = vpop.permute.xlu0 %3235
    %v3237 = vsel %vm294, %v3236, 0
    %3239 = vmatprep.subr.mxu0 0.0
    %3240 = vmatpush1.msra.mxu0 %v2376
    %3241 = vmatprep.subr.mxu0 0.0
    %3242 = vmatpush1.msra.mxu0 %v2377
    %3243 = vmatprep.subr.mxu0 0.0
    %3244 = vmatpush1.msra.mxu0 %v2378
    %3245 = vmatprep.subr.mxu0 0.0
    %3246 = vmatpush1.msra.mxu0 %v2379
    %3247 = vmatprep.subr.mxu0 0.0
    %3248 = vmatpush1.msra.mxu0 0.0
    %3249 = vmatprep.subr.mxu0 0.0
    %3250 = vmatpush1.msra.mxu0 0.0
    %3251 = vmatprep.subr.mxu0 0.0
    %3252 = vmatpush1.msra.mxu0 0.0
    %3253 = vmatprep.subr.mxu0 0.0
    %3254 = vmatpush1.msra.mxu0 0.0
    %3255 = vmatprep.subr.mxu0 0.0
    %3256 = vmatpush1.msra.mxu0 0.0
    %3257 = vmatprep.subr.mxu0 0.0
    %3258 = vmatpush1.msra.mxu0 0.0
    %3259 = vmatprep.subr.mxu0 0.0
    %3260 = vmatpush1.msra.mxu0 0.0
    %3261 = vmatprep.subr.mxu0 0.0
    %3262 = vmatpush1.msra.mxu0 0.0
    %3263 = vmatprep.subr.mxu0 0.0
    %3264 = vmatpush1.msra.mxu0 0.0
    %3265 = vmatprep.subr.mxu0 0.0
    %3266 = vmatpush1.msra.mxu0 0.0
    %3267 = vmatprep.subr.mxu0 0.0
    %3268 = vmatpush1.msra.mxu0 0.0
    %3269 = vmatprep.subr.mxu0 0.0
    %3270 = vmatpush1.msra.mxu0 0.0
    %3271 = vmatprep.subr.mxu0 0.0
    %3272 = vmatpush1.msra.mxu0 0.0
    %3273 = vmatprep.subr.mxu0 0.0
    %3274 = vmatpush1.msra.mxu0 0.0
    %3275 = vmatprep.subr.mxu0 0.0
    %3276 = vmatpush1.msra.mxu0 0.0
    %3277 = vmatprep.subr.mxu0 0.0
    %3278 = vmatpush1.msra.mxu0 0.0
    %3279 = vmatprep.subr.mxu0 0.0
    %3280 = vmatpush1.msra.mxu0 0.0
    %3281 = vmatprep.subr.mxu0 0.0
    %3282 = vmatpush1.msra.mxu0 0.0
    %3283 = vmatprep.subr.mxu0 0.0
    %3284 = vmatpush1.msra.mxu0 0.0
    %3285 = vmatprep.subr.mxu0 0.0
    %3286 = vmatpush1.msra.mxu0 0.0
    %3287 = vmatprep.subr.mxu0 0.0
    %3288 = vmatpush1.msra.mxu0 0.0
    %3289 = vmatprep.subr.mxu0 0.0
    %3290 = vmatpush1.msra.mxu0 0.0
    %3291 = vmatprep.subr.mxu0 0.0
    %3292 = vmatpush1.msra.mxu0 0.0
    %3293 = vmatprep.subr.mxu0 0.0
    %3294 = vmatpush1.msra.mxu0 0.0
    %3295 = vmatprep.subr.mxu0 0.0
    %3296 = vmatpush1.msra.mxu0 0.0
    %3297 = vmatprep.subr.mxu0 0.0
    %3298 = vmatpush1.msra.mxu0 0.0
    %3299 = vmatprep.subr.mxu0 0.0
    %3300 = vmatpush1.msra.mxu0 0.0
    %3301 = vmatprep.subr.mxu0 0.0
    %3302 = vmatpush1.msra.mxu0 0.0
    %3303 = vmatprep.mubr.f32.mxu0 0.0
    %3304 = vmatmul.mubr.f32.gmra.mrb[0].mxu0 %v3237
    %v3305 = vpop.f32.mrb[0].mxu0
    %v3306 = vadd.f32 0.0, %v3305
    %v3307 = vpop.f32.mrb[0].mxu0
    %3308 = vdwg.mxu0
    %v3309 = vadd.f32 %v3233, %v3306
    %v3310 = vxor.u32 %v3309, 2147483648
    %v3311 = vmul.f32 %v3310, 1.442695
    %v3312 = vpow.pop %v3311
    %v3313 = vadd.f32 %v3312, 1.0
    %v3314 = vrcp.pop %v3313
    %v3315 = vmul.f32 1.0, %v3314
    %v3316 = vadd.f32 %v3306, %v2696
    %3318 = vrot.lane.b32.xlu0 %v3316, 64
    %v3319 = vpop.permute.xlu0 %3318
    %v3321 = vmul.f32 %v3315, %v3319
    %3323 = vrot.lane.b32.xlu0 %v3321, 64
    %v3324 = vpop.permute.xlu0 %3323
    %v3326 = vadd.f32 %v3233, %v3324
    %v3327 = vtanh.pop %v3326
    %v3328 = vsub.f32 1.0, %v3315
    %3330 = vrot.lane.b32.xlu0 %v3327, 96
    %v3331 = vpop.permute.xlu0 %3330
    %v3333 = vmul.f32 %v3328, %v3331
    %v3334 = vmul.f32 %v3315, %v3232
    %v3335 = vadd.f32 %v3333, %v3334
    %v3336 = vadd.f32 %v2508, %v2578
    %3338 = vrot.lane.b32.xlu0 %v3335, 96
    %v3339 = vpop.permute.xlu0 %3338
    %v3340 = vsel %vm294, %v3339, 0
    %3342 = vmatprep.subr.mxu0 0.0
    %3343 = vmatpush1.msra.mxu0 %v2376
    %3344 = vmatprep.subr.mxu0 0.0
    %3345 = vmatpush1.msra.mxu0 %v2377
    %3346 = vmatprep.subr.mxu0 0.0
    %3347 = vmatpush1.msra.mxu0 %v2378
    %3348 = vmatprep.subr.mxu0 0.0
    %3349 = vmatpush1.msra.mxu0 %v2379
    %3350 = vmatprep.subr.mxu0 0.0
    %3351 = vmatpush1.msra.mxu0 0.0
    %3352 = vmatprep.subr.mxu0 0.0
    %3353 = vmatpush1.msra.mxu0 0.0
    %3354 = vmatprep.subr.mxu0 0.0
    %3355 = vmatpush1.msra.mxu0 0.0
    %3356 = vmatprep.subr.mxu0 0.0
    %3357 = vmatpush1.msra.mxu0 0.0
    %3358 = vmatprep.subr.mxu0 0.0
    %3359 = vmatpush1.msra.mxu0 0.0
    %3360 = vmatprep.subr.mxu0 0.0
    %3361 = vmatpush1.msra.mxu0 0.0
    %3362 = vmatprep.subr.mxu0 0.0
    %3363 = vmatpush1.msra.mxu0 0.0
    %3364 = vmatprep.subr.mxu0 0.0
    %3365 = vmatpush1.msra.mxu0 0.0
    %3366 = vmatprep.subr.mxu0 0.0
    %3367 = vmatpush1.msra.mxu0 0.0
    %3368 = vmatprep.subr.mxu0 0.0
    %3369 = vmatpush1.msra.mxu0 0.0
    %3370 = vmatprep.subr.mxu0 0.0
    %3371 = vmatpush1.msra.mxu0 0.0
    %3372 = vmatprep.subr.mxu0 0.0
    %3373 = vmatpush1.msra.mxu0 0.0
    %3374 = vmatprep.subr.mxu0 0.0
    %3375 = vmatpush1.msra.mxu0 0.0
    %3376 = vmatprep.subr.mxu0 0.0
    %3377 = vmatpush1.msra.mxu0 0.0
    %3378 = vmatprep.subr.mxu0 0.0
    %3379 = vmatpush1.msra.mxu0 0.0
    %3380 = vmatprep.subr.mxu0 0.0
    %3381 = vmatpush1.msra.mxu0 0.0
    %3382 = vmatprep.subr.mxu0 0.0
    %3383 = vmatpush1.msra.mxu0 0.0
    %3384 = vmatprep.subr.mxu0 0.0
    %3385 = vmatpush1.msra.mxu0 0.0
    %3386 = vmatprep.subr.mxu0 0.0
    %3387 = vmatpush1.msra.mxu0 0.0
    %3388 = vmatprep.subr.mxu0 0.0
    %3389 = vmatpush1.msra.mxu0 0.0
    %3390 = vmatprep.subr.mxu0 0.0
    %3391 = vmatpush1.msra.mxu0 0.0
    %3392 = vmatprep.subr.mxu0 0.0
    %3393 = vmatpush1.msra.mxu0 0.0
    %3394 = vmatprep.subr.mxu0 0.0
    %3395 = vmatpush1.msra.mxu0 0.0
    %3396 = vmatprep.subr.mxu0 0.0
    %3397 = vmatpush1.msra.mxu0 0.0
    %3398 = vmatprep.subr.mxu0 0.0
    %3399 = vmatpush1.msra.mxu0 0.0
    %3400 = vmatprep.subr.mxu0 0.0
    %3401 = vmatpush1.msra.mxu0 0.0
    %3402 = vmatprep.subr.mxu0 0.0
    %3403 = vmatpush1.msra.mxu0 0.0
    %3404 = vmatprep.subr.mxu0 0.0
    %3405 = vmatpush1.msra.mxu0 0.0
    %3406 = vmatprep.mubr.f32.mxu0 0.0
    %3407 = vmatmul.mubr.f32.gmra.mrb[0].mxu0 %v3340
    %v3408 = vpop.f32.mrb[0].mxu0
    %v3409 = vadd.f32 0.0, %v3408
    %v3410 = vpop.f32.mrb[0].mxu0
    %3411 = vdwg.mxu0
    %v3412 = vadd.f32 %v3336, %v3409
    %v3413 = vxor.u32 %v3412, 2147483648
    %v3414 = vmul.f32 %v3413, 1.442695
    %v3415 = vpow.pop %v3414
    %v3416 = vadd.f32 %v3415, 1.0
    %v3417 = vrcp.pop %v3416
    %v3418 = vmul.f32 1.0, %v3417
    %v3419 = vadd.f32 %v3409, %v2696
    %3421 = vrot.lane.b32.xlu0 %v3419, 64
    %v3422 = vpop.permute.xlu0 %3421
    %v3424 = vmul.f32 %v3418, %v3422
    %3426 = vrot.lane.b32.xlu0 %v3424, 64
    %v3427 = vpop.permute.xlu0 %3426
    %v3429 = vadd.f32 %v3336, %v3427
    %v3430 = vtanh.pop %v3429
    %v3431 = vsub.f32 1.0, %v3418
    %3433 = vrot.lane.b32.xlu0 %v3430, 96
    %v3434 = vpop.permute.xlu0 %3433
    %v3436 = vmul.f32 %v3431, %v3434
    %v3437 = vmul.f32 %v3418, %v3335
    %v3438 = vadd.f32 %v3436, %v3437
    %3441 = vrot.lane.b32.xlu0 %v3438, 96
    %v3442 = vpop.permute.xlu0 %3441
    %v3444 = vsel %vm1122, %v2721, %v3442
    %v3447 = vsel %vm1122, %v2824, %v3339
    %v3450 = vsel %vm1122, %v2927, %v3236
    %v3453 = vsel %vm1122, %v3030, %v3133
    %v3454 = vsel %vm1122, %v3133, %v3030
    %v3455 = vsel %vm1122, %v3236, %v2927
    %v3456 = vsel %vm1122, %v3339, %v2824
    %v3457 = vsel %vm1122, %v3442, %v2721
    %v3458 = vld [vmem:[#allocation2 + $0x2a0] sm:$0xff]
    %v3459 = vld [vmem:[#allocation2 + $0x2a8] sm:$0xff]
    %v3460 = vld [vmem:[#allocation2 + $0x2b0] sm:$0xff]
    %v3461 = vld [vmem:[#allocation2 + $0x2b8] sm:$0xff]
    %v3462 = vld [vmem:[#allocation2 + $0x2c0] sm:$0xff]
    %v3463 = vld [vmem:[#allocation2 + $0x2c8] sm:$0xff]
    %v3464 = vld [vmem:[#allocation2 + $0x2d0] sm:$0xff]
    %v3465 = vld [vmem:[#allocation2 + $0x2d8] sm:$0xff]
    %v3466 = vld [vmem:[#allocation2 + $0x2e0] sm:$0xff]
    %v3467 = vld [vmem:[#allocation2 + $0x2e8] sm:$0xff]
    %v3468 = vld [vmem:[#allocation2 + $0x2f0] sm:$0xff]
    %v3469 = vld [vmem:[#allocation2 + $0x2f8] sm:$0xff]
    %v3470 = vld [vmem:[#allocation2 + $0x300] sm:$0xff]
    %v3471 = vld [vmem:[#allocation2 + $0x308] sm:$0xff]
    %v3472 = vld [vmem:[#allocation2 + $0x310] sm:$0xff]
    %v3473 = vld [vmem:[#allocation2 + $0x318] sm:$0xff]
    %v3474 = vld [vmem:[#allocation2 + $0x320] sm:$0xff]
    %v3475 = vld [vmem:[#allocation2 + $0x328] sm:$0xff]
    %v3476 = vld [vmem:[#allocation2 + $0x330] sm:$0xff]
    %v3477 = vld [vmem:[#allocation2 + $0x338] sm:$0xff]
    %v3478 = vld [vmem:[#allocation2 + $0x340] sm:$0xff]
    %v3479 = vld [vmem:[#allocation2 + $0x348] sm:$0xff]
    %v3480 = vld [vmem:[#allocation2 + $0x350] sm:$0xff]
    %v3481 = vld [vmem:[#allocation2 + $0x358] sm:$0xff]
    %v3482 = vld [vmem:[#allocation2 + $0x360] sm:$0xff]
    %v3483 = vld [vmem:[#allocation2 + $0x368] sm:$0xff]
    %v3484 = vld [vmem:[#allocation2 + $0x370] sm:$0xff]
    %v3485 = vld [vmem:[#allocation2 + $0x378] sm:$0xff]
    %v3486 = vld [vmem:[#allocation2 + $0x380] sm:$0xff]
    %v3487 = vld [vmem:[#allocation2 + $0x388] sm:$0xff]
    %v3488 = vld [vmem:[#allocation2 + $0x390] sm:$0xff]
    %v3489 = vld [vmem:[#allocation2 + $0x398] sm:$0xff]
    %v3490 = vld [vmem:[#allocation2 + $0x3a0] sm:$0xff]
    %v3491 = vld [vmem:[#allocation2 + $0x3a8] sm:$0xff]
    %v3492 = vld [vmem:[#allocation2 + $0x3b0] sm:$0xff]
    %v3493 = vld [vmem:[#allocation2 + $0x3b8] sm:$0xff]
    %v3494 = vld [vmem:[#allocation2 + $0x3c0] sm:$0xff]
    %v3495 = vld [vmem:[#allocation2 + $0x3c8] sm:$0xff]
    %v3496 = vld [vmem:[#allocation2 + $0x3d0] sm:$0xff]
    %v3497 = vld [vmem:[#allocation2 + $0x3d8] sm:$0xff]
    %v3498 = vld [vmem:[#allocation2 + $0x3e0] sm:$0xff]
    %v3499 = vld [vmem:[#allocation2 + $0x3e8] sm:$0xff]
    %v3500 = vld [vmem:[#allocation2 + $0x3f0] sm:$0xff]
    %v3501 = vld [vmem:[#allocation2 + $0x3f8] sm:$0xff]
    %v3502 = vld [vmem:[#allocation2 + $0x400] sm:$0xff]
    %v3503 = vld [vmem:[#allocation2 + $0x408] sm:$0xff]
    %v3504 = vld [vmem:[#allocation2 + $0x410] sm:$0xff]
    %v3505 = vld [vmem:[#allocation2 + $0x418] sm:$0xff]
    %v3506 = vld [vmem:[#allocation2 + $0x420] sm:$0xff]
    %v3507 = vld [vmem:[#allocation2 + $0x428] sm:$0xff]
    %v3508 = vld [vmem:[#allocation2 + $0x430] sm:$0xff]
    %v3509 = vld [vmem:[#allocation2 + $0x438] sm:$0xff]
    %v3510 = vld [vmem:[#allocation2 + $0x440] sm:$0xff]
    %v3511 = vld [vmem:[#allocation2 + $0x448] sm:$0xff]
    %v3512 = vld [vmem:[#allocation2 + $0x450] sm:$0xff]
    %v3513 = vld [vmem:[#allocation2 + $0x458] sm:$0xff]
    %v3514 = vld [vmem:[#allocation2 + $0x460] sm:$0xff]
    %v3515 = vld [vmem:[#allocation2 + $0x468] sm:$0xff]
    %v3516 = vld [vmem:[#allocation2 + $0x470] sm:$0xff]
    %v3517 = vld [vmem:[#allocation2 + $0x478] sm:$0xff]
    %v3518 = vld [vmem:[#allocation2 + $0x480] sm:$0xff]
    %v3519 = vld [vmem:[#allocation2 + $0x488] sm:$0xff]
    %v3520 = vld [vmem:[#allocation2 + $0x490] sm:$0xff]
    %v3521 = vld [vmem:[#allocation2 + $0x498] sm:$0xff]
    %v3522 = vld [vmem:[#allocation2 + $0x4a0] sm:$0xff]
    %v3523 = vld [vmem:[#allocation2 + $0x4a8] sm:$0xff]
    %v3524 = vld [vmem:[#allocation2 + $0x4b0] sm:$0xff]
    %v3525 = vld [vmem:[#allocation2 + $0x4b8] sm:$0xff]
    %v3526 = vld [vmem:[#allocation2 + $0x4c0] sm:$0xff]
    %v3527 = vld [vmem:[#allocation2 + $0x4c8] sm:$0xff]
    %v3528 = vld [vmem:[#allocation2 + $0x4d0] sm:$0xff]
    %v3529 = vld [vmem:[#allocation2 + $0x4d8] sm:$0xff]
    %s3530 = scalar_lea.vmem [#allocation4], 168
    %v3531 = vld [vmem:[%s3530] ss:$8 sm:$0x7]
    %v3532 = vld [vmem:[#allocation4 + $0xc0] ss:$0 sm:$0xff]
    %v3534 = vlaneseq
    %v3535 = vshrl.u32 %v3534, 7
    %v3536 = vsub.s32 0, %v3535
    %v3537 = vrot.slane %v3531, %v3536
    %v3538 = vlaneseq
    %v3539 = vshrl.u32 %v3538, 7
    %v3540 = vsub.s32 1, %v3539
    %v3541 = vrot.slane %v3531, %v3540
    %v3542 = vlaneseq
    %v3543 = vshrl.u32 %v3542, 7
    %v3544 = vsub.s32 2, %v3543
    %v3545 = vrot.slane %v3531, %v3544
    %v3550 = vsel %vm294, %v3444, 0
    %v3553 = vsel %vm294, %v3447, 0
    %v3556 = vsel %vm294, %v3450, 0
    %v3559 = vsel %vm294, %v3453, 0
    %v3562 = vsel %vm294, %v3454, 0
    %v3565 = vsel %vm294, %v3455, 0
    %v3568 = vsel %vm294, %v3456, 0
    %v3571 = vsel %vm294, %v3457, 0
    %3573 = vmatprep.subr.mxu0 %v3459
    %3574 = vmatpush1.msra.mxu0 %v3458
    %3575 = vmatprep.subr.mxu0 %v3462
    %3576 = vmatpush1.msra.mxu0 %v3461
    %3577 = vmatprep.subr.mxu0 %v3465
    %3578 = vmatpush1.msra.mxu0 %v3464
    %3579 = vmatprep.subr.mxu0 %v3468
    %3580 = vmatpush1.msra.mxu0 %v3467
    %3581 = vmatprep.subr.mxu0 0.0
    %3582 = vmatpush1.msra.mxu0 0.0
    %3583 = vmatprep.subr.mxu0 0.0
    %3584 = vmatpush1.msra.mxu0 0.0
    %3585 = vmatprep.subr.mxu0 0.0
    %3586 = vmatpush1.msra.mxu0 0.0
    %3587 = vmatprep.subr.mxu0 0.0
    %3588 = vmatpush1.msra.mxu0 0.0
    %3589 = vmatprep.subr.mxu0 0.0
    %3590 = vmatpush1.msra.mxu0 0.0
    %3591 = vmatprep.subr.mxu0 0.0
    %3592 = vmatpush1.msra.mxu0 0.0
    %3593 = vmatprep.subr.mxu0 0.0
    %3594 = vmatpush1.msra.mxu0 0.0
    %3595 = vmatprep.subr.mxu0 0.0
    %3596 = vmatpush1.msra.mxu0 0.0
    %3597 = vmatprep.subr.mxu0 0.0
    %3598 = vmatpush1.msra.mxu0 0.0
    %3599 = vmatprep.subr.mxu0 0.0
    %3600 = vmatpush1.msra.mxu0 0.0
    %3601 = vmatprep.subr.mxu0 0.0
    %3602 = vmatpush1.msra.mxu0 0.0
    %3603 = vmatprep.subr.mxu0 0.0
    %3604 = vmatpush1.msra.mxu0 0.0
    %3605 = vmatprep.subr.mxu0 0.0
    %3606 = vmatpush1.msra.mxu0 0.0
    %3607 = vmatprep.subr.mxu0 0.0
    %3608 = vmatpush1.msra.mxu0 0.0
    %3609 = vmatprep.subr.mxu0 0.0
    %3610 = vmatpush1.msra.mxu0 0.0
    %3611 = vmatprep.subr.mxu0 0.0
    %3612 = vmatpush1.msra.mxu0 0.0
    %3613 = vmatprep.subr.mxu0 0.0
    %3614 = vmatpush1.msra.mxu0 0.0
    %3615 = vmatprep.subr.mxu0 0.0
    %3616 = vmatpush1.msra.mxu0 0.0
    %3617 = vmatprep.subr.mxu0 0.0
    %3618 = vmatpush1.msra.mxu0 0.0
    %3619 = vmatprep.subr.mxu0 0.0
    %3620 = vmatpush1.msra.mxu0 0.0
    %3621 = vmatprep.subr.mxu0 0.0
    %3622 = vmatpush1.msra.mxu0 0.0
    %3623 = vmatprep.subr.mxu0 0.0
    %3624 = vmatpush1.msra.mxu0 0.0
    %3625 = vmatprep.subr.mxu0 0.0
    %3626 = vmatpush1.msra.mxu0 0.0
    %3627 = vmatprep.subr.mxu0 0.0
    %3628 = vmatpush1.msra.mxu0 0.0
    %3629 = vmatprep.subr.mxu0 0.0
    %3630 = vmatpush1.msra.mxu0 0.0
    %3631 = vmatprep.subr.mxu0 0.0
    %3632 = vmatpush1.msra.mxu0 0.0
    %3633 = vmatprep.subr.mxu0 0.0
    %3634 = vmatpush1.msra.mxu0 0.0
    %3635 = vmatprep.subr.mxu0 0.0
    %3636 = vmatpush1.msra.mxu0 0.0
    %3637 = vmatprep.mubr.f32.mxu0 0.0
    %3638 = vmatmul.mubr.f32.gmra.mrb[0].mxu0 %v3550
    %v3639 = vpop.f32.mrb[0].mxu0
    %v3640 = vadd.f32 %v3537, %v3639
    %v3641 = vpop.f32.mrb[0].mxu0
    %v3642 = vadd.f32 %v3541, %v3641
    %3643 = vmatprep.mubr.f32.mxu0 0.0
    %3644 = vmatmul.mubr.f32.gmra.mrb[0].mxu0 %v3553
    %v3645 = vpop.f32.mrb[0].mxu0
    %v3646 = vadd.f32 %v3537, %v3645
    %v3647 = vpop.f32.mrb[0].mxu0
    %v3648 = vadd.f32 %v3541, %v3647
    %3649 = vmatprep.mubr.f32.mxu0 0.0
    %3650 = vmatmul.mubr.f32.gmra.mrb[0].mxu0 %v3556
    %v3651 = vpop.f32.mrb[0].mxu0
    %v3652 = vadd.f32 %v3537, %v3651
    %v3653 = vpop.f32.mrb[0].mxu0
    %v3654 = vadd.f32 %v3541, %v3653
    %3655 = vmatprep.mubr.f32.mxu0 0.0
    %3656 = vmatmul.mubr.f32.gmra.mrb[0].mxu0 %v3559
    %v3657 = vpop.f32.mrb[0].mxu0
    %v3658 = vadd.f32 %v3537, %v3657
    %v3659 = vpop.f32.mrb[0].mxu0
    %v3660 = vadd.f32 %v3541, %v3659
    %3661 = vmatprep.mubr.f32.mxu0 0.0
    %3662 = vmatmul.mubr.f32.gmra.mrb[0].mxu0 %v3562
    %v3663 = vpop.f32.mrb[0].mxu0
    %v3664 = vadd.f32 %v3537, %v3663
    %v3665 = vpop.f32.mrb[0].mxu0
    %v3666 = vadd.f32 %v3541, %v3665
    %3667 = vmatprep.mubr.f32.mxu0 0.0
    %3668 = vmatmul.mubr.f32.gmra.mrb[0].mxu0 %v3565
    %v3669 = vpop.f32.mrb[0].mxu0
    %v3670 = vadd.f32 %v3537, %v3669
    %v3671 = vpop.f32.mrb[0].mxu0
    %v3672 = vadd.f32 %v3541, %v3671
    %3673 = vmatprep.mubr.f32.mxu0 0.0
    %3674 = vmatmul.mubr.f32.gmra.mrb[0].mxu0 %v3568
    %v3675 = vpop.f32.mrb[0].mxu0
    %v3676 = vadd.f32 %v3537, %v3675
    %v3677 = vpop.f32.mrb[0].mxu0
    %v3678 = vadd.f32 %v3541, %v3677
    %3679 = vmatprep.mubr.f32.mxu0 0.0
    %3680 = vmatmul.mubr.f32.gmra.mrb[0].mxu0 %v3571
    %v3681 = vpop.f32.mrb[0].mxu0
    %v3682 = vadd.f32 %v3537, %v3681
    %v3683 = vpop.f32.mrb[0].mxu0
    %v3684 = vadd.f32 %v3541, %v3683
    %3685 = vdwg.mxu0
    %3686 = vmatprep.subr.mxu0 0.0
    %3687 = vmatpush1.msra.mxu0 %v3460
    %3688 = vmatprep.subr.mxu0 0.0
    %3689 = vmatpush1.msra.mxu0 %v3463
    %3690 = vmatprep.subr.mxu0 0.0
    %3691 = vmatpush1.msra.mxu0 %v3466
    %3692 = vmatprep.subr.mxu0 0.0
    %3693 = vmatpush1.msra.mxu0 %v3469
    %3694 = vmatprep.subr.mxu0 0.0
    %3695 = vmatpush1.msra.mxu0 0.0
    %3696 = vmatprep.subr.mxu0 0.0
    %3697 = vmatpush1.msra.mxu0 0.0
    %3698 = vmatprep.subr.mxu0 0.0
    %3699 = vmatpush1.msra.mxu0 0.0
    %3700 = vmatprep.subr.mxu0 0.0
    %3701 = vmatpush1.msra.mxu0 0.0
    %3702 = vmatprep.subr.mxu0 0.0
    %3703 = vmatpush1.msra.mxu0 0.0
    %3704 = vmatprep.subr.mxu0 0.0
    %3705 = vmatpush1.msra.mxu0 0.0
    %3706 = vmatprep.subr.mxu0 0.0
    %3707 = vmatpush1.msra.mxu0 0.0
    %3708 = vmatprep.subr.mxu0 0.0
    %3709 = vmatpush1.msra.mxu0 0.0
    %3710 = vmatprep.subr.mxu0 0.0
    %3711 = vmatpush1.msra.mxu0 0.0
    %3712 = vmatprep.subr.mxu0 0.0
    %3713 = vmatpush1.msra.mxu0 0.0
    %3714 = vmatprep.subr.mxu0 0.0
    %3715 = vmatpush1.msra.mxu0 0.0
    %3716 = vmatprep.subr.mxu0 0.0
    %3717 = vmatpush1.msra.mxu0 0.0
    %3718 = vmatprep.subr.mxu0 0.0
    %3719 = vmatpush1.msra.mxu0 0.0
    %3720 = vmatprep.subr.mxu0 0.0
    %3721 = vmatpush1.msra.mxu0 0.0
    %3722 = vmatprep.subr.mxu0 0.0
    %3723 = vmatpush1.msra.mxu0 0.0
    %3724 = vmatprep.subr.mxu0 0.0
    %3725 = vmatpush1.msra.mxu0 0.0
    %3726 = vmatprep.subr.mxu0 0.0
    %3727 = vmatpush1.msra.mxu0 0.0
    %3728 = vmatprep.subr.mxu0 0.0
    %3729 = vmatpush1.msra.mxu0 0.0
    %3730 = vmatprep.subr.mxu0 0.0
    %3731 = vmatpush1.msra.mxu0 0.0
    %3732 = vmatprep.subr.mxu0 0.0
    %3733 = vmatpush1.msra.mxu0 0.0
    %3734 = vmatprep.subr.mxu0 0.0
    %3735 = vmatpush1.msra.mxu0 0.0
    %3736 = vmatprep.subr.mxu0 0.0
    %3737 = vmatpush1.msra.mxu0 0.0
    %3738 = vmatprep.subr.mxu0 0.0
    %3739 = vmatpush1.msra.mxu0 0.0
    %3740 = vmatprep.subr.mxu0 0.0
    %3741 = vmatpush1.msra.mxu0 0.0
    %3742 = vmatprep.subr.mxu0 0.0
    %3743 = vmatpush1.msra.mxu0 0.0
    %3744 = vmatprep.subr.mxu0 0.0
    %3745 = vmatpush1.msra.mxu0 0.0
    %3746 = vmatprep.subr.mxu0 0.0
    %3747 = vmatpush1.msra.mxu0 0.0
    %3748 = vmatprep.subr.mxu0 0.0
    %3749 = vmatpush1.msra.mxu0 0.0
    %3750 = vmatprep.mubr.f32.mxu0 0.0
    %3751 = vmatmul.mubr.f32.gmra.mrb[0].mxu0 %v3550
    %v3752 = vpop.f32.mrb[0].mxu0
    %v3753 = vadd.f32 %v3545, %v3752
    %v3754 = vpop.f32.mrb[0].mxu0
    %3755 = vmatprep.mubr.f32.mxu0 0.0
    %3756 = vmatmul.mubr.f32.gmra.mrb[0].mxu0 %v3553
    %v3757 = vpop.f32.mrb[0].mxu0
    %v3758 = vadd.f32 %v3545, %v3757
    %v3759 = vpop.f32.mrb[0].mxu0
    %3760 = vmatprep.mubr.f32.mxu0 0.0
    %3761 = vmatmul.mubr.f32.gmra.mrb[0].mxu0 %v3556
    %v3762 = vpop.f32.mrb[0].mxu0
    %v3763 = vadd.f32 %v3545, %v3762
    %v3764 = vpop.f32.mrb[0].mxu0
    %3765 = vmatprep.mubr.f32.mxu0 0.0
    %3766 = vmatmul.mubr.f32.gmra.mrb[0].mxu0 %v3559
    %v3767 = vpop.f32.mrb[0].mxu0
    %v3768 = vadd.f32 %v3545, %v3767
    %v3769 = vpop.f32.mrb[0].mxu0
    %3770 = vmatprep.mubr.f32.mxu0 0.0
    %3771 = vmatmul.mubr.f32.gmra.mrb[0].mxu0 %v3562
    %v3772 = vpop.f32.mrb[0].mxu0
    %v3773 = vadd.f32 %v3545, %v3772
    %v3774 = vpop.f32.mrb[0].mxu0
    %3775 = vmatprep.mubr.f32.mxu0 0.0
    %3776 = vmatmul.mubr.f32.gmra.mrb[0].mxu0 %v3565
    %v3777 = vpop.f32.mrb[0].mxu0
    %v3778 = vadd.f32 %v3545, %v3777
    %v3779 = vpop.f32.mrb[0].mxu0
    %3780 = vmatprep.mubr.f32.mxu0 0.0
    %3781 = vmatmul.mubr.f32.gmra.mrb[0].mxu0 %v3568
    %v3782 = vpop.f32.mrb[0].mxu0
    %v3783 = vadd.f32 %v3545, %v3782
    %v3784 = vpop.f32.mrb[0].mxu0
    %3785 = vmatprep.mubr.f32.mxu0 0.0
    %3786 = vmatmul.mubr.f32.gmra.mrb[0].mxu0 %v3571
    %v3787 = vpop.f32.mrb[0].mxu0
    %v3788 = vadd.f32 %v3545, %v3787
    %v3789 = vpop.f32.mrb[0].mxu0
    %3790 = vdwg.mxu0
    %3791 = vmatprep.subr.mxu0 %v3471
    %3792 = vmatpush1.msra.mxu0 %v3470
    %3793 = vmatprep.subr.mxu0 %v3474
    %3794 = vmatpush1.msra.mxu0 %v3473
    %3795 = vmatprep.subr.mxu0 %v3477
    %3796 = vmatpush1.msra.mxu0 %v3476
    %3797 = vmatprep.subr.mxu0 %v3480
    %3798 = vmatpush1.msra.mxu0 %v3479
    %3799 = vmatprep.subr.mxu0 0.0
    %3800 = vmatpush1.msra.mxu0 0.0
    %3801 = vmatprep.subr.mxu0 0.0
    %3802 = vmatpush1.msra.mxu0 0.0
    %3803 = vmatprep.subr.mxu0 0.0
    %3804 = vmatpush1.msra.mxu0 0.0
    %3805 = vmatprep.subr.mxu0 0.0
    %3806 = vmatpush1.msra.mxu0 0.0
    %3807 = vmatprep.subr.mxu0 0.0
    %3808 = vmatpush1.msra.mxu0 0.0
    %3809 = vmatprep.subr.mxu0 0.0
    %3810 = vmatpush1.msra.mxu0 0.0
    %3811 = vmatprep.subr.mxu0 0.0
    %3812 = vmatpush1.msra.mxu0 0.0
    %3813 = vmatprep.subr.mxu0 0.0
    %3814 = vmatpush1.msra.mxu0 0.0
    %3815 = vmatprep.subr.mxu0 0.0
    %3816 = vmatpush1.msra.mxu0 0.0
    %3817 = vmatprep.subr.mxu0 0.0
    %3818 = vmatpush1.msra.mxu0 0.0
    %3819 = vmatprep.subr.mxu0 0.0
    %3820 = vmatpush1.msra.mxu0 0.0
    %3821 = vmatprep.subr.mxu0 0.0
    %3822 = vmatpush1.msra.mxu0 0.0
    %3823 = vmatprep.subr.mxu0 0.0
    %3824 = vmatpush1.msra.mxu0 0.0
    %3825 = vmatprep.subr.mxu0 0.0
    %3826 = vmatpush1.msra.mxu0 0.0
    %3827 = vmatprep.subr.mxu0 0.0
    %3828 = vmatpush1.msra.mxu0 0.0
    %3829 = vmatprep.subr.mxu0 0.0
    %3830 = vmatpush1.msra.mxu0 0.0
    %3831 = vmatprep.subr.mxu0 0.0
    %3832 = vmatpush1.msra.mxu0 0.0
    %3833 = vmatprep.subr.mxu0 0.0
    %3834 = vmatpush1.msra.mxu0 0.0
    %3835 = vmatprep.subr.mxu0 0.0
    %3836 = vmatpush1.msra.mxu0 0.0
    %3837 = vmatprep.subr.mxu0 0.0
    %3838 = vmatpush1.msra.mxu0 0.0
    %3839 = vmatprep.subr.mxu0 0.0
    %3840 = vmatpush1.msra.mxu0 0.0
    %3841 = vmatprep.subr.mxu0 0.0
    %3842 = vmatpush1.msra.mxu0 0.0
    %3843 = vmatprep.subr.mxu0 0.0
    %3844 = vmatpush1.msra.mxu0 0.0
    %3845 = vmatprep.subr.mxu0 0.0
    %3846 = vmatpush1.msra.mxu0 0.0
    %3847 = vmatprep.subr.mxu0 0.0
    %3848 = vmatpush1.msra.mxu0 0.0
    %3849 = vmatprep.subr.mxu0 0.0
    %3850 = vmatpush1.msra.mxu0 0.0
    %3851 = vmatprep.subr.mxu0 0.0
    %3852 = vmatpush1.msra.mxu0 0.0
    %3853 = vmatprep.subr.mxu0 0.0
    %3854 = vmatpush1.msra.mxu0 0.0
    %3855 = vmatprep.mubr.f32.mxu0 0.0
    %3856 = vmatmul.mubr.f32.gmra.mrb[0].mxu0 %v3550
    %v3857 = vpop.f32.mrb[0].mxu0
    %v3858 = vadd.f32 0.0, %v3857
    %v3859 = vpop.f32.mrb[0].mxu0
    %v3860 = vadd.f32 0.0, %v3859
    %3861 = vmatprep.mubr.f32.mxu0 0.0
    %3862 = vmatmul.mubr.f32.gmra.mrb[0].mxu0 %v3553
    %v3863 = vpop.f32.mrb[0].mxu0
    %v3864 = vadd.f32 0.0, %v3863
    %v3865 = vpop.f32.mrb[0].mxu0
    %v3866 = vadd.f32 0.0, %v3865
    %3867 = vmatprep.mubr.f32.mxu0 0.0
    %3868 = vmatmul.mubr.f32.gmra.mrb[0].mxu0 %v3556
    %v3869 = vpop.f32.mrb[0].mxu0
    %v3870 = vadd.f32 0.0, %v3869
    %v3871 = vpop.f32.mrb[0].mxu0
    %v3872 = vadd.f32 0.0, %v3871
    %3873 = vmatprep.mubr.f32.mxu0 0.0
    %3874 = vmatmul.mubr.f32.gmra.mrb[0].mxu0 %v3559
    %v3875 = vpop.f32.mrb[0].mxu0
    %v3876 = vadd.f32 0.0, %v3875
    %v3877 = vpop.f32.mrb[0].mxu0
    %v3878 = vadd.f32 0.0, %v3877
    %3879 = vmatprep.mubr.f32.mxu0 0.0
    %3880 = vmatmul.mubr.f32.gmra.mrb[0].mxu0 %v3562
    %v3881 = vpop.f32.mrb[0].mxu0
    %v3882 = vadd.f32 0.0, %v3881
    %v3883 = vpop.f32.mrb[0].mxu0
    %v3884 = vadd.f32 0.0, %v3883
    %3885 = vmatprep.mubr.f32.mxu0 0.0
    %3886 = vmatmul.mubr.f32.gmra.mrb[0].mxu0 %v3565
    %v3887 = vpop.f32.mrb[0].mxu0
    %v3888 = vadd.f32 0.0, %v3887
    %v3889 = vpop.f32.mrb[0].mxu0
    %v3890 = vadd.f32 0.0, %v3889
    %3891 = vmatprep.mubr.f32.mxu0 0.0
    %3892 = vmatmul.mubr.f32.gmra.mrb[0].mxu0 %v3568
    %v3893 = vpop.f32.mrb[0].mxu0
    %v3894 = vadd.f32 0.0, %v3893
    %v3895 = vpop.f32.mrb[0].mxu0
    %v3896 = vadd.f32 0.0, %v3895
    %3897 = vmatprep.mubr.f32.mxu0 0.0
    %3898 = vmatmul.mubr.f32.gmra.mrb[0].mxu0 %v3571
    %v3899 = vpop.f32.mrb[0].mxu0
    %v3900 = vadd.f32 0.0, %v3899
    %v3901 = vpop.f32.mrb[0].mxu0
    %v3902 = vadd.f32 0.0, %v3901
    %3903 = vdwg.mxu0
    %3904 = vmatprep.subr.mxu0 0.0
    %3905 = vmatpush1.msra.mxu0 %v3472
    %3906 = vmatprep.subr.mxu0 0.0
    %3907 = vmatpush1.msra.mxu0 %v3475
    %3908 = vmatprep.subr.mxu0 0.0
    %3909 = vmatpush1.msra.mxu0 %v3478
    %3910 = vmatprep.subr.mxu0 0.0
    %3911 = vmatpush1.msra.mxu0 %v3481
    %3912 = vmatprep.subr.mxu0 0.0
    %3913 = vmatpush1.msra.mxu0 0.0
    %3914 = vmatprep.subr.mxu0 0.0
    %3915 = vmatpush1.msra.mxu0 0.0
    %3916 = vmatprep.subr.mxu0 0.0
    %3917 = vmatpush1.msra.mxu0 0.0
    %3918 = vmatprep.subr.mxu0 0.0
    %3919 = vmatpush1.msra.mxu0 0.0
    %3920 = vmatprep.subr.mxu0 0.0
    %3921 = vmatpush1.msra.mxu0 0.0
    %3922 = vmatprep.subr.mxu0 0.0
    %3923 = vmatpush1.msra.mxu0 0.0
    %3924 = vmatprep.subr.mxu0 0.0
    %3925 = vmatpush1.msra.mxu0 0.0
    %3926 = vmatprep.subr.mxu0 0.0
    %3927 = vmatpush1.msra.mxu0 0.0
    %3928 = vmatprep.subr.mxu0 0.0
    %3929 = vmatpush1.msra.mxu0 0.0
    %3930 = vmatprep.subr.mxu0 0.0
    %3931 = vmatpush1.msra.mxu0 0.0
    %3932 = vmatprep.subr.mxu0 0.0
    %3933 = vmatpush1.msra.mxu0 0.0
    %3934 = vmatprep.subr.mxu0 0.0
    %3935 = vmatpush1.msra.mxu0 0.0
    %3936 = vmatprep.subr.mxu0 0.0
    %3937 = vmatpush1.msra.mxu0 0.0
    %3938 = vmatprep.subr.mxu0 0.0
    %3939 = vmatpush1.msra.mxu0 0.0
    %3940 = vmatprep.subr.mxu0 0.0
    %3941 = vmatpush1.msra.mxu0 0.0
    %3942 = vmatprep.subr.mxu0 0.0
    %3943 = vmatpush1.msra.mxu0 0.0
    %3944 = vmatprep.subr.mxu0 0.0
    %3945 = vmatpush1.msra.mxu0 0.0
    %3946 = vmatprep.subr.mxu0 0.0
    %3947 = vmatpush1.msra.mxu0 0.0
    %3948 = vmatprep.subr.mxu0 0.0
    %3949 = vmatpush1.msra.mxu0 0.0
    %3950 = vmatprep.subr.mxu0 0.0
    %3951 = vmatpush1.msra.mxu0 0.0
    %3952 = vmatprep.subr.mxu0 0.0
    %3953 = vmatpush1.msra.mxu0 0.0
    %3954 = vmatprep.subr.mxu0 0.0
    %3955 = vmatpush1.msra.mxu0 0.0
    %3956 = vmatprep.subr.mxu0 0.0
    %3957 = vmatpush1.msra.mxu0 0.0
    %3958 = vmatprep.subr.mxu0 0.0
    %3959 = vmatpush1.msra.mxu0 0.0
    %3960 = vmatprep.subr.mxu0 0.0
    %3961 = vmatpush1.msra.mxu0 0.0
    %3962 = vmatprep.subr.mxu0 0.0
    %3963 = vmatpush1.msra.mxu0 0.0
    %3964 = vmatprep.subr.mxu0 0.0
    %3965 = vmatpush1.msra.mxu0 0.0
    %3966 = vmatprep.subr.mxu0 0.0
    %3967 = vmatpush1.msra.mxu0 0.0
    %3968 = vmatprep.mubr.f32.mxu0 0.0
    %3969 = vmatmul.mubr.f32.gmra.mrb[0].mxu0 %v3550
    %v3970 = vpop.f32.mrb[0].mxu0
    %v3971 = vadd.f32 0.0, %v3970
    %v3972 = vpop.f32.mrb[0].mxu0
    %3973 = vmatprep.mubr.f32.mxu0 0.0
    %3974 = vmatmul.mubr.f32.gmra.mrb[0].mxu0 %v3553
    %v3975 = vpop.f32.mrb[0].mxu0
    %v3976 = vadd.f32 0.0, %v3975
    %v3977 = vpop.f32.mrb[0].mxu0
    %3978 = vmatprep.mubr.f32.mxu0 0.0
    %3979 = vmatmul.mubr.f32.gmra.mrb[0].mxu0 %v3556
    %v3980 = vpop.f32.mrb[0].mxu0
    %v3981 = vadd.f32 0.0, %v3980
    %v3982 = vpop.f32.mrb[0].mxu0
    %3983 = vmatprep.mubr.f32.mxu0 0.0
    %3984 = vmatmul.mubr.f32.gmra.mrb[0].mxu0 %v3559
    %v3985 = vpop.f32.mrb[0].mxu0
    %v3986 = vadd.f32 0.0, %v3985
    %v3987 = vpop.f32.mrb[0].mxu0
    %3988 = vmatprep.mubr.f32.mxu0 0.0
    %3989 = vmatmul.mubr.f32.gmra.mrb[0].mxu0 %v3562
    %v3990 = vpop.f32.mrb[0].mxu0
    %v3991 = vadd.f32 0.0, %v3990
    %v3992 = vpop.f32.mrb[0].mxu0
    %3993 = vmatprep.mubr.f32.mxu0 0.0
    %3994 = vmatmul.mubr.f32.gmra.mrb[0].mxu0 %v3565
    %v3995 = vpop.f32.mrb[0].mxu0
    %v3996 = vadd.f32 0.0, %v3995
    %v3997 = vpop.f32.mrb[0].mxu0
    %3998 = vmatprep.mubr.f32.mxu0 0.0
    %3999 = vmatmul.mubr.f32.gmra.mrb[0].mxu0 %v3568
    %v4000 = vpop.f32.mrb[0].mxu0
    %v4001 = vadd.f32 0.0, %v4000
    %v4002 = vpop.f32.mrb[0].mxu0
    %4003 = vmatprep.mubr.f32.mxu0 0.0
    %4004 = vmatmul.mubr.f32.gmra.mrb[0].mxu0 %v3571
    %v4005 = vpop.f32.mrb[0].mxu0
    %v4006 = vadd.f32 0.0, %v4005
    %v4007 = vpop.f32.mrb[0].mxu0
    %4008 = vdwg.mxu0
    %v4009 = vadd.f32 %v3640, %v3900
    %v4010 = vadd.f32 %v3642, %v3902
    %v4011 = vadd.f32 %v3753, %v4006
    %4012 = vmatprep.subr.mxu0 %v3483
    %4013 = vmatpush1.msra.mxu0 %v3482
    %4014 = vmatprep.subr.mxu0 %v3486
    %4015 = vmatpush1.msra.mxu0 %v3485
    %4016 = vmatprep.subr.mxu0 %v3489
    %4017 = vmatpush1.msra.mxu0 %v3488
    %4018 = vmatprep.subr.mxu0 %v3492
    %4019 = vmatpush1.msra.mxu0 %v3491
    %4020 = vmatprep.subr.mxu0 %v3495
    %4021 = vmatpush1.msra.mxu0 %v3494
    %4022 = vmatprep.subr.mxu0 %v3498
    %4023 = vmatpush1.msra.mxu0 %v3497
    %4024 = vmatprep.subr.mxu0 %v3501
    %4025 = vmatpush1.msra.mxu0 %v3500
    %4026 = vmatprep.subr.mxu0 %v3504
    %4027 = vmatpush1.msra.mxu0 %v3503
    %4028 = vmatprep.subr.mxu0 %v3507
    %4029 = vmatpush1.msra.mxu0 %v3506
    %4030 = vmatprep.subr.mxu0 %v3510
    %4031 = vmatpush1.msra.mxu0 %v3509
    %4032 = vmatprep.subr.mxu0 %v3513
    %4033 = vmatpush1.msra.mxu0 %v3512
    %4034 = vmatprep.subr.mxu0 %v3516
    %4035 = vmatpush1.msra.mxu0 %v3515
    %4036 = vmatprep.subr.mxu0 %v3519
    %4037 = vmatpush1.msra.mxu0 %v3518
    %4038 = vmatprep.subr.mxu0 %v3522
    %4039 = vmatpush1.msra.mxu0 %v3521
    %4040 = vmatprep.subr.mxu0 %v3525
    %4041 = vmatpush1.msra.mxu0 %v3524
    %4042 = vmatprep.subr.mxu0 %v3528
    %4043 = vmatpush1.msra.mxu0 %v3527
    %4044 = vmatprep.subr.mxu0 0.0
    %4045 = vmatpush1.msra.mxu0 0.0
    %4046 = vmatprep.subr.mxu0 0.0
    %4047 = vmatpush1.msra.mxu0 0.0
    %4048 = vmatprep.subr.mxu0 0.0
    %4049 = vmatpush1.msra.mxu0 0.0
    %4050 = vmatprep.subr.mxu0 0.0
    %4051 = vmatpush1.msra.mxu0 0.0
    %4052 = vmatprep.subr.mxu0 0.0
    %4053 = vmatpush1.msra.mxu0 0.0
    %4054 = vmatprep.subr.mxu0 0.0
    %4055 = vmatpush1.msra.mxu0 0.0
    %4056 = vmatprep.subr.mxu0 0.0
    %4057 = vmatpush1.msra.mxu0 0.0
    %4058 = vmatprep.subr.mxu0 0.0
    %4059 = vmatpush1.msra.mxu0 0.0
    %4060 = vmatprep.subr.mxu0 0.0
    %4061 = vmatpush1.msra.mxu0 0.0
    %4062 = vmatprep.subr.mxu0 0.0
    %4063 = vmatpush1.msra.mxu0 0.0
    %4064 = vmatprep.subr.mxu0 0.0
    %4065 = vmatpush1.msra.mxu0 0.0
    %4066 = vmatprep.subr.mxu0 0.0
    %4067 = vmatpush1.msra.mxu0 0.0
    %4068 = vmatprep.subr.mxu0 0.0
    %4069 = vmatpush1.msra.mxu0 0.0
    %4070 = vmatprep.subr.mxu0 0.0
    %4071 = vmatpush1.msra.mxu0 0.0
    %4072 = vmatprep.subr.mxu0 0.0
    %4073 = vmatpush1.msra.mxu0 0.0
    %4074 = vmatprep.subr.mxu0 0.0
    %4075 = vmatpush1.msra.mxu0 0.0
    %4076 = vmatprep.mubr.f32.mxu0 0.0
    %4077 = vmatmul.mubr.f32.gmra.mrb[0].mxu0 0.0
    %v4078 = vpop.f32.mrb[0].mxu0
    %v4079 = vadd.f32 0.0, %v4078
    %v4080 = vpop.f32.mrb[0].mxu0
    %v4081 = vadd.f32 0.0, %v4080
    %4082 = vdwg.mxu0
    %4083 = vmatprep.subr.mxu0 0.0
    %4084 = vmatpush1.msra.mxu0 %v3484
    %4085 = vmatprep.subr.mxu0 0.0
    %4086 = vmatpush1.msra.mxu0 %v3487
    %4087 = vmatprep.subr.mxu0 0.0
    %4088 = vmatpush1.msra.mxu0 %v3490
    %4089 = vmatprep.subr.mxu0 0.0
    %4090 = vmatpush1.msra.mxu0 %v3493
    %4091 = vmatprep.subr.mxu0 0.0
    %4092 = vmatpush1.msra.mxu0 %v3496
    %4093 = vmatprep.subr.mxu0 0.0
    %4094 = vmatpush1.msra.mxu0 %v3499
    %4095 = vmatprep.subr.mxu0 0.0
    %4096 = vmatpush1.msra.mxu0 %v3502
    %4097 = vmatprep.subr.mxu0 0.0
    %4098 = vmatpush1.msra.mxu0 %v3505
    %4099 = vmatprep.subr.mxu0 0.0
    %4100 = vmatpush1.msra.mxu0 %v3508
    %4101 = vmatprep.subr.mxu0 0.0
    %4102 = vmatpush1.msra.mxu0 %v3511
    %4103 = vmatprep.subr.mxu0 0.0
    %4104 = vmatpush1.msra.mxu0 %v3514
    %4105 = vmatprep.subr.mxu0 0.0
    %4106 = vmatpush1.msra.mxu0 %v3517
    %4107 = vmatprep.subr.mxu0 0.0
    %4108 = vmatpush1.msra.mxu0 %v3520
    %4109 = vmatprep.subr.mxu0 0.0
    %4110 = vmatpush1.msra.mxu0 %v3523
    %4111 = vmatprep.subr.mxu0 0.0
    %4112 = vmatpush1.msra.mxu0 %v3526
    %4113 = vmatprep.subr.mxu0 0.0
    %4114 = vmatpush1.msra.mxu0 %v3529
    %4115 = vmatprep.subr.mxu0 0.0
    %4116 = vmatpush1.msra.mxu0 0.0
    %4117 = vmatprep.subr.mxu0 0.0
    %4118 = vmatpush1.msra.mxu0 0.0
    %4119 = vmatprep.subr.mxu0 0.0
    %4120 = vmatpush1.msra.mxu0 0.0
    %4121 = vmatprep.subr.mxu0 0.0
    %4122 = vmatpush1.msra.mxu0 0.0
    %4123 = vmatprep.subr.mxu0 0.0
    %4124 = vmatpush1.msra.mxu0 0.0
    %4125 = vmatprep.subr.mxu0 0.0
    %4126 = vmatpush1.msra.mxu0 0.0
    %4127 = vmatprep.subr.mxu0 0.0
    %4128 = vmatpush1.msra.mxu0 0.0
    %4129 = vmatprep.subr.mxu0 0.0
    %4130 = vmatpush1.msra.mxu0 0.0
    %4131 = vmatprep.subr.mxu0 0.0
    %4132 = vmatpush1.msra.mxu0 0.0
    %4133 = vmatprep.subr.mxu0 0.0
    %4134 = vmatpush1.msra.mxu0 0.0
    %4135 = vmatprep.subr.mxu0 0.0
    %4136 = vmatpush1.msra.mxu0 0.0
    %4137 = vmatprep.subr.mxu0 0.0
    %4138 = vmatpush1.msra.mxu0 0.0
    %4139 = vmatprep.subr.mxu0 0.0
    %4140 = vmatpush1.msra.mxu0 0.0
    %4141 = vmatprep.subr.mxu0 0.0
    %4142 = vmatpush1.msra.mxu0 0.0
    %4143 = vmatprep.subr.mxu0 0.0
    %4144 = vmatpush1.msra.mxu0 0.0
    %4145 = vmatprep.subr.mxu0 0.0
    %4146 = vmatpush1.msra.mxu0 0.0
    %4147 = vmatprep.mubr.f32.mxu0 0.0
    %4148 = vmatmul.mubr.f32.gmra.mrb[0].mxu0 0.0
    %v4149 = vpop.f32.mrb[0].mxu0
    %v4150 = vadd.f32 0.0, %v4149
    %v4151 = vpop.f32.mrb[0].mxu0
    %4152 = vdwg.mxu0
    %v4153 = vadd.f32 %v4009, %v4079
    %v4154 = vadd.f32 %v4010, %v4081
    %v4155 = vxor.u32 %v4153, 2147483648
    %v4156 = vxor.u32 %v4154, 2147483648
    %v4157 = vmul.f32 %v4155, 1.442695
    %v4158 = vpow.pop %v4157
    %v4159 = vmul.f32 %v4156, 1.442695
    %v4160 = vpow.pop %v4159
    %v4161 = vadd.f32 %v4158, 1.0
    %v4162 = vadd.f32 %v4160, 1.0
    %v4163 = vrcp.pop %v4161
    %v4164 = vmul.f32 1.0, %v4163
    %v4165 = vrcp.pop %v4162
    %v4166 = vmul.f32 1.0, %v4165
    %v4167 = vadd.f32 %v4150, %v3532
    %v4168 = vmul.f32 %v4164, %v4167
    %v4169 = vadd.f32 %v4011, %v4168
    %v4170 = vtanh.pop %v4169
    %v4171 = vsub.f32 1.0, %v4166
    %v4172 = vmul.f32 %v4171, %v4170
    %v4173 = vmul.f32 %v4166, 0.0
    %v4174 = vadd.f32 %v4172, %v4173
    %v4175 = vadd.f32 %v3646, %v3894
    %v4176 = vadd.f32 %v3648, %v3896
    %v4177 = vadd.f32 %v3758, %v4001
    %4178 = vmatprep.subr.mxu0 %v3483
    %4179 = vmatpush1.msra.mxu0 %v3482
    %4180 = vmatprep.subr.mxu0 %v3486
    %4181 = vmatpush1.msra.mxu0 %v3485
    %4182 = vmatprep.subr.mxu0 %v3489
    %4183 = vmatpush1.msra.mxu0 %v3488
    %4184 = vmatprep.subr.mxu0 %v3492
    %4185 = vmatpush1.msra.mxu0 %v3491
    %4186 = vmatprep.subr.mxu0 %v3495
    %4187 = vmatpush1.msra.mxu0 %v3494
    %4188 = vmatprep.subr.mxu0 %v3498
    %4189 = vmatpush1.msra.mxu0 %v3497
    %4190 = vmatprep.subr.mxu0 %v3501
    %4191 = vmatpush1.msra.mxu0 %v3500
    %4192 = vmatprep.subr.mxu0 %v3504
    %4193 = vmatpush1.msra.mxu0 %v3503
    %4194 = vmatprep.subr.mxu0 %v3507
    %4195 = vmatpush1.msra.mxu0 %v3506
    %4196 = vmatprep.subr.mxu0 %v3510
    %4197 = vmatpush1.msra.mxu0 %v3509
    %4198 = vmatprep.subr.mxu0 %v3513
    %4199 = vmatpush1.msra.mxu0 %v3512
    %4200 = vmatprep.subr.mxu0 %v3516
    %4201 = vmatpush1.msra.mxu0 %v3515
    %4202 = vmatprep.subr.mxu0 %v3519
    %4203 = vmatpush1.msra.mxu0 %v3518
    %4204 = vmatprep.subr.mxu0 %v3522
    %4205 = vmatpush1.msra.mxu0 %v3521
    %4206 = vmatprep.subr.mxu0 %v3525
    %4207 = vmatpush1.msra.mxu0 %v3524
    %4208 = vmatprep.subr.mxu0 %v3528
    %4209 = vmatpush1.msra.mxu0 %v3527
    %4210 = vmatprep.subr.mxu0 0.0
    %4211 = vmatpush1.msra.mxu0 0.0
    %4212 = vmatprep.subr.mxu0 0.0
    %4213 = vmatpush1.msra.mxu0 0.0
    %4214 = vmatprep.subr.mxu0 0.0
    %4215 = vmatpush1.msra.mxu0 0.0
    %4216 = vmatprep.subr.mxu0 0.0
    %4217 = vmatpush1.msra.mxu0 0.0
    %4218 = vmatprep.subr.mxu0 0.0
    %4219 = vmatpush1.msra.mxu0 0.0
    %4220 = vmatprep.subr.mxu0 0.0
    %4221 = vmatpush1.msra.mxu0 0.0
    %4222 = vmatprep.subr.mxu0 0.0
    %4223 = vmatpush1.msra.mxu0 0.0
    %4224 = vmatprep.subr.mxu0 0.0
    %4225 = vmatpush1.msra.mxu0 0.0
    %4226 = vmatprep.subr.mxu0 0.0
    %4227 = vmatpush1.msra.mxu0 0.0
    %4228 = vmatprep.subr.mxu0 0.0
    %4229 = vmatpush1.msra.mxu0 0.0
    %4230 = vmatprep.subr.mxu0 0.0
    %4231 = vmatpush1.msra.mxu0 0.0
    %4232 = vmatprep.subr.mxu0 0.0
    %4233 = vmatpush1.msra.mxu0 0.0
    %4234 = vmatprep.subr.mxu0 0.0
    %4235 = vmatpush1.msra.mxu0 0.0
    %4236 = vmatprep.subr.mxu0 0.0
    %4237 = vmatpush1.msra.mxu0 0.0
    %4238 = vmatprep.subr.mxu0 0.0
    %4239 = vmatpush1.msra.mxu0 0.0
    %4240 = vmatprep.subr.mxu0 0.0
    %4241 = vmatpush1.msra.mxu0 0.0
    %4242 = vmatprep.mubr.f32.mxu0 0.0
    %4243 = vmatmul.mubr.f32.gmra.mrb[0].mxu0 %v4174
    %v4244 = vpop.f32.mrb[0].mxu0
    %v4245 = vadd.f32 0.0, %v4244
    %v4246 = vpop.f32.mrb[0].mxu0
    %v4247 = vadd.f32 0.0, %v4246
    %4248 = vdwg.mxu0
    %4249 = vmatprep.subr.mxu0 0.0
    %4250 = vmatpush1.msra.mxu0 %v3484
    %4251 = vmatprep.subr.mxu0 0.0
    %4252 = vmatpush1.msra.mxu0 %v3487
    %4253 = vmatprep.subr.mxu0 0.0
    %4254 = vmatpush1.msra.mxu0 %v3490
    %4255 = vmatprep.subr.mxu0 0.0
    %4256 = vmatpush1.msra.mxu0 %v3493
    %4257 = vmatprep.subr.mxu0 0.0
    %4258 = vmatpush1.msra.mxu0 %v3496
    %4259 = vmatprep.subr.mxu0 0.0
    %4260 = vmatpush1.msra.mxu0 %v3499
    %4261 = vmatprep.subr.mxu0 0.0
    %4262 = vmatpush1.msra.mxu0 %v3502
    %4263 = vmatprep.subr.mxu0 0.0
    %4264 = vmatpush1.msra.mxu0 %v3505
    %4265 = vmatprep.subr.mxu0 0.0
    %4266 = vmatpush1.msra.mxu0 %v3508
    %4267 = vmatprep.subr.mxu0 0.0
    %4268 = vmatpush1.msra.mxu0 %v3511
    %4269 = vmatprep.subr.mxu0 0.0
    %4270 = vmatpush1.msra.mxu0 %v3514
    %4271 = vmatprep.subr.mxu0 0.0
    %4272 = vmatpush1.msra.mxu0 %v3517
    %4273 = vmatprep.subr.mxu0 0.0
    %4274 = vmatpush1.msra.mxu0 %v3520
    %4275 = vmatprep.subr.mxu0 0.0
    %4276 = vmatpush1.msra.mxu0 %v3523
    %4277 = vmatprep.subr.mxu0 0.0
    %4278 = vmatpush1.msra.mxu0 %v3526
    %4279 = vmatprep.subr.mxu0 0.0
    %4280 = vmatpush1.msra.mxu0 %v3529
    %4281 = vmatprep.subr.mxu0 0.0
    %4282 = vmatpush1.msra.mxu0 0.0
    %4283 = vmatprep.subr.mxu0 0.0
    %4284 = vmatpush1.msra.mxu0 0.0
    %4285 = vmatprep.subr.mxu0 0.0
    %4286 = vmatpush1.msra.mxu0 0.0
    %4287 = vmatprep.subr.mxu0 0.0
    %4288 = vmatpush1.msra.mxu0 0.0
    %4289 = vmatprep.subr.mxu0 0.0
    %4290 = vmatpush1.msra.mxu0 0.0
    %4291 = vmatprep.subr.mxu0 0.0
    %4292 = vmatpush1.msra.mxu0 0.0
    %4293 = vmatprep.subr.mxu0 0.0
    %4294 = vmatpush1.msra.mxu0 0.0
    %4295 = vmatprep.subr.mxu0 0.0
    %4296 = vmatpush1.msra.mxu0 0.0
    %4297 = vmatprep.subr.mxu0 0.0
    %4298 = vmatpush1.msra.mxu0 0.0
    %4299 = vmatprep.subr.mxu0 0.0
    %4300 = vmatpush1.msra.mxu0 0.0
    %4301 = vmatprep.subr.mxu0 0.0
    %4302 = vmatpush1.msra.mxu0 0.0
    %4303 = vmatprep.subr.mxu0 0.0
    %4304 = vmatpush1.msra.mxu0 0.0
    %4305 = vmatprep.subr.mxu0 0.0
    %4306 = vmatpush1.msra.mxu0 0.0
    %4307 = vmatprep.subr.mxu0 0.0
    %4308 = vmatpush1.msra.mxu0 0.0
    %4309 = vmatprep.subr.mxu0 0.0
    %4310 = vmatpush1.msra.mxu0 0.0
    %4311 = vmatprep.subr.mxu0 0.0
    %4312 = vmatpush1.msra.mxu0 0.0
    %4313 = vmatprep.mubr.f32.mxu0 0.0
    %4314 = vmatmul.mubr.f32.gmra.mrb[0].mxu0 %v4174
    %v4315 = vpop.f32.mrb[0].mxu0
    %v4316 = vadd.f32 0.0, %v4315
    %v4317 = vpop.f32.mrb[0].mxu0
    %4318 = vdwg.mxu0
    %v4319 = vadd.f32 %v4175, %v4245
    %v4320 = vadd.f32 %v4176, %v4247
    %v4321 = vxor.u32 %v4319, 2147483648
    %v4322 = vxor.u32 %v4320, 2147483648
    %v4323 = vmul.f32 %v4321, 1.442695
    %v4324 = vpow.pop %v4323
    %v4325 = vmul.f32 %v4322, 1.442695
    %v4326 = vpow.pop %v4325
    %v4327 = vadd.f32 %v4324, 1.0
    %v4328 = vadd.f32 %v4326, 1.0
    %v4329 = vrcp.pop %v4327
    %v4330 = vmul.f32 1.0, %v4329
    %v4331 = vrcp.pop %v4328
    %v4332 = vmul.f32 1.0, %v4331
    %v4333 = vadd.f32 %v4316, %v3532
    %v4334 = vmul.f32 %v4330, %v4333
    %v4335 = vadd.f32 %v4177, %v4334
    %v4336 = vtanh.pop %v4335
    %v4337 = vsub.f32 1.0, %v4332
    %v4338 = vmul.f32 %v4337, %v4336
    %v4339 = vmul.f32 %v4332, %v4174
    %v4340 = vadd.f32 %v4338, %v4339
    %v4341 = vadd.f32 %v3652, %v3888
    %v4342 = vadd.f32 %v3654, %v3890
    %v4343 = vadd.f32 %v3763, %v3996
    %4344 = vmatprep.subr.mxu0 %v3483
    %4345 = vmatpush1.msra.mxu0 %v3482
    %4346 = vmatprep.subr.mxu0 %v3486
    %4347 = vmatpush1.msra.mxu0 %v3485
    %4348 = vmatprep.subr.mxu0 %v3489
    %4349 = vmatpush1.msra.mxu0 %v3488
    %4350 = vmatprep.subr.mxu0 %v3492
    %4351 = vmatpush1.msra.mxu0 %v3491
    %4352 = vmatprep.subr.mxu0 %v3495
    %4353 = vmatpush1.msra.mxu0 %v3494
    %4354 = vmatprep.subr.mxu0 %v3498
    %4355 = vmatpush1.msra.mxu0 %v3497
    %4356 = vmatprep.subr.mxu0 %v3501
    %4357 = vmatpush1.msra.mxu0 %v3500
    %4358 = vmatprep.subr.mxu0 %v3504
    %4359 = vmatpush1.msra.mxu0 %v3503
    %4360 = vmatprep.subr.mxu0 %v3507
    %4361 = vmatpush1.msra.mxu0 %v3506
    %4362 = vmatprep.subr.mxu0 %v3510
    %4363 = vmatpush1.msra.mxu0 %v3509
    %4364 = vmatprep.subr.mxu0 %v3513
    %4365 = vmatpush1.msra.mxu0 %v3512
    %4366 = vmatprep.subr.mxu0 %v3516
    %4367 = vmatpush1.msra.mxu0 %v3515
    %4368 = vmatprep.subr.mxu0 %v3519
    %4369 = vmatpush1.msra.mxu0 %v3518
    %4370 = vmatprep.subr.mxu0 %v3522
    %4371 = vmatpush1.msra.mxu0 %v3521
    %4372 = vmatprep.subr.mxu0 %v3525
    %4373 = vmatpush1.msra.mxu0 %v3524
    %4374 = vmatprep.subr.mxu0 %v3528
    %4375 = vmatpush1.msra.mxu0 %v3527
    %4376 = vmatprep.subr.mxu0 0.0
    %4377 = vmatpush1.msra.mxu0 0.0
    %4378 = vmatprep.subr.mxu0 0.0
    %4379 = vmatpush1.msra.mxu0 0.0
    %4380 = vmatprep.subr.mxu0 0.0
    %4381 = vmatpush1.msra.mxu0 0.0
    %4382 = vmatprep.subr.mxu0 0.0
    %4383 = vmatpush1.msra.mxu0 0.0
    %4384 = vmatprep.subr.mxu0 0.0
    %4385 = vmatpush1.msra.mxu0 0.0
    %4386 = vmatprep.subr.mxu0 0.0
    %4387 = vmatpush1.msra.mxu0 0.0
    %4388 = vmatprep.subr.mxu0 0.0
    %4389 = vmatpush1.msra.mxu0 0.0
    %4390 = vmatprep.subr.mxu0 0.0
    %4391 = vmatpush1.msra.mxu0 0.0
    %4392 = vmatprep.subr.mxu0 0.0
    %4393 = vmatpush1.msra.mxu0 0.0
    %4394 = vmatprep.subr.mxu0 0.0
    %4395 = vmatpush1.msra.mxu0 0.0
    %4396 = vmatprep.subr.mxu0 0.0
    %4397 = vmatpush1.msra.mxu0 0.0
    %4398 = vmatprep.subr.mxu0 0.0
    %4399 = vmatpush1.msra.mxu0 0.0
    %4400 = vmatprep.subr.mxu0 0.0
    %4401 = vmatpush1.msra.mxu0 0.0
    %4402 = vmatprep.subr.mxu0 0.0
    %4403 = vmatpush1.msra.mxu0 0.0
    %4404 = vmatprep.subr.mxu0 0.0
    %4405 = vmatpush1.msra.mxu0 0.0
    %4406 = vmatprep.subr.mxu0 0.0
    %4407 = vmatpush1.msra.mxu0 0.0
    %4408 = vmatprep.mubr.f32.mxu0 0.0
    %4409 = vmatmul.mubr.f32.gmra.mrb[0].mxu0 %v4340
    %v4410 = vpop.f32.mrb[0].mxu0
    %v4411 = vadd.f32 0.0, %v4410
    %v4412 = vpop.f32.mrb[0].mxu0
    %v4413 = vadd.f32 0.0, %v4412
    %4414 = vdwg.mxu0
    %4415 = vmatprep.subr.mxu0 0.0
    %4416 = vmatpush1.msra.mxu0 %v3484
    %4417 = vmatprep.subr.mxu0 0.0
    %4418 = vmatpush1.msra.mxu0 %v3487
    %4419 = vmatprep.subr.mxu0 0.0
    %4420 = vmatpush1.msra.mxu0 %v3490
    %4421 = vmatprep.subr.mxu0 0.0
    %4422 = vmatpush1.msra.mxu0 %v3493
    %4423 = vmatprep.subr.mxu0 0.0
    %4424 = vmatpush1.msra.mxu0 %v3496
    %4425 = vmatprep.subr.mxu0 0.0
    %4426 = vmatpush1.msra.mxu0 %v3499
    %4427 = vmatprep.subr.mxu0 0.0
    %4428 = vmatpush1.msra.mxu0 %v3502
    %4429 = vmatprep.subr.mxu0 0.0
    %4430 = vmatpush1.msra.mxu0 %v3505
    %4431 = vmatprep.subr.mxu0 0.0
    %4432 = vmatpush1.msra.mxu0 %v3508
    %4433 = vmatprep.subr.mxu0 0.0
    %4434 = vmatpush1.msra.mxu0 %v3511
    %4435 = vmatprep.subr.mxu0 0.0
    %4436 = vmatpush1.msra.mxu0 %v3514
    %4437 = vmatprep.subr.mxu0 0.0
    %4438 = vmatpush1.msra.mxu0 %v3517
    %4439 = vmatprep.subr.mxu0 0.0
    %4440 = vmatpush1.msra.mxu0 %v3520
    %4441 = vmatprep.subr.mxu0 0.0
    %4442 = vmatpush1.msra.mxu0 %v3523
    %4443 = vmatprep.subr.mxu0 0.0
    %4444 = vmatpush1.msra.mxu0 %v3526
    %4445 = vmatprep.subr.mxu0 0.0
    %4446 = vmatpush1.msra.mxu0 %v3529
    %4447 = vmatprep.subr.mxu0 0.0
    %4448 = vmatpush1.msra.mxu0 0.0
    %4449 = vmatprep.subr.mxu0 0.0
    %4450 = vmatpush1.msra.mxu0 0.0
    %4451 = vmatprep.subr.mxu0 0.0
    %4452 = vmatpush1.msra.mxu0 0.0
    %4453 = vmatprep.subr.mxu0 0.0
    %4454 = vmatpush1.msra.mxu0 0.0
    %4455 = vmatprep.subr.mxu0 0.0
    %4456 = vmatpush1.msra.mxu0 0.0
    %4457 = vmatprep.subr.mxu0 0.0
    %4458 = vmatpush1.msra.mxu0 0.0
    %4459 = vmatprep.subr.mxu0 0.0
    %4460 = vmatpush1.msra.mxu0 0.0
    %4461 = vmatprep.subr.mxu0 0.0
    %4462 = vmatpush1.msra.mxu0 0.0
    %4463 = vmatprep.subr.mxu0 0.0
    %4464 = vmatpush1.msra.mxu0 0.0
    %4465 = vmatprep.subr.mxu0 0.0
    %4466 = vmatpush1.msra.mxu0 0.0
    %4467 = vmatprep.subr.mxu0 0.0
    %4468 = vmatpush1.msra.mxu0 0.0
    %4469 = vmatprep.subr.mxu0 0.0
    %4470 = vmatpush1.msra.mxu0 0.0
    %4471 = vmatprep.subr.mxu0 0.0
    %4472 = vmatpush1.msra.mxu0 0.0
    %4473 = vmatprep.subr.mxu0 0.0
    %4474 = vmatpush1.msra.mxu0 0.0
    %4475 = vmatprep.subr.mxu0 0.0
    %4476 = vmatpush1.msra.mxu0 0.0
    %4477 = vmatprep.subr.mxu0 0.0
    %4478 = vmatpush1.msra.mxu0 0.0
    %4479 = vmatprep.mubr.f32.mxu0 0.0
    %4480 = vmatmul.mubr.f32.gmra.mrb[0].mxu0 %v4340
    %v4481 = vpop.f32.mrb[0].mxu0
    %v4482 = vadd.f32 0.0, %v4481
    %v4483 = vpop.f32.mrb[0].mxu0
    %4484 = vdwg.mxu0
    %v4485 = vadd.f32 %v4341, %v4411
    %v4486 = vadd.f32 %v4342, %v4413
    %v4487 = vxor.u32 %v4485, 2147483648
    %v4488 = vxor.u32 %v4486, 2147483648
    %v4489 = vmul.f32 %v4487, 1.442695
    %v4490 = vpow.pop %v4489
    %v4491 = vmul.f32 %v4488, 1.442695
    %v4492 = vpow.pop %v4491
    %v4493 = vadd.f32 %v4490, 1.0
    %v4494 = vadd.f32 %v4492, 1.0
    %v4495 = vrcp.pop %v4493
    %v4496 = vmul.f32 1.0, %v4495
    %v4497 = vrcp.pop %v4494
    %v4498 = vmul.f32 1.0, %v4497
    %v4499 = vadd.f32 %v4482, %v3532
    %v4500 = vmul.f32 %v4496, %v4499
    %v4501 = vadd.f32 %v4343, %v4500
    %v4502 = vtanh.pop %v4501
    %v4503 = vsub.f32 1.0, %v4498
    %v4504 = vmul.f32 %v4503, %v4502
    %v4505 = vmul.f32 %v4498, %v4340
    %v4506 = vadd.f32 %v4504, %v4505
    %v4507 = vadd.f32 %v3658, %v3882
    %v4508 = vadd.f32 %v3660, %v3884
    %v4509 = vadd.f32 %v3768, %v3991
    %4510 = vmatprep.subr.mxu0 %v3483
    %4511 = vmatpush1.msra.mxu0 %v3482
    %4512 = vmatprep.subr.mxu0 %v3486
    %4513 = vmatpush1.msra.mxu0 %v3485
    %4514 = vmatprep.subr.mxu0 %v3489
    %4515 = vmatpush1.msra.mxu0 %v3488
    %4516 = vmatprep.subr.mxu0 %v3492
    %4517 = vmatpush1.msra.mxu0 %v3491
    %4518 = vmatprep.subr.mxu0 %v3495
    %4519 = vmatpush1.msra.mxu0 %v3494
    %4520 = vmatprep.subr.mxu0 %v3498
    %4521 = vmatpush1.msra.mxu0 %v3497
    %4522 = vmatprep.subr.mxu0 %v3501
    %4523 = vmatpush1.msra.mxu0 %v3500
    %4524 = vmatprep.subr.mxu0 %v3504
    %4525 = vmatpush1.msra.mxu0 %v3503
    %4526 = vmatprep.subr.mxu0 %v3507
    %4527 = vmatpush1.msra.mxu0 %v3506
    %4528 = vmatprep.subr.mxu0 %v3510
    %4529 = vmatpush1.msra.mxu0 %v3509
    %4530 = vmatprep.subr.mxu0 %v3513
    %4531 = vmatpush1.msra.mxu0 %v3512
    %4532 = vmatprep.subr.mxu0 %v3516
    %4533 = vmatpush1.msra.mxu0 %v3515
    %4534 = vmatprep.subr.mxu0 %v3519
    %4535 = vmatpush1.msra.mxu0 %v3518
    %4536 = vmatprep.subr.mxu0 %v3522
    %4537 = vmatpush1.msra.mxu0 %v3521
    %4538 = vmatprep.subr.mxu0 %v3525
    %4539 = vmatpush1.msra.mxu0 %v3524
    %4540 = vmatprep.subr.mxu0 %v3528
    %4541 = vmatpush1.msra.mxu0 %v3527
    %4542 = vmatprep.subr.mxu0 0.0
    %4543 = vmatpush1.msra.mxu0 0.0
    %4544 = vmatprep.subr.mxu0 0.0
    %4545 = vmatpush1.msra.mxu0 0.0
    %4546 = vmatprep.subr.mxu0 0.0
    %4547 = vmatpush1.msra.mxu0 0.0
    %4548 = vmatprep.subr.mxu0 0.0
    %4549 = vmatpush1.msra.mxu0 0.0
    %4550 = vmatprep.subr.mxu0 0.0
    %4551 = vmatpush1.msra.mxu0 0.0
    %4552 = vmatprep.subr.mxu0 0.0
    %4553 = vmatpush1.msra.mxu0 0.0
    %4554 = vmatprep.subr.mxu0 0.0
    %4555 = vmatpush1.msra.mxu0 0.0
    %4556 = vmatprep.subr.mxu0 0.0
    %4557 = vmatpush1.msra.mxu0 0.0
    %4558 = vmatprep.subr.mxu0 0.0
    %4559 = vmatpush1.msra.mxu0 0.0
    %4560 = vmatprep.subr.mxu0 0.0
    %4561 = vmatpush1.msra.mxu0 0.0
    %4562 = vmatprep.subr.mxu0 0.0
    %4563 = vmatpush1.msra.mxu0 0.0
    %4564 = vmatprep.subr.mxu0 0.0
    %4565 = vmatpush1.msra.mxu0 0.0
    %4566 = vmatprep.subr.mxu0 0.0
    %4567 = vmatpush1.msra.mxu0 0.0
    %4568 = vmatprep.subr.mxu0 0.0
    %4569 = vmatpush1.msra.mxu0 0.0
    %4570 = vmatprep.subr.mxu0 0.0
    %4571 = vmatpush1.msra.mxu0 0.0
    %4572 = vmatprep.subr.mxu0 0.0
    %4573 = vmatpush1.msra.mxu0 0.0
    %4574 = vmatprep.mubr.f32.mxu0 0.0
    %4575 = vmatmul.mubr.f32.gmra.mrb[0].mxu0 %v4506
    %v4576 = vpop.f32.mrb[0].mxu0
    %v4577 = vadd.f32 0.0, %v4576
    %v4578 = vpop.f32.mrb[0].mxu0
    %v4579 = vadd.f32 0.0, %v4578
    %4580 = vdwg.mxu0
    %4581 = vmatprep.subr.mxu0 0.0
    %4582 = vmatpush1.msra.mxu0 %v3484
    %4583 = vmatprep.subr.mxu0 0.0
    %4584 = vmatpush1.msra.mxu0 %v3487
    %4585 = vmatprep.subr.mxu0 0.0
    %4586 = vmatpush1.msra.mxu0 %v3490
    %4587 = vmatprep.subr.mxu0 0.0
    %4588 = vmatpush1.msra.mxu0 %v3493
    %4589 = vmatprep.subr.mxu0 0.0
    %4590 = vmatpush1.msra.mxu0 %v3496
    %4591 = vmatprep.subr.mxu0 0.0
    %4592 = vmatpush1.msra.mxu0 %v3499
    %4593 = vmatprep.subr.mxu0 0.0
    %4594 = vmatpush1.msra.mxu0 %v3502
    %4595 = vmatprep.subr.mxu0 0.0
    %4596 = vmatpush1.msra.mxu0 %v3505
    %4597 = vmatprep.subr.mxu0 0.0
    %4598 = vmatpush1.msra.mxu0 %v3508
    %4599 = vmatprep.subr.mxu0 0.0
    %4600 = vmatpush1.msra.mxu0 %v3511
    %4601 = vmatprep.subr.mxu0 0.0
    %4602 = vmatpush1.msra.mxu0 %v3514
    %4603 = vmatprep.subr.mxu0 0.0
    %4604 = vmatpush1.msra.mxu0 %v3517
    %4605 = vmatprep.subr.mxu0 0.0
    %4606 = vmatpush1.msra.mxu0 %v3520
    %4607 = vmatprep.subr.mxu0 0.0
    %4608 = vmatpush1.msra.mxu0 %v3523
    %4609 = vmatprep.subr.mxu0 0.0
    %4610 = vmatpush1.msra.mxu0 %v3526
    %4611 = vmatprep.subr.mxu0 0.0
    %4612 = vmatpush1.msra.mxu0 %v3529
    %4613 = vmatprep.subr.mxu0 0.0
    %4614 = vmatpush1.msra.mxu0 0.0
    %4615 = vmatprep.subr.mxu0 0.0
    %4616 = vmatpush1.msra.mxu0 0.0
    %4617 = vmatprep.subr.mxu0 0.0
    %4618 = vmatpush1.msra.mxu0 0.0
    %4619 = vmatprep.subr.mxu0 0.0
    %4620 = vmatpush1.msra.mxu0 0.0
    %4621 = vmatprep.subr.mxu0 0.0
    %4622 = vmatpush1.msra.mxu0 0.0
    %4623 = vmatprep.subr.mxu0 0.0
    %4624 = vmatpush1.msra.mxu0 0.0
    %4625 = vmatprep.subr.mxu0 0.0
    %4626 = vmatpush1.msra.mxu0 0.0
    %4627 = vmatprep.subr.mxu0 0.0
    %4628 = vmatpush1.msra.mxu0 0.0
    %4629 = vmatprep.subr.mxu0 0.0
    %4630 = vmatpush1.msra.mxu0 0.0
    %4631 = vmatprep.subr.mxu0 0.0
    %4632 = vmatpush1.msra.mxu0 0.0
    %4633 = vmatprep.subr.mxu0 0.0
    %4634 = vmatpush1.msra.mxu0 0.0
    %4635 = vmatprep.subr.mxu0 0.0
    %4636 = vmatpush1.msra.mxu0 0.0
    %4637 = vmatprep.subr.mxu0 0.0
    %4638 = vmatpush1.msra.mxu0 0.0
    %4639 = vmatprep.subr.mxu0 0.0
    %4640 = vmatpush1.msra.mxu0 0.0
    %4641 = vmatprep.subr.mxu0 0.0
    %4642 = vmatpush1.msra.mxu0 0.0
    %4643 = vmatprep.subr.mxu0 0.0
    %4644 = vmatpush1.msra.mxu0 0.0
    %4645 = vmatprep.mubr.f32.mxu0 0.0
    %4646 = vmatmul.mubr.f32.gmra.mrb[0].mxu0 %v4506
    %v4647 = vpop.f32.mrb[0].mxu0
    %v4648 = vadd.f32 0.0, %v4647
    %v4649 = vpop.f32.mrb[0].mxu0
    %4650 = vdwg.mxu0
    %v4651 = vadd.f32 %v4507, %v4577
    %v4652 = vadd.f32 %v4508, %v4579
    %v4653 = vxor.u32 %v4651, 2147483648
    %v4654 = vxor.u32 %v4652, 2147483648
    %v4655 = vmul.f32 %v4653, 1.442695
    %v4656 = vpow.pop %v4655
    %v4657 = vmul.f32 %v4654, 1.442695
    %v4658 = vpow.pop %v4657
    %v4659 = vadd.f32 %v4656, 1.0
    %v4660 = vadd.f32 %v4658, 1.0
    %v4661 = vrcp.pop %v4659
    %v4662 = vmul.f32 1.0, %v4661
    %v4663 = vrcp.pop %v4660
    %v4664 = vmul.f32 1.0, %v4663
    %v4665 = vadd.f32 %v4648, %v3532
    %v4666 = vmul.f32 %v4662, %v4665
    %v4667 = vadd.f32 %v4509, %v4666
    %v4668 = vtanh.pop %v4667
    %v4669 = vsub.f32 1.0, %v4664
    %v4670 = vmul.f32 %v4669, %v4668
    %v4671 = vmul.f32 %v4664, %v4506
    %v4672 = vadd.f32 %v4670, %v4671
    %v4673 = vadd.f32 %v3664, %v3876
    %v4674 = vadd.f32 %v3666, %v3878
    %v4675 = vadd.f32 %v3773, %v3986
    %4676 = vmatprep.subr.mxu0 %v3483
    %4677 = vmatpush1.msra.mxu0 %v3482
    %4678 = vmatprep.subr.mxu0 %v3486
    %4679 = vmatpush1.msra.mxu0 %v3485
    %4680 = vmatprep.subr.mxu0 %v3489
    %4681 = vmatpush1.msra.mxu0 %v3488
    %4682 = vmatprep.subr.mxu0 %v3492
    %4683 = vmatpush1.msra.mxu0 %v3491
    %4684 = vmatprep.subr.mxu0 %v3495
    %4685 = vmatpush1.msra.mxu0 %v3494
    %4686 = vmatprep.subr.mxu0 %v3498
    %4687 = vmatpush1.msra.mxu0 %v3497
    %4688 = vmatprep.subr.mxu0 %v3501
    %4689 = vmatpush1.msra.mxu0 %v3500
    %4690 = vmatprep.subr.mxu0 %v3504
    %4691 = vmatpush1.msra.mxu0 %v3503
    %4692 = vmatprep.subr.mxu0 %v3507
    %4693 = vmatpush1.msra.mxu0 %v3506
    %4694 = vmatprep.subr.mxu0 %v3510
    %4695 = vmatpush1.msra.mxu0 %v3509
    %4696 = vmatprep.subr.mxu0 %v3513
    %4697 = vmatpush1.msra.mxu0 %v3512
    %4698 = vmatprep.subr.mxu0 %v3516
    %4699 = vmatpush1.msra.mxu0 %v3515
    %4700 = vmatprep.subr.mxu0 %v3519
    %4701 = vmatpush1.msra.mxu0 %v3518
    %4702 = vmatprep.subr.mxu0 %v3522
    %4703 = vmatpush1.msra.mxu0 %v3521
    %4704 = vmatprep.subr.mxu0 %v3525
    %4705 = vmatpush1.msra.mxu0 %v3524
    %4706 = vmatprep.subr.mxu0 %v3528
    %4707 = vmatpush1.msra.mxu0 %v3527
    %4708 = vmatprep.subr.mxu0 0.0
    %4709 = vmatpush1.msra.mxu0 0.0
    %4710 = vmatprep.subr.mxu0 0.0
    %4711 = vmatpush1.msra.mxu0 0.0
    %4712 = vmatprep.subr.mxu0 0.0
    %4713 = vmatpush1.msra.mxu0 0.0
    %4714 = vmatprep.subr.mxu0 0.0
    %4715 = vmatpush1.msra.mxu0 0.0
    %4716 = vmatprep.subr.mxu0 0.0
    %4717 = vmatpush1.msra.mxu0 0.0
    %4718 = vmatprep.subr.mxu0 0.0
    %4719 = vmatpush1.msra.mxu0 0.0
    %4720 = vmatprep.subr.mxu0 0.0
    %4721 = vmatpush1.msra.mxu0 0.0
    %4722 = vmatprep.subr.mxu0 0.0
    %4723 = vmatpush1.msra.mxu0 0.0
    %4724 = vmatprep.subr.mxu0 0.0
    %4725 = vmatpush1.msra.mxu0 0.0
    %4726 = vmatprep.subr.mxu0 0.0
    %4727 = vmatpush1.msra.mxu0 0.0
    %4728 = vmatprep.subr.mxu0 0.0
    %4729 = vmatpush1.msra.mxu0 0.0
    %4730 = vmatprep.subr.mxu0 0.0
    %4731 = vmatpush1.msra.mxu0 0.0
    %4732 = vmatprep.subr.mxu0 0.0
    %4733 = vmatpush1.msra.mxu0 0.0
    %4734 = vmatprep.subr.mxu0 0.0
    %4735 = vmatpush1.msra.mxu0 0.0
    %4736 = vmatprep.subr.mxu0 0.0
    %4737 = vmatpush1.msra.mxu0 0.0
    %4738 = vmatprep.subr.mxu0 0.0
    %4739 = vmatpush1.msra.mxu0 0.0
    %4740 = vmatprep.mubr.f32.mxu0 0.0
    %4741 = vmatmul.mubr.f32.gmra.mrb[0].mxu0 %v4672
    %v4742 = vpop.f32.mrb[0].mxu0
    %v4743 = vadd.f32 0.0, %v4742
    %v4744 = vpop.f32.mrb[0].mxu0
    %v4745 = vadd.f32 0.0, %v4744
    %4746 = vdwg.mxu0
    %4747 = vmatprep.subr.mxu0 0.0
    %4748 = vmatpush1.msra.mxu0 %v3484
    %4749 = vmatprep.subr.mxu0 0.0
    %4750 = vmatpush1.msra.mxu0 %v3487
    %4751 = vmatprep.subr.mxu0 0.0
    %4752 = vmatpush1.msra.mxu0 %v3490
    %4753 = vmatprep.subr.mxu0 0.0
    %4754 = vmatpush1.msra.mxu0 %v3493
    %4755 = vmatprep.subr.mxu0 0.0
    %4756 = vmatpush1.msra.mxu0 %v3496
    %4757 = vmatprep.subr.mxu0 0.0
    %4758 = vmatpush1.msra.mxu0 %v3499
    %4759 = vmatprep.subr.mxu0 0.0
    %4760 = vmatpush1.msra.mxu0 %v3502
    %4761 = vmatprep.subr.mxu0 0.0
    %4762 = vmatpush1.msra.mxu0 %v3505
    %4763 = vmatprep.subr.mxu0 0.0
    %4764 = vmatpush1.msra.mxu0 %v3508
    %4765 = vmatprep.subr.mxu0 0.0
    %4766 = vmatpush1.msra.mxu0 %v3511
    %4767 = vmatprep.subr.mxu0 0.0
    %4768 = vmatpush1.msra.mxu0 %v3514
    %4769 = vmatprep.subr.mxu0 0.0
    %4770 = vmatpush1.msra.mxu0 %v3517
    %4771 = vmatprep.subr.mxu0 0.0
    %4772 = vmatpush1.msra.mxu0 %v3520
    %4773 = vmatprep.subr.mxu0 0.0
    %4774 = vmatpush1.msra.mxu0 %v3523
    %4775 = vmatprep.subr.mxu0 0.0
    %4776 = vmatpush1.msra.mxu0 %v3526
    %4777 = vmatprep.subr.mxu0 0.0
    %4778 = vmatpush1.msra.mxu0 %v3529
    %4779 = vmatprep.subr.mxu0 0.0
    %4780 = vmatpush1.msra.mxu0 0.0
    %4781 = vmatprep.subr.mxu0 0.0
    %4782 = vmatpush1.msra.mxu0 0.0
    %4783 = vmatprep.subr.mxu0 0.0
    %4784 = vmatpush1.msra.mxu0 0.0
    %4785 = vmatprep.subr.mxu0 0.0
    %4786 = vmatpush1.msra.mxu0 0.0
    %4787 = vmatprep.subr.mxu0 0.0
    %4788 = vmatpush1.msra.mxu0 0.0
    %4789 = vmatprep.subr.mxu0 0.0
    %4790 = vmatpush1.msra.mxu0 0.0
    %4791 = vmatprep.subr.mxu0 0.0
    %4792 = vmatpush1.msra.mxu0 0.0
    %4793 = vmatprep.subr.mxu0 0.0
    %4794 = vmatpush1.msra.mxu0 0.0
    %4795 = vmatprep.subr.mxu0 0.0
    %4796 = vmatpush1.msra.mxu0 0.0
    %4797 = vmatprep.subr.mxu0 0.0
    %4798 = vmatpush1.msra.mxu0 0.0
    %4799 = vmatprep.subr.mxu0 0.0
    %4800 = vmatpush1.msra.mxu0 0.0
    %4801 = vmatprep.subr.mxu0 0.0
    %4802 = vmatpush1.msra.mxu0 0.0
    %4803 = vmatprep.subr.mxu0 0.0
    %4804 = vmatpush1.msra.mxu0 0.0
    %4805 = vmatprep.subr.mxu0 0.0
    %4806 = vmatpush1.msra.mxu0 0.0
    %4807 = vmatprep.subr.mxu0 0.0
    %4808 = vmatpush1.msra.mxu0 0.0
    %4809 = vmatprep.subr.mxu0 0.0
    %4810 = vmatpush1.msra.mxu0 0.0
    %4811 = vmatprep.mubr.f32.mxu0 0.0
    %4812 = vmatmul.mubr.f32.gmra.mrb[0].mxu0 %v4672
    %v4813 = vpop.f32.mrb[0].mxu0
    %v4814 = vadd.f32 0.0, %v4813
    %v4815 = vpop.f32.mrb[0].mxu0
    %4816 = vdwg.mxu0
    %v4817 = vadd.f32 %v4673, %v4743
    %v4818 = vadd.f32 %v4674, %v4745
    %v4819 = vxor.u32 %v4817, 2147483648
    %v4820 = vxor.u32 %v4818, 2147483648
    %v4821 = vmul.f32 %v4819, 1.442695
    %v4822 = vpow.pop %v4821
    %v4823 = vmul.f32 %v4820, 1.442695
    %v4824 = vpow.pop %v4823
    %v4825 = vadd.f32 %v4822, 1.0
    %v4826 = vadd.f32 %v4824, 1.0
    %v4827 = vrcp.pop %v4825
    %v4828 = vmul.f32 1.0, %v4827
    %v4829 = vrcp.pop %v4826
    %v4830 = vmul.f32 1.0, %v4829
    %v4831 = vadd.f32 %v4814, %v3532
    %v4832 = vmul.f32 %v4828, %v4831
    %v4833 = vadd.f32 %v4675, %v4832
    %v4834 = vtanh.pop %v4833
    %v4835 = vsub.f32 1.0, %v4830
    %v4836 = vmul.f32 %v4835, %v4834
    %v4837 = vmul.f32 %v4830, %v4672
    %v4838 = vadd.f32 %v4836, %v4837
    %v4839 = vadd.f32 %v3670, %v3870
    %v4840 = vadd.f32 %v3672, %v3872
    %v4841 = vadd.f32 %v3778, %v3981
    %4842 = vmatprep.subr.mxu0 %v3483
    %4843 = vmatpush1.msra.mxu0 %v3482
    %4844 = vmatprep.subr.mxu0 %v3486
    %4845 = vmatpush1.msra.mxu0 %v3485
    %4846 = vmatprep.subr.mxu0 %v3489
    %4847 = vmatpush1.msra.mxu0 %v3488
    %4848 = vmatprep.subr.mxu0 %v3492
    %4849 = vmatpush1.msra.mxu0 %v3491
    %4850 = vmatprep.subr.mxu0 %v3495
    %4851 = vmatpush1.msra.mxu0 %v3494
    %4852 = vmatprep.subr.mxu0 %v3498
    %4853 = vmatpush1.msra.mxu0 %v3497
    %4854 = vmatprep.subr.mxu0 %v3501
    %4855 = vmatpush1.msra.mxu0 %v3500
    %4856 = vmatprep.subr.mxu0 %v3504
    %4857 = vmatpush1.msra.mxu0 %v3503
    %4858 = vmatprep.subr.mxu0 %v3507
    %4859 = vmatpush1.msra.mxu0 %v3506
    %4860 = vmatprep.subr.mxu0 %v3510
    %4861 = vmatpush1.msra.mxu0 %v3509
    %4862 = vmatprep.subr.mxu0 %v3513
    %4863 = vmatpush1.msra.mxu0 %v3512
    %4864 = vmatprep.subr.mxu0 %v3516
    %4865 = vmatpush1.msra.mxu0 %v3515
    %4866 = vmatprep.subr.mxu0 %v3519
    %4867 = vmatpush1.msra.mxu0 %v3518
    %4868 = vmatprep.subr.mxu0 %v3522
    %4869 = vmatpush1.msra.mxu0 %v3521
    %4870 = vmatprep.subr.mxu0 %v3525
    %4871 = vmatpush1.msra.mxu0 %v3524
    %4872 = vmatprep.subr.mxu0 %v3528
    %4873 = vmatpush1.msra.mxu0 %v3527
    %4874 = vmatprep.subr.mxu0 0.0
    %4875 = vmatpush1.msra.mxu0 0.0
    %4876 = vmatprep.subr.mxu0 0.0
    %4877 = vmatpush1.msra.mxu0 0.0
    %4878 = vmatprep.subr.mxu0 0.0
    %4879 = vmatpush1.msra.mxu0 0.0
    %4880 = vmatprep.subr.mxu0 0.0
    %4881 = vmatpush1.msra.mxu0 0.0
    %4882 = vmatprep.subr.mxu0 0.0
    %4883 = vmatpush1.msra.mxu0 0.0
    %4884 = vmatprep.subr.mxu0 0.0
    %4885 = vmatpush1.msra.mxu0 0.0
    %4886 = vmatprep.subr.mxu0 0.0
    %4887 = vmatpush1.msra.mxu0 0.0
    %4888 = vmatprep.subr.mxu0 0.0
    %4889 = vmatpush1.msra.mxu0 0.0
    %4890 = vmatprep.subr.mxu0 0.0
    %4891 = vmatpush1.msra.mxu0 0.0
    %4892 = vmatprep.subr.mxu0 0.0
    %4893 = vmatpush1.msra.mxu0 0.0
    %4894 = vmatprep.subr.mxu0 0.0
    %4895 = vmatpush1.msra.mxu0 0.0
    %4896 = vmatprep.subr.mxu0 0.0
    %4897 = vmatpush1.msra.mxu0 0.0
    %4898 = vmatprep.subr.mxu0 0.0
    %4899 = vmatpush1.msra.mxu0 0.0
    %4900 = vmatprep.subr.mxu0 0.0
    %4901 = vmatpush1.msra.mxu0 0.0
    %4902 = vmatprep.subr.mxu0 0.0
    %4903 = vmatpush1.msra.mxu0 0.0
    %4904 = vmatprep.subr.mxu0 0.0
    %4905 = vmatpush1.msra.mxu0 0.0
    %4906 = vmatprep.mubr.f32.mxu0 0.0
    %4907 = vmatmul.mubr.f32.gmra.mrb[0].mxu0 %v4838
    %v4908 = vpop.f32.mrb[0].mxu0
    %v4909 = vadd.f32 0.0, %v4908
    %v4910 = vpop.f32.mrb[0].mxu0
    %v4911 = vadd.f32 0.0, %v4910
    %4912 = vdwg.mxu0
    %4913 = vmatprep.subr.mxu0 0.0
    %4914 = vmatpush1.msra.mxu0 %v3484
    %4915 = vmatprep.subr.mxu0 0.0
    %4916 = vmatpush1.msra.mxu0 %v3487
    %4917 = vmatprep.subr.mxu0 0.0
    %4918 = vmatpush1.msra.mxu0 %v3490
    %4919 = vmatprep.subr.mxu0 0.0
    %4920 = vmatpush1.msra.mxu0 %v3493
    %4921 = vmatprep.subr.mxu0 0.0
    %4922 = vmatpush1.msra.mxu0 %v3496
    %4923 = vmatprep.subr.mxu0 0.0
    %4924 = vmatpush1.msra.mxu0 %v3499
    %4925 = vmatprep.subr.mxu0 0.0
    %4926 = vmatpush1.msra.mxu0 %v3502
    %4927 = vmatprep.subr.mxu0 0.0
    %4928 = vmatpush1.msra.mxu0 %v3505
    %4929 = vmatprep.subr.mxu0 0.0
    %4930 = vmatpush1.msra.mxu0 %v3508
    %4931 = vmatprep.subr.mxu0 0.0
    %4932 = vmatpush1.msra.mxu0 %v3511
    %4933 = vmatprep.subr.mxu0 0.0
    %4934 = vmatpush1.msra.mxu0 %v3514
    %4935 = vmatprep.subr.mxu0 0.0
    %4936 = vmatpush1.msra.mxu0 %v3517
    %4937 = vmatprep.subr.mxu0 0.0
    %4938 = vmatpush1.msra.mxu0 %v3520
    %4939 = vmatprep.subr.mxu0 0.0
    %4940 = vmatpush1.msra.mxu0 %v3523
    %4941 = vmatprep.subr.mxu0 0.0
    %4942 = vmatpush1.msra.mxu0 %v3526
    %4943 = vmatprep.subr.mxu0 0.0
    %4944 = vmatpush1.msra.mxu0 %v3529
    %4945 = vmatprep.subr.mxu0 0.0
    %4946 = vmatpush1.msra.mxu0 0.0
    %4947 = vmatprep.subr.mxu0 0.0
    %4948 = vmatpush1.msra.mxu0 0.0
    %4949 = vmatprep.subr.mxu0 0.0
    %4950 = vmatpush1.msra.mxu0 0.0
    %4951 = vmatprep.subr.mxu0 0.0
    %4952 = vmatpush1.msra.mxu0 0.0
    %4953 = vmatprep.subr.mxu0 0.0
    %4954 = vmatpush1.msra.mxu0 0.0
    %4955 = vmatprep.subr.mxu0 0.0
    %4956 = vmatpush1.msra.mxu0 0.0
    %4957 = vmatprep.subr.mxu0 0.0
    %4958 = vmatpush1.msra.mxu0 0.0
    %4959 = vmatprep.subr.mxu0 0.0
    %4960 = vmatpush1.msra.mxu0 0.0
    %4961 = vmatprep.subr.mxu0 0.0
    %4962 = vmatpush1.msra.mxu0 0.0
    %4963 = vmatprep.subr.mxu0 0.0
    %4964 = vmatpush1.msra.mxu0 0.0
    %4965 = vmatprep.subr.mxu0 0.0
    %4966 = vmatpush1.msra.mxu0 0.0
    %4967 = vmatprep.subr.mxu0 0.0
    %4968 = vmatpush1.msra.mxu0 0.0
    %4969 = vmatprep.subr.mxu0 0.0
    %4970 = vmatpush1.msra.mxu0 0.0
    %4971 = vmatprep.subr.mxu0 0.0
    %4972 = vmatpush1.msra.mxu0 0.0
    %4973 = vmatprep.subr.mxu0 0.0
    %4974 = vmatpush1.msra.mxu0 0.0
    %4975 = vmatprep.subr.mxu0 0.0
    %4976 = vmatpush1.msra.mxu0 0.0
    %4977 = vmatprep.mubr.f32.mxu0 0.0
    %4978 = vmatmul.mubr.f32.gmra.mrb[0].mxu0 %v4838
    %v4979 = vpop.f32.mrb[0].mxu0
    %v4980 = vadd.f32 0.0, %v4979
    %v4981 = vpop.f32.mrb[0].mxu0
    %4982 = vdwg.mxu0
    %v4983 = vadd.f32 %v4839, %v4909
    %v4984 = vadd.f32 %v4840, %v4911
    %v4985 = vxor.u32 %v4983, 2147483648
    %v4986 = vxor.u32 %v4984, 2147483648
    %v4987 = vmul.f32 %v4985, 1.442695
    %v4988 = vpow.pop %v4987
    %v4989 = vmul.f32 %v4986, 1.442695
    %v4990 = vpow.pop %v4989
    %v4991 = vadd.f32 %v4988, 1.0
    %v4992 = vadd.f32 %v4990, 1.0
    %v4993 = vrcp.pop %v4991
    %v4994 = vmul.f32 1.0, %v4993
    %v4995 = vrcp.pop %v4992
    %v4996 = vmul.f32 1.0, %v4995
    %v4997 = vadd.f32 %v4980, %v3532
    %v4998 = vmul.f32 %v4994, %v4997
    %v4999 = vadd.f32 %v4841, %v4998
    %v5000 = vtanh.pop %v4999
    %v5001 = vsub.f32 1.0, %v4996
    %v5002 = vmul.f32 %v5001, %v5000
    %v5003 = vmul.f32 %v4996, %v4838
    %v5004 = vadd.f32 %v5002, %v5003
    %v5005 = vadd.f32 %v3676, %v3864
    %v5006 = vadd.f32 %v3678, %v3866
    %v5007 = vadd.f32 %v3783, %v3976
    %5008 = vmatprep.subr.mxu0 %v3483
    %5009 = vmatpush1.msra.mxu0 %v3482
    %5010 = vmatprep.subr.mxu0 %v3486
    %5011 = vmatpush1.msra.mxu0 %v3485
    %5012 = vmatprep.subr.mxu0 %v3489
    %5013 = vmatpush1.msra.mxu0 %v3488
    %5014 = vmatprep.subr.mxu0 %v3492
    %5015 = vmatpush1.msra.mxu0 %v3491
    %5016 = vmatprep.subr.mxu0 %v3495
    %5017 = vmatpush1.msra.mxu0 %v3494
    %5018 = vmatprep.subr.mxu0 %v3498
    %5019 = vmatpush1.msra.mxu0 %v3497
    %5020 = vmatprep.subr.mxu0 %v3501
    %5021 = vmatpush1.msra.mxu0 %v3500
    %5022 = vmatprep.subr.mxu0 %v3504
    %5023 = vmatpush1.msra.mxu0 %v3503
    %5024 = vmatprep.subr.mxu0 %v3507
    %5025 = vmatpush1.msra.mxu0 %v3506
    %5026 = vmatprep.subr.mxu0 %v3510
    %5027 = vmatpush1.msra.mxu0 %v3509
    %5028 = vmatprep.subr.mxu0 %v3513
    %5029 = vmatpush1.msra.mxu0 %v3512
    %5030 = vmatprep.subr.mxu0 %v3516
    %5031 = vmatpush1.msra.mxu0 %v3515
    %5032 = vmatprep.subr.mxu0 %v3519
    %5033 = vmatpush1.msra.mxu0 %v3518
    %5034 = vmatprep.subr.mxu0 %v3522
    %5035 = vmatpush1.msra.mxu0 %v3521
    %5036 = vmatprep.subr.mxu0 %v3525
    %5037 = vmatpush1.msra.mxu0 %v3524
    %5038 = vmatprep.subr.mxu0 %v3528
    %5039 = vmatpush1.msra.mxu0 %v3527
    %5040 = vmatprep.subr.mxu0 0.0
    %5041 = vmatpush1.msra.mxu0 0.0
    %5042 = vmatprep.subr.mxu0 0.0
    %5043 = vmatpush1.msra.mxu0 0.0
    %5044 = vmatprep.subr.mxu0 0.0
    %5045 = vmatpush1.msra.mxu0 0.0
    %5046 = vmatprep.subr.mxu0 0.0
    %5047 = vmatpush1.msra.mxu0 0.0
    %5048 = vmatprep.subr.mxu0 0.0
    %5049 = vmatpush1.msra.mxu0 0.0
    %5050 = vmatprep.subr.mxu0 0.0
    %5051 = vmatpush1.msra.mxu0 0.0
    %5052 = vmatprep.subr.mxu0 0.0
    %5053 = vmatpush1.msra.mxu0 0.0
    %5054 = vmatprep.subr.mxu0 0.0
    %5055 = vmatpush1.msra.mxu0 0.0
    %5056 = vmatprep.subr.mxu0 0.0
    %5057 = vmatpush1.msra.mxu0 0.0
    %5058 = vmatprep.subr.mxu0 0.0
    %5059 = vmatpush1.msra.mxu0 0.0
    %5060 = vmatprep.subr.mxu0 0.0
    %5061 = vmatpush1.msra.mxu0 0.0
    %5062 = vmatprep.subr.mxu0 0.0
    %5063 = vmatpush1.msra.mxu0 0.0
    %5064 = vmatprep.subr.mxu0 0.0
    %5065 = vmatpush1.msra.mxu0 0.0
    %5066 = vmatprep.subr.mxu0 0.0
    %5067 = vmatpush1.msra.mxu0 0.0
    %5068 = vmatprep.subr.mxu0 0.0
    %5069 = vmatpush1.msra.mxu0 0.0
    %5070 = vmatprep.subr.mxu0 0.0
    %5071 = vmatpush1.msra.mxu0 0.0
    %5072 = vmatprep.mubr.f32.mxu0 0.0
    %5073 = vmatmul.mubr.f32.gmra.mrb[0].mxu0 %v5004
    %v5074 = vpop.f32.mrb[0].mxu0
    %v5075 = vadd.f32 0.0, %v5074
    %v5076 = vpop.f32.mrb[0].mxu0
    %v5077 = vadd.f32 0.0, %v5076
    %5078 = vdwg.mxu0
    %5079 = vmatprep.subr.mxu0 0.0
    %5080 = vmatpush1.msra.mxu0 %v3484
    %5081 = vmatprep.subr.mxu0 0.0
    %5082 = vmatpush1.msra.mxu0 %v3487
    %5083 = vmatprep.subr.mxu0 0.0
    %5084 = vmatpush1.msra.mxu0 %v3490
    %5085 = vmatprep.subr.mxu0 0.0
    %5086 = vmatpush1.msra.mxu0 %v3493
    %5087 = vmatprep.subr.mxu0 0.0
    %5088 = vmatpush1.msra.mxu0 %v3496
    %5089 = vmatprep.subr.mxu0 0.0
    %5090 = vmatpush1.msra.mxu0 %v3499
    %5091 = vmatprep.subr.mxu0 0.0
    %5092 = vmatpush1.msra.mxu0 %v3502
    %5093 = vmatprep.subr.mxu0 0.0
    %5094 = vmatpush1.msra.mxu0 %v3505
    %5095 = vmatprep.subr.mxu0 0.0
    %5096 = vmatpush1.msra.mxu0 %v3508
    %5097 = vmatprep.subr.mxu0 0.0
    %5098 = vmatpush1.msra.mxu0 %v3511
    %5099 = vmatprep.subr.mxu0 0.0
    %5100 = vmatpush1.msra.mxu0 %v3514
    %5101 = vmatprep.subr.mxu0 0.0
    %5102 = vmatpush1.msra.mxu0 %v3517
    %5103 = vmatprep.subr.mxu0 0.0
    %5104 = vmatpush1.msra.mxu0 %v3520
    %5105 = vmatprep.subr.mxu0 0.0
    %5106 = vmatpush1.msra.mxu0 %v3523
    %5107 = vmatprep.subr.mxu0 0.0
    %5108 = vmatpush1.msra.mxu0 %v3526
    %5109 = vmatprep.subr.mxu0 0.0
    %5110 = vmatpush1.msra.mxu0 %v3529
    %5111 = vmatprep.subr.mxu0 0.0
    %5112 = vmatpush1.msra.mxu0 0.0
    %5113 = vmatprep.subr.mxu0 0.0
    %5114 = vmatpush1.msra.mxu0 0.0
    %5115 = vmatprep.subr.mxu0 0.0
    %5116 = vmatpush1.msra.mxu0 0.0
    %5117 = vmatprep.subr.mxu0 0.0
    %5118 = vmatpush1.msra.mxu0 0.0
    %5119 = vmatprep.subr.mxu0 0.0
    %5120 = vmatpush1.msra.mxu0 0.0
    %5121 = vmatprep.subr.mxu0 0.0
    %5122 = vmatpush1.msra.mxu0 0.0
    %5123 = vmatprep.subr.mxu0 0.0
    %5124 = vmatpush1.msra.mxu0 0.0
    %5125 = vmatprep.subr.mxu0 0.0
    %5126 = vmatpush1.msra.mxu0 0.0
    %5127 = vmatprep.subr.mxu0 0.0
    %5128 = vmatpush1.msra.mxu0 0.0
    %5129 = vmatprep.subr.mxu0 0.0
    %5130 = vmatpush1.msra.mxu0 0.0
    %5131 = vmatprep.subr.mxu0 0.0
    %5132 = vmatpush1.msra.mxu0 0.0
    %5133 = vmatprep.subr.mxu0 0.0
    %5134 = vmatpush1.msra.mxu0 0.0
    %5135 = vmatprep.subr.mxu0 0.0
    %5136 = vmatpush1.msra.mxu0 0.0
    %5137 = vmatprep.subr.mxu0 0.0
    %5138 = vmatpush1.msra.mxu0 0.0
    %5139 = vmatprep.subr.mxu0 0.0
    %5140 = vmatpush1.msra.mxu0 0.0
    %5141 = vmatprep.subr.mxu0 0.0
    %5142 = vmatpush1.msra.mxu0 0.0
    %5143 = vmatprep.mubr.f32.mxu0 0.0
    %5144 = vmatmul.mubr.f32.gmra.mrb[0].mxu0 %v5004
    %v5145 = vpop.f32.mrb[0].mxu0
    %v5146 = vadd.f32 0.0, %v5145
    %v5147 = vpop.f32.mrb[0].mxu0
    %5148 = vdwg.mxu0
    %v5149 = vadd.f32 %v5005, %v5075
    %v5150 = vadd.f32 %v5006, %v5077
    %v5151 = vxor.u32 %v5149, 2147483648
    %v5152 = vxor.u32 %v5150, 2147483648
    %v5153 = vmul.f32 %v5151, 1.442695
    %v5154 = vpow.pop %v5153
    %v5155 = vmul.f32 %v5152, 1.442695
    %v5156 = vpow.pop %v5155
    %v5157 = vadd.f32 %v5154, 1.0
    %v5158 = vadd.f32 %v5156, 1.0
    %v5159 = vrcp.pop %v5157
    %v5160 = vmul.f32 1.0, %v5159
    %v5161 = vrcp.pop %v5158
    %v5162 = vmul.f32 1.0, %v5161
    %v5163 = vadd.f32 %v5146, %v3532
    %v5164 = vmul.f32 %v5160, %v5163
    %v5165 = vadd.f32 %v5007, %v5164
    %v5166 = vtanh.pop %v5165
    %v5167 = vsub.f32 1.0, %v5162
    %v5168 = vmul.f32 %v5167, %v5166
    %v5169 = vmul.f32 %v5162, %v5004
    %v5170 = vadd.f32 %v5168, %v5169
    %v5171 = vadd.f32 %v3682, %v3858
    %v5172 = vadd.f32 %v3684, %v3860
    %v5173 = vadd.f32 %v3788, %v3971
    %5174 = vmatprep.subr.mxu0 %v3483
    %5175 = vmatpush1.msra.mxu0 %v3482
    %5176 = vmatprep.subr.mxu0 %v3486
    %5177 = vmatpush1.msra.mxu0 %v3485
    %5178 = vmatprep.subr.mxu0 %v3489
    %5179 = vmatpush1.msra.mxu0 %v3488
    %5180 = vmatprep.subr.mxu0 %v3492
    %5181 = vmatpush1.msra.mxu0 %v3491
    %5182 = vmatprep.subr.mxu0 %v3495
    %5183 = vmatpush1.msra.mxu0 %v3494
    %5184 = vmatprep.subr.mxu0 %v3498
    %5185 = vmatpush1.msra.mxu0 %v3497
    %5186 = vmatprep.subr.mxu0 %v3501
    %5187 = vmatpush1.msra.mxu0 %v3500
    %5188 = vmatprep.subr.mxu0 %v3504
    %5189 = vmatpush1.msra.mxu0 %v3503
    %5190 = vmatprep.subr.mxu0 %v3507
    %5191 = vmatpush1.msra.mxu0 %v3506
    %5192 = vmatprep.subr.mxu0 %v3510
    %5193 = vmatpush1.msra.mxu0 %v3509
    %5194 = vmatprep.subr.mxu0 %v3513
    %5195 = vmatpush1.msra.mxu0 %v3512
    %5196 = vmatprep.subr.mxu0 %v3516
    %5197 = vmatpush1.msra.mxu0 %v3515
    %5198 = vmatprep.subr.mxu0 %v3519
    %5199 = vmatpush1.msra.mxu0 %v3518
    %5200 = vmatprep.subr.mxu0 %v3522
    %5201 = vmatpush1.msra.mxu0 %v3521
    %5202 = vmatprep.subr.mxu0 %v3525
    %5203 = vmatpush1.msra.mxu0 %v3524
    %5204 = vmatprep.subr.mxu0 %v3528
    %5205 = vmatpush1.msra.mxu0 %v3527
    %5206 = vmatprep.subr.mxu0 0.0
    %5207 = vmatpush1.msra.mxu0 0.0
    %5208 = vmatprep.subr.mxu0 0.0
    %5209 = vmatpush1.msra.mxu0 0.0
    %5210 = vmatprep.subr.mxu0 0.0
    %5211 = vmatpush1.msra.mxu0 0.0
    %5212 = vmatprep.subr.mxu0 0.0
    %5213 = vmatpush1.msra.mxu0 0.0
    %5214 = vmatprep.subr.mxu0 0.0
    %5215 = vmatpush1.msra.mxu0 0.0
    %5216 = vmatprep.subr.mxu0 0.0
    %5217 = vmatpush1.msra.mxu0 0.0
    %5218 = vmatprep.subr.mxu0 0.0
    %5219 = vmatpush1.msra.mxu0 0.0
    %5220 = vmatprep.subr.mxu0 0.0
    %5221 = vmatpush1.msra.mxu0 0.0
    %5222 = vmatprep.subr.mxu0 0.0
    %5223 = vmatpush1.msra.mxu0 0.0
    %5224 = vmatprep.subr.mxu0 0.0
    %5225 = vmatpush1.msra.mxu0 0.0
    %5226 = vmatprep.subr.mxu0 0.0
    %5227 = vmatpush1.msra.mxu0 0.0
    %5228 = vmatprep.subr.mxu0 0.0
    %5229 = vmatpush1.msra.mxu0 0.0
    %5230 = vmatprep.subr.mxu0 0.0
    %5231 = vmatpush1.msra.mxu0 0.0
    %5232 = vmatprep.subr.mxu0 0.0
    %5233 = vmatpush1.msra.mxu0 0.0
    %5234 = vmatprep.subr.mxu0 0.0
    %5235 = vmatpush1.msra.mxu0 0.0
    %5236 = vmatprep.subr.mxu0 0.0
    %5237 = vmatpush1.msra.mxu0 0.0
    %5238 = vmatprep.mubr.f32.mxu0 0.0
    %5239 = vmatmul.mubr.f32.gmra.mrb[0].mxu0 %v5170
    %v5240 = vpop.f32.mrb[0].mxu0
    %v5241 = vadd.f32 0.0, %v5240
    %v5242 = vpop.f32.mrb[0].mxu0
    %v5243 = vadd.f32 0.0, %v5242
    %5244 = vdwg.mxu0
    %5245 = vmatprep.subr.mxu0 0.0
    %5246 = vmatpush1.msra.mxu0 %v3484
    %5247 = vmatprep.subr.mxu0 0.0
    %5248 = vmatpush1.msra.mxu0 %v3487
    %5249 = vmatprep.subr.mxu0 0.0
    %5250 = vmatpush1.msra.mxu0 %v3490
    %5251 = vmatprep.subr.mxu0 0.0
    %5252 = vmatpush1.msra.mxu0 %v3493
    %5253 = vmatprep.subr.mxu0 0.0
    %5254 = vmatpush1.msra.mxu0 %v3496
    %5255 = vmatprep.subr.mxu0 0.0
    %5256 = vmatpush1.msra.mxu0 %v3499
    %5257 = vmatprep.subr.mxu0 0.0
    %5258 = vmatpush1.msra.mxu0 %v3502
    %5259 = vmatprep.subr.mxu0 0.0
    %5260 = vmatpush1.msra.mxu0 %v3505
    %5261 = vmatprep.subr.mxu0 0.0
    %5262 = vmatpush1.msra.mxu0 %v3508
    %5263 = vmatprep.subr.mxu0 0.0
    %5264 = vmatpush1.msra.mxu0 %v3511
    %5265 = vmatprep.subr.mxu0 0.0
    %5266 = vmatpush1.msra.mxu0 %v3514
    %5267 = vmatprep.subr.mxu0 0.0
    %5268 = vmatpush1.msra.mxu0 %v3517
    %5269 = vmatprep.subr.mxu0 0.0
    %5270 = vmatpush1.msra.mxu0 %v3520
    %5271 = vmatprep.subr.mxu0 0.0
    %5272 = vmatpush1.msra.mxu0 %v3523
    %5273 = vmatprep.subr.mxu0 0.0
    %5274 = vmatpush1.msra.mxu0 %v3526
    %5275 = vmatprep.subr.mxu0 0.0
    %5276 = vmatpush1.msra.mxu0 %v3529
    %5277 = vmatprep.subr.mxu0 0.0
    %5278 = vmatpush1.msra.mxu0 0.0
    %5279 = vmatprep.subr.mxu0 0.0
    %5280 = vmatpush1.msra.mxu0 0.0
    %5281 = vmatprep.subr.mxu0 0.0
    %5282 = vmatpush1.msra.mxu0 0.0
    %5283 = vmatprep.subr.mxu0 0.0
    %5284 = vmatpush1.msra.mxu0 0.0
    %5285 = vmatprep.subr.mxu0 0.0
    %5286 = vmatpush1.msra.mxu0 0.0
    %5287 = vmatprep.subr.mxu0 0.0
    %5288 = vmatpush1.msra.mxu0 0.0
    %5289 = vmatprep.subr.mxu0 0.0
    %5290 = vmatpush1.msra.mxu0 0.0
    %5291 = vmatprep.subr.mxu0 0.0
    %5292 = vmatpush1.msra.mxu0 0.0
    %5293 = vmatprep.subr.mxu0 0.0
    %5294 = vmatpush1.msra.mxu0 0.0
    %5295 = vmatprep.subr.mxu0 0.0
    %5296 = vmatpush1.msra.mxu0 0.0
    %5297 = vmatprep.subr.mxu0 0.0
    %5298 = vmatpush1.msra.mxu0 0.0
    %5299 = vmatprep.subr.mxu0 0.0
    %5300 = vmatpush1.msra.mxu0 0.0
    %5301 = vmatprep.subr.mxu0 0.0
    %5302 = vmatpush1.msra.mxu0 0.0
    %5303 = vmatprep.subr.mxu0 0.0
    %5304 = vmatpush1.msra.mxu0 0.0
    %5305 = vmatprep.subr.mxu0 0.0
    %5306 = vmatpush1.msra.mxu0 0.0
    %5307 = vmatprep.subr.mxu0 0.0
    %5308 = vmatpush1.msra.mxu0 0.0
    %5309 = vmatprep.mubr.f32.mxu0 0.0
    %5310 = vmatmul.mubr.f32.gmra.mrb[0].mxu0 %v5170
    %v5311 = vpop.f32.mrb[0].mxu0
    %v5312 = vadd.f32 0.0, %v5311
    %v5313 = vpop.f32.mrb[0].mxu0
    %5314 = vdwg.mxu0
    %v5315 = vadd.f32 %v5171, %v5241
    %v5316 = vadd.f32 %v5172, %v5243
    %v5317 = vxor.u32 %v5315, 2147483648
    %v5318 = vxor.u32 %v5316, 2147483648
    %v5319 = vmul.f32 %v5317, 1.442695
    %v5320 = vpow.pop %v5319
    %v5321 = vmul.f32 %v5318, 1.442695
    %v5322 = vpow.pop %v5321
    %v5323 = vadd.f32 %v5320, 1.0
    %v5324 = vadd.f32 %v5322, 1.0
    %v5325 = vrcp.pop %v5323
    %v5326 = vmul.f32 1.0, %v5325
    %v5327 = vrcp.pop %v5324
    %v5328 = vmul.f32 1.0, %v5327
    %v5329 = vadd.f32 %v5312, %v3532
    %v5330 = vmul.f32 %v5326, %v5329
    %v5331 = vadd.f32 %v5173, %v5330
    %v5332 = vtanh.pop %v5331
    %v5333 = vsub.f32 1.0, %v5328
    %v5334 = vmul.f32 %v5333, %v5332
    %v5335 = vmul.f32 %v5328, %v5170
    %v5336 = vadd.f32 %v5334, %v5335
    %vm5337 = vcmp.lt.s32.totalorder %v1121, 64
    %v5338 = vsel %vm5337, %v4174, %v5336
    %v5339 = vsel %vm5337, %v4340, %v5170
    %v5340 = vsel %vm5337, %v4506, %v5004
    %v5341 = vsel %vm5337, %v4672, %v4838
    %v5342 = vsel %vm5337, %v4838, %v4672
    %v5343 = vsel %vm5337, %v5004, %v4506
    %v5344 = vsel %vm5337, %v5170, %v4340
    %v5345 = vsel %vm5337, %v5336, %v4174
    %v5346 = vld [vmem:[#allocation2 + $0x4e0] sm:$0xff]
    %v5347 = vld [vmem:[#allocation2 + $0x4f8] sm:$0xff]
    %v5348 = vld [vmem:[#allocation2 + $0x510] sm:$0xff]
    %v5349 = vld [vmem:[#allocation2 + $0x528] sm:$0xff]
    %v5350 = vld [vmem:[#allocation2 + $0x540] sm:$0xff]
    %v5351 = vld [vmem:[#allocation2 + $0x558] sm:$0xff]
    %v5352 = vld [vmem:[#allocation2 + $0x570] sm:$0xff]
    %v5353 = vld [vmem:[#allocation2 + $0x588] sm:$0xff]
    %v5354 = vld [vmem:[#allocation2 + $0x5a0] sm:$0xff]
    %v5355 = vld [vmem:[#allocation2 + $0x5b8] sm:$0xff]
    %v5356 = vld [vmem:[#allocation2 + $0x5d0] sm:$0xff]
    %v5357 = vld [vmem:[#allocation2 + $0x5e8] sm:$0xff]
    %v5358 = vld [vmem:[#allocation2 + $0x600] sm:$0xff]
    %v5359 = vld [vmem:[#allocation2 + $0x618] sm:$0xff]
    %v5360 = vld [vmem:[#allocation2 + $0x630] sm:$0xff]
    %v5361 = vld [vmem:[#allocation2 + $0x648] sm:$0xff]
    %v5362 = vld [vmem:[#allocation4 + $0xd8] ss:$0 sm:$0xff]
    %5363 = vmatprep.subr.mxu0 0.0
    %5364 = vmatpush1.msra.mxu0 %v5346
    %5365 = vmatprep.subr.mxu0 0.0
    %5366 = vmatpush1.msra.mxu0 %v5347
    %5367 = vmatprep.subr.mxu0 0.0
    %5368 = vmatpush1.msra.mxu0 %v5348
    %5369 = vmatprep.subr.mxu0 0.0
    %5370 = vmatpush1.msra.mxu0 %v5349
    %5371 = vmatprep.subr.mxu0 0.0
    %5372 = vmatpush1.msra.mxu0 %v5350
    %5373 = vmatprep.subr.mxu0 0.0
    %5374 = vmatpush1.msra.mxu0 %v5351
    %5375 = vmatprep.subr.mxu0 0.0
    %5376 = vmatpush1.msra.mxu0 %v5352
    %5377 = vmatprep.subr.mxu0 0.0
    %5378 = vmatpush1.msra.mxu0 %v5353
    %5379 = vmatprep.subr.mxu0 0.0
    %5380 = vmatpush1.msra.mxu0 %v5354
    %5381 = vmatprep.subr.mxu0 0.0
    %5382 = vmatpush1.msra.mxu0 %v5355
    %5383 = vmatprep.subr.mxu0 0.0
    %5384 = vmatpush1.msra.mxu0 %v5356
    %5385 = vmatprep.subr.mxu0 0.0
    %5386 = vmatpush1.msra.mxu0 %v5357
    %5387 = vmatprep.subr.mxu0 0.0
    %5388 = vmatpush1.msra.mxu0 %v5358
    %5389 = vmatprep.subr.mxu0 0.0
    %5390 = vmatpush1.msra.mxu0 %v5359
    %5391 = vmatprep.subr.mxu0 0.0
    %5392 = vmatpush1.msra.mxu0 %v5360
    %5393 = vmatprep.subr.mxu0 0.0
    %5394 = vmatpush1.msra.mxu0 %v5361
    %5395 = vmatprep.subr.mxu0 0.0
    %5396 = vmatpush1.msra.mxu0 0.0
    %5397 = vmatprep.subr.mxu0 0.0
    %5398 = vmatpush1.msra.mxu0 0.0
    %5399 = vmatprep.subr.mxu0 0.0
    %5400 = vmatpush1.msra.mxu0 0.0
    %5401 = vmatprep.subr.mxu0 0.0
    %5402 = vmatpush1.msra.mxu0 0.0
    %5403 = vmatprep.subr.mxu0 0.0
    %5404 = vmatpush1.msra.mxu0 0.0
    %5405 = vmatprep.subr.mxu0 0.0
    %5406 = vmatpush1.msra.mxu0 0.0
    %5407 = vmatprep.subr.mxu0 0.0
    %5408 = vmatpush1.msra.mxu0 0.0
    %5409 = vmatprep.subr.mxu0 0.0
    %5410 = vmatpush1.msra.mxu0 0.0
    %5411 = vmatprep.subr.mxu0 0.0
    %5412 = vmatpush1.msra.mxu0 0.0
    %5413 = vmatprep.subr.mxu0 0.0
    %5414 = vmatpush1.msra.mxu0 0.0
    %5415 = vmatprep.subr.mxu0 0.0
    %5416 = vmatpush1.msra.mxu0 0.0
    %5417 = vmatprep.subr.mxu0 0.0
    %5418 = vmatpush1.msra.mxu0 0.0
    %5419 = vmatprep.subr.mxu0 0.0
    %5420 = vmatpush1.msra.mxu0 0.0
    %5421 = vmatprep.subr.mxu0 0.0
    %5422 = vmatpush1.msra.mxu0 0.0
    %5423 = vmatprep.subr.mxu0 0.0
    %5424 = vmatpush1.msra.mxu0 0.0
    %5425 = vmatprep.subr.mxu0 0.0
    %5426 = vmatpush1.msra.mxu0 0.0
    %5427 = vmatprep.mubr.f32.mxu0 0.0
    %5428 = vmatmul.mubr.f32.gmra.mrb[0].mxu0 %v5338
    %v5429 = vpop.f32.mrb[0].mxu0
    %v5430 = vadd.f32 %v5362, %v5429
    %v5431 = vpop.f32.mrb[0].mxu0
    %5432 = vmatprep.mubr.f32.mxu0 0.0
    %5433 = vmatmul.mubr.f32.gmra.mrb[0].mxu0 %v5339
    %v5434 = vpop.f32.mrb[0].mxu0
    %v5435 = vadd.f32 %v5362, %v5434
    %v5436 = vpop.f32.mrb[0].mxu0
    %5437 = vmatprep.mubr.f32.mxu0 0.0
    %5438 = vmatmul.mubr.f32.gmra.mrb[0].mxu0 %v5340
    %v5439 = vpop.f32.mrb[0].mxu0
    %v5440 = vadd.f32 %v5362, %v5439
    %v5441 = vpop.f32.mrb[0].mxu0
    %5442 = vmatprep.mubr.f32.mxu0 0.0
    %5443 = vmatmul.mubr.f32.gmra.mrb[0].mxu0 %v5341
    %v5444 = vpop.f32.mrb[0].mxu0
    %v5445 = vadd.f32 %v5362, %v5444
    %v5446 = vpop.f32.mrb[0].mxu0
    %5447 = vmatprep.mubr.f32.mxu0 0.0
    %5448 = vmatmul.mubr.f32.gmra.mrb[0].mxu0 %v5342
    %v5449 = vpop.f32.mrb[0].mxu0
    %v5450 = vadd.f32 %v5362, %v5449
    %v5451 = vpop.f32.mrb[0].mxu0
    %5452 = vmatprep.mubr.f32.mxu0 0.0
    %5453 = vmatmul.mubr.f32.gmra.mrb[0].mxu0 %v5343
    %v5454 = vpop.f32.mrb[0].mxu0
    %v5455 = vadd.f32 %v5362, %v5454
    %v5456 = vpop.f32.mrb[0].mxu0
    %5457 = vmatprep.mubr.f32.mxu0 0.0
    %5458 = vmatmul.mubr.f32.gmra.mrb[0].mxu0 %v5344
    %v5459 = vpop.f32.mrb[0].mxu0
    %v5460 = vadd.f32 %v5362, %v5459
    %v5461 = vpop.f32.mrb[0].mxu0
    %5462 = vmatprep.mubr.f32.mxu0 0.0
    %5463 = vmatmul.mubr.f32.gmra.mrb[0].mxu0 %v5345
    %v5464 = vpop.f32.mrb[0].mxu0
    %v5465 = vadd.f32 %v5362, %v5464
    %v5466 = vpop.f32.mrb[0].mxu0
    %5467 = vdwg.mxu0
    %vm5468 = vcmask 39936
    %5469 = vst.msk [vmem:[%s3] sm:$0xff] %vm5468, %v5430
    %5470 = vst.msk [vmem:[%s3 + $0x8] sm:$0xff] %vm5468, %v5435
    %5471 = vst.msk [vmem:[%s3 + $0x10] sm:$0xff] %vm5468, %v5440
    %5472 = vst.msk [vmem:[%s3 + $0x18] sm:$0xff] %vm5468, %v5445
    %5473 = vst.msk [vmem:[%s3 + $0x20] sm:$0xff] %vm5468, %v5450
    %5474 = vst.msk [vmem:[%s3 + $0x28] sm:$0xff] %vm5468, %v5455
    %5475 = vst.msk [vmem:[%s3 + $0x30] sm:$0xff] %vm5468, %v5460
    %5476 = vst.msk [vmem:[%s3 + $0x38] sm:$0xff] %vm5468, %v5465
    // Predicated region
    $region22: #{bigru_forward.1} parent=1 // pred_check
      _
    $region23: #{bigru_forward.1} parent=1 // pred_check_branch
      %5478 = sbr.rel (0) target = $region25
    $region24: #{bigru_forward.1} parent=1 // pred_region
      _
    $region25: #{bigru_forward.1} parent=1 // pred_fallthru
      _
    // Predicated region
    $region26: #{bigru_forward.1} parent=1 // pred_check
      _
    $region27: #{bigru_forward.1} parent=1 // pred_check_branch
      %5480 = sbr.rel (0) target = $region29
    $region28: #{bigru_forward.1} parent=1 // pred_region
      _
    $region29: #{bigru_forward.1} parent=1 // pred_fallthru
      _
    %5481 = vsyncpa [#allocation3], 1
    %5482 = vsyncpa [#allocation5], 1

</llo_original>
